<compile_context>
chip_gen: v6e
topology: v6e:2x2x1
jax: 0.10.0
libtpu: 0.0.40
codegen_flags: <defaults>
</compile_context>

<pallas_src>
import functools

import jax
import jax.numpy as jnp
import numpy as np
from jax.experimental import pallas as pl
from jax.experimental.pallas import tpu as pltpu


def spawnnet_kernel(
    noise_ref,
    w1t_ref, b1_ref,
    w2t_ref, b2_ref,
    w3t3_ref, b3_ref,
    g1_ref, be1_ref,
    wc1t_ref, bc1_ref,
    g2_ref, be2_ref,
    wc2t_ref, bc2_ref,
    out_ref,
    x_sc,
    *, batch, fflat, eps1, eps2, neg_slope,
):
    leaky = lambda v: jnp.where(v > 0, v, neg_slope * v)

    # --- inop: Linear(zsize->d) + LeakyReLU, Linear(d->d) + LeakyReLU --------
    h = leaky(jnp.dot(noise_ref[...], w1t_ref[...],
                      preferred_element_type=jnp.float32) + b1_ref[...])
    h = leaky(jnp.dot(h.astype(jnp.bfloat16), w2t_ref[...],
                      preferred_element_type=jnp.float32) + b2_ref[...])

    # --- 3rd Linear, emitted directly as channels-last tokens ---------------
    # w3t3[l] is (d, 128): the slice of the permuted W3^T producing position l.
    # Row l*batch + b of x_sc corresponds to torch token (b, :, l).
    h_bf = h.astype(jnp.bfloat16)
    for l in range(fflat):
        xl = jnp.dot(h_bf, w3t3_ref[l],
                     preferred_element_type=jnp.float32) + b3_ref[l]
        x_sc[pl.ds(l * batch, batch), :] = leaky(xl)
    x = x_sc[...]                                  # (fflat*batch, 128), f32

    # --- BatchNorm1d(128), training mode (biased var over batch*length) -----
    mu = jnp.mean(x, axis=0, keepdims=True)
    var = jnp.mean(x * x, axis=0, keepdims=True) - mu * mu
    x = (x - mu) * jax.lax.rsqrt(var + eps1) * g1_ref[...] + be1_ref[...]

    # --- Conv1d(128 -> 512, k=1) == per-token matmul, LeakyReLU --------------
    y = leaky(jnp.dot(x.astype(jnp.bfloat16), wc1t_ref[...],
                      preferred_element_type=jnp.float32) + bc1_ref[...])

    # --- BatchNorm1d(512, eps=0.8), training mode ----------------------------
    mu2 = jnp.mean(y, axis=0, keepdims=True)
    var2 = jnp.mean(y * y, axis=0, keepdims=True) - mu2 * mu2
    y = (y - mu2) * jax.lax.rsqrt(var2 + eps2) * g2_ref[...] + be2_ref[...]

    # --- Conv1d(512 -> hsize, k=1) + Sigmoid (lane-padded output) ------------
    z = jnp.dot(y.astype(jnp.bfloat16), wc2t_ref[...],
                preferred_element_type=jnp.float32) + bc2_ref[...]
    out_ref[...] = jax.nn.sigmoid(z)


def prepare_params(params, *, fflat=8, hsize=32):
    """One-time conversion of PyTorch-layout params to kernel layout.

    Folds all transposes, the fflat output-feature permutation, the hsize->128
    lane padding, and the bf16 down-cast of the matmul weights into init time.
    """
    d = params["w2"].shape[0]
    hp = ((hsize + 127) // 128) * 128           # lane-dense padded out-channels

    # w3 rows are output features f = c*fflat + l (torch view(-1,128,fflat)).
    # Build w3t3[l, k, c] = w3[c*fflat + l, k] so each slice is a (d,128) matmul
    # producing channels-last tokens for position l directly.
    w3t3 = params["w3"].reshape(128, fflat, d).transpose(1, 2, 0)   # (fflat,d,128)
    b3_3 = params["b3"].reshape(128, fflat).T[:, None, :]           # (fflat,1,128)

    wc2t = jnp.pad(params["wc2"].T, ((0, 0), (0, hp - hsize)))      # (512, hp)
    bc2 = jnp.pad(params["bc2"], (0, hp - hsize))[None, :]          # (1, hp)

    return {
        "w1t": params["w1"].T.astype(jnp.float32),
        "b1": params["b1"][None, :].astype(jnp.float32),
        "w2t": params["w2"].T.astype(jnp.bfloat16),
        "b2": params["b2"][None, :].astype(jnp.float32),
        "w3t3": w3t3.astype(jnp.bfloat16),
        "b3": b3_3.astype(jnp.float32),
        "g1": params["g1"][None, :].astype(jnp.float32),
        "be1": params["be1"][None, :].astype(jnp.float32),
        "wc1t": params["wc1"].T.astype(jnp.bfloat16),
        "bc1": params["bc1"][None, :].astype(jnp.float32),
        "g2": params["g2"][None, :].astype(jnp.float32),
        "be2": params["be2"][None, :].astype(jnp.float32),
        "wc2t": wc2t.astype(jnp.bfloat16),
        "bc2": bc2.astype(jnp.float32),
    }


def spawnnet_forward(noise, prep, *, fflat=8, hsize=32):
    """Forward pass using pre-laid-out params (see prepare_params)."""
    B = noise.shape[0]
    hp = prep["wc2t"].shape[1]

    args = (
        noise,
        prep["w1t"], prep["b1"],
        prep["w2t"], prep["b2"],
        prep["w3t3"], prep["b3"],
        prep["g1"], prep["be1"],
        prep["wc1t"], prep["bc1"],
        prep["g2"], prep["be2"],
        prep["wc2t"], prep["bc2"],
    )

    kernel = functools.partial(
        spawnnet_kernel,
        batch=B, fflat=fflat,
        eps1=1e-5, eps2=0.8,          # second BN: positional 0.8 is eps
        neg_slope=0.2,
    )

    out_tokens = pl.pallas_call(
        kernel,
        out_shape=jax.ShapeDtypeStruct((fflat * B, hp), jnp.float32),
        in_specs=[pl.BlockSpec(memory_space=pltpu.MemorySpace.VMEM)] * len(args),
        out_specs=pl.BlockSpec(memory_space=pltpu.MemorySpace.VMEM),
        scratch_shapes=[pltpu.VMEM((fflat * B, 128), jnp.float32)],
        compiler_params=pltpu.CompilerParams(vmem_limit_bytes=32 << 20),
    )(*args)

    # rows are ordered (l, b): row l*B + b == torch token (b, :, l)
    out = out_tokens[:, :hsize].reshape(fflat, B, hsize)
    return out.transpose(1, 2, 0)                 # (B, hsize, fflat)


def spawnnet_reference(noise, params, *, fflat=8):
    """Pure-JAX f32 reference mirroring the PyTorch module (training-mode BN)."""
    leaky = lambda v: jnp.where(v > 0, v, 0.2 * v)
    h = leaky(noise @ params["w1"].T + params["b1"])
    h = leaky(h @ params["w2"].T + params["b2"])
    h = leaky(h @ params["w3"].T + params["b3"])
    x = h.reshape(-1, 128, fflat)                                   # NCL
    mu = x.mean(axis=(0, 2), keepdims=True)
    var = ((x - mu) ** 2).mean(axis=(0, 2), keepdims=True)
    x = (x - mu) / jnp.sqrt(var + 1e-5)
    x = x * params["g1"][None, :, None] + params["be1"][None, :, None]
    y = jnp.einsum("oc,bcl->bol", params["wc1"], x) + params["bc1"][None, :, None]
    y = leaky(y)
    mu2 = y.mean(axis=(0, 2), keepdims=True)
    var2 = ((y - mu2) ** 2).mean(axis=(0, 2), keepdims=True)
    y = (y - mu2) / jnp.sqrt(var2 + 0.8)
    y = y * params["g2"][None, :, None] + params["be2"][None, :, None]
    z = jnp.einsum("oc,bcl->bol", params["wc2"], y) + params["bc2"][None, :, None]
    return jax.nn.sigmoid(z)


def init_params(key, *, zsize=20, fflat=8, hsize=32):
    d = fflat * 128
    ks = jax.random.split(key, 12)
    s = 0.05
    return {
        "w1": s * jax.random.normal(ks[0], (d, zsize), jnp.float32),
        "b1": s * jax.random.normal(ks[1], (d,), jnp.float32),
        "w2": s * jax.random.normal(ks[2], (d, d), jnp.float32),
        "b2": s * jax.random.normal(ks[3], (d,), jnp.float32),
        "w3": s * jax.random.normal(ks[4], (d, d), jnp.float32),
        "b3": s * jax.random.normal(ks[5], (d,), jnp.float32),
        # BatchNorm1d(128)
        "g1": 1.0 + 0.1 * jax.random.normal(ks[6], (128,), jnp.float32),
        "be1": 0.1 * jax.random.normal(ks[7], (128,), jnp.float32),
        # Conv1d(128, 512, 1) stored as (out, in)
        "wc1": s * jax.random.normal(ks[8], (512, 128), jnp.float32),
        "bc1": s * jax.random.normal(ks[9], (512,), jnp.float32),
        # BatchNorm1d(512, 0.8)
        "g2": 1.0 + 0.1 * jax.random.normal(ks[10], (512,), jnp.float32),
        "be2": 0.1 * jax.random.normal(ks[11], (512,), jnp.float32),
        # Conv1d(512, hsize, 1)
        "wc2": s * jax.random.normal(ks[0], (hsize, 512), jnp.float32),
        "bc2": s * jax.random.normal(ks[1], (hsize,), jnp.float32),
    }


if __name__ == "__main__":
    B, ZSIZE, FFLAT, HSIZE = 2, 20, 8, 32
    key = jax.random.PRNGKey(0)
    knoise, kparams = jax.random.split(key)

    noise = jax.random.normal(knoise, (B, ZSIZE), jnp.float32)
    params = init_params(kparams, zsize=ZSIZE, fflat=FFLAT, hsize=HSIZE)

    # One-time (init-time) weight layout/precision preparation.
    prep = prepare_params(params, fflat=FFLAT, hsize=HSIZE)
    prep = jax.tree_util.tree_map(jnp.asarray, prep)

    out = spawnnet_forward(noise, prep, fflat=FFLAT, hsize=HSIZE)
    out = jax.block_until_ready(out)

    ref = jax.block_until_ready(spawnnet_reference(noise, params, fflat=FFLAT))

    assert out.shape == (B, HSIZE, FFLAT), out.shape
    # Tolerance loosened vs. a pure-f32 version: all matmul weights (w2, w3,
    # wc1, wc2) are stored / MXU-fed in bf16; accumulation, BatchNorm and
    # activation math remain f32, and the sigmoid further damps the error.
    np.testing.assert_allclose(np.asarray(out), np.asarray(ref),
                               rtol=1e-2, atol=1e-2)
    print("KERNEL_OK")
</pallas_src>

<mosaic_0001>
module attributes {stable_mosaic.version = 11 : i64} {
  func.func @spawnnet_kernel(%arg0: memref<2x20xf32, #tpu.memory_space<vmem>>, %arg1: memref<20x1024xf32, #tpu.memory_space<vmem>>, %arg2: memref<1x1024xf32, #tpu.memory_space<vmem>>, %arg3: memref<1024x1024xbf16, #tpu.memory_space<vmem>>, %arg4: memref<1x1024xf32, #tpu.memory_space<vmem>>, %arg5: memref<8x1024x128xbf16, #tpu.memory_space<vmem>>, %arg6: memref<8x1x128xf32, #tpu.memory_space<vmem>>, %arg7: memref<1x128xf32, #tpu.memory_space<vmem>>, %arg8: memref<1x128xf32, #tpu.memory_space<vmem>>, %arg9: memref<128x512xbf16, #tpu.memory_space<vmem>>, %arg10: memref<1x512xf32, #tpu.memory_space<vmem>>, %arg11: memref<1x512xf32, #tpu.memory_space<vmem>>, %arg12: memref<1x512xf32, #tpu.memory_space<vmem>>, %arg13: memref<512x128xbf16, #tpu.memory_space<vmem>>, %arg14: memref<1x128xf32, #tpu.memory_space<vmem>>, %arg15: memref<16x128xf32, #tpu.memory_space<vmem>>, %arg16: memref<16x128xf32, #tpu.memory_space<vmem>>) attributes {dimension_semantics = [], scalar_prefetch = 0 : i64, scratch_operands = 1 : i64, tpu.core_type = #tpu.core_type<tc>} {
    %c0 = arith.constant 0 : index
    %c0_0 = arith.constant 0 : index
    %0 = vector.load %arg0[%c0, %c0_0] : memref<2x20xf32, #tpu.memory_space<vmem>>, vector<2x20xf32>
    %c0_1 = arith.constant 0 : index
    %c0_2 = arith.constant 0 : index
    %1 = vector.load %arg1[%c0_1, %c0_2] : memref<20x1024xf32, #tpu.memory_space<vmem>>, vector<20x1024xf32>
    %cst = arith.constant dense<0.000000e+00> : vector<2x1024xf32>
    %2 = tpu.matmul %0, %1, %cst {dimension_numbers = #tpu.dot_dimension_numbers<[1], [0], [0], [1], [0, 0, 1, 1], [], []>} : vector<2x20xf32>, vector<20x1024xf32>, vector<2x1024xf32> -> vector<2x1024xf32>
    %c0_3 = arith.constant 0 : index
    %c0_4 = arith.constant 0 : index
    %3 = vector.load %arg2[%c0_3, %c0_4] : memref<1x1024xf32, #tpu.memory_space<vmem>>, vector<1x1024xf32>
    %4 = vector.broadcast %3 : vector<1x1024xf32> to vector<2x1024xf32>
    %5 = arith.addf %2, %4 : vector<2x1024xf32>
    %cst_5 = arith.constant 0.000000e+00 : f32
    %6 = vector.broadcast %cst_5 : f32 to vector<2x1024xf32>
    %7 = arith.cmpf ogt, %5, %6 : vector<2x1024xf32>
    %cst_6 = arith.constant 2.000000e-01 : f32
    %8 = vector.broadcast %cst_6 : f32 to vector<2x1024xf32>
    %9 = arith.mulf %8, %5 : vector<2x1024xf32>
    %10 = arith.select %7, %5, %9 : vector<2x1024xi1>, vector<2x1024xf32>
    %11 = arith.truncf %10 : vector<2x1024xf32> to vector<2x1024xbf16>
    %c0_7 = arith.constant 0 : index
    %c0_8 = arith.constant 0 : index
    %12 = vector.load %arg3[%c0_7, %c0_8] : memref<1024x1024xbf16, #tpu.memory_space<vmem>>, vector<1024x1024xbf16>
    %cst_9 = arith.constant dense<0.000000e+00> : vector<2x1024xf32>
    %13 = tpu.matmul %11, %12, %cst_9 {dimension_numbers = #tpu.dot_dimension_numbers<[1], [0], [0], [1], [0, 0, 1, 1], [], []>} : vector<2x1024xbf16>, vector<1024x1024xbf16>, vector<2x1024xf32> -> vector<2x1024xf32>
    %c0_10 = arith.constant 0 : index
    %c0_11 = arith.constant 0 : index
    %14 = vector.load %arg4[%c0_10, %c0_11] : memref<1x1024xf32, #tpu.memory_space<vmem>>, vector<1x1024xf32>
    %15 = vector.broadcast %14 : vector<1x1024xf32> to vector<2x1024xf32>
    %16 = arith.addf %13, %15 : vector<2x1024xf32>
    %cst_12 = arith.constant 0.000000e+00 : f32
    %17 = vector.broadcast %cst_12 : f32 to vector<2x1024xf32>
    %18 = arith.cmpf ogt, %16, %17 : vector<2x1024xf32>
    %cst_13 = arith.constant 2.000000e-01 : f32
    %19 = vector.broadcast %cst_13 : f32 to vector<2x1024xf32>
    %20 = arith.mulf %19, %16 : vector<2x1024xf32>
    %21 = arith.select %18, %16, %20 : vector<2x1024xi1>, vector<2x1024xf32>
    %22 = arith.truncf %21 : vector<2x1024xf32> to vector<2x1024xbf16>
    %c0_14 = arith.constant 0 : index
    %c0_15 = arith.constant 0 : index
    %c0_16 = arith.constant 0 : index
    %23 = vector.load %arg5[%c0_14, %c0_15, %c0_16] : memref<8x1024x128xbf16, #tpu.memory_space<vmem>>, vector<1x1024x128xbf16>
    %24 = vector.shape_cast %23 : vector<1x1024x128xbf16> to vector<1024x128xbf16>
    %cst_17 = arith.constant dense<0.000000e+00> : vector<2x128xf32>
    %25 = tpu.matmul %22, %24, %cst_17 {dimension_numbers = #tpu.dot_dimension_numbers<[1], [0], [0], [1], [0, 0, 1, 1], [], []>} : vector<2x1024xbf16>, vector<1024x128xbf16>, vector<2x128xf32> -> vector<2x128xf32>
    %c0_18 = arith.constant 0 : index
    %c0_19 = arith.constant 0 : index
    %c0_20 = arith.constant 0 : index
    %26 = vector.load %arg6[%c0_18, %c0_19, %c0_20] : memref<8x1x128xf32, #tpu.memory_space<vmem>>, vector<1x1x128xf32>
    %27 = vector.shape_cast %26 : vector<1x1x128xf32> to vector<1x128xf32>
    %28 = vector.broadcast %27 : vector<1x128xf32> to vector<2x128xf32>
    %29 = arith.addf %25, %28 : vector<2x128xf32>
    %cst_21 = arith.constant 0.000000e+00 : f32
    %30 = vector.broadcast %cst_21 : f32 to vector<2x128xf32>
    %31 = arith.cmpf ogt, %29, %30 : vector<2x128xf32>
    %cst_22 = arith.constant 2.000000e-01 : f32
    %32 = vector.broadcast %cst_22 : f32 to vector<2x128xf32>
    %33 = arith.mulf %32, %29 : vector<2x128xf32>
    %34 = arith.select %31, %29, %33 : vector<2x128xi1>, vector<2x128xf32>
    %c0_23 = arith.constant 0 : index
    %c0_24 = arith.constant 0 : index
    %35 = vector.load %arg16[%c0_23, %c0_24] : memref<16x128xf32, #tpu.memory_space<vmem>>, vector<2x128xf32>
    tpu.vector_store %arg16[%c0_23, %c0_24], %34 {strides = array<i32>} : memref<16x128xf32, #tpu.memory_space<vmem>>, vector<2x128xf32>,
    %c1 = arith.constant 1 : index
    %c0_25 = arith.constant 0 : index
    %c0_26 = arith.constant 0 : index
    %36 = vector.load %arg5[%c1, %c0_25, %c0_26] : memref<8x1024x128xbf16, #tpu.memory_space<vmem>>, vector<1x1024x128xbf16>
    %37 = vector.shape_cast %36 : vector<1x1024x128xbf16> to vector<1024x128xbf16>
    %cst_27 = arith.constant dense<0.000000e+00> : vector<2x128xf32>
    %38 = tpu.matmul %22, %37, %cst_27 {dimension_numbers = #tpu.dot_dimension_numbers<[1], [0], [0], [1], [0, 0, 1, 1], [], []>} : vector<2x1024xbf16>, vector<1024x128xbf16>, vector<2x128xf32> -> vector<2x128xf32>
    %c1_28 = arith.constant 1 : index
    %c0_29 = arith.constant 0 : index
    %c0_30 = arith.constant 0 : index
    %39 = vector.load %arg6[%c1_28, %c0_29, %c0_30] : memref<8x1x128xf32, #tpu.memory_space<vmem>>, vector<1x1x128xf32>
    %40 = vector.shape_cast %39 : vector<1x1x128xf32> to vector<1x128xf32>
    %41 = vector.broadcast %40 : vector<1x128xf32> to vector<2x128xf32>
    %42 = arith.addf %38, %41 : vector<2x128xf32>
    %cst_31 = arith.constant 0.000000e+00 : f32
    %43 = vector.broadcast %cst_31 : f32 to vector<2x128xf32>
    %44 = arith.cmpf ogt, %42, %43 : vector<2x128xf32>
    %cst_32 = arith.constant 2.000000e-01 : f32
    %45 = vector.broadcast %cst_32 : f32 to vector<2x128xf32>
    %46 = arith.mulf %45, %42 : vector<2x128xf32>
    %47 = arith.select %44, %42, %46 : vector<2x128xi1>, vector<2x128xf32>
    %c2 = arith.constant 2 : index
    %c0_33 = arith.constant 0 : index
    %48 = vector.load %arg16[%c2, %c0_33] : memref<16x128xf32, #tpu.memory_space<vmem>>, vector<2x128xf32>
    tpu.vector_store %arg16[%c2, %c0_33], %47 {strides = array<i32>} : memref<16x128xf32, #tpu.memory_space<vmem>>, vector<2x128xf32>,
    %c2_34 = arith.constant 2 : index
    %c0_35 = arith.constant 0 : index
    %c0_36 = arith.constant 0 : index
    %49 = vector.load %arg5[%c2_34, %c0_35, %c0_36] : memref<8x1024x128xbf16, #tpu.memory_space<vmem>>, vector<1x1024x128xbf16>
    %50 = vector.shape_cast %49 : vector<1x1024x128xbf16> to vector<1024x128xbf16>
    %cst_37 = arith.constant dense<0.000000e+00> : vector<2x128xf32>
    %51 = tpu.matmul %22, %50, %cst_37 {dimension_numbers = #tpu.dot_dimension_numbers<[1], [0], [0], [1], [0, 0, 1, 1], [], []>} : vector<2x1024xbf16>, vector<1024x128xbf16>, vector<2x128xf32> -> vector<2x128xf32>
    %c2_38 = arith.constant 2 : index
    %c0_39 = arith.constant 0 : index
    %c0_40 = arith.constant 0 : index
    %52 = vector.load %arg6[%c2_38, %c0_39, %c0_40] : memref<8x1x128xf32, #tpu.memory_space<vmem>>, vector<1x1x128xf32>
    %53 = vector.shape_cast %52 : vector<1x1x128xf32> to vector<1x128xf32>
    %54 = vector.broadcast %53 : vector<1x128xf32> to vector<2x128xf32>
    %55 = arith.addf %51, %54 : vector<2x128xf32>
    %cst_41 = arith.constant 0.000000e+00 : f32
    %56 = vector.broadcast %cst_41 : f32 to vector<2x128xf32>
    %57 = arith.cmpf ogt, %55, %56 : vector<2x128xf32>
    %cst_42 = arith.constant 2.000000e-01 : f32
    %58 = vector.broadcast %cst_42 : f32 to vector<2x128xf32>
    %59 = arith.mulf %58, %55 : vector<2x128xf32>
    %60 = arith.select %57, %55, %59 : vector<2x128xi1>, vector<2x128xf32>
    %c4 = arith.constant 4 : index
    %c0_43 = arith.constant 0 : index
    %61 = vector.load %arg16[%c4, %c0_43] : memref<16x128xf32, #tpu.memory_space<vmem>>, vector<2x128xf32>
    tpu.vector_store %arg16[%c4, %c0_43], %60 {strides = array<i32>} : memref<16x128xf32, #tpu.memory_space<vmem>>, vector<2x128xf32>,
    %c3 = arith.constant 3 : index
    %c0_44 = arith.constant 0 : index
    %c0_45 = arith.constant 0 : index
    %62 = vector.load %arg5[%c3, %c0_44, %c0_45] : memref<8x1024x128xbf16, #tpu.memory_space<vmem>>, vector<1x1024x128xbf16>
    %63 = vector.shape_cast %62 : vector<1x1024x128xbf16> to vector<1024x128xbf16>
    %cst_46 = arith.constant dense<0.000000e+00> : vector<2x128xf32>
    %64 = tpu.matmul %22, %63, %cst_46 {dimension_numbers = #tpu.dot_dimension_numbers<[1], [0], [0], [1], [0, 0, 1, 1], [], []>} : vector<2x1024xbf16>, vector<1024x128xbf16>, vector<2x128xf32> -> vector<2x128xf32>
    %c3_47 = arith.constant 3 : index
    %c0_48 = arith.constant 0 : index
    %c0_49 = arith.constant 0 : index
    %65 = vector.load %arg6[%c3_47, %c0_48, %c0_49] : memref<8x1x128xf32, #tpu.memory_space<vmem>>, vector<1x1x128xf32>
    %66 = vector.shape_cast %65 : vector<1x1x128xf32> to vector<1x128xf32>
    %67 = vector.broadcast %66 : vector<1x128xf32> to vector<2x128xf32>
    %68 = arith.addf %64, %67 : vector<2x128xf32>
    %cst_50 = arith.constant 0.000000e+00 : f32
    %69 = vector.broadcast %cst_50 : f32 to vector<2x128xf32>
    %70 = arith.cmpf ogt, %68, %69 : vector<2x128xf32>
    %cst_51 = arith.constant 2.000000e-01 : f32
    %71 = vector.broadcast %cst_51 : f32 to vector<2x128xf32>
    %72 = arith.mulf %71, %68 : vector<2x128xf32>
    %73 = arith.select %70, %68, %72 : vector<2x128xi1>, vector<2x128xf32>
    %c6 = arith.constant 6 : index
    %c0_52 = arith.constant 0 : index
    %74 = vector.load %arg16[%c6, %c0_52] : memref<16x128xf32, #tpu.memory_space<vmem>>, vector<2x128xf32>
    tpu.vector_store %arg16[%c6, %c0_52], %73 {strides = array<i32>} : memref<16x128xf32, #tpu.memory_space<vmem>>, vector<2x128xf32>,
    %c4_53 = arith.constant 4 : index
    %c0_54 = arith.constant 0 : index
    %c0_55 = arith.constant 0 : index
    %75 = vector.load %arg5[%c4_53, %c0_54, %c0_55] : memref<8x1024x128xbf16, #tpu.memory_space<vmem>>, vector<1x1024x128xbf16>
    %76 = vector.shape_cast %75 : vector<1x1024x128xbf16> to vector<1024x128xbf16>
    %cst_56 = arith.constant dense<0.000000e+00> : vector<2x128xf32>
    %77 = tpu.matmul %22, %76, %cst_56 {dimension_numbers = #tpu.dot_dimension_numbers<[1], [0], [0], [1], [0, 0, 1, 1], [], []>} : vector<2x1024xbf16>, vector<1024x128xbf16>, vector<2x128xf32> -> vector<2x128xf32>
    %c4_57 = arith.constant 4 : index
    %c0_58 = arith.constant 0 : index
    %c0_59 = arith.constant 0 : index
    %78 = vector.load %arg6[%c4_57, %c0_58, %c0_59] : memref<8x1x128xf32, #tpu.memory_space<vmem>>, vector<1x1x128xf32>
    %79 = vector.shape_cast %78 : vector<1x1x128xf32> to vector<1x128xf32>
    %80 = vector.broadcast %79 : vector<1x128xf32> to vector<2x128xf32>
    %81 = arith.addf %77, %80 : vector<2x128xf32>
    %cst_60 = arith.constant 0.000000e+00 : f32
    %82 = vector.broadcast %cst_60 : f32 to vector<2x128xf32>
    %83 = arith.cmpf ogt, %81, %82 : vector<2x128xf32>
    %cst_61 = arith.constant 2.000000e-01 : f32
    %84 = vector.broadcast %cst_61 : f32 to vector<2x128xf32>
    %85 = arith.mulf %84, %81 : vector<2x128xf32>
    %86 = arith.select %83, %81, %85 : vector<2x128xi1>, vector<2x128xf32>
    %c8 = arith.constant 8 : index
    %c0_62 = arith.constant 0 : index
    %87 = vector.load %arg16[%c8, %c0_62] : memref<16x128xf32, #tpu.memory_space<vmem>>, vector<2x128xf32>
    tpu.vector_store %arg16[%c8, %c0_62], %86 {strides = array<i32>} : memref<16x128xf32, #tpu.memory_space<vmem>>, vector<2x128xf32>,
    %c5 = arith.constant 5 : index
    %c0_63 = arith.constant 0 : index
    %c0_64 = arith.constant 0 : index
    %88 = vector.load %arg5[%c5, %c0_63, %c0_64] : memref<8x1024x128xbf16, #tpu.memory_space<vmem>>, vector<1x1024x128xbf16>
    %89 = vector.shape_cast %88 : vector<1x1024x128xbf16> to vector<1024x128xbf16>
    %cst_65 = arith.constant dense<0.000000e+00> : vector<2x128xf32>
    %90 = tpu.matmul %22, %89, %cst_65 {dimension_numbers = #tpu.dot_dimension_numbers<[1], [0], [0], [1], [0, 0, 1, 1], [], []>} : vector<2x1024xbf16>, vector<1024x128xbf16>, vector<2x128xf32> -> vector<2x128xf32>
    %c5_66 = arith.constant 5 : index
    %c0_67 = arith.constant 0 : index
    %c0_68 = arith.constant 0 : index
    %91 = vector.load %arg6[%c5_66, %c0_67, %c0_68] : memref<8x1x128xf32, #tpu.memory_space<vmem>>, vector<1x1x128xf32>
    %92 = vector.shape_cast %91 : vector<1x1x128xf32> to vector<1x128xf32>
    %93 = vector.broadcast %92 : vector<1x128xf32> to vector<2x128xf32>
    %94 = arith.addf %90, %93 : vector<2x128xf32>
    %cst_69 = arith.constant 0.000000e+00 : f32
    %95 = vector.broadcast %cst_69 : f32 to vector<2x128xf32>
    %96 = arith.cmpf ogt, %94, %95 : vector<2x128xf32>
    %cst_70 = arith.constant 2.000000e-01 : f32
    %97 = vector.broadcast %cst_70 : f32 to vector<2x128xf32>
    %98 = arith.mulf %97, %94 : vector<2x128xf32>
    %99 = arith.select %96, %94, %98 : vector<2x128xi1>, vector<2x128xf32>
    %c10 = arith.constant 10 : index
    %c0_71 = arith.constant 0 : index
    %100 = vector.load %arg16[%c10, %c0_71] : memref<16x128xf32, #tpu.memory_space<vmem>>, vector<2x128xf32>
    tpu.vector_store %arg16[%c10, %c0_71], %99 {strides = array<i32>} : memref<16x128xf32, #tpu.memory_space<vmem>>, vector<2x128xf32>,
    %c6_72 = arith.constant 6 : index
    %c0_73 = arith.constant 0 : index
    %c0_74 = arith.constant 0 : index
    %101 = vector.load %arg5[%c6_72, %c0_73, %c0_74] : memref<8x1024x128xbf16, #tpu.memory_space<vmem>>, vector<1x1024x128xbf16>
    %102 = vector.shape_cast %101 : vector<1x1024x128xbf16> to vector<1024x128xbf16>
    %cst_75 = arith.constant dense<0.000000e+00> : vector<2x128xf32>
    %103 = tpu.matmul %22, %102, %cst_75 {dimension_numbers = #tpu.dot_dimension_numbers<[1], [0], [0], [1], [0, 0, 1, 1], [], []>} : vector<2x1024xbf16>, vector<1024x128xbf16>, vector<2x128xf32> -> vector<2x128xf32>
    %c6_76 = arith.constant 6 : index
    %c0_77 = arith.constant 0 : index
    %c0_78 = arith.constant 0 : index
    %104 = vector.load %arg6[%c6_76, %c0_77, %c0_78] : memref<8x1x128xf32, #tpu.memory_space<vmem>>, vector<1x1x128xf32>
    %105 = vector.shape_cast %104 : vector<1x1x128xf32> to vector<1x128xf32>
    %106 = vector.broadcast %105 : vector<1x128xf32> to vector<2x128xf32>
    %107 = arith.addf %103, %106 : vector<2x128xf32>
    %cst_79 = arith.constant 0.000000e+00 : f32
    %108 = vector.broadcast %cst_79 : f32 to vector<2x128xf32>
    %109 = arith.cmpf ogt, %107, %108 : vector<2x128xf32>
    %cst_80 = arith.constant 2.000000e-01 : f32
    %110 = vector.broadcast %cst_80 : f32 to vector<2x128xf32>
    %111 = arith.mulf %110, %107 : vector<2x128xf32>
    %112 = arith.select %109, %107, %111 : vector<2x128xi1>, vector<2x128xf32>
    %c12 = arith.constant 12 : index
    %c0_81 = arith.constant 0 : index
    %113 = vector.load %arg16[%c12, %c0_81] : memref<16x128xf32, #tpu.memory_space<vmem>>, vector<2x128xf32>
    tpu.vector_store %arg16[%c12, %c0_81], %112 {strides = array<i32>} : memref<16x128xf32, #tpu.memory_space<vmem>>, vector<2x128xf32>,
    %c7 = arith.constant 7 : index
    %c0_82 = arith.constant 0 : index
    %c0_83 = arith.constant 0 : index
    %114 = vector.load %arg5[%c7, %c0_82, %c0_83] : memref<8x1024x128xbf16, #tpu.memory_space<vmem>>, vector<1x1024x128xbf16>
    %115 = vector.shape_cast %114 : vector<1x1024x128xbf16> to vector<1024x128xbf16>
    %cst_84 = arith.constant dense<0.000000e+00> : vector<2x128xf32>
    %116 = tpu.matmul %22, %115, %cst_84 {dimension_numbers = #tpu.dot_dimension_numbers<[1], [0], [0], [1], [0, 0, 1, 1], [], []>} : vector<2x1024xbf16>, vector<1024x128xbf16>, vector<2x128xf32> -> vector<2x128xf32>
    %c7_85 = arith.constant 7 : index
    %c0_86 = arith.constant 0 : index
    %c0_87 = arith.constant 0 : index
    %117 = vector.load %arg6[%c7_85, %c0_86, %c0_87] : memref<8x1x128xf32, #tpu.memory_space<vmem>>, vector<1x1x128xf32>
    %118 = vector.shape_cast %117 : vector<1x1x128xf32> to vector<1x128xf32>
    %119 = vector.broadcast %118 : vector<1x128xf32> to vector<2x128xf32>
    %120 = arith.addf %116, %119 : vector<2x128xf32>
    %cst_88 = arith.constant 0.000000e+00 : f32
    %121 = vector.broadcast %cst_88 : f32 to vector<2x128xf32>
    %122 = arith.cmpf ogt, %120, %121 : vector<2x128xf32>
    %cst_89 = arith.constant 2.000000e-01 : f32
    %123 = vector.broadcast %cst_89 : f32 to vector<2x128xf32>
    %124 = arith.mulf %123, %120 : vector<2x128xf32>
    %125 = arith.select %122, %120, %124 : vector<2x128xi1>, vector<2x128xf32>
    %c14 = arith.constant 14 : index
    %c0_90 = arith.constant 0 : index
    %126 = vector.load %arg16[%c14, %c0_90] : memref<16x128xf32, #tpu.memory_space<vmem>>, vector<2x128xf32>
    tpu.vector_store %arg16[%c14, %c0_90], %125 {strides = array<i32>} : memref<16x128xf32, #tpu.memory_space<vmem>>, vector<2x128xf32>,
    %c0_91 = arith.constant 0 : index
    %c0_92 = arith.constant 0 : index
    %127 = vector.load %arg16[%c0_91, %c0_92] : memref<16x128xf32, #tpu.memory_space<vmem>>, vector<16x128xf32>
    %cst_93 = arith.constant dense<0.000000e+00> : vector<128xf32>
    %128 = vector.multi_reduction <add>, %127, %cst_93 [0] : vector<16x128xf32> to vector<128xf32>
    %129 = vector.shape_cast %128 : vector<128xf32> to vector<1x128xf32>
    %cst_94 = arith.constant 1.600000e+01 : f32
    %130 = vector.broadcast %cst_94 : f32 to vector<1x128xf32>
    %131 = arith.divf %129, %130 : vector<1x128xf32>
    %132 = arith.mulf %127, %127 : vector<16x128xf32>
    %cst_95 = arith.constant dense<0.000000e+00> : vector<128xf32>
    %133 = vector.multi_reduction <add>, %132, %cst_95 [0] : vector<16x128xf32> to vector<128xf32>
    %134 = vector.shape_cast %133 : vector<128xf32> to vector<1x128xf32>
    %cst_96 = arith.constant 1.600000e+01 : f32
    %135 = vector.broadcast %cst_96 : f32 to vector<1x128xf32>
    %136 = arith.divf %134, %135 : vector<1x128xf32>
    %137 = arith.mulf %131, %131 : vector<1x128xf32>
    %138 = arith.subf %136, %137 : vector<1x128xf32>
    %139 = vector.broadcast %131 : vector<1x128xf32> to vector<16x128xf32>
    %140 = arith.subf %127, %139 : vector<16x128xf32>
    %cst_97 = arith.constant 9.99999974E-6 : f32
    %141 = vector.broadcast %cst_97 : f32 to vector<1x128xf32>
    %142 = arith.addf %138, %141 : vector<1x128xf32>
    %143 = math.rsqrt %142 : vector<1x128xf32>
    %144 = vector.broadcast %143 : vector<1x128xf32> to vector<16x128xf32>
    %145 = arith.mulf %140, %144 : vector<16x128xf32>
    %c0_98 = arith.constant 0 : index
    %c0_99 = arith.constant 0 : index
    %146 = vector.load %arg7[%c0_98, %c0_99] : memref<1x128xf32, #tpu.memory_space<vmem>>, vector<1x128xf32>
    %147 = vector.broadcast %146 : vector<1x128xf32> to vector<16x128xf32>
    %148 = arith.mulf %145, %147 : vector<16x128xf32>
    %c0_100 = arith.constant 0 : index
    %c0_101 = arith.constant 0 : index
    %149 = vector.load %arg8[%c0_100, %c0_101] : memref<1x128xf32, #tpu.memory_space<vmem>>, vector<1x128xf32>
    %150 = vector.broadcast %149 : vector<1x128xf32> to vector<16x128xf32>
    %151 = arith.addf %148, %150 : vector<16x128xf32>
    %152 = arith.truncf %151 : vector<16x128xf32> to vector<16x128xbf16>
    %c0_102 = arith.constant 0 : index
    %c0_103 = arith.constant 0 : index
    %153 = vector.load %arg9[%c0_102, %c0_103] : memref<128x512xbf16, #tpu.memory_space<vmem>>, vector<128x512xbf16>
    %cst_104 = arith.constant dense<0.000000e+00> : vector<16x512xf32>
    %154 = tpu.matmul %152, %153, %cst_104 {dimension_numbers = #tpu.dot_dimension_numbers<[1], [0], [0], [1], [0, 0, 1, 1], [], []>} : vector<16x128xbf16>, vector<128x512xbf16>, vector<16x512xf32> -> vector<16x512xf32>
    %c0_105 = arith.constant 0 : index
    %c0_106 = arith.constant 0 : index
    %155 = vector.load %arg10[%c0_105, %c0_106] : memref<1x512xf32, #tpu.memory_space<vmem>>, vector<1x512xf32>
    %156 = vector.broadcast %155 : vector<1x512xf32> to vector<16x512xf32>
    %157 = arith.addf %154, %156 : vector<16x512xf32>
    %cst_107 = arith.constant 0.000000e+00 : f32
    %158 = vector.broadcast %cst_107 : f32 to vector<16x512xf32>
    %159 = arith.cmpf ogt, %157, %158 : vector<16x512xf32>
    %cst_108 = arith.constant 2.000000e-01 : f32
    %160 = vector.broadcast %cst_108 : f32 to vector<16x512xf32>
    %161 = arith.mulf %160, %157 : vector<16x512xf32>
    %162 = arith.select %159, %157, %161 : vector<16x512xi1>, vector<16x512xf32>
    %cst_109 = arith.constant dense<0.000000e+00> : vector<512xf32>
    %163 = vector.multi_reduction <add>, %162, %cst_109 [0] : vector<16x512xf32> to vector<512xf32>
    %164 = vector.shape_cast %163 : vector<512xf32> to vector<1x512xf32>
    %cst_110 = arith.constant 1.600000e+01 : f32
    %165 = vector.broadcast %cst_110 : f32 to vector<1x512xf32>
    %166 = arith.divf %164, %165 : vector<1x512xf32>
    %167 = arith.mulf %162, %162 : vector<16x512xf32>
    %cst_111 = arith.constant dense<0.000000e+00> : vector<512xf32>
    %168 = vector.multi_reduction <add>, %167, %cst_111 [0] : vector<16x512xf32> to vector<512xf32>
    %169 = vector.shape_cast %168 : vector<512xf32> to vector<1x512xf32>
    %cst_112 = arith.constant 1.600000e+01 : f32
    %170 = vector.broadcast %cst_112 : f32 to vector<1x512xf32>
    %171 = arith.divf %169, %170 : vector<1x512xf32>
    %172 = arith.mulf %166, %166 : vector<1x512xf32>
    %173 = arith.subf %171, %172 : vector<1x512xf32>
    %174 = vector.broadcast %166 : vector<1x512xf32> to vector<16x512xf32>
    %175 = arith.subf %162, %174 : vector<16x512xf32>
    %cst_113 = arith.constant 8.000000e-01 : f32
    %176 = vector.broadcast %cst_113 : f32 to vector<1x512xf32>
    %177 = arith.addf %173, %176 : vector<1x512xf32>
    %178 = math.rsqrt %177 : vector<1x512xf32>
    %179 = vector.broadcast %178 : vector<1x512xf32> to vector<16x512xf32>
    %180 = arith.mulf %175, %179 : vector<16x512xf32>
    %c0_114 = arith.constant 0 : index
    %c0_115 = arith.constant 0 : index
    %181 = vector.load %arg11[%c0_114, %c0_115] : memref<1x512xf32, #tpu.memory_space<vmem>>, vector<1x512xf32>
    %182 = vector.broadcast %181 : vector<1x512xf32> to vector<16x512xf32>
    %183 = arith.mulf %180, %182 : vector<16x512xf32>
    %c0_116 = arith.constant 0 : index
    %c0_117 = arith.constant 0 : index
    %184 = vector.load %arg12[%c0_116, %c0_117] : memref<1x512xf32, #tpu.memory_space<vmem>>, vector<1x512xf32>
    %185 = vector.broadcast %184 : vector<1x512xf32> to vector<16x512xf32>
    %186 = arith.addf %183, %185 : vector<16x512xf32>
    %187 = arith.truncf %186 : vector<16x512xf32> to vector<16x512xbf16>
    %c0_118 = arith.constant 0 : index
    %c0_119 = arith.constant 0 : index
    %188 = vector.load %arg13[%c0_118, %c0_119] : memref<512x128xbf16, #tpu.memory_space<vmem>>, vector<512x128xbf16>
    %cst_120 = arith.constant dense<0.000000e+00> : vector<16x128xf32>
    %189 = tpu.matmul %187, %188, %cst_120 {dimension_numbers = #tpu.dot_dimension_numbers<[1], [0], [0], [1], [0, 0, 1, 1], [], []>} : vector<16x512xbf16>, vector<512x128xbf16>, vector<16x128xf32> -> vector<16x128xf32>
    %c0_121 = arith.constant 0 : index
    %c0_122 = arith.constant 0 : index
    %190 = vector.load %arg14[%c0_121, %c0_122] : memref<1x128xf32, #tpu.memory_space<vmem>>, vector<1x128xf32>
    %191 = vector.broadcast %190 : vector<1x128xf32> to vector<16x128xf32>
    %192 = arith.addf %189, %191 : vector<16x128xf32>
    %193 = arith.negf %192 : vector<16x128xf32>
    %194 = math.exp %193 : vector<16x128xf32>
    %cst_123 = arith.constant 1.000000e+00 : f32
    %195 = vector.broadcast %cst_123 : f32 to vector<16x128xf32>
    %196 = arith.addf %195, %194 : vector<16x128xf32>
    %197 = arith.divf %195, %196 : vector<16x128xf32>
    %c0_124 = arith.constant 0 : index
    %c0_125 = arith.constant 0 : index
    %198 = vector.load %arg15[%c0_124, %c0_125] : memref<16x128xf32, #tpu.memory_space<vmem>>, vector<16x128xf32>
    tpu.vector_store %arg15[%c0_124, %c0_125], %197 {strides = array<i32>} : memref<16x128xf32, #tpu.memory_space<vmem>>, vector<16x128xf32>,
    return
  }
}

</mosaic_0001>

<llo_original>
// kernel: tpu_custom_call.1
$region0: #{tpu_custom_call.1}
  #allocation0 [shape = 'u32[]', space=smem, size = 0x4, offset = 0x4, fixed_abs, tag = 'smem constant byte address 0x4 - core index']
  #allocation1 [shape = 'u32[144,128]{1,0:T(1,128)}', space=vmem, size = 0x12000, scoped, tag = 'internal scratch']
  #allocation2 [shape = 'f32[16,128]{1,0:T(8,128)}', space=vmem, size = 0x2000, scoped, tag = 'scratch operand']
  %s0 = inlined_call_operand.hbm [shape: f32[2,20], index: 0, kind: input, shape index: {}]
  %s1 = inlined_call_operand.hbm [shape: f32[20,1024], index: 1, kind: input, shape index: {}]
  %s2 = inlined_call_operand.hbm [shape: f32[1,1024], index: 2, kind: input, shape index: {}]
  %s3 = inlined_call_operand.hbm [shape: bf16[1024,1024], index: 3, kind: input, shape index: {}]
  %s4 = inlined_call_operand.hbm [shape: f32[1,1024], index: 4, kind: input, shape index: {}]
  %s5 = inlined_call_operand.hbm [shape: bf16[8,1024,128], index: 5, kind: input, shape index: {}]
  %s6 = inlined_call_operand.hbm [shape: f32[8,1,128], index: 6, kind: input, shape index: {}]
  %s7 = inlined_call_operand.hbm [shape: f32[1,128], index: 7, kind: input, shape index: {}]
  %s8 = inlined_call_operand.hbm [shape: f32[1,128], index: 8, kind: input, shape index: {}]
  %s9 = inlined_call_operand.hbm [shape: bf16[128,512], index: 9, kind: input, shape index: {}]
  %s10 = inlined_call_operand.hbm [shape: f32[1,512], index: 10, kind: input, shape index: {}]
  %s11 = inlined_call_operand.hbm [shape: f32[1,512], index: 11, kind: input, shape index: {}]
  %s12 = inlined_call_operand.hbm [shape: f32[1,512], index: 12, kind: input, shape index: {}]
  %s13 = inlined_call_operand.hbm [shape: bf16[512,128], index: 13, kind: input, shape index: {}]
  %s14 = inlined_call_operand.hbm [shape: f32[1,128], index: 14, kind: input, shape index: {}]
  %s15 = inlined_call_operand.hbm [shape: f32[16,128], index: 15, kind: output, shape index: {}]
  %s16 = sld [smem:[#allocation0]]
  $region130: #{tpu_custom_call.1} parent=0
    _
  %s18 = ssub.s32 1, %s16
  %s19 = scalar_select 0, %s18, %s16
  $region1: #{tpu_custom_call.1} parent=0
    #allocation3 [shape = 'u8[1024]{0}', space=vmem, size = 0x400, scoped, tag = 'input window, operand 0, single buffered']
    #allocation4 [shape = 's32[1]{0}', space=sflag, size = 0x4, scoped, tag = 'scoped memory for tpu_custom_call.1']
    #allocation5 [shape = 's32[1]{0}', space=sflag, size = 0x4, scoped, tag = 'scoped memory for tpu_custom_call.1']
    #allocation6 [shape = 'u8[98304]{0}', space=vmem, size = 0x18000, scoped, tag = 'input window, operand 1, single buffered']
    #allocation7 [shape = 's32[1]{0}', space=sflag, size = 0x4, scoped, tag = 'scoped memory for tpu_custom_call.1']
    #allocation8 [shape = 'u8[4096]{0}', space=vmem, size = 0x1000, scoped, tag = 'input window, operand 2, single buffered']
    #allocation9 [shape = 'u8[2097152]{0}', space=vmem, size = 0x200000, scoped, tag = 'input window, operand 3, single buffered']
    #allocation10 [shape = 's32[1]{0}', space=sflag, size = 0x4, scoped, tag = 'scoped memory for tpu_custom_call.1']
    #allocation11 [shape = 'u8[4096]{0}', space=vmem, size = 0x1000, scoped, tag = 'input window, operand 4, single buffered']
    #allocation12 [shape = 'u8[2097152]{0}', space=vmem, size = 0x200000, scoped, tag = 'input window, operand 5, single buffered']
    #allocation13 [shape = 's32[1]{0}', space=sflag, size = 0x4, scoped, tag = 'scoped memory for tpu_custom_call.1']
    #allocation14 [shape = 'u8[4096]{0}', space=vmem, size = 0x1000, scoped, tag = 'input window, operand 6, single buffered']
    #allocation15 [shape = 'u8[512]{0}', space=vmem, size = 0x400, scoped, tag = 'input window, operand 7, single buffered']
    #allocation16 [shape = 's32[1]{0}', space=sflag, size = 0x4, scoped, tag = 'scoped memory for tpu_custom_call.1']
    #allocation17 [shape = 'u8[512]{0}', space=vmem, size = 0x400, scoped, tag = 'input window, operand 8, single buffered']
    #allocation18 [shape = 'u8[131072]{0}', space=vmem, size = 0x20000, scoped, tag = 'input window, operand 9, single buffered']
    #allocation19 [shape = 's32[1]{0}', space=sflag, size = 0x4, scoped, tag = 'scoped memory for tpu_custom_call.1']
    #allocation20 [shape = 'u8[2048]{0}', space=vmem, size = 0x800, scoped, tag = 'input window, operand 10, single buffered']
    #allocation21 [shape = 'u8[2048]{0}', space=vmem, size = 0x800, scoped, tag = 'input window, operand 11, single buffered']
    #allocation22 [shape = 's32[1]{0}', space=sflag, size = 0x4, scoped, tag = 'scoped memory for tpu_custom_call.1']
    #allocation23 [shape = 'u8[2048]{0}', space=vmem, size = 0x800, scoped, tag = 'input window, operand 12, single buffered']
    #allocation24 [shape = 'u8[131072]{0}', space=vmem, size = 0x20000, scoped, tag = 'input window, operand 13, single buffered']
    #allocation25 [shape = 's32[1]{0}', space=sflag, size = 0x4, scoped, tag = 'scoped memory for tpu_custom_call.1']
    #allocation26 [shape = 'u8[512]{0}', space=vmem, size = 0x400, scoped, tag = 'input window, operand 14, single buffered']
    #allocation27 [shape = 'u8[8192]{0}', space=vmem, size = 0x2000, scoped, tag = 'output window, operand 0, single buffered']
    %20 = vsyncpa [#allocation4], 0
    %21 = vsyncpa [#allocation7], 0
    %22 = vsyncpa [#allocation10], 0
    %23 = vsyncpa [#allocation13], 0
    %24 = vsyncpa [#allocation16], 0
    %25 = vsyncpa [#allocation19], 0
    %26 = vsyncpa [#allocation22], 0
    %27 = vsyncpa [#allocation25], 0
    %28 = vsyncpa [#allocation5], 0
    // Predicated region
    $region2: #{tpu_custom_call.1} parent=1 // pred_check
      _
    $region3: #{tpu_custom_call.1} parent=1 // pred_check_branch
      %30 = sbr.rel (0) target = $region5
    $region4: #{tpu_custom_call.1} parent=1 // pred_region
      %s32 = ssub.s32 32, 32
      %33 = vsyncadd [#allocation4], %s32
      %s35 = sshll.u32 [#allocation3], 4
      %s36 = int_to_ptr.vmem [resolvable:$true] %s35
      %38 = dma.hbm_to_vmem [thread:$0]  %s0, 32, %s36, [#allocation4]
    $region5: #{tpu_custom_call.1} parent=1 // pred_fallthru
      _
    // Predicated region
    $region6: #{tpu_custom_call.1} parent=1 // pred_check
      _
    $region7: #{tpu_custom_call.1} parent=1 // pred_check_branch
      %40 = sbr.rel (0) target = $region9
    $region8: #{tpu_custom_call.1} parent=1 // pred_region
      %s42 = ssub.s32 3072, 3072
      %43 = vsyncadd [#allocation7], %s42
      %s44 = sshll.u32 [#allocation6], 4
      %s45 = int_to_ptr.vmem [resolvable:$true] %s44
      %50 = dma.hbm_to_vmem [thread:$0]  %s1, 3072, %s45, [#allocation7], 1024, 1024, 64
    $region9: #{tpu_custom_call.1} parent=1 // pred_fallthru
      _
    // Predicated region
    $region10: #{tpu_custom_call.1} parent=1 // pred_check
      _
    $region11: #{tpu_custom_call.1} parent=1 // pred_check_branch
      %52 = sbr.rel (0) target = $region13
    $region12: #{tpu_custom_call.1} parent=1 // pred_region
      %s54 = ssub.s32 128, 128
      %55 = vsyncadd [#allocation7], %s54
      %s57 = sshll.u32 [#allocation8], 4
      %s58 = int_to_ptr.vmem [resolvable:$true] %s57
      %60 = dma.hbm_to_vmem [thread:$0]  %s2, 128, %s58, [#allocation7]
    $region13: #{tpu_custom_call.1} parent=1 // pred_fallthru
      _
    // Predicated region
    $region14: #{tpu_custom_call.1} parent=1 // pred_check
      _
    $region15: #{tpu_custom_call.1} parent=1 // pred_check_branch
      %62 = sbr.rel (0) target = $region17
    $region16: #{tpu_custom_call.1} parent=1 // pred_region
      %s64 = ssub.s32 65536, 65536
      %65 = vsyncadd [#allocation10], %s64
      %s66 = sshll.u32 [#allocation9], 4
      %s67 = int_to_ptr.vmem [resolvable:$true] %s66
      %72 = dma.hbm_to_vmem [thread:$0]  %s3, 65536, %s67, [#allocation10], 512, 512, 32
    $region17: #{tpu_custom_call.1} parent=1 // pred_fallthru
      _
    // Predicated region
    $region18: #{tpu_custom_call.1} parent=1 // pred_check
      _
    $region19: #{tpu_custom_call.1} parent=1 // pred_check_branch
      %74 = sbr.rel (0) target = $region21
    $region20: #{tpu_custom_call.1} parent=1 // pred_region
      %s76 = ssub.s32 128, 128
      %77 = vsyncadd [#allocation10], %s76
      %s79 = sshll.u32 [#allocation11], 4
      %s80 = int_to_ptr.vmem [resolvable:$true] %s79
      %82 = dma.hbm_to_vmem [thread:$0]  %s4, 128, %s80, [#allocation10]
    $region21: #{tpu_custom_call.1} parent=1 // pred_fallthru
      _
    // Predicated region
    $region22: #{tpu_custom_call.1} parent=1 // pred_check
      _
    $region23: #{tpu_custom_call.1} parent=1 // pred_check_branch
      %84 = sbr.rel (0) target = $region25
    $region24: #{tpu_custom_call.1} parent=1 // pred_region
      %s86 = ssub.s32 65536, 65536
      %87 = vsyncadd [#allocation13], %s86
      %s88 = sshll.u32 [#allocation12], 4
      %s89 = int_to_ptr.vmem [resolvable:$true] %s88
      %94 = dma.hbm_to_vmem [thread:$0]  %s5, 65536, %s89, [#allocation13], 64, 64, 4
    $region25: #{tpu_custom_call.1} parent=1 // pred_fallthru
      _
    // Predicated region
    $region26: #{tpu_custom_call.1} parent=1 // pred_check
      _
    $region27: #{tpu_custom_call.1} parent=1 // pred_check_branch
      %96 = sbr.rel (0) target = $region29
    $region28: #{tpu_custom_call.1} parent=1 // pred_region
      %s98 = ssub.s32 128, 128
      %99 = vsyncadd [#allocation13], %s98
      %s100 = sshll.u32 [#allocation14], 4
      %s101 = int_to_ptr.vmem [resolvable:$true] %s100
      %106 = dma.hbm_to_vmem [thread:$0]  %s6, 128, %s101, [#allocation13], 16, 16, 1
    $region29: #{tpu_custom_call.1} parent=1 // pred_fallthru
      _
    // Predicated region
    $region30: #{tpu_custom_call.1} parent=1 // pred_check
      _
    $region31: #{tpu_custom_call.1} parent=1 // pred_check_branch
      %108 = sbr.rel (0) target = $region33
    $region32: #{tpu_custom_call.1} parent=1 // pred_region
      %s110 = ssub.s32 16, 16
      %111 = vsyncadd [#allocation16], %s110
      %s113 = sshll.u32 [#allocation15], 4
      %s114 = int_to_ptr.vmem [resolvable:$true] %s113
      %116 = dma.hbm_to_vmem [thread:$0]  %s7, 16, %s114, [#allocation16]
    $region33: #{tpu_custom_call.1} parent=1 // pred_fallthru
      _
    // Predicated region
    $region34: #{tpu_custom_call.1} parent=1 // pred_check
      _
    $region35: #{tpu_custom_call.1} parent=1 // pred_check_branch
      %118 = sbr.rel (0) target = $region37
    $region36: #{tpu_custom_call.1} parent=1 // pred_region
      %s120 = ssub.s32 16, 16
      %121 = vsyncadd [#allocation16], %s120
      %s123 = sshll.u32 [#allocation17], 4
      %s124 = int_to_ptr.vmem [resolvable:$true] %s123
      %126 = dma.hbm_to_vmem [thread:$0]  %s8, 16, %s124, [#allocation16]
    $region37: #{tpu_custom_call.1} parent=1 // pred_fallthru
      _
    // Predicated region
    $region38: #{tpu_custom_call.1} parent=1 // pred_check
      _
    $region39: #{tpu_custom_call.1} parent=1 // pred_check_branch
      %128 = sbr.rel (0) target = $region41
    $region40: #{tpu_custom_call.1} parent=1 // pred_region
      %s130 = ssub.s32 4096, 4096
      %131 = vsyncadd [#allocation19], %s130
      %s132 = sshll.u32 [#allocation18], 4
      %s133 = int_to_ptr.vmem [resolvable:$true] %s132
      %138 = dma.hbm_to_vmem [thread:$0]  %s9, 4096, %s133, [#allocation19], 256, 256, 16
    $region41: #{tpu_custom_call.1} parent=1 // pred_fallthru
      _
    // Predicated region
    $region42: #{tpu_custom_call.1} parent=1 // pred_check
      _
    $region43: #{tpu_custom_call.1} parent=1 // pred_check_branch
      %140 = sbr.rel (0) target = $region45
    $region44: #{tpu_custom_call.1} parent=1 // pred_region
      %s142 = ssub.s32 64, 64
      %143 = vsyncadd [#allocation19], %s142
      %s145 = sshll.u32 [#allocation20], 4
      %s146 = int_to_ptr.vmem [resolvable:$true] %s145
      %148 = dma.hbm_to_vmem [thread:$0]  %s10, 64, %s146, [#allocation19]
    $region45: #{tpu_custom_call.1} parent=1 // pred_fallthru
      _
    // Predicated region
    $region46: #{tpu_custom_call.1} parent=1 // pred_check
      _
    $region47: #{tpu_custom_call.1} parent=1 // pred_check_branch
      %150 = sbr.rel (0) target = $region49
    $region48: #{tpu_custom_call.1} parent=1 // pred_region
      %s152 = ssub.s32 64, 64
      %153 = vsyncadd [#allocation22], %s152
      %s155 = sshll.u32 [#allocation21], 4
      %s156 = int_to_ptr.vmem [resolvable:$true] %s155
      %158 = dma.hbm_to_vmem [thread:$0]  %s11, 64, %s156, [#allocation22]
    $region49: #{tpu_custom_call.1} parent=1 // pred_fallthru
      _
    // Predicated region
    $region50: #{tpu_custom_call.1} parent=1 // pred_check
      _
    $region51: #{tpu_custom_call.1} parent=1 // pred_check_branch
      %160 = sbr.rel (0) target = $region53
    $region52: #{tpu_custom_call.1} parent=1 // pred_region
      %s162 = ssub.s32 64, 64
      %163 = vsyncadd [#allocation22], %s162
      %s165 = sshll.u32 [#allocation23], 4
      %s166 = int_to_ptr.vmem [resolvable:$true] %s165
      %168 = dma.hbm_to_vmem [thread:$0]  %s12, 64, %s166, [#allocation22]
    $region53: #{tpu_custom_call.1} parent=1 // pred_fallthru
      _
    // Predicated region
    $region54: #{tpu_custom_call.1} parent=1 // pred_check
      _
    $region55: #{tpu_custom_call.1} parent=1 // pred_check_branch
      %170 = sbr.rel (0) target = $region57
    $region56: #{tpu_custom_call.1} parent=1 // pred_region
      %s172 = ssub.s32 4096, 4096
      %173 = vsyncadd [#allocation25], %s172
      %s174 = sshll.u32 [#allocation24], 4
      %s175 = int_to_ptr.vmem [resolvable:$true] %s174
      %180 = dma.hbm_to_vmem [thread:$0]  %s13, 4096, %s175, [#allocation25], 64, 64, 4
    $region57: #{tpu_custom_call.1} parent=1 // pred_fallthru
      _
    // Predicated region
    $region58: #{tpu_custom_call.1} parent=1 // pred_check
      _
    $region59: #{tpu_custom_call.1} parent=1 // pred_check_branch
      %182 = sbr.rel (0) target = $region61
    $region60: #{tpu_custom_call.1} parent=1 // pred_region
      %s184 = ssub.s32 16, 16
      %185 = vsyncadd [#allocation25], %s184
      %s187 = sshll.u32 [#allocation26], 4
      %s188 = int_to_ptr.vmem [resolvable:$true] %s187
      %190 = dma.hbm_to_vmem [thread:$0]  %s14, 16, %s188, [#allocation25]
    $region61: #{tpu_custom_call.1} parent=1 // pred_fallthru
      _
    // Predicated region
    $region62: #{tpu_custom_call.1} parent=1 // pred_check
      _
    $region63: #{tpu_custom_call.1} parent=1 // pred_check_branch
      %192 = sbr.rel (0) target = $region65
    $region64: #{tpu_custom_call.1} parent=1 // pred_region
      %193 = dma.done [#allocation4], 32
    $region65: #{tpu_custom_call.1} parent=1 // pred_fallthru
      _
    // Predicated region
    $region66: #{tpu_custom_call.1} parent=1 // pred_check
      _
    $region67: #{tpu_custom_call.1} parent=1 // pred_check_branch
      %195 = sbr.rel (0) target = $region69
    $region68: #{tpu_custom_call.1} parent=1 // pred_region
      %196 = dma.done [#allocation7], 3072
    $region69: #{tpu_custom_call.1} parent=1 // pred_fallthru
      _
    // Predicated region
    $region70: #{tpu_custom_call.1} parent=1 // pred_check
      _
    $region71: #{tpu_custom_call.1} parent=1 // pred_check_branch
      %198 = sbr.rel (0) target = $region73
    $region72: #{tpu_custom_call.1} parent=1 // pred_region
      %199 = dma.done [#allocation7], 128
    $region73: #{tpu_custom_call.1} parent=1 // pred_fallthru
      _
    // Predicated region
    $region74: #{tpu_custom_call.1} parent=1 // pred_check
      _
    $region75: #{tpu_custom_call.1} parent=1 // pred_check_branch
      %201 = sbr.rel (0) target = $region77
    $region76: #{tpu_custom_call.1} parent=1 // pred_region
      %202 = dma.done [#allocation10], 65536
    $region77: #{tpu_custom_call.1} parent=1 // pred_fallthru
      _
    // Predicated region
    $region78: #{tpu_custom_call.1} parent=1 // pred_check
      _
    $region79: #{tpu_custom_call.1} parent=1 // pred_check_branch
      %204 = sbr.rel (0) target = $region81
    $region80: #{tpu_custom_call.1} parent=1 // pred_region
      %205 = dma.done [#allocation10], 128
    $region81: #{tpu_custom_call.1} parent=1 // pred_fallthru
      _
    // Predicated region
    $region82: #{tpu_custom_call.1} parent=1 // pred_check
      _
    $region83: #{tpu_custom_call.1} parent=1 // pred_check_branch
      %207 = sbr.rel (0) target = $region85
    $region84: #{tpu_custom_call.1} parent=1 // pred_region
      %208 = dma.done [#allocation13], 65536
    $region85: #{tpu_custom_call.1} parent=1 // pred_fallthru
      _
    // Predicated region
    $region86: #{tpu_custom_call.1} parent=1 // pred_check
      _
    $region87: #{tpu_custom_call.1} parent=1 // pred_check_branch
      %210 = sbr.rel (0) target = $region89
    $region88: #{tpu_custom_call.1} parent=1 // pred_region
      %211 = dma.done [#allocation13], 128
    $region89: #{tpu_custom_call.1} parent=1 // pred_fallthru
      _
    // Predicated region
    $region90: #{tpu_custom_call.1} parent=1 // pred_check
      _
    $region91: #{tpu_custom_call.1} parent=1 // pred_check_branch
      %213 = sbr.rel (0) target = $region93
    $region92: #{tpu_custom_call.1} parent=1 // pred_region
      %214 = dma.done [#allocation16], 16
    $region93: #{tpu_custom_call.1} parent=1 // pred_fallthru
      _
    // Predicated region
    $region94: #{tpu_custom_call.1} parent=1 // pred_check
      _
    $region95: #{tpu_custom_call.1} parent=1 // pred_check_branch
      %216 = sbr.rel (0) target = $region97
    $region96: #{tpu_custom_call.1} parent=1 // pred_region
      %217 = dma.done [#allocation16], 16
    $region97: #{tpu_custom_call.1} parent=1 // pred_fallthru
      _
    // Predicated region
    $region98: #{tpu_custom_call.1} parent=1 // pred_check
      _
    $region99: #{tpu_custom_call.1} parent=1 // pred_check_branch
      %219 = sbr.rel (0) target = $region101
    $region100: #{tpu_custom_call.1} parent=1 // pred_region
      %220 = dma.done [#allocation19], 4096
    $region101: #{tpu_custom_call.1} parent=1 // pred_fallthru
      _
    // Predicated region
    $region102: #{tpu_custom_call.1} parent=1 // pred_check
      _
    $region103: #{tpu_custom_call.1} parent=1 // pred_check_branch
      %222 = sbr.rel (0) target = $region105
    $region104: #{tpu_custom_call.1} parent=1 // pred_region
      %223 = dma.done [#allocation19], 64
    $region105: #{tpu_custom_call.1} parent=1 // pred_fallthru
      _
    // Predicated region
    $region106: #{tpu_custom_call.1} parent=1 // pred_check
      _
    $region107: #{tpu_custom_call.1} parent=1 // pred_check_branch
      %225 = sbr.rel (0) target = $region109
    $region108: #{tpu_custom_call.1} parent=1 // pred_region
      %226 = dma.done [#allocation22], 64
    $region109: #{tpu_custom_call.1} parent=1 // pred_fallthru
      _
    // Predicated region
    $region110: #{tpu_custom_call.1} parent=1 // pred_check
      _
    $region111: #{tpu_custom_call.1} parent=1 // pred_check_branch
      %228 = sbr.rel (0) target = $region113
    $region112: #{tpu_custom_call.1} parent=1 // pred_region
      %229 = dma.done [#allocation22], 64
    $region113: #{tpu_custom_call.1} parent=1 // pred_fallthru
      _
    // Predicated region
    $region114: #{tpu_custom_call.1} parent=1 // pred_check
      _
    $region115: #{tpu_custom_call.1} parent=1 // pred_check_branch
      %231 = sbr.rel (0) target = $region117
    $region116: #{tpu_custom_call.1} parent=1 // pred_region
      %232 = dma.done [#allocation25], 4096
    $region117: #{tpu_custom_call.1} parent=1 // pred_fallthru
      _
    // Predicated region
    $region118: #{tpu_custom_call.1} parent=1 // pred_check
      _
    $region119: #{tpu_custom_call.1} parent=1 // pred_check_branch
      %234 = sbr.rel (0) target = $region121
    $region120: #{tpu_custom_call.1} parent=1 // pred_region
      %235 = dma.done [#allocation25], 16
    $region121: #{tpu_custom_call.1} parent=1 // pred_fallthru
      _
    %v237 = vld [vmem:[#allocation3] sm:$0x3]
    %v238 = vld [vmem:[#allocation6] sm:$0xff]
    %v239 = vld [vmem:[#allocation6 + $0x8] sm:$0xff]
    %v240 = vld [vmem:[#allocation6 + $0x10] sm:$0xff]
    %v241 = vld [vmem:[#allocation6 + $0x18] sm:$0xff]
    %v242 = vld [vmem:[#allocation6 + $0x20] sm:$0xff]
    %v243 = vld [vmem:[#allocation6 + $0x28] sm:$0xff]
    %v244 = vld [vmem:[#allocation6 + $0x30] sm:$0xff]
    %v245 = vld [vmem:[#allocation6 + $0x38] sm:$0xff]
    %v246 = vld [vmem:[#allocation6 + $0x40] sm:$0xff]
    %v247 = vld [vmem:[#allocation6 + $0x48] sm:$0xff]
    %v248 = vld [vmem:[#allocation6 + $0x50] sm:$0xff]
    %v249 = vld [vmem:[#allocation6 + $0x58] sm:$0xff]
    %v250 = vld [vmem:[#allocation6 + $0x60] sm:$0xff]
    %v251 = vld [vmem:[#allocation6 + $0x68] sm:$0xff]
    %v252 = vld [vmem:[#allocation6 + $0x70] sm:$0xff]
    %v253 = vld [vmem:[#allocation6 + $0x78] sm:$0xff]
    %v254 = vld [vmem:[#allocation6 + $0x80] sm:$0xf]
    %v255 = vld [vmem:[#allocation6 + $0x88] sm:$0xf]
    %v256 = vld [vmem:[#allocation6 + $0x90] sm:$0xf]
    %v257 = vld [vmem:[#allocation6 + $0x98] sm:$0xf]
    %v258 = vld [vmem:[#allocation6 + $0xa0] sm:$0xf]
    %v259 = vld [vmem:[#allocation6 + $0xa8] sm:$0xf]
    %v260 = vld [vmem:[#allocation6 + $0xb0] sm:$0xf]
    %v261 = vld [vmem:[#allocation6 + $0xb8] sm:$0xf]
    %v262 = vld [vmem:[#allocation8] sm:$0xff]
    %v264 = vlaneseq
    %v265 = vshrl.u32 %v264, 7
    %v266 = vsub.s32 0, %v265
    %v267 = vrot.slane %v262, %v266
    %v268 = vlaneseq
    %v269 = vshrl.u32 %v268, 7
    %v270 = vsub.s32 1, %v269
    %v271 = vrot.slane %v262, %v270
    %v272 = vlaneseq
    %v273 = vshrl.u32 %v272, 7
    %v274 = vsub.s32 2, %v273
    %v275 = vrot.slane %v262, %v274
    %v276 = vlaneseq
    %v277 = vshrl.u32 %v276, 7
    %v278 = vsub.s32 3, %v277
    %v279 = vrot.slane %v262, %v278
    %v280 = vlaneseq
    %v281 = vshrl.u32 %v280, 7
    %v282 = vsub.s32 4, %v281
    %v283 = vrot.slane %v262, %v282
    %v284 = vlaneseq
    %v285 = vshrl.u32 %v284, 7
    %v286 = vsub.s32 5, %v285
    %v287 = vrot.slane %v262, %v286
    %v288 = vlaneseq
    %v289 = vshrl.u32 %v288, 7
    %v290 = vsub.s32 6, %v289
    %v291 = vrot.slane %v262, %v290
    %v292 = vlaneseq
    %v293 = vshrl.u32 %v292, 7
    %v294 = vsub.s32 7, %v293
    %v295 = vrot.slane %v262, %v294
    %vm304 = vcmask 162816
    %v306 = vsel %vm304, %v237, 0
    %vm308 = vcmask 1043456
    %v310 = vsel %vm308, %v254, 0
    %v313 = vsel %vm308, %v255, 0
    %v316 = vsel %vm308, %v256, 0
    %v319 = vsel %vm308, %v257, 0
    %v322 = vsel %vm308, %v258, 0
    %v325 = vsel %vm308, %v259, 0
    %v328 = vsel %vm308, %v260, 0
    %v331 = vsel %vm308, %v261, 0
    %333 = vmatprep.subr.mxu0 0.0
    %334 = vmatpush1.msra.mxu0 0.0
    %335 = vmatprep.subr.mxu0 0.0
    %336 = vmatpush1.msra.mxu0 0.0
    %337 = vmatprep.subr.mxu0 0.0
    %338 = vmatpush1.msra.mxu0 0.0
    %339 = vmatprep.subr.mxu0 0.0
    %340 = vmatpush1.msra.mxu0 0.0
    %341 = vmatprep.subr.mxu0 0.0
    %342 = vmatpush1.msra.mxu0 0.0
    %343 = vmatprep.subr.mxu0 0.0
    %344 = vmatpush1.msra.mxu0 0.0
    %345 = vmatprep.subr.mxu0 0.0
    %346 = vmatpush1.msra.mxu0 0.0
    %347 = vmatprep.subr.mxu0 0.0
    %348 = vmatpush1.msra.mxu0 0.0
    %349 = vmatprep.subr.mxu0 0.0
    %350 = vmatpush1.msra.mxu0 0.0
    %351 = vmatprep.subr.mxu0 0.0
    %352 = vmatpush1.msra.mxu0 0.0
    %353 = vmatprep.subr.mxu0 0.0
    %354 = vmatpush1.msra.mxu0 0.0
    %355 = vmatprep.subr.mxu0 0.0
    %356 = vmatpush1.msra.mxu0 0.0
    %357 = vmatprep.subr.mxu0 0.0
    %358 = vmatpush1.msra.mxu0 0.0
    %359 = vmatprep.subr.mxu0 %v313
    %360 = vmatpush1.msra.mxu0 %v310
    %361 = vmatprep.subr.mxu0 %v247
    %362 = vmatpush1.msra.mxu0 %v246
    %363 = vmatprep.subr.mxu0 %v239
    %364 = vmatpush1.msra.mxu0 %v238
    %365 = vmatprep.subr.mxu0 0.0
    %366 = vmatpush2.msra.mxu0 0.0
    %367 = vmatprep.subr.mxu0 0.0
    %368 = vmatpush2.msra.mxu0 0.0
    %369 = vmatprep.subr.mxu0 0.0
    %370 = vmatpush2.msra.mxu0 0.0
    %371 = vmatprep.subr.mxu0 0.0
    %372 = vmatpush2.msra.mxu0 0.0
    %373 = vmatprep.subr.mxu0 0.0
    %374 = vmatpush2.msra.mxu0 0.0
    %375 = vmatprep.subr.mxu0 0.0
    %376 = vmatpush2.msra.mxu0 0.0
    %377 = vmatprep.subr.mxu0 0.0
    %378 = vmatpush2.msra.mxu0 0.0
    %379 = vmatprep.subr.mxu0 0.0
    %380 = vmatpush2.msra.mxu0 0.0
    %381 = vmatprep.subr.mxu0 0.0
    %382 = vmatpush2.msra.mxu0 0.0
    %383 = vmatprep.subr.mxu0 0.0
    %384 = vmatpush2.msra.mxu0 0.0
    %385 = vmatprep.subr.mxu0 0.0
    %386 = vmatpush2.msra.mxu0 0.0
    %387 = vmatprep.subr.mxu0 0.0
    %388 = vmatpush2.msra.mxu0 0.0
    %389 = vmatprep.subr.mxu0 0.0
    %390 = vmatpush2.msra.mxu0 0.0
    %391 = vmatprep.subr.mxu0 0.0
    %392 = vmatpush2.msra.mxu0 0.0
    %393 = vmatprep.subr.mxu0 0.0
    %394 = vmatpush2.msra.mxu0 0.0
    %395 = vmatprep.subr.mxu0 0.0
    %396 = vmatpush2.msra.mxu0 0.0
    %397 = vmatprep.mubr.f32.mxu0 0.0
    %398 = vmatmul.mubr.f32.gmra.mxu0 %v306
    %v399 = vpop.f32.mrf.mxu0
    %v400 = vadd.f32 %v267, %v399
    %v401 = vpop.f32.mrf.mxu0
    %v402 = vadd.f32 %v271, %v401
    %403 = vdwg.mxu0
    %404 = vmatprep.subr.mxu0 0.0
    %405 = vmatpush1.msra.mxu0 0.0
    %406 = vmatprep.subr.mxu0 0.0
    %407 = vmatpush1.msra.mxu0 0.0
    %408 = vmatprep.subr.mxu0 0.0
    %409 = vmatpush1.msra.mxu0 0.0
    %410 = vmatprep.subr.mxu0 0.0
    %411 = vmatpush1.msra.mxu0 0.0
    %412 = vmatprep.subr.mxu0 0.0
    %413 = vmatpush1.msra.mxu0 0.0
    %414 = vmatprep.subr.mxu0 0.0
    %415 = vmatpush1.msra.mxu0 0.0
    %416 = vmatprep.subr.mxu0 0.0
    %417 = vmatpush1.msra.mxu0 0.0
    %418 = vmatprep.subr.mxu0 0.0
    %419 = vmatpush1.msra.mxu0 0.0
    %420 = vmatprep.subr.mxu0 0.0
    %421 = vmatpush1.msra.mxu0 0.0
    %422 = vmatprep.subr.mxu0 0.0
    %423 = vmatpush1.msra.mxu0 0.0
    %424 = vmatprep.subr.mxu0 0.0
    %425 = vmatpush1.msra.mxu0 0.0
    %426 = vmatprep.subr.mxu0 0.0
    %427 = vmatpush1.msra.mxu0 0.0
    %428 = vmatprep.subr.mxu0 0.0
    %429 = vmatpush1.msra.mxu0 0.0
    %430 = vmatprep.subr.mxu0 %v319
    %431 = vmatpush1.msra.mxu0 %v316
    %432 = vmatprep.subr.mxu0 %v249
    %433 = vmatpush1.msra.mxu0 %v248
    %434 = vmatprep.subr.mxu0 %v241
    %435 = vmatpush1.msra.mxu0 %v240
    %436 = vmatprep.subr.mxu0 0.0
    %437 = vmatpush2.msra.mxu0 0.0
    %438 = vmatprep.subr.mxu0 0.0
    %439 = vmatpush2.msra.mxu0 0.0
    %440 = vmatprep.subr.mxu0 0.0
    %441 = vmatpush2.msra.mxu0 0.0
    %442 = vmatprep.subr.mxu0 0.0
    %443 = vmatpush2.msra.mxu0 0.0
    %444 = vmatprep.subr.mxu0 0.0
    %445 = vmatpush2.msra.mxu0 0.0
    %446 = vmatprep.subr.mxu0 0.0
    %447 = vmatpush2.msra.mxu0 0.0
    %448 = vmatprep.subr.mxu0 0.0
    %449 = vmatpush2.msra.mxu0 0.0
    %450 = vmatprep.subr.mxu0 0.0
    %451 = vmatpush2.msra.mxu0 0.0
    %452 = vmatprep.subr.mxu0 0.0
    %453 = vmatpush2.msra.mxu0 0.0
    %454 = vmatprep.subr.mxu0 0.0
    %455 = vmatpush2.msra.mxu0 0.0
    %456 = vmatprep.subr.mxu0 0.0
    %457 = vmatpush2.msra.mxu0 0.0
    %458 = vmatprep.subr.mxu0 0.0
    %459 = vmatpush2.msra.mxu0 0.0
    %460 = vmatprep.subr.mxu0 0.0
    %461 = vmatpush2.msra.mxu0 0.0
    %462 = vmatprep.subr.mxu0 0.0
    %463 = vmatpush2.msra.mxu0 0.0
    %464 = vmatprep.subr.mxu0 0.0
    %465 = vmatpush2.msra.mxu0 0.0
    %466 = vmatprep.subr.mxu0 0.0
    %467 = vmatpush2.msra.mxu0 0.0
    %468 = vmatprep.mubr.f32.mxu0 0.0
    %469 = vmatmul.mubr.f32.gmra.mxu0 %v306
    %v470 = vpop.f32.mrf.mxu0
    %v471 = vadd.f32 %v275, %v470
    %v472 = vpop.f32.mrf.mxu0
    %v473 = vadd.f32 %v279, %v472
    %474 = vdwg.mxu0
    %475 = vmatprep.subr.mxu0 0.0
    %476 = vmatpush1.msra.mxu0 0.0
    %477 = vmatprep.subr.mxu0 0.0
    %478 = vmatpush1.msra.mxu0 0.0
    %479 = vmatprep.subr.mxu0 0.0
    %480 = vmatpush1.msra.mxu0 0.0
    %481 = vmatprep.subr.mxu0 0.0
    %482 = vmatpush1.msra.mxu0 0.0
    %483 = vmatprep.subr.mxu0 0.0
    %484 = vmatpush1.msra.mxu0 0.0
    %485 = vmatprep.subr.mxu0 0.0
    %486 = vmatpush1.msra.mxu0 0.0
    %487 = vmatprep.subr.mxu0 0.0
    %488 = vmatpush1.msra.mxu0 0.0
    %489 = vmatprep.subr.mxu0 0.0
    %490 = vmatpush1.msra.mxu0 0.0
    %491 = vmatprep.subr.mxu0 0.0
    %492 = vmatpush1.msra.mxu0 0.0
    %493 = vmatprep.subr.mxu0 0.0
    %494 = vmatpush1.msra.mxu0 0.0
    %495 = vmatprep.subr.mxu0 0.0
    %496 = vmatpush1.msra.mxu0 0.0
    %497 = vmatprep.subr.mxu0 0.0
    %498 = vmatpush1.msra.mxu0 0.0
    %499 = vmatprep.subr.mxu0 0.0
    %500 = vmatpush1.msra.mxu0 0.0
    %501 = vmatprep.subr.mxu0 %v325
    %502 = vmatpush1.msra.mxu0 %v322
    %503 = vmatprep.subr.mxu0 %v251
    %504 = vmatpush1.msra.mxu0 %v250
    %505 = vmatprep.subr.mxu0 %v243
    %506 = vmatpush1.msra.mxu0 %v242
    %507 = vmatprep.subr.mxu0 0.0
    %508 = vmatpush2.msra.mxu0 0.0
    %509 = vmatprep.subr.mxu0 0.0
    %510 = vmatpush2.msra.mxu0 0.0
    %511 = vmatprep.subr.mxu0 0.0
    %512 = vmatpush2.msra.mxu0 0.0
    %513 = vmatprep.subr.mxu0 0.0
    %514 = vmatpush2.msra.mxu0 0.0
    %515 = vmatprep.subr.mxu0 0.0
    %516 = vmatpush2.msra.mxu0 0.0
    %517 = vmatprep.subr.mxu0 0.0
    %518 = vmatpush2.msra.mxu0 0.0
    %519 = vmatprep.subr.mxu0 0.0
    %520 = vmatpush2.msra.mxu0 0.0
    %521 = vmatprep.subr.mxu0 0.0
    %522 = vmatpush2.msra.mxu0 0.0
    %523 = vmatprep.subr.mxu0 0.0
    %524 = vmatpush2.msra.mxu0 0.0
    %525 = vmatprep.subr.mxu0 0.0
    %526 = vmatpush2.msra.mxu0 0.0
    %527 = vmatprep.subr.mxu0 0.0
    %528 = vmatpush2.msra.mxu0 0.0
    %529 = vmatprep.subr.mxu0 0.0
    %530 = vmatpush2.msra.mxu0 0.0
    %531 = vmatprep.subr.mxu0 0.0
    %532 = vmatpush2.msra.mxu0 0.0
    %533 = vmatprep.subr.mxu0 0.0
    %534 = vmatpush2.msra.mxu0 0.0
    %535 = vmatprep.subr.mxu0 0.0
    %536 = vmatpush2.msra.mxu0 0.0
    %537 = vmatprep.subr.mxu0 0.0
    %538 = vmatpush2.msra.mxu0 0.0
    %539 = vmatprep.mubr.f32.mxu0 0.0
    %540 = vmatmul.mubr.f32.gmra.mxu0 %v306
    %v541 = vpop.f32.mrf.mxu0
    %v542 = vadd.f32 %v283, %v541
    %v543 = vpop.f32.mrf.mxu0
    %v544 = vadd.f32 %v287, %v543
    %545 = vdwg.mxu0
    %546 = vmatprep.subr.mxu0 0.0
    %547 = vmatpush1.msra.mxu0 0.0
    %548 = vmatprep.subr.mxu0 0.0
    %549 = vmatpush1.msra.mxu0 0.0
    %550 = vmatprep.subr.mxu0 0.0
    %551 = vmatpush1.msra.mxu0 0.0
    %552 = vmatprep.subr.mxu0 0.0
    %553 = vmatpush1.msra.mxu0 0.0
    %554 = vmatprep.subr.mxu0 0.0
    %555 = vmatpush1.msra.mxu0 0.0
    %556 = vmatprep.subr.mxu0 0.0
    %557 = vmatpush1.msra.mxu0 0.0
    %558 = vmatprep.subr.mxu0 0.0
    %559 = vmatpush1.msra.mxu0 0.0
    %560 = vmatprep.subr.mxu0 0.0
    %561 = vmatpush1.msra.mxu0 0.0
    %562 = vmatprep.subr.mxu0 0.0
    %563 = vmatpush1.msra.mxu0 0.0
    %564 = vmatprep.subr.mxu0 0.0
    %565 = vmatpush1.msra.mxu0 0.0
    %566 = vmatprep.subr.mxu0 0.0
    %567 = vmatpush1.msra.mxu0 0.0
    %568 = vmatprep.subr.mxu0 0.0
    %569 = vmatpush1.msra.mxu0 0.0
    %570 = vmatprep.subr.mxu0 0.0
    %571 = vmatpush1.msra.mxu0 0.0
    %572 = vmatprep.subr.mxu0 %v331
    %573 = vmatpush1.msra.mxu0 %v328
    %574 = vmatprep.subr.mxu0 %v253
    %575 = vmatpush1.msra.mxu0 %v252
    %576 = vmatprep.subr.mxu0 %v245
    %577 = vmatpush1.msra.mxu0 %v244
    %578 = vmatprep.subr.mxu0 0.0
    %579 = vmatpush2.msra.mxu0 0.0
    %580 = vmatprep.subr.mxu0 0.0
    %581 = vmatpush2.msra.mxu0 0.0
    %582 = vmatprep.subr.mxu0 0.0
    %583 = vmatpush2.msra.mxu0 0.0
    %584 = vmatprep.subr.mxu0 0.0
    %585 = vmatpush2.msra.mxu0 0.0
    %586 = vmatprep.subr.mxu0 0.0
    %587 = vmatpush2.msra.mxu0 0.0
    %588 = vmatprep.subr.mxu0 0.0
    %589 = vmatpush2.msra.mxu0 0.0
    %590 = vmatprep.subr.mxu0 0.0
    %591 = vmatpush2.msra.mxu0 0.0
    %592 = vmatprep.subr.mxu0 0.0
    %593 = vmatpush2.msra.mxu0 0.0
    %594 = vmatprep.subr.mxu0 0.0
    %595 = vmatpush2.msra.mxu0 0.0
    %596 = vmatprep.subr.mxu0 0.0
    %597 = vmatpush2.msra.mxu0 0.0
    %598 = vmatprep.subr.mxu0 0.0
    %599 = vmatpush2.msra.mxu0 0.0
    %600 = vmatprep.subr.mxu0 0.0
    %601 = vmatpush2.msra.mxu0 0.0
    %602 = vmatprep.subr.mxu0 0.0
    %603 = vmatpush2.msra.mxu0 0.0
    %604 = vmatprep.subr.mxu0 0.0
    %605 = vmatpush2.msra.mxu0 0.0
    %606 = vmatprep.subr.mxu0 0.0
    %607 = vmatpush2.msra.mxu0 0.0
    %608 = vmatprep.subr.mxu0 0.0
    %609 = vmatpush2.msra.mxu0 0.0
    %610 = vmatprep.mubr.f32.mxu0 0.0
    %611 = vmatmul.mubr.f32.gmra.mxu0 %v306
    %v612 = vpop.f32.mrf.mxu0
    %v613 = vadd.f32 %v291, %v612
    %v614 = vpop.f32.mrf.mxu0
    %v615 = vadd.f32 %v295, %v614
    %616 = vdwg.mxu0
    %vm617 = vcmp.gt.f32.partialorder %v400, 0.0
    %vm618 = vcmp.gt.f32.partialorder %v402, 0.0
    %vm619 = vcmp.gt.f32.partialorder %v471, 0.0
    %vm620 = vcmp.gt.f32.partialorder %v473, 0.0
    %vm621 = vcmp.gt.f32.partialorder %v542, 0.0
    %vm622 = vcmp.gt.f32.partialorder %v544, 0.0
    %vm623 = vcmp.gt.f32.partialorder %v613, 0.0
    %vm624 = vcmp.gt.f32.partialorder %v615, 0.0
    %v625 = vmul.f32 %v400, 0.2
    %v626 = vmul.f32 %v402, 0.2
    %v627 = vmul.f32 %v471, 0.2
    %v628 = vmul.f32 %v473, 0.2
    %v629 = vmul.f32 %v542, 0.2
    %v630 = vmul.f32 %v544, 0.2
    %v631 = vmul.f32 %v613, 0.2
    %v632 = vmul.f32 %v615, 0.2
    %v633 = vsel %vm617, %v400, %v625
    %v634 = vsel %vm618, %v402, %v626
    %v635 = vsel %vm619, %v471, %v627
    %v636 = vsel %vm620, %v473, %v628
    %v637 = vsel %vm621, %v542, %v629
    %v638 = vsel %vm622, %v544, %v630
    %v639 = vsel %vm623, %v613, %v631
    %v640 = vsel %vm624, %v615, %v632
    %v641 = vpack.c.bf16 %v633, %v633
    %v642 = vpack.c.bf16 %v634, %v634
    %v643 = vpack.c.bf16 %v635, %v635
    %v644 = vpack.c.bf16 %v636, %v636
    %v645 = vpack.c.bf16 %v637, %v637
    %v646 = vpack.c.bf16 %v638, %v638
    %v647 = vpack.c.bf16 %v639, %v639
    %v648 = vpack.c.bf16 %v640, %v640
    %v649 = vld [vmem:[#allocation9] sm:$0xff]
    %v650 = vld [vmem:[#allocation9 + $0x8] sm:$0xff]
    %v651 = vld [vmem:[#allocation9 + $0x10] sm:$0xff]
    %v652 = vld [vmem:[#allocation9 + $0x18] sm:$0xff]
    %v653 = vld [vmem:[#allocation9 + $0x20] sm:$0xff]
    %v654 = vld [vmem:[#allocation9 + $0x28] sm:$0xff]
    %v655 = vld [vmem:[#allocation9 + $0x30] sm:$0xff]
    %v656 = vld [vmem:[#allocation9 + $0x38] sm:$0xff]
    %v657 = vld [vmem:[#allocation9 + $0x40] sm:$0xff]
    %v658 = vld [vmem:[#allocation9 + $0x48] sm:$0xff]
    %v659 = vld [vmem:[#allocation9 + $0x50] sm:$0xff]
    %v660 = vld [vmem:[#allocation9 + $0x58] sm:$0xff]
    %v661 = vld [vmem:[#allocation9 + $0x60] sm:$0xff]
    %v662 = vld [vmem:[#allocation9 + $0x68] sm:$0xff]
    %v663 = vld [vmem:[#allocation9 + $0x70] sm:$0xff]
    %v664 = vld [vmem:[#allocation9 + $0x78] sm:$0xff]
    %v665 = vld [vmem:[#allocation9 + $0x80] sm:$0xff]
    %v666 = vld [vmem:[#allocation9 + $0x88] sm:$0xff]
    %v667 = vld [vmem:[#allocation9 + $0x90] sm:$0xff]
    %v668 = vld [vmem:[#allocation9 + $0x98] sm:$0xff]
    %v669 = vld [vmem:[#allocation9 + $0xa0] sm:$0xff]
    %v670 = vld [vmem:[#allocation9 + $0xa8] sm:$0xff]
    %v671 = vld [vmem:[#allocation9 + $0xb0] sm:$0xff]
    %v672 = vld [vmem:[#allocation9 + $0xb8] sm:$0xff]
    %v673 = vld [vmem:[#allocation9 + $0xc0] sm:$0xff]
    %v674 = vld [vmem:[#allocation9 + $0xc8] sm:$0xff]
    %v675 = vld [vmem:[#allocation9 + $0xd0] sm:$0xff]
    %v676 = vld [vmem:[#allocation9 + $0xd8] sm:$0xff]
    %v677 = vld [vmem:[#allocation9 + $0xe0] sm:$0xff]
    %v678 = vld [vmem:[#allocation9 + $0xe8] sm:$0xff]
    %v679 = vld [vmem:[#allocation9 + $0xf0] sm:$0xff]
    %v680 = vld [vmem:[#allocation9 + $0xf8] sm:$0xff]
    %v681 = vld [vmem:[#allocation9 + $0x100] sm:$0xff]
    %v682 = vld [vmem:[#allocation9 + $0x108] sm:$0xff]
    %v683 = vld [vmem:[#allocation9 + $0x110] sm:$0xff]
    %v684 = vld [vmem:[#allocation9 + $0x118] sm:$0xff]
    %v685 = vld [vmem:[#allocation9 + $0x120] sm:$0xff]
    %v686 = vld [vmem:[#allocation9 + $0x128] sm:$0xff]
    %v687 = vld [vmem:[#allocation9 + $0x130] sm:$0xff]
    %v688 = vld [vmem:[#allocation9 + $0x138] sm:$0xff]
    %v689 = vld [vmem:[#allocation9 + $0x140] sm:$0xff]
    %v690 = vld [vmem:[#allocation9 + $0x148] sm:$0xff]
    %v691 = vld [vmem:[#allocation9 + $0x150] sm:$0xff]
    %v692 = vld [vmem:[#allocation9 + $0x158] sm:$0xff]
    %v693 = vld [vmem:[#allocation9 + $0x160] sm:$0xff]
    %v694 = vld [vmem:[#allocation9 + $0x168] sm:$0xff]
    %v695 = vld [vmem:[#allocation9 + $0x170] sm:$0xff]
    %v696 = vld [vmem:[#allocation9 + $0x178] sm:$0xff]
    %v697 = vld [vmem:[#allocation9 + $0x180] sm:$0xff]
    %v698 = vld [vmem:[#allocation9 + $0x188] sm:$0xff]
    %v699 = vld [vmem:[#allocation9 + $0x190] sm:$0xff]
    %v700 = vld [vmem:[#allocation9 + $0x198] sm:$0xff]
    %v701 = vld [vmem:[#allocation9 + $0x1a0] sm:$0xff]
    %v702 = vld [vmem:[#allocation9 + $0x1a8] sm:$0xff]
    %v703 = vld [vmem:[#allocation9 + $0x1b0] sm:$0xff]
    %v704 = vld [vmem:[#allocation9 + $0x1b8] sm:$0xff]
    %v705 = vld [vmem:[#allocation9 + $0x1c0] sm:$0xff]
    %v706 = vld [vmem:[#allocation9 + $0x1c8] sm:$0xff]
    %v707 = vld [vmem:[#allocation9 + $0x1d0] sm:$0xff]
    %v708 = vld [vmem:[#allocation9 + $0x1d8] sm:$0xff]
    %v709 = vld [vmem:[#allocation9 + $0x1e0] sm:$0xff]
    %v710 = vld [vmem:[#allocation9 + $0x1e8] sm:$0xff]
    %v711 = vld [vmem:[#allocation9 + $0x1f0] sm:$0xff]
    %v712 = vld [vmem:[#allocation9 + $0x1f8] sm:$0xff]
    %v713 = vld [vmem:[#allocation9 + $0x200] sm:$0xff]
    %v714 = vld [vmem:[#allocation9 + $0x208] sm:$0xff]
    %v715 = vld [vmem:[#allocation9 + $0x210] sm:$0xff]
    %v716 = vld [vmem:[#allocation9 + $0x218] sm:$0xff]
    %v717 = vld [vmem:[#allocation9 + $0x220] sm:$0xff]
    %v718 = vld [vmem:[#allocation9 + $0x228] sm:$0xff]
    %v719 = vld [vmem:[#allocation9 + $0x230] sm:$0xff]
    %v720 = vld [vmem:[#allocation9 + $0x238] sm:$0xff]
    %v721 = vld [vmem:[#allocation9 + $0x240] sm:$0xff]
    %v722 = vld [vmem:[#allocation9 + $0x248] sm:$0xff]
    %v723 = vld [vmem:[#allocation9 + $0x250] sm:$0xff]
    %v724 = vld [vmem:[#allocation9 + $0x258] sm:$0xff]
    %v725 = vld [vmem:[#allocation9 + $0x260] sm:$0xff]
    %v726 = vld [vmem:[#allocation9 + $0x268] sm:$0xff]
    %v727 = vld [vmem:[#allocation9 + $0x270] sm:$0xff]
    %v728 = vld [vmem:[#allocation9 + $0x278] sm:$0xff]
    %v729 = vld [vmem:[#allocation9 + $0x280] sm:$0xff]
    %v730 = vld [vmem:[#allocation9 + $0x288] sm:$0xff]
    %v731 = vld [vmem:[#allocation9 + $0x290] sm:$0xff]
    %v732 = vld [vmem:[#allocation9 + $0x298] sm:$0xff]
    %v733 = vld [vmem:[#allocation9 + $0x2a0] sm:$0xff]
    %v734 = vld [vmem:[#allocation9 + $0x2a8] sm:$0xff]
    %v735 = vld [vmem:[#allocation9 + $0x2b0] sm:$0xff]
    %v736 = vld [vmem:[#allocation9 + $0x2b8] sm:$0xff]
    %v737 = vld [vmem:[#allocation9 + $0x2c0] sm:$0xff]
    %v738 = vld [vmem:[#allocation9 + $0x2c8] sm:$0xff]
    %v739 = vld [vmem:[#allocation9 + $0x2d0] sm:$0xff]
    %v740 = vld [vmem:[#allocation9 + $0x2d8] sm:$0xff]
    %v741 = vld [vmem:[#allocation9 + $0x2e0] sm:$0xff]
    %v742 = vld [vmem:[#allocation9 + $0x2e8] sm:$0xff]
    %v743 = vld [vmem:[#allocation9 + $0x2f0] sm:$0xff]
    %v744 = vld [vmem:[#allocation9 + $0x2f8] sm:$0xff]
    %v745 = vld [vmem:[#allocation9 + $0x300] sm:$0xff]
    %v746 = vld [vmem:[#allocation9 + $0x308] sm:$0xff]
    %v747 = vld [vmem:[#allocation9 + $0x310] sm:$0xff]
    %v748 = vld [vmem:[#allocation9 + $0x318] sm:$0xff]
    %v749 = vld [vmem:[#allocation9 + $0x320] sm:$0xff]
    %v750 = vld [vmem:[#allocation9 + $0x328] sm:$0xff]
    %v751 = vld [vmem:[#allocation9 + $0x330] sm:$0xff]
    %v752 = vld [vmem:[#allocation9 + $0x338] sm:$0xff]
    %v753 = vld [vmem:[#allocation9 + $0x340] sm:$0xff]
    %v754 = vld [vmem:[#allocation9 + $0x348] sm:$0xff]
    %v755 = vld [vmem:[#allocation9 + $0x350] sm:$0xff]
    %v756 = vld [vmem:[#allocation9 + $0x358] sm:$0xff]
    %v757 = vld [vmem:[#allocation9 + $0x360] sm:$0xff]
    %v758 = vld [vmem:[#allocation9 + $0x368] sm:$0xff]
    %v759 = vld [vmem:[#allocation9 + $0x370] sm:$0xff]
    %v760 = vld [vmem:[#allocation9 + $0x378] sm:$0xff]
    %v761 = vld [vmem:[#allocation9 + $0x380] sm:$0xff]
    %v762 = vld [vmem:[#allocation9 + $0x388] sm:$0xff]
    %v763 = vld [vmem:[#allocation9 + $0x390] sm:$0xff]
    %v764 = vld [vmem:[#allocation9 + $0x398] sm:$0xff]
    %v765 = vld [vmem:[#allocation9 + $0x3a0] sm:$0xff]
    %v766 = vld [vmem:[#allocation9 + $0x3a8] sm:$0xff]
    %v767 = vld [vmem:[#allocation9 + $0x3b0] sm:$0xff]
    %v768 = vld [vmem:[#allocation9 + $0x3b8] sm:$0xff]
    %v769 = vld [vmem:[#allocation9 + $0x3c0] sm:$0xff]
    %v770 = vld [vmem:[#allocation9 + $0x3c8] sm:$0xff]
    %v771 = vld [vmem:[#allocation9 + $0x3d0] sm:$0xff]
    %v772 = vld [vmem:[#allocation9 + $0x3d8] sm:$0xff]
    %v773 = vld [vmem:[#allocation9 + $0x3e0] sm:$0xff]
    %v774 = vld [vmem:[#allocation9 + $0x3e8] sm:$0xff]
    %v775 = vld [vmem:[#allocation9 + $0x3f0] sm:$0xff]
    %v776 = vld [vmem:[#allocation9 + $0x3f8] sm:$0xff]
    %v777 = vld [vmem:[#allocation9 + $0x400] sm:$0xff]
    %v778 = vld [vmem:[#allocation9 + $0x408] sm:$0xff]
    %v779 = vld [vmem:[#allocation9 + $0x410] sm:$0xff]
    %v780 = vld [vmem:[#allocation9 + $0x418] sm:$0xff]
    %v781 = vld [vmem:[#allocation9 + $0x420] sm:$0xff]
    %v782 = vld [vmem:[#allocation9 + $0x428] sm:$0xff]
    %v783 = vld [vmem:[#allocation9 + $0x430] sm:$0xff]
    %v784 = vld [vmem:[#allocation9 + $0x438] sm:$0xff]
    %v785 = vld [vmem:[#allocation9 + $0x440] sm:$0xff]
    %v786 = vld [vmem:[#allocation9 + $0x448] sm:$0xff]
    %v787 = vld [vmem:[#allocation9 + $0x450] sm:$0xff]
    %v788 = vld [vmem:[#allocation9 + $0x458] sm:$0xff]
    %v789 = vld [vmem:[#allocation9 + $0x460] sm:$0xff]
    %v790 = vld [vmem:[#allocation9 + $0x468] sm:$0xff]
    %v791 = vld [vmem:[#allocation9 + $0x470] sm:$0xff]
    %v792 = vld [vmem:[#allocation9 + $0x478] sm:$0xff]
    %v793 = vld [vmem:[#allocation9 + $0x480] sm:$0xff]
    %v794 = vld [vmem:[#allocation9 + $0x488] sm:$0xff]
    %v795 = vld [vmem:[#allocation9 + $0x490] sm:$0xff]
    %v796 = vld [vmem:[#allocation9 + $0x498] sm:$0xff]
    %v797 = vld [vmem:[#allocation9 + $0x4a0] sm:$0xff]
    %v798 = vld [vmem:[#allocation9 + $0x4a8] sm:$0xff]
    %v799 = vld [vmem:[#allocation9 + $0x4b0] sm:$0xff]
    %v800 = vld [vmem:[#allocation9 + $0x4b8] sm:$0xff]
    %v801 = vld [vmem:[#allocation9 + $0x4c0] sm:$0xff]
    %v802 = vld [vmem:[#allocation9 + $0x4c8] sm:$0xff]
    %v803 = vld [vmem:[#allocation9 + $0x4d0] sm:$0xff]
    %v804 = vld [vmem:[#allocation9 + $0x4d8] sm:$0xff]
    %v805 = vld [vmem:[#allocation9 + $0x4e0] sm:$0xff]
    %v806 = vld [vmem:[#allocation9 + $0x4e8] sm:$0xff]
    %v807 = vld [vmem:[#allocation9 + $0x4f0] sm:$0xff]
    %v808 = vld [vmem:[#allocation9 + $0x4f8] sm:$0xff]
    %v809 = vld [vmem:[#allocation9 + $0x500] sm:$0xff]
    %v810 = vld [vmem:[#allocation9 + $0x508] sm:$0xff]
    %v811 = vld [vmem:[#allocation9 + $0x510] sm:$0xff]
    %v812 = vld [vmem:[#allocation9 + $0x518] sm:$0xff]
    %v813 = vld [vmem:[#allocation9 + $0x520] sm:$0xff]
    %v814 = vld [vmem:[#allocation9 + $0x528] sm:$0xff]
    %v815 = vld [vmem:[#allocation9 + $0x530] sm:$0xff]
    %v816 = vld [vmem:[#allocation9 + $0x538] sm:$0xff]
    %v817 = vld [vmem:[#allocation9 + $0x540] sm:$0xff]
    %v818 = vld [vmem:[#allocation9 + $0x548] sm:$0xff]
    %v819 = vld [vmem:[#allocation9 + $0x550] sm:$0xff]
    %v820 = vld [vmem:[#allocation9 + $0x558] sm:$0xff]
    %v821 = vld [vmem:[#allocation9 + $0x560] sm:$0xff]
    %v822 = vld [vmem:[#allocation9 + $0x568] sm:$0xff]
    %v823 = vld [vmem:[#allocation9 + $0x570] sm:$0xff]
    %v824 = vld [vmem:[#allocation9 + $0x578] sm:$0xff]
    %v825 = vld [vmem:[#allocation9 + $0x580] sm:$0xff]
    %v826 = vld [vmem:[#allocation9 + $0x588] sm:$0xff]
    %v827 = vld [vmem:[#allocation9 + $0x590] sm:$0xff]
    %v828 = vld [vmem:[#allocation9 + $0x598] sm:$0xff]
    %v829 = vld [vmem:[#allocation9 + $0x5a0] sm:$0xff]
    %v830 = vld [vmem:[#allocation9 + $0x5a8] sm:$0xff]
    %v831 = vld [vmem:[#allocation9 + $0x5b0] sm:$0xff]
    %v832 = vld [vmem:[#allocation9 + $0x5b8] sm:$0xff]
    %v833 = vld [vmem:[#allocation9 + $0x5c0] sm:$0xff]
    %v834 = vld [vmem:[#allocation9 + $0x5c8] sm:$0xff]
    %v835 = vld [vmem:[#allocation9 + $0x5d0] sm:$0xff]
    %v836 = vld [vmem:[#allocation9 + $0x5d8] sm:$0xff]
    %v837 = vld [vmem:[#allocation9 + $0x5e0] sm:$0xff]
    %v838 = vld [vmem:[#allocation9 + $0x5e8] sm:$0xff]
    %v839 = vld [vmem:[#allocation9 + $0x5f0] sm:$0xff]
    %v840 = vld [vmem:[#allocation9 + $0x5f8] sm:$0xff]
    %v841 = vld [vmem:[#allocation9 + $0x600] sm:$0xff]
    %v842 = vld [vmem:[#allocation9 + $0x608] sm:$0xff]
    %v843 = vld [vmem:[#allocation9 + $0x610] sm:$0xff]
    %v844 = vld [vmem:[#allocation9 + $0x618] sm:$0xff]
    %v845 = vld [vmem:[#allocation9 + $0x620] sm:$0xff]
    %v846 = vld [vmem:[#allocation9 + $0x628] sm:$0xff]
    %v847 = vld [vmem:[#allocation9 + $0x630] sm:$0xff]
    %v848 = vld [vmem:[#allocation9 + $0x638] sm:$0xff]
    %v849 = vld [vmem:[#allocation9 + $0x640] sm:$0xff]
    %v850 = vld [vmem:[#allocation9 + $0x648] sm:$0xff]
    %v851 = vld [vmem:[#allocation9 + $0x650] sm:$0xff]
    %v852 = vld [vmem:[#allocation9 + $0x658] sm:$0xff]
    %v853 = vld [vmem:[#allocation9 + $0x660] sm:$0xff]
    %v854 = vld [vmem:[#allocation9 + $0x668] sm:$0xff]
    %v855 = vld [vmem:[#allocation9 + $0x670] sm:$0xff]
    %v856 = vld [vmem:[#allocation9 + $0x678] sm:$0xff]
    %v857 = vld [vmem:[#allocation9 + $0x680] sm:$0xff]
    %v858 = vld [vmem:[#allocation9 + $0x688] sm:$0xff]
    %v859 = vld [vmem:[#allocation9 + $0x690] sm:$0xff]
    %v860 = vld [vmem:[#allocation9 + $0x698] sm:$0xff]
    %v861 = vld [vmem:[#allocation9 + $0x6a0] sm:$0xff]
    %v862 = vld [vmem:[#allocation9 + $0x6a8] sm:$0xff]
    %v863 = vld [vmem:[#allocation9 + $0x6b0] sm:$0xff]
    %v864 = vld [vmem:[#allocation9 + $0x6b8] sm:$0xff]
    %v865 = vld [vmem:[#allocation9 + $0x6c0] sm:$0xff]
    %v866 = vld [vmem:[#allocation9 + $0x6c8] sm:$0xff]
    %v867 = vld [vmem:[#allocation9 + $0x6d0] sm:$0xff]
    %v868 = vld [vmem:[#allocation9 + $0x6d8] sm:$0xff]
    %v869 = vld [vmem:[#allocation9 + $0x6e0] sm:$0xff]
    %v870 = vld [vmem:[#allocation9 + $0x6e8] sm:$0xff]
    %v871 = vld [vmem:[#allocation9 + $0x6f0] sm:$0xff]
    %v872 = vld [vmem:[#allocation9 + $0x6f8] sm:$0xff]
    %v873 = vld [vmem:[#allocation9 + $0x700] sm:$0xff]
    %v874 = vld [vmem:[#allocation9 + $0x708] sm:$0xff]
    %v875 = vld [vmem:[#allocation9 + $0x710] sm:$0xff]
    %v876 = vld [vmem:[#allocation9 + $0x718] sm:$0xff]
    %v877 = vld [vmem:[#allocation9 + $0x720] sm:$0xff]
    %v878 = vld [vmem:[#allocation9 + $0x728] sm:$0xff]
    %v879 = vld [vmem:[#allocation9 + $0x730] sm:$0xff]
    %v880 = vld [vmem:[#allocation9 + $0x738] sm:$0xff]
    %v881 = vld [vmem:[#allocation9 + $0x740] sm:$0xff]
    %v882 = vld [vmem:[#allocation9 + $0x748] sm:$0xff]
    %v883 = vld [vmem:[#allocation9 + $0x750] sm:$0xff]
    %v884 = vld [vmem:[#allocation9 + $0x758] sm:$0xff]
    %v885 = vld [vmem:[#allocation9 + $0x760] sm:$0xff]
    %v886 = vld [vmem:[#allocation9 + $0x768] sm:$0xff]
    %v887 = vld [vmem:[#allocation9 + $0x770] sm:$0xff]
    %v888 = vld [vmem:[#allocation9 + $0x778] sm:$0xff]
    %v889 = vld [vmem:[#allocation9 + $0x780] sm:$0xff]
    %v890 = vld [vmem:[#allocation9 + $0x788] sm:$0xff]
    %v891 = vld [vmem:[#allocation9 + $0x790] sm:$0xff]
    %v892 = vld [vmem:[#allocation9 + $0x798] sm:$0xff]
    %v893 = vld [vmem:[#allocation9 + $0x7a0] sm:$0xff]
    %v894 = vld [vmem:[#allocation9 + $0x7a8] sm:$0xff]
    %v895 = vld [vmem:[#allocation9 + $0x7b0] sm:$0xff]
    %v896 = vld [vmem:[#allocation9 + $0x7b8] sm:$0xff]
    %v897 = vld [vmem:[#allocation9 + $0x7c0] sm:$0xff]
    %v898 = vld [vmem:[#allocation9 + $0x7c8] sm:$0xff]
    %v899 = vld [vmem:[#allocation9 + $0x7d0] sm:$0xff]
    %v900 = vld [vmem:[#allocation9 + $0x7d8] sm:$0xff]
    %v901 = vld [vmem:[#allocation9 + $0x7e0] sm:$0xff]
    %v902 = vld [vmem:[#allocation9 + $0x7e8] sm:$0xff]
    %v903 = vld [vmem:[#allocation9 + $0x7f0] sm:$0xff]
    %v904 = vld [vmem:[#allocation9 + $0x7f8] sm:$0xff]
    %v905 = vld [vmem:[#allocation9 + $0x800] sm:$0xff]
    %v906 = vld [vmem:[#allocation9 + $0x808] sm:$0xff]
    %v907 = vld [vmem:[#allocation9 + $0x810] sm:$0xff]
    %v908 = vld [vmem:[#allocation9 + $0x818] sm:$0xff]
    %v909 = vld [vmem:[#allocation9 + $0x820] sm:$0xff]
    %v910 = vld [vmem:[#allocation9 + $0x828] sm:$0xff]
    %v911 = vld [vmem:[#allocation9 + $0x830] sm:$0xff]
    %v912 = vld [vmem:[#allocation9 + $0x838] sm:$0xff]
    %v913 = vld [vmem:[#allocation9 + $0x840] sm:$0xff]
    %v914 = vld [vmem:[#allocation9 + $0x848] sm:$0xff]
    %v915 = vld [vmem:[#allocation9 + $0x850] sm:$0xff]
    %v916 = vld [vmem:[#allocation9 + $0x858] sm:$0xff]
    %v917 = vld [vmem:[#allocation9 + $0x860] sm:$0xff]
    %v918 = vld [vmem:[#allocation9 + $0x868] sm:$0xff]
    %v919 = vld [vmem:[#allocation9 + $0x870] sm:$0xff]
    %v920 = vld [vmem:[#allocation9 + $0x878] sm:$0xff]
    %v921 = vld [vmem:[#allocation9 + $0x880] sm:$0xff]
    %v922 = vld [vmem:[#allocation9 + $0x888] sm:$0xff]
    %v923 = vld [vmem:[#allocation9 + $0x890] sm:$0xff]
    %v924 = vld [vmem:[#allocation9 + $0x898] sm:$0xff]
    %v925 = vld [vmem:[#allocation9 + $0x8a0] sm:$0xff]
    %v926 = vld [vmem:[#allocation9 + $0x8a8] sm:$0xff]
    %v927 = vld [vmem:[#allocation9 + $0x8b0] sm:$0xff]
    %v928 = vld [vmem:[#allocation9 + $0x8b8] sm:$0xff]
    %v929 = vld [vmem:[#allocation9 + $0x8c0] sm:$0xff]
    %v930 = vld [vmem:[#allocation9 + $0x8c8] sm:$0xff]
    %v931 = vld [vmem:[#allocation9 + $0x8d0] sm:$0xff]
    %v932 = vld [vmem:[#allocation9 + $0x8d8] sm:$0xff]
    %v933 = vld [vmem:[#allocation9 + $0x8e0] sm:$0xff]
    %v934 = vld [vmem:[#allocation9 + $0x8e8] sm:$0xff]
    %v935 = vld [vmem:[#allocation9 + $0x8f0] sm:$0xff]
    %v936 = vld [vmem:[#allocation9 + $0x8f8] sm:$0xff]
    %v937 = vld [vmem:[#allocation9 + $0x900] sm:$0xff]
    %v938 = vld [vmem:[#allocation9 + $0x908] sm:$0xff]
    %v939 = vld [vmem:[#allocation9 + $0x910] sm:$0xff]
    %v940 = vld [vmem:[#allocation9 + $0x918] sm:$0xff]
    %v941 = vld [vmem:[#allocation9 + $0x920] sm:$0xff]
    %v942 = vld [vmem:[#allocation9 + $0x928] sm:$0xff]
    %v943 = vld [vmem:[#allocation9 + $0x930] sm:$0xff]
    %v944 = vld [vmem:[#allocation9 + $0x938] sm:$0xff]
    %v945 = vld [vmem:[#allocation9 + $0x940] sm:$0xff]
    %v946 = vld [vmem:[#allocation9 + $0x948] sm:$0xff]
    %v947 = vld [vmem:[#allocation9 + $0x950] sm:$0xff]
    %v948 = vld [vmem:[#allocation9 + $0x958] sm:$0xff]
    %v949 = vld [vmem:[#allocation9 + $0x960] sm:$0xff]
    %v950 = vld [vmem:[#allocation9 + $0x968] sm:$0xff]
    %v951 = vld [vmem:[#allocation9 + $0x970] sm:$0xff]
    %v952 = vld [vmem:[#allocation9 + $0x978] sm:$0xff]
    %v953 = vld [vmem:[#allocation9 + $0x980] sm:$0xff]
    %v954 = vld [vmem:[#allocation9 + $0x988] sm:$0xff]
    %v955 = vld [vmem:[#allocation9 + $0x990] sm:$0xff]
    %v956 = vld [vmem:[#allocation9 + $0x998] sm:$0xff]
    %v957 = vld [vmem:[#allocation9 + $0x9a0] sm:$0xff]
    %v958 = vld [vmem:[#allocation9 + $0x9a8] sm:$0xff]
    %v959 = vld [vmem:[#allocation9 + $0x9b0] sm:$0xff]
    %v960 = vld [vmem:[#allocation9 + $0x9b8] sm:$0xff]
    %v961 = vld [vmem:[#allocation9 + $0x9c0] sm:$0xff]
    %v962 = vld [vmem:[#allocation9 + $0x9c8] sm:$0xff]
    %v963 = vld [vmem:[#allocation9 + $0x9d0] sm:$0xff]
    %v964 = vld [vmem:[#allocation9 + $0x9d8] sm:$0xff]
    %v965 = vld [vmem:[#allocation9 + $0x9e0] sm:$0xff]
    %v966 = vld [vmem:[#allocation9 + $0x9e8] sm:$0xff]
    %v967 = vld [vmem:[#allocation9 + $0x9f0] sm:$0xff]
    %v968 = vld [vmem:[#allocation9 + $0x9f8] sm:$0xff]
    %v969 = vld [vmem:[#allocation9 + $0xa00] sm:$0xff]
    %v970 = vld [vmem:[#allocation9 + $0xa08] sm:$0xff]
    %v971 = vld [vmem:[#allocation9 + $0xa10] sm:$0xff]
    %v972 = vld [vmem:[#allocation9 + $0xa18] sm:$0xff]
    %v973 = vld [vmem:[#allocation9 + $0xa20] sm:$0xff]
    %v974 = vld [vmem:[#allocation9 + $0xa28] sm:$0xff]
    %v975 = vld [vmem:[#allocation9 + $0xa30] sm:$0xff]
    %v976 = vld [vmem:[#allocation9 + $0xa38] sm:$0xff]
    %v977 = vld [vmem:[#allocation9 + $0xa40] sm:$0xff]
    %v978 = vld [vmem:[#allocation9 + $0xa48] sm:$0xff]
    %v979 = vld [vmem:[#allocation9 + $0xa50] sm:$0xff]
    %v980 = vld [vmem:[#allocation9 + $0xa58] sm:$0xff]
    %v981 = vld [vmem:[#allocation9 + $0xa60] sm:$0xff]
    %v982 = vld [vmem:[#allocation9 + $0xa68] sm:$0xff]
    %v983 = vld [vmem:[#allocation9 + $0xa70] sm:$0xff]
    %v984 = vld [vmem:[#allocation9 + $0xa78] sm:$0xff]
    %v985 = vld [vmem:[#allocation9 + $0xa80] sm:$0xff]
    %v986 = vld [vmem:[#allocation9 + $0xa88] sm:$0xff]
    %v987 = vld [vmem:[#allocation9 + $0xa90] sm:$0xff]
    %v988 = vld [vmem:[#allocation9 + $0xa98] sm:$0xff]
    %v989 = vld [vmem:[#allocation9 + $0xaa0] sm:$0xff]
    %v990 = vld [vmem:[#allocation9 + $0xaa8] sm:$0xff]
    %v991 = vld [vmem:[#allocation9 + $0xab0] sm:$0xff]
    %v992 = vld [vmem:[#allocation9 + $0xab8] sm:$0xff]
    %v993 = vld [vmem:[#allocation9 + $0xac0] sm:$0xff]
    %v994 = vld [vmem:[#allocation9 + $0xac8] sm:$0xff]
    %v995 = vld [vmem:[#allocation9 + $0xad0] sm:$0xff]
    %v996 = vld [vmem:[#allocation9 + $0xad8] sm:$0xff]
    %v997 = vld [vmem:[#allocation9 + $0xae0] sm:$0xff]
    %v998 = vld [vmem:[#allocation9 + $0xae8] sm:$0xff]
    %v999 = vld [vmem:[#allocation9 + $0xaf0] sm:$0xff]
    %v1000 = vld [vmem:[#allocation9 + $0xaf8] sm:$0xff]
    %v1001 = vld [vmem:[#allocation9 + $0xb00] sm:$0xff]
    %v1002 = vld [vmem:[#allocation9 + $0xb08] sm:$0xff]
    %v1003 = vld [vmem:[#allocation9 + $0xb10] sm:$0xff]
    %v1004 = vld [vmem:[#allocation9 + $0xb18] sm:$0xff]
    %v1005 = vld [vmem:[#allocation9 + $0xb20] sm:$0xff]
    %v1006 = vld [vmem:[#allocation9 + $0xb28] sm:$0xff]
    %v1007 = vld [vmem:[#allocation9 + $0xb30] sm:$0xff]
    %v1008 = vld [vmem:[#allocation9 + $0xb38] sm:$0xff]
    %v1009 = vld [vmem:[#allocation9 + $0xb40] sm:$0xff]
    %v1010 = vld [vmem:[#allocation9 + $0xb48] sm:$0xff]
    %v1011 = vld [vmem:[#allocation9 + $0xb50] sm:$0xff]
    %v1012 = vld [vmem:[#allocation9 + $0xb58] sm:$0xff]
    %v1013 = vld [vmem:[#allocation9 + $0xb60] sm:$0xff]
    %v1014 = vld [vmem:[#allocation9 + $0xb68] sm:$0xff]
    %v1015 = vld [vmem:[#allocation9 + $0xb70] sm:$0xff]
    %v1016 = vld [vmem:[#allocation9 + $0xb78] sm:$0xff]
    %v1017 = vld [vmem:[#allocation9 + $0xb80] sm:$0xff]
    %v1018 = vld [vmem:[#allocation9 + $0xb88] sm:$0xff]
    %v1019 = vld [vmem:[#allocation9 + $0xb90] sm:$0xff]
    %v1020 = vld [vmem:[#allocation9 + $0xb98] sm:$0xff]
    %v1021 = vld [vmem:[#allocation9 + $0xba0] sm:$0xff]
    %v1022 = vld [vmem:[#allocation9 + $0xba8] sm:$0xff]
    %v1023 = vld [vmem:[#allocation9 + $0xbb0] sm:$0xff]
    %v1024 = vld [vmem:[#allocation9 + $0xbb8] sm:$0xff]
    %v1025 = vld [vmem:[#allocation9 + $0xbc0] sm:$0xff]
    %v1026 = vld [vmem:[#allocation9 + $0xbc8] sm:$0xff]
    %v1027 = vld [vmem:[#allocation9 + $0xbd0] sm:$0xff]
    %v1028 = vld [vmem:[#allocation9 + $0xbd8] sm:$0xff]
    %v1029 = vld [vmem:[#allocation9 + $0xbe0] sm:$0xff]
    %v1030 = vld [vmem:[#allocation9 + $0xbe8] sm:$0xff]
    %v1031 = vld [vmem:[#allocation9 + $0xbf0] sm:$0xff]
    %v1032 = vld [vmem:[#allocation9 + $0xbf8] sm:$0xff]
    %v1033 = vld [vmem:[#allocation9 + $0xc00] sm:$0xff]
    %v1034 = vld [vmem:[#allocation9 + $0xc08] sm:$0xff]
    %v1035 = vld [vmem:[#allocation9 + $0xc10] sm:$0xff]
    %v1036 = vld [vmem:[#allocation9 + $0xc18] sm:$0xff]
    %v1037 = vld [vmem:[#allocation9 + $0xc20] sm:$0xff]
    %v1038 = vld [vmem:[#allocation9 + $0xc28] sm:$0xff]
    %v1039 = vld [vmem:[#allocation9 + $0xc30] sm:$0xff]
    %v1040 = vld [vmem:[#allocation9 + $0xc38] sm:$0xff]
    %v1041 = vld [vmem:[#allocation9 + $0xc40] sm:$0xff]
    %v1042 = vld [vmem:[#allocation9 + $0xc48] sm:$0xff]
    %v1043 = vld [vmem:[#allocation9 + $0xc50] sm:$0xff]
    %v1044 = vld [vmem:[#allocation9 + $0xc58] sm:$0xff]
    %v1045 = vld [vmem:[#allocation9 + $0xc60] sm:$0xff]
    %v1046 = vld [vmem:[#allocation9 + $0xc68] sm:$0xff]
    %v1047 = vld [vmem:[#allocation9 + $0xc70] sm:$0xff]
    %v1048 = vld [vmem:[#allocation9 + $0xc78] sm:$0xff]
    %v1049 = vld [vmem:[#allocation9 + $0xc80] sm:$0xff]
    %v1050 = vld [vmem:[#allocation9 + $0xc88] sm:$0xff]
    %v1051 = vld [vmem:[#allocation9 + $0xc90] sm:$0xff]
    %v1052 = vld [vmem:[#allocation9 + $0xc98] sm:$0xff]
    %v1053 = vld [vmem:[#allocation9 + $0xca0] sm:$0xff]
    %v1054 = vld [vmem:[#allocation9 + $0xca8] sm:$0xff]
    %v1055 = vld [vmem:[#allocation9 + $0xcb0] sm:$0xff]
    %v1056 = vld [vmem:[#allocation9 + $0xcb8] sm:$0xff]
    %v1057 = vld [vmem:[#allocation9 + $0xcc0] sm:$0xff]
    %v1058 = vld [vmem:[#allocation9 + $0xcc8] sm:$0xff]
    %v1059 = vld [vmem:[#allocation9 + $0xcd0] sm:$0xff]
    %v1060 = vld [vmem:[#allocation9 + $0xcd8] sm:$0xff]
    %v1061 = vld [vmem:[#allocation9 + $0xce0] sm:$0xff]
    %v1062 = vld [vmem:[#allocation9 + $0xce8] sm:$0xff]
    %v1063 = vld [vmem:[#allocation9 + $0xcf0] sm:$0xff]
    %v1064 = vld [vmem:[#allocation9 + $0xcf8] sm:$0xff]
    %v1065 = vld [vmem:[#allocation9 + $0xd00] sm:$0xff]
    %v1066 = vld [vmem:[#allocation9 + $0xd08] sm:$0xff]
    %v1067 = vld [vmem:[#allocation9 + $0xd10] sm:$0xff]
    %v1068 = vld [vmem:[#allocation9 + $0xd18] sm:$0xff]
    %v1069 = vld [vmem:[#allocation9 + $0xd20] sm:$0xff]
    %v1070 = vld [vmem:[#allocation9 + $0xd28] sm:$0xff]
    %v1071 = vld [vmem:[#allocation9 + $0xd30] sm:$0xff]
    %v1072 = vld [vmem:[#allocation9 + $0xd38] sm:$0xff]
    %v1073 = vld [vmem:[#allocation9 + $0xd40] sm:$0xff]
    %v1074 = vld [vmem:[#allocation9 + $0xd48] sm:$0xff]
    %v1075 = vld [vmem:[#allocation9 + $0xd50] sm:$0xff]
    %v1076 = vld [vmem:[#allocation9 + $0xd58] sm:$0xff]
    %v1077 = vld [vmem:[#allocation9 + $0xd60] sm:$0xff]
    %v1078 = vld [vmem:[#allocation9 + $0xd68] sm:$0xff]
    %v1079 = vld [vmem:[#allocation9 + $0xd70] sm:$0xff]
    %v1080 = vld [vmem:[#allocation9 + $0xd78] sm:$0xff]
    %v1081 = vld [vmem:[#allocation9 + $0xd80] sm:$0xff]
    %v1082 = vld [vmem:[#allocation9 + $0xd88] sm:$0xff]
    %v1083 = vld [vmem:[#allocation9 + $0xd90] sm:$0xff]
    %v1084 = vld [vmem:[#allocation9 + $0xd98] sm:$0xff]
    %v1085 = vld [vmem:[#allocation9 + $0xda0] sm:$0xff]
    %v1086 = vld [vmem:[#allocation9 + $0xda8] sm:$0xff]
    %v1087 = vld [vmem:[#allocation9 + $0xdb0] sm:$0xff]
    %v1088 = vld [vmem:[#allocation9 + $0xdb8] sm:$0xff]
    %v1089 = vld [vmem:[#allocation9 + $0xdc0] sm:$0xff]
    %v1090 = vld [vmem:[#allocation9 + $0xdc8] sm:$0xff]
    %v1091 = vld [vmem:[#allocation9 + $0xdd0] sm:$0xff]
    %v1092 = vld [vmem:[#allocation9 + $0xdd8] sm:$0xff]
    %v1093 = vld [vmem:[#allocation9 + $0xde0] sm:$0xff]
    %v1094 = vld [vmem:[#allocation9 + $0xde8] sm:$0xff]
    %v1095 = vld [vmem:[#allocation9 + $0xdf0] sm:$0xff]
    %v1096 = vld [vmem:[#allocation9 + $0xdf8] sm:$0xff]
    %v1097 = vld [vmem:[#allocation9 + $0xe00] sm:$0xff]
    %v1098 = vld [vmem:[#allocation9 + $0xe08] sm:$0xff]
    %v1099 = vld [vmem:[#allocation9 + $0xe10] sm:$0xff]
    %v1100 = vld [vmem:[#allocation9 + $0xe18] sm:$0xff]
    %v1101 = vld [vmem:[#allocation9 + $0xe20] sm:$0xff]
    %v1102 = vld [vmem:[#allocation9 + $0xe28] sm:$0xff]
    %v1103 = vld [vmem:[#allocation9 + $0xe30] sm:$0xff]
    %v1104 = vld [vmem:[#allocation9 + $0xe38] sm:$0xff]
    %v1105 = vld [vmem:[#allocation9 + $0xe40] sm:$0xff]
    %v1106 = vld [vmem:[#allocation9 + $0xe48] sm:$0xff]
    %v1107 = vld [vmem:[#allocation9 + $0xe50] sm:$0xff]
    %v1108 = vld [vmem:[#allocation9 + $0xe58] sm:$0xff]
    %v1109 = vld [vmem:[#allocation9 + $0xe60] sm:$0xff]
    %v1110 = vld [vmem:[#allocation9 + $0xe68] sm:$0xff]
    %v1111 = vld [vmem:[#allocation9 + $0xe70] sm:$0xff]
    %v1112 = vld [vmem:[#allocation9 + $0xe78] sm:$0xff]
    %v1113 = vld [vmem:[#allocation9 + $0xe80] sm:$0xff]
    %v1114 = vld [vmem:[#allocation9 + $0xe88] sm:$0xff]
    %v1115 = vld [vmem:[#allocation9 + $0xe90] sm:$0xff]
    %v1116 = vld [vmem:[#allocation9 + $0xe98] sm:$0xff]
    %v1117 = vld [vmem:[#allocation9 + $0xea0] sm:$0xff]
    %v1118 = vld [vmem:[#allocation9 + $0xea8] sm:$0xff]
    %v1119 = vld [vmem:[#allocation9 + $0xeb0] sm:$0xff]
    %v1120 = vld [vmem:[#allocation9 + $0xeb8] sm:$0xff]
    %v1121 = vld [vmem:[#allocation9 + $0xec0] sm:$0xff]
    %v1122 = vld [vmem:[#allocation9 + $0xec8] sm:$0xff]
    %v1123 = vld [vmem:[#allocation9 + $0xed0] sm:$0xff]
    %v1124 = vld [vmem:[#allocation9 + $0xed8] sm:$0xff]
    %v1125 = vld [vmem:[#allocation9 + $0xee0] sm:$0xff]
    %v1126 = vld [vmem:[#allocation9 + $0xee8] sm:$0xff]
    %v1127 = vld [vmem:[#allocation9 + $0xef0] sm:$0xff]
    %v1128 = vld [vmem:[#allocation9 + $0xef8] sm:$0xff]
    %v1129 = vld [vmem:[#allocation9 + $0xf00] sm:$0xff]
    %v1130 = vld [vmem:[#allocation9 + $0xf08] sm:$0xff]
    %v1131 = vld [vmem:[#allocation9 + $0xf10] sm:$0xff]
    %v1132 = vld [vmem:[#allocation9 + $0xf18] sm:$0xff]
    %v1133 = vld [vmem:[#allocation9 + $0xf20] sm:$0xff]
    %v1134 = vld [vmem:[#allocation9 + $0xf28] sm:$0xff]
    %v1135 = vld [vmem:[#allocation9 + $0xf30] sm:$0xff]
    %v1136 = vld [vmem:[#allocation9 + $0xf38] sm:$0xff]
    %v1137 = vld [vmem:[#allocation9 + $0xf40] sm:$0xff]
    %v1138 = vld [vmem:[#allocation9 + $0xf48] sm:$0xff]
    %v1139 = vld [vmem:[#allocation9 + $0xf50] sm:$0xff]
    %v1140 = vld [vmem:[#allocation9 + $0xf58] sm:$0xff]
    %v1141 = vld [vmem:[#allocation9 + $0xf60] sm:$0xff]
    %v1142 = vld [vmem:[#allocation9 + $0xf68] sm:$0xff]
    %v1143 = vld [vmem:[#allocation9 + $0xf70] sm:$0xff]
    %v1144 = vld [vmem:[#allocation9 + $0xf78] sm:$0xff]
    %v1145 = vld [vmem:[#allocation9 + $0xf80] sm:$0xff]
    %v1146 = vld [vmem:[#allocation9 + $0xf88] sm:$0xff]
    %v1147 = vld [vmem:[#allocation9 + $0xf90] sm:$0xff]
    %v1148 = vld [vmem:[#allocation9 + $0xf98] sm:$0xff]
    %v1149 = vld [vmem:[#allocation9 + $0xfa0] sm:$0xff]
    %v1150 = vld [vmem:[#allocation9 + $0xfa8] sm:$0xff]
    %v1151 = vld [vmem:[#allocation9 + $0xfb0] sm:$0xff]
    %v1152 = vld [vmem:[#allocation9 + $0xfb8] sm:$0xff]
    %v1153 = vld [vmem:[#allocation9 + $0xfc0] sm:$0xff]
    %v1154 = vld [vmem:[#allocation9 + $0xfc8] sm:$0xff]
    %v1155 = vld [vmem:[#allocation9 + $0xfd0] sm:$0xff]
    %v1156 = vld [vmem:[#allocation9 + $0xfd8] sm:$0xff]
    %v1157 = vld [vmem:[#allocation9 + $0xfe0] sm:$0xff]
    %v1158 = vld [vmem:[#allocation9 + $0xfe8] sm:$0xff]
    %v1159 = vld [vmem:[#allocation9 + $0xff0] sm:$0xff]
    %v1160 = vld [vmem:[#allocation9 + $0xff8] sm:$0xff]
    %v1161 = vld [vmem:[#allocation11] sm:$0xff]
    %v1163 = vlaneseq
    %v1164 = vshrl.u32 %v1163, 7
    %v1165 = vsub.s32 0, %v1164
    %v1166 = vrot.slane %v1161, %v1165
    %v1167 = vlaneseq
    %v1168 = vshrl.u32 %v1167, 7
    %v1169 = vsub.s32 1, %v1168
    %v1170 = vrot.slane %v1161, %v1169
    %v1171 = vlaneseq
    %v1172 = vshrl.u32 %v1171, 7
    %v1173 = vsub.s32 2, %v1172
    %v1174 = vrot.slane %v1161, %v1173
    %v1175 = vlaneseq
    %v1176 = vshrl.u32 %v1175, 7
    %v1177 = vsub.s32 3, %v1176
    %v1178 = vrot.slane %v1161, %v1177
    %v1179 = vlaneseq
    %v1180 = vshrl.u32 %v1179, 7
    %v1181 = vsub.s32 4, %v1180
    %v1182 = vrot.slane %v1161, %v1181
    %v1183 = vlaneseq
    %v1184 = vshrl.u32 %v1183, 7
    %v1185 = vsub.s32 5, %v1184
    %v1186 = vrot.slane %v1161, %v1185
    %v1187 = vlaneseq
    %v1188 = vshrl.u32 %v1187, 7
    %v1189 = vsub.s32 6, %v1188
    %v1190 = vrot.slane %v1161, %v1189
    %v1191 = vlaneseq
    %v1192 = vshrl.u32 %v1191, 7
    %v1193 = vsub.s32 7, %v1192
    %v1194 = vrot.slane %v1161, %v1193
    %v1715 = vunpack.c.l.b16 %v649
    %v1716 = vunpack.c.h.b16 %v649
    %v1717 = vunpack.c.l.b16 %v650
    %v1718 = vunpack.c.h.b16 %v650
    %v1719 = vunpack.c.l.b16 %v651
    %v1720 = vunpack.c.h.b16 %v651
    %v1721 = vunpack.c.l.b16 %v652
    %v1722 = vunpack.c.h.b16 %v652
    %v1723 = vunpack.c.l.b16 %v653
    %v1724 = vunpack.c.h.b16 %v653
    %v1725 = vunpack.c.l.b16 %v654
    %v1726 = vunpack.c.h.b16 %v654
    %v1727 = vunpack.c.l.b16 %v655
    %v1728 = vunpack.c.h.b16 %v655
    %v1729 = vunpack.c.l.b16 %v656
    %v1730 = vunpack.c.h.b16 %v656
    %v1731 = vunpack.c.l.b16 %v657
    %v1732 = vunpack.c.h.b16 %v657
    %v1733 = vunpack.c.l.b16 %v658
    %v1734 = vunpack.c.h.b16 %v658
    %v1735 = vunpack.c.l.b16 %v659
    %v1736 = vunpack.c.h.b16 %v659
    %v1737 = vunpack.c.l.b16 %v660
    %v1738 = vunpack.c.h.b16 %v660
    %v1739 = vunpack.c.l.b16 %v661
    %v1740 = vunpack.c.h.b16 %v661
    %v1741 = vunpack.c.l.b16 %v662
    %v1742 = vunpack.c.h.b16 %v662
    %v1743 = vunpack.c.l.b16 %v663
    %v1744 = vunpack.c.h.b16 %v663
    %v1745 = vunpack.c.l.b16 %v664
    %v1746 = vunpack.c.h.b16 %v664
    %v1747 = vunpack.c.l.b16 %v665
    %v1748 = vunpack.c.h.b16 %v665
    %v1749 = vunpack.c.l.b16 %v666
    %v1750 = vunpack.c.h.b16 %v666
    %v1751 = vunpack.c.l.b16 %v667
    %v1752 = vunpack.c.h.b16 %v667
    %v1753 = vunpack.c.l.b16 %v668
    %v1754 = vunpack.c.h.b16 %v668
    %v1755 = vunpack.c.l.b16 %v669
    %v1756 = vunpack.c.h.b16 %v669
    %v1757 = vunpack.c.l.b16 %v670
    %v1758 = vunpack.c.h.b16 %v670
    %v1759 = vunpack.c.l.b16 %v671
    %v1760 = vunpack.c.h.b16 %v671
    %v1761 = vunpack.c.l.b16 %v672
    %v1762 = vunpack.c.h.b16 %v672
    %v1763 = vunpack.c.l.b16 %v673
    %v1764 = vunpack.c.h.b16 %v673
    %v1765 = vunpack.c.l.b16 %v674
    %v1766 = vunpack.c.h.b16 %v674
    %v1767 = vunpack.c.l.b16 %v675
    %v1768 = vunpack.c.h.b16 %v675
    %v1769 = vunpack.c.l.b16 %v676
    %v1770 = vunpack.c.h.b16 %v676
    %v1771 = vunpack.c.l.b16 %v677
    %v1772 = vunpack.c.h.b16 %v677
    %v1773 = vunpack.c.l.b16 %v678
    %v1774 = vunpack.c.h.b16 %v678
    %v1775 = vunpack.c.l.b16 %v679
    %v1776 = vunpack.c.h.b16 %v679
    %v1777 = vunpack.c.l.b16 %v680
    %v1778 = vunpack.c.h.b16 %v680
    %v1779 = vunpack.c.l.b16 %v681
    %v1780 = vunpack.c.h.b16 %v681
    %v1781 = vunpack.c.l.b16 %v682
    %v1782 = vunpack.c.h.b16 %v682
    %v1783 = vunpack.c.l.b16 %v683
    %v1784 = vunpack.c.h.b16 %v683
    %v1785 = vunpack.c.l.b16 %v684
    %v1786 = vunpack.c.h.b16 %v684
    %v1787 = vunpack.c.l.b16 %v685
    %v1788 = vunpack.c.h.b16 %v685
    %v1789 = vunpack.c.l.b16 %v686
    %v1790 = vunpack.c.h.b16 %v686
    %v1791 = vunpack.c.l.b16 %v687
    %v1792 = vunpack.c.h.b16 %v687
    %v1793 = vunpack.c.l.b16 %v688
    %v1794 = vunpack.c.h.b16 %v688
    %v1795 = vunpack.c.l.b16 %v689
    %v1796 = vunpack.c.h.b16 %v689
    %v1797 = vunpack.c.l.b16 %v690
    %v1798 = vunpack.c.h.b16 %v690
    %v1799 = vunpack.c.l.b16 %v691
    %v1800 = vunpack.c.h.b16 %v691
    %v1801 = vunpack.c.l.b16 %v692
    %v1802 = vunpack.c.h.b16 %v692
    %v1803 = vunpack.c.l.b16 %v693
    %v1804 = vunpack.c.h.b16 %v693
    %v1805 = vunpack.c.l.b16 %v694
    %v1806 = vunpack.c.h.b16 %v694
    %v1807 = vunpack.c.l.b16 %v695
    %v1808 = vunpack.c.h.b16 %v695
    %v1809 = vunpack.c.l.b16 %v696
    %v1810 = vunpack.c.h.b16 %v696
    %v1811 = vunpack.c.l.b16 %v697
    %v1812 = vunpack.c.h.b16 %v697
    %v1813 = vunpack.c.l.b16 %v698
    %v1814 = vunpack.c.h.b16 %v698
    %v1815 = vunpack.c.l.b16 %v699
    %v1816 = vunpack.c.h.b16 %v699
    %v1817 = vunpack.c.l.b16 %v700
    %v1818 = vunpack.c.h.b16 %v700
    %v1819 = vunpack.c.l.b16 %v701
    %v1820 = vunpack.c.h.b16 %v701
    %v1821 = vunpack.c.l.b16 %v702
    %v1822 = vunpack.c.h.b16 %v702
    %v1823 = vunpack.c.l.b16 %v703
    %v1824 = vunpack.c.h.b16 %v703
    %v1825 = vunpack.c.l.b16 %v704
    %v1826 = vunpack.c.h.b16 %v704
    %v1827 = vunpack.c.l.b16 %v705
    %v1828 = vunpack.c.h.b16 %v705
    %v1829 = vunpack.c.l.b16 %v706
    %v1830 = vunpack.c.h.b16 %v706
    %v1831 = vunpack.c.l.b16 %v707
    %v1832 = vunpack.c.h.b16 %v707
    %v1833 = vunpack.c.l.b16 %v708
    %v1834 = vunpack.c.h.b16 %v708
    %v1835 = vunpack.c.l.b16 %v709
    %v1836 = vunpack.c.h.b16 %v709
    %v1837 = vunpack.c.l.b16 %v710
    %v1838 = vunpack.c.h.b16 %v710
    %v1839 = vunpack.c.l.b16 %v711
    %v1840 = vunpack.c.h.b16 %v711
    %v1841 = vunpack.c.l.b16 %v712
    %v1842 = vunpack.c.h.b16 %v712
    %v1843 = vunpack.c.l.b16 %v713
    %v1844 = vunpack.c.h.b16 %v713
    %v1845 = vunpack.c.l.b16 %v714
    %v1846 = vunpack.c.h.b16 %v714
    %v1847 = vunpack.c.l.b16 %v715
    %v1848 = vunpack.c.h.b16 %v715
    %v1849 = vunpack.c.l.b16 %v716
    %v1850 = vunpack.c.h.b16 %v716
    %v1851 = vunpack.c.l.b16 %v717
    %v1852 = vunpack.c.h.b16 %v717
    %v1853 = vunpack.c.l.b16 %v718
    %v1854 = vunpack.c.h.b16 %v718
    %v1855 = vunpack.c.l.b16 %v719
    %v1856 = vunpack.c.h.b16 %v719
    %v1857 = vunpack.c.l.b16 %v720
    %v1858 = vunpack.c.h.b16 %v720
    %v1859 = vunpack.c.l.b16 %v721
    %v1860 = vunpack.c.h.b16 %v721
    %v1861 = vunpack.c.l.b16 %v722
    %v1862 = vunpack.c.h.b16 %v722
    %v1863 = vunpack.c.l.b16 %v723
    %v1864 = vunpack.c.h.b16 %v723
    %v1865 = vunpack.c.l.b16 %v724
    %v1866 = vunpack.c.h.b16 %v724
    %v1867 = vunpack.c.l.b16 %v725
    %v1868 = vunpack.c.h.b16 %v725
    %v1869 = vunpack.c.l.b16 %v726
    %v1870 = vunpack.c.h.b16 %v726
    %v1871 = vunpack.c.l.b16 %v727
    %v1872 = vunpack.c.h.b16 %v727
    %v1873 = vunpack.c.l.b16 %v728
    %v1874 = vunpack.c.h.b16 %v728
    %v1875 = vunpack.c.l.b16 %v729
    %v1876 = vunpack.c.h.b16 %v729
    %v1877 = vunpack.c.l.b16 %v730
    %v1878 = vunpack.c.h.b16 %v730
    %v1879 = vunpack.c.l.b16 %v731
    %v1880 = vunpack.c.h.b16 %v731
    %v1881 = vunpack.c.l.b16 %v732
    %v1882 = vunpack.c.h.b16 %v732
    %v1883 = vunpack.c.l.b16 %v733
    %v1884 = vunpack.c.h.b16 %v733
    %v1885 = vunpack.c.l.b16 %v734
    %v1886 = vunpack.c.h.b16 %v734
    %v1887 = vunpack.c.l.b16 %v735
    %v1888 = vunpack.c.h.b16 %v735
    %v1889 = vunpack.c.l.b16 %v736
    %v1890 = vunpack.c.h.b16 %v736
    %v1891 = vunpack.c.l.b16 %v737
    %v1892 = vunpack.c.h.b16 %v737
    %v1893 = vunpack.c.l.b16 %v738
    %v1894 = vunpack.c.h.b16 %v738
    %v1895 = vunpack.c.l.b16 %v739
    %v1896 = vunpack.c.h.b16 %v739
    %v1897 = vunpack.c.l.b16 %v740
    %v1898 = vunpack.c.h.b16 %v740
    %v1899 = vunpack.c.l.b16 %v741
    %v1900 = vunpack.c.h.b16 %v741
    %v1901 = vunpack.c.l.b16 %v742
    %v1902 = vunpack.c.h.b16 %v742
    %v1903 = vunpack.c.l.b16 %v743
    %v1904 = vunpack.c.h.b16 %v743
    %v1905 = vunpack.c.l.b16 %v744
    %v1906 = vunpack.c.h.b16 %v744
    %v1907 = vunpack.c.l.b16 %v745
    %v1908 = vunpack.c.h.b16 %v745
    %v1909 = vunpack.c.l.b16 %v746
    %v1910 = vunpack.c.h.b16 %v746
    %v1911 = vunpack.c.l.b16 %v747
    %v1912 = vunpack.c.h.b16 %v747
    %v1913 = vunpack.c.l.b16 %v748
    %v1914 = vunpack.c.h.b16 %v748
    %v1915 = vunpack.c.l.b16 %v749
    %v1916 = vunpack.c.h.b16 %v749
    %v1917 = vunpack.c.l.b16 %v750
    %v1918 = vunpack.c.h.b16 %v750
    %v1919 = vunpack.c.l.b16 %v751
    %v1920 = vunpack.c.h.b16 %v751
    %v1921 = vunpack.c.l.b16 %v752
    %v1922 = vunpack.c.h.b16 %v752
    %v1923 = vunpack.c.l.b16 %v753
    %v1924 = vunpack.c.h.b16 %v753
    %v1925 = vunpack.c.l.b16 %v754
    %v1926 = vunpack.c.h.b16 %v754
    %v1927 = vunpack.c.l.b16 %v755
    %v1928 = vunpack.c.h.b16 %v755
    %v1929 = vunpack.c.l.b16 %v756
    %v1930 = vunpack.c.h.b16 %v756
    %v1931 = vunpack.c.l.b16 %v757
    %v1932 = vunpack.c.h.b16 %v757
    %v1933 = vunpack.c.l.b16 %v758
    %v1934 = vunpack.c.h.b16 %v758
    %v1935 = vunpack.c.l.b16 %v759
    %v1936 = vunpack.c.h.b16 %v759
    %v1937 = vunpack.c.l.b16 %v760
    %v1938 = vunpack.c.h.b16 %v760
    %v1939 = vunpack.c.l.b16 %v761
    %v1940 = vunpack.c.h.b16 %v761
    %v1941 = vunpack.c.l.b16 %v762
    %v1942 = vunpack.c.h.b16 %v762
    %v1943 = vunpack.c.l.b16 %v763
    %v1944 = vunpack.c.h.b16 %v763
    %v1945 = vunpack.c.l.b16 %v764
    %v1946 = vunpack.c.h.b16 %v764
    %v1947 = vunpack.c.l.b16 %v765
    %v1948 = vunpack.c.h.b16 %v765
    %v1949 = vunpack.c.l.b16 %v766
    %v1950 = vunpack.c.h.b16 %v766
    %v1951 = vunpack.c.l.b16 %v767
    %v1952 = vunpack.c.h.b16 %v767
    %v1953 = vunpack.c.l.b16 %v768
    %v1954 = vunpack.c.h.b16 %v768
    %v1955 = vunpack.c.l.b16 %v769
    %v1956 = vunpack.c.h.b16 %v769
    %v1957 = vunpack.c.l.b16 %v770
    %v1958 = vunpack.c.h.b16 %v770
    %v1959 = vunpack.c.l.b16 %v771
    %v1960 = vunpack.c.h.b16 %v771
    %v1961 = vunpack.c.l.b16 %v772
    %v1962 = vunpack.c.h.b16 %v772
    %v1963 = vunpack.c.l.b16 %v773
    %v1964 = vunpack.c.h.b16 %v773
    %v1965 = vunpack.c.l.b16 %v774
    %v1966 = vunpack.c.h.b16 %v774
    %v1967 = vunpack.c.l.b16 %v775
    %v1968 = vunpack.c.h.b16 %v775
    %v1969 = vunpack.c.l.b16 %v776
    %v1970 = vunpack.c.h.b16 %v776
    %v1971 = vunpack.c.l.b16 %v777
    %v1972 = vunpack.c.h.b16 %v777
    %v1973 = vunpack.c.l.b16 %v778
    %v1974 = vunpack.c.h.b16 %v778
    %v1975 = vunpack.c.l.b16 %v779
    %v1976 = vunpack.c.h.b16 %v779
    %v1977 = vunpack.c.l.b16 %v780
    %v1978 = vunpack.c.h.b16 %v780
    %v1979 = vunpack.c.l.b16 %v781
    %v1980 = vunpack.c.h.b16 %v781
    %v1981 = vunpack.c.l.b16 %v782
    %v1982 = vunpack.c.h.b16 %v782
    %v1983 = vunpack.c.l.b16 %v783
    %v1984 = vunpack.c.h.b16 %v783
    %v1985 = vunpack.c.l.b16 %v784
    %v1986 = vunpack.c.h.b16 %v784
    %v1987 = vunpack.c.l.b16 %v785
    %v1988 = vunpack.c.h.b16 %v785
    %v1989 = vunpack.c.l.b16 %v786
    %v1990 = vunpack.c.h.b16 %v786
    %v1991 = vunpack.c.l.b16 %v787
    %v1992 = vunpack.c.h.b16 %v787
    %v1993 = vunpack.c.l.b16 %v788
    %v1994 = vunpack.c.h.b16 %v788
    %v1995 = vunpack.c.l.b16 %v789
    %v1996 = vunpack.c.h.b16 %v789
    %v1997 = vunpack.c.l.b16 %v790
    %v1998 = vunpack.c.h.b16 %v790
    %v1999 = vunpack.c.l.b16 %v791
    %v2000 = vunpack.c.h.b16 %v791
    %v2001 = vunpack.c.l.b16 %v792
    %v2002 = vunpack.c.h.b16 %v792
    %v2003 = vunpack.c.l.b16 %v793
    %v2004 = vunpack.c.h.b16 %v793
    %v2005 = vunpack.c.l.b16 %v794
    %v2006 = vunpack.c.h.b16 %v794
    %v2007 = vunpack.c.l.b16 %v795
    %v2008 = vunpack.c.h.b16 %v795
    %v2009 = vunpack.c.l.b16 %v796
    %v2010 = vunpack.c.h.b16 %v796
    %v2011 = vunpack.c.l.b16 %v797
    %v2012 = vunpack.c.h.b16 %v797
    %v2013 = vunpack.c.l.b16 %v798
    %v2014 = vunpack.c.h.b16 %v798
    %v2015 = vunpack.c.l.b16 %v799
    %v2016 = vunpack.c.h.b16 %v799
    %v2017 = vunpack.c.l.b16 %v800
    %v2018 = vunpack.c.h.b16 %v800
    %v2019 = vunpack.c.l.b16 %v801
    %v2020 = vunpack.c.h.b16 %v801
    %v2021 = vunpack.c.l.b16 %v802
    %v2022 = vunpack.c.h.b16 %v802
    %v2023 = vunpack.c.l.b16 %v803
    %v2024 = vunpack.c.h.b16 %v803
    %v2025 = vunpack.c.l.b16 %v804
    %v2026 = vunpack.c.h.b16 %v804
    %v2027 = vunpack.c.l.b16 %v805
    %v2028 = vunpack.c.h.b16 %v805
    %v2029 = vunpack.c.l.b16 %v806
    %v2030 = vunpack.c.h.b16 %v806
    %v2031 = vunpack.c.l.b16 %v807
    %v2032 = vunpack.c.h.b16 %v807
    %v2033 = vunpack.c.l.b16 %v808
    %v2034 = vunpack.c.h.b16 %v808
    %v2035 = vunpack.c.l.b16 %v809
    %v2036 = vunpack.c.h.b16 %v809
    %v2037 = vunpack.c.l.b16 %v810
    %v2038 = vunpack.c.h.b16 %v810
    %v2039 = vunpack.c.l.b16 %v811
    %v2040 = vunpack.c.h.b16 %v811
    %v2041 = vunpack.c.l.b16 %v812
    %v2042 = vunpack.c.h.b16 %v812
    %v2043 = vunpack.c.l.b16 %v813
    %v2044 = vunpack.c.h.b16 %v813
    %v2045 = vunpack.c.l.b16 %v814
    %v2046 = vunpack.c.h.b16 %v814
    %v2047 = vunpack.c.l.b16 %v815
    %v2048 = vunpack.c.h.b16 %v815
    %v2049 = vunpack.c.l.b16 %v816
    %v2050 = vunpack.c.h.b16 %v816
    %v2051 = vunpack.c.l.b16 %v817
    %v2052 = vunpack.c.h.b16 %v817
    %v2053 = vunpack.c.l.b16 %v818
    %v2054 = vunpack.c.h.b16 %v818
    %v2055 = vunpack.c.l.b16 %v819
    %v2056 = vunpack.c.h.b16 %v819
    %v2057 = vunpack.c.l.b16 %v820
    %v2058 = vunpack.c.h.b16 %v820
    %v2059 = vunpack.c.l.b16 %v821
    %v2060 = vunpack.c.h.b16 %v821
    %v2061 = vunpack.c.l.b16 %v822
    %v2062 = vunpack.c.h.b16 %v822
    %v2063 = vunpack.c.l.b16 %v823
    %v2064 = vunpack.c.h.b16 %v823
    %v2065 = vunpack.c.l.b16 %v824
    %v2066 = vunpack.c.h.b16 %v824
    %v2067 = vunpack.c.l.b16 %v825
    %v2068 = vunpack.c.h.b16 %v825
    %v2069 = vunpack.c.l.b16 %v826
    %v2070 = vunpack.c.h.b16 %v826
    %v2071 = vunpack.c.l.b16 %v827
    %v2072 = vunpack.c.h.b16 %v827
    %v2073 = vunpack.c.l.b16 %v828
    %v2074 = vunpack.c.h.b16 %v828
    %v2075 = vunpack.c.l.b16 %v829
    %v2076 = vunpack.c.h.b16 %v829
    %v2077 = vunpack.c.l.b16 %v830
    %v2078 = vunpack.c.h.b16 %v830
    %v2079 = vunpack.c.l.b16 %v831
    %v2080 = vunpack.c.h.b16 %v831
    %v2081 = vunpack.c.l.b16 %v832
    %v2082 = vunpack.c.h.b16 %v832
    %v2083 = vunpack.c.l.b16 %v833
    %v2084 = vunpack.c.h.b16 %v833
    %v2085 = vunpack.c.l.b16 %v834
    %v2086 = vunpack.c.h.b16 %v834
    %v2087 = vunpack.c.l.b16 %v835
    %v2088 = vunpack.c.h.b16 %v835
    %v2089 = vunpack.c.l.b16 %v836
    %v2090 = vunpack.c.h.b16 %v836
    %v2091 = vunpack.c.l.b16 %v837
    %v2092 = vunpack.c.h.b16 %v837
    %v2093 = vunpack.c.l.b16 %v838
    %v2094 = vunpack.c.h.b16 %v838
    %v2095 = vunpack.c.l.b16 %v839
    %v2096 = vunpack.c.h.b16 %v839
    %v2097 = vunpack.c.l.b16 %v840
    %v2098 = vunpack.c.h.b16 %v840
    %v2099 = vunpack.c.l.b16 %v841
    %v2100 = vunpack.c.h.b16 %v841
    %v2101 = vunpack.c.l.b16 %v842
    %v2102 = vunpack.c.h.b16 %v842
    %v2103 = vunpack.c.l.b16 %v843
    %v2104 = vunpack.c.h.b16 %v843
    %v2105 = vunpack.c.l.b16 %v844
    %v2106 = vunpack.c.h.b16 %v844
    %v2107 = vunpack.c.l.b16 %v845
    %v2108 = vunpack.c.h.b16 %v845
    %v2109 = vunpack.c.l.b16 %v846
    %v2110 = vunpack.c.h.b16 %v846
    %v2111 = vunpack.c.l.b16 %v847
    %v2112 = vunpack.c.h.b16 %v847
    %v2113 = vunpack.c.l.b16 %v848
    %v2114 = vunpack.c.h.b16 %v848
    %v2115 = vunpack.c.l.b16 %v849
    %v2116 = vunpack.c.h.b16 %v849
    %v2117 = vunpack.c.l.b16 %v850
    %v2118 = vunpack.c.h.b16 %v850
    %v2119 = vunpack.c.l.b16 %v851
    %v2120 = vunpack.c.h.b16 %v851
    %v2121 = vunpack.c.l.b16 %v852
    %v2122 = vunpack.c.h.b16 %v852
    %v2123 = vunpack.c.l.b16 %v853
    %v2124 = vunpack.c.h.b16 %v853
    %v2125 = vunpack.c.l.b16 %v854
    %v2126 = vunpack.c.h.b16 %v854
    %v2127 = vunpack.c.l.b16 %v855
    %v2128 = vunpack.c.h.b16 %v855
    %v2129 = vunpack.c.l.b16 %v856
    %v2130 = vunpack.c.h.b16 %v856
    %v2131 = vunpack.c.l.b16 %v857
    %v2132 = vunpack.c.h.b16 %v857
    %v2133 = vunpack.c.l.b16 %v858
    %v2134 = vunpack.c.h.b16 %v858
    %v2135 = vunpack.c.l.b16 %v859
    %v2136 = vunpack.c.h.b16 %v859
    %v2137 = vunpack.c.l.b16 %v860
    %v2138 = vunpack.c.h.b16 %v860
    %v2139 = vunpack.c.l.b16 %v861
    %v2140 = vunpack.c.h.b16 %v861
    %v2141 = vunpack.c.l.b16 %v862
    %v2142 = vunpack.c.h.b16 %v862
    %v2143 = vunpack.c.l.b16 %v863
    %v2144 = vunpack.c.h.b16 %v863
    %v2145 = vunpack.c.l.b16 %v864
    %v2146 = vunpack.c.h.b16 %v864
    %v2147 = vunpack.c.l.b16 %v865
    %v2148 = vunpack.c.h.b16 %v865
    %v2149 = vunpack.c.l.b16 %v866
    %v2150 = vunpack.c.h.b16 %v866
    %v2151 = vunpack.c.l.b16 %v867
    %v2152 = vunpack.c.h.b16 %v867
    %v2153 = vunpack.c.l.b16 %v868
    %v2154 = vunpack.c.h.b16 %v868
    %v2155 = vunpack.c.l.b16 %v869
    %v2156 = vunpack.c.h.b16 %v869
    %v2157 = vunpack.c.l.b16 %v870
    %v2158 = vunpack.c.h.b16 %v870
    %v2159 = vunpack.c.l.b16 %v871
    %v2160 = vunpack.c.h.b16 %v871
    %v2161 = vunpack.c.l.b16 %v872
    %v2162 = vunpack.c.h.b16 %v872
    %v2163 = vunpack.c.l.b16 %v873
    %v2164 = vunpack.c.h.b16 %v873
    %v2165 = vunpack.c.l.b16 %v874
    %v2166 = vunpack.c.h.b16 %v874
    %v2167 = vunpack.c.l.b16 %v875
    %v2168 = vunpack.c.h.b16 %v875
    %v2169 = vunpack.c.l.b16 %v876
    %v2170 = vunpack.c.h.b16 %v876
    %v2171 = vunpack.c.l.b16 %v877
    %v2172 = vunpack.c.h.b16 %v877
    %v2173 = vunpack.c.l.b16 %v878
    %v2174 = vunpack.c.h.b16 %v878
    %v2175 = vunpack.c.l.b16 %v879
    %v2176 = vunpack.c.h.b16 %v879
    %v2177 = vunpack.c.l.b16 %v880
    %v2178 = vunpack.c.h.b16 %v880
    %v2179 = vunpack.c.l.b16 %v881
    %v2180 = vunpack.c.h.b16 %v881
    %v2181 = vunpack.c.l.b16 %v882
    %v2182 = vunpack.c.h.b16 %v882
    %v2183 = vunpack.c.l.b16 %v883
    %v2184 = vunpack.c.h.b16 %v883
    %v2185 = vunpack.c.l.b16 %v884
    %v2186 = vunpack.c.h.b16 %v884
    %v2187 = vunpack.c.l.b16 %v885
    %v2188 = vunpack.c.h.b16 %v885
    %v2189 = vunpack.c.l.b16 %v886
    %v2190 = vunpack.c.h.b16 %v886
    %v2191 = vunpack.c.l.b16 %v887
    %v2192 = vunpack.c.h.b16 %v887
    %v2193 = vunpack.c.l.b16 %v888
    %v2194 = vunpack.c.h.b16 %v888
    %v2195 = vunpack.c.l.b16 %v889
    %v2196 = vunpack.c.h.b16 %v889
    %v2197 = vunpack.c.l.b16 %v890
    %v2198 = vunpack.c.h.b16 %v890
    %v2199 = vunpack.c.l.b16 %v891
    %v2200 = vunpack.c.h.b16 %v891
    %v2201 = vunpack.c.l.b16 %v892
    %v2202 = vunpack.c.h.b16 %v892
    %v2203 = vunpack.c.l.b16 %v893
    %v2204 = vunpack.c.h.b16 %v893
    %v2205 = vunpack.c.l.b16 %v894
    %v2206 = vunpack.c.h.b16 %v894
    %v2207 = vunpack.c.l.b16 %v895
    %v2208 = vunpack.c.h.b16 %v895
    %v2209 = vunpack.c.l.b16 %v896
    %v2210 = vunpack.c.h.b16 %v896
    %v2211 = vunpack.c.l.b16 %v897
    %v2212 = vunpack.c.h.b16 %v897
    %v2213 = vunpack.c.l.b16 %v898
    %v2214 = vunpack.c.h.b16 %v898
    %v2215 = vunpack.c.l.b16 %v899
    %v2216 = vunpack.c.h.b16 %v899
    %v2217 = vunpack.c.l.b16 %v900
    %v2218 = vunpack.c.h.b16 %v900
    %v2219 = vunpack.c.l.b16 %v901
    %v2220 = vunpack.c.h.b16 %v901
    %v2221 = vunpack.c.l.b16 %v902
    %v2222 = vunpack.c.h.b16 %v902
    %v2223 = vunpack.c.l.b16 %v903
    %v2224 = vunpack.c.h.b16 %v903
    %v2225 = vunpack.c.l.b16 %v904
    %v2226 = vunpack.c.h.b16 %v904
    %v2227 = vunpack.c.l.b16 %v905
    %v2228 = vunpack.c.h.b16 %v905
    %v2229 = vunpack.c.l.b16 %v906
    %v2230 = vunpack.c.h.b16 %v906
    %v2231 = vunpack.c.l.b16 %v907
    %v2232 = vunpack.c.h.b16 %v907
    %v2233 = vunpack.c.l.b16 %v908
    %v2234 = vunpack.c.h.b16 %v908
    %v2235 = vunpack.c.l.b16 %v909
    %v2236 = vunpack.c.h.b16 %v909
    %v2237 = vunpack.c.l.b16 %v910
    %v2238 = vunpack.c.h.b16 %v910
    %v2239 = vunpack.c.l.b16 %v911
    %v2240 = vunpack.c.h.b16 %v911
    %v2241 = vunpack.c.l.b16 %v912
    %v2242 = vunpack.c.h.b16 %v912
    %v2243 = vunpack.c.l.b16 %v913
    %v2244 = vunpack.c.h.b16 %v913
    %v2245 = vunpack.c.l.b16 %v914
    %v2246 = vunpack.c.h.b16 %v914
    %v2247 = vunpack.c.l.b16 %v915
    %v2248 = vunpack.c.h.b16 %v915
    %v2249 = vunpack.c.l.b16 %v916
    %v2250 = vunpack.c.h.b16 %v916
    %v2251 = vunpack.c.l.b16 %v917
    %v2252 = vunpack.c.h.b16 %v917
    %v2253 = vunpack.c.l.b16 %v918
    %v2254 = vunpack.c.h.b16 %v918
    %v2255 = vunpack.c.l.b16 %v919
    %v2256 = vunpack.c.h.b16 %v919
    %v2257 = vunpack.c.l.b16 %v920
    %v2258 = vunpack.c.h.b16 %v920
    %v2259 = vunpack.c.l.b16 %v921
    %v2260 = vunpack.c.h.b16 %v921
    %v2261 = vunpack.c.l.b16 %v922
    %v2262 = vunpack.c.h.b16 %v922
    %v2263 = vunpack.c.l.b16 %v923
    %v2264 = vunpack.c.h.b16 %v923
    %v2265 = vunpack.c.l.b16 %v924
    %v2266 = vunpack.c.h.b16 %v924
    %v2267 = vunpack.c.l.b16 %v925
    %v2268 = vunpack.c.h.b16 %v925
    %v2269 = vunpack.c.l.b16 %v926
    %v2270 = vunpack.c.h.b16 %v926
    %v2271 = vunpack.c.l.b16 %v927
    %v2272 = vunpack.c.h.b16 %v927
    %v2273 = vunpack.c.l.b16 %v928
    %v2274 = vunpack.c.h.b16 %v928
    %v2275 = vunpack.c.l.b16 %v929
    %v2276 = vunpack.c.h.b16 %v929
    %v2277 = vunpack.c.l.b16 %v930
    %v2278 = vunpack.c.h.b16 %v930
    %v2279 = vunpack.c.l.b16 %v931
    %v2280 = vunpack.c.h.b16 %v931
    %v2281 = vunpack.c.l.b16 %v932
    %v2282 = vunpack.c.h.b16 %v932
    %v2283 = vunpack.c.l.b16 %v933
    %v2284 = vunpack.c.h.b16 %v933
    %v2285 = vunpack.c.l.b16 %v934
    %v2286 = vunpack.c.h.b16 %v934
    %v2287 = vunpack.c.l.b16 %v935
    %v2288 = vunpack.c.h.b16 %v935
    %v2289 = vunpack.c.l.b16 %v936
    %v2290 = vunpack.c.h.b16 %v936
    %v2291 = vunpack.c.l.b16 %v937
    %v2292 = vunpack.c.h.b16 %v937
    %v2293 = vunpack.c.l.b16 %v938
    %v2294 = vunpack.c.h.b16 %v938
    %v2295 = vunpack.c.l.b16 %v939
    %v2296 = vunpack.c.h.b16 %v939
    %v2297 = vunpack.c.l.b16 %v940
    %v2298 = vunpack.c.h.b16 %v940
    %v2299 = vunpack.c.l.b16 %v941
    %v2300 = vunpack.c.h.b16 %v941
    %v2301 = vunpack.c.l.b16 %v942
    %v2302 = vunpack.c.h.b16 %v942
    %v2303 = vunpack.c.l.b16 %v943
    %v2304 = vunpack.c.h.b16 %v943
    %v2305 = vunpack.c.l.b16 %v944
    %v2306 = vunpack.c.h.b16 %v944
    %v2307 = vunpack.c.l.b16 %v945
    %v2308 = vunpack.c.h.b16 %v945
    %v2309 = vunpack.c.l.b16 %v946
    %v2310 = vunpack.c.h.b16 %v946
    %v2311 = vunpack.c.l.b16 %v947
    %v2312 = vunpack.c.h.b16 %v947
    %v2313 = vunpack.c.l.b16 %v948
    %v2314 = vunpack.c.h.b16 %v948
    %v2315 = vunpack.c.l.b16 %v949
    %v2316 = vunpack.c.h.b16 %v949
    %v2317 = vunpack.c.l.b16 %v950
    %v2318 = vunpack.c.h.b16 %v950
    %v2319 = vunpack.c.l.b16 %v951
    %v2320 = vunpack.c.h.b16 %v951
    %v2321 = vunpack.c.l.b16 %v952
    %v2322 = vunpack.c.h.b16 %v952
    %v2323 = vunpack.c.l.b16 %v953
    %v2324 = vunpack.c.h.b16 %v953
    %v2325 = vunpack.c.l.b16 %v954
    %v2326 = vunpack.c.h.b16 %v954
    %v2327 = vunpack.c.l.b16 %v955
    %v2328 = vunpack.c.h.b16 %v955
    %v2329 = vunpack.c.l.b16 %v956
    %v2330 = vunpack.c.h.b16 %v956
    %v2331 = vunpack.c.l.b16 %v957
    %v2332 = vunpack.c.h.b16 %v957
    %v2333 = vunpack.c.l.b16 %v958
    %v2334 = vunpack.c.h.b16 %v958
    %v2335 = vunpack.c.l.b16 %v959
    %v2336 = vunpack.c.h.b16 %v959
    %v2337 = vunpack.c.l.b16 %v960
    %v2338 = vunpack.c.h.b16 %v960
    %v2339 = vunpack.c.l.b16 %v961
    %v2340 = vunpack.c.h.b16 %v961
    %v2341 = vunpack.c.l.b16 %v962
    %v2342 = vunpack.c.h.b16 %v962
    %v2343 = vunpack.c.l.b16 %v963
    %v2344 = vunpack.c.h.b16 %v963
    %v2345 = vunpack.c.l.b16 %v964
    %v2346 = vunpack.c.h.b16 %v964
    %v2347 = vunpack.c.l.b16 %v965
    %v2348 = vunpack.c.h.b16 %v965
    %v2349 = vunpack.c.l.b16 %v966
    %v2350 = vunpack.c.h.b16 %v966
    %v2351 = vunpack.c.l.b16 %v967
    %v2352 = vunpack.c.h.b16 %v967
    %v2353 = vunpack.c.l.b16 %v968
    %v2354 = vunpack.c.h.b16 %v968
    %v2355 = vunpack.c.l.b16 %v969
    %v2356 = vunpack.c.h.b16 %v969
    %v2357 = vunpack.c.l.b16 %v970
    %v2358 = vunpack.c.h.b16 %v970
    %v2359 = vunpack.c.l.b16 %v971
    %v2360 = vunpack.c.h.b16 %v971
    %v2361 = vunpack.c.l.b16 %v972
    %v2362 = vunpack.c.h.b16 %v972
    %v2363 = vunpack.c.l.b16 %v973
    %v2364 = vunpack.c.h.b16 %v973
    %v2365 = vunpack.c.l.b16 %v974
    %v2366 = vunpack.c.h.b16 %v974
    %v2367 = vunpack.c.l.b16 %v975
    %v2368 = vunpack.c.h.b16 %v975
    %v2369 = vunpack.c.l.b16 %v976
    %v2370 = vunpack.c.h.b16 %v976
    %v2371 = vunpack.c.l.b16 %v977
    %v2372 = vunpack.c.h.b16 %v977
    %v2373 = vunpack.c.l.b16 %v978
    %v2374 = vunpack.c.h.b16 %v978
    %v2375 = vunpack.c.l.b16 %v979
    %v2376 = vunpack.c.h.b16 %v979
    %v2377 = vunpack.c.l.b16 %v980
    %v2378 = vunpack.c.h.b16 %v980
    %v2379 = vunpack.c.l.b16 %v981
    %v2380 = vunpack.c.h.b16 %v981
    %v2381 = vunpack.c.l.b16 %v982
    %v2382 = vunpack.c.h.b16 %v982
    %v2383 = vunpack.c.l.b16 %v983
    %v2384 = vunpack.c.h.b16 %v983
    %v2385 = vunpack.c.l.b16 %v984
    %v2386 = vunpack.c.h.b16 %v984
    %v2387 = vunpack.c.l.b16 %v985
    %v2388 = vunpack.c.h.b16 %v985
    %v2389 = vunpack.c.l.b16 %v986
    %v2390 = vunpack.c.h.b16 %v986
    %v2391 = vunpack.c.l.b16 %v987
    %v2392 = vunpack.c.h.b16 %v987
    %v2393 = vunpack.c.l.b16 %v988
    %v2394 = vunpack.c.h.b16 %v988
    %v2395 = vunpack.c.l.b16 %v989
    %v2396 = vunpack.c.h.b16 %v989
    %v2397 = vunpack.c.l.b16 %v990
    %v2398 = vunpack.c.h.b16 %v990
    %v2399 = vunpack.c.l.b16 %v991
    %v2400 = vunpack.c.h.b16 %v991
    %v2401 = vunpack.c.l.b16 %v992
    %v2402 = vunpack.c.h.b16 %v992
    %v2403 = vunpack.c.l.b16 %v993
    %v2404 = vunpack.c.h.b16 %v993
    %v2405 = vunpack.c.l.b16 %v994
    %v2406 = vunpack.c.h.b16 %v994
    %v2407 = vunpack.c.l.b16 %v995
    %v2408 = vunpack.c.h.b16 %v995
    %v2409 = vunpack.c.l.b16 %v996
    %v2410 = vunpack.c.h.b16 %v996
    %v2411 = vunpack.c.l.b16 %v997
    %v2412 = vunpack.c.h.b16 %v997
    %v2413 = vunpack.c.l.b16 %v998
    %v2414 = vunpack.c.h.b16 %v998
    %v2415 = vunpack.c.l.b16 %v999
    %v2416 = vunpack.c.h.b16 %v999
    %v2417 = vunpack.c.l.b16 %v1000
    %v2418 = vunpack.c.h.b16 %v1000
    %v2419 = vunpack.c.l.b16 %v1001
    %v2420 = vunpack.c.h.b16 %v1001
    %v2421 = vunpack.c.l.b16 %v1002
    %v2422 = vunpack.c.h.b16 %v1002
    %v2423 = vunpack.c.l.b16 %v1003
    %v2424 = vunpack.c.h.b16 %v1003
    %v2425 = vunpack.c.l.b16 %v1004
    %v2426 = vunpack.c.h.b16 %v1004
    %v2427 = vunpack.c.l.b16 %v1005
    %v2428 = vunpack.c.h.b16 %v1005
    %v2429 = vunpack.c.l.b16 %v1006
    %v2430 = vunpack.c.h.b16 %v1006
    %v2431 = vunpack.c.l.b16 %v1007
    %v2432 = vunpack.c.h.b16 %v1007
    %v2433 = vunpack.c.l.b16 %v1008
    %v2434 = vunpack.c.h.b16 %v1008
    %v2435 = vunpack.c.l.b16 %v1009
    %v2436 = vunpack.c.h.b16 %v1009
    %v2437 = vunpack.c.l.b16 %v1010
    %v2438 = vunpack.c.h.b16 %v1010
    %v2439 = vunpack.c.l.b16 %v1011
    %v2440 = vunpack.c.h.b16 %v1011
    %v2441 = vunpack.c.l.b16 %v1012
    %v2442 = vunpack.c.h.b16 %v1012
    %v2443 = vunpack.c.l.b16 %v1013
    %v2444 = vunpack.c.h.b16 %v1013
    %v2445 = vunpack.c.l.b16 %v1014
    %v2446 = vunpack.c.h.b16 %v1014
    %v2447 = vunpack.c.l.b16 %v1015
    %v2448 = vunpack.c.h.b16 %v1015
    %v2449 = vunpack.c.l.b16 %v1016
    %v2450 = vunpack.c.h.b16 %v1016
    %v2451 = vunpack.c.l.b16 %v1017
    %v2452 = vunpack.c.h.b16 %v1017
    %v2453 = vunpack.c.l.b16 %v1018
    %v2454 = vunpack.c.h.b16 %v1018
    %v2455 = vunpack.c.l.b16 %v1019
    %v2456 = vunpack.c.h.b16 %v1019
    %v2457 = vunpack.c.l.b16 %v1020
    %v2458 = vunpack.c.h.b16 %v1020
    %v2459 = vunpack.c.l.b16 %v1021
    %v2460 = vunpack.c.h.b16 %v1021
    %v2461 = vunpack.c.l.b16 %v1022
    %v2462 = vunpack.c.h.b16 %v1022
    %v2463 = vunpack.c.l.b16 %v1023
    %v2464 = vunpack.c.h.b16 %v1023
    %v2465 = vunpack.c.l.b16 %v1024
    %v2466 = vunpack.c.h.b16 %v1024
    %v2467 = vunpack.c.l.b16 %v1025
    %v2468 = vunpack.c.h.b16 %v1025
    %v2469 = vunpack.c.l.b16 %v1026
    %v2470 = vunpack.c.h.b16 %v1026
    %v2471 = vunpack.c.l.b16 %v1027
    %v2472 = vunpack.c.h.b16 %v1027
    %v2473 = vunpack.c.l.b16 %v1028
    %v2474 = vunpack.c.h.b16 %v1028
    %v2475 = vunpack.c.l.b16 %v1029
    %v2476 = vunpack.c.h.b16 %v1029
    %v2477 = vunpack.c.l.b16 %v1030
    %v2478 = vunpack.c.h.b16 %v1030
    %v2479 = vunpack.c.l.b16 %v1031
    %v2480 = vunpack.c.h.b16 %v1031
    %v2481 = vunpack.c.l.b16 %v1032
    %v2482 = vunpack.c.h.b16 %v1032
    %v2483 = vunpack.c.l.b16 %v1033
    %v2484 = vunpack.c.h.b16 %v1033
    %v2485 = vunpack.c.l.b16 %v1034
    %v2486 = vunpack.c.h.b16 %v1034
    %v2487 = vunpack.c.l.b16 %v1035
    %v2488 = vunpack.c.h.b16 %v1035
    %v2489 = vunpack.c.l.b16 %v1036
    %v2490 = vunpack.c.h.b16 %v1036
    %v2491 = vunpack.c.l.b16 %v1037
    %v2492 = vunpack.c.h.b16 %v1037
    %v2493 = vunpack.c.l.b16 %v1038
    %v2494 = vunpack.c.h.b16 %v1038
    %v2495 = vunpack.c.l.b16 %v1039
    %v2496 = vunpack.c.h.b16 %v1039
    %v2497 = vunpack.c.l.b16 %v1040
    %v2498 = vunpack.c.h.b16 %v1040
    %v2499 = vunpack.c.l.b16 %v1041
    %v2500 = vunpack.c.h.b16 %v1041
    %v2501 = vunpack.c.l.b16 %v1042
    %v2502 = vunpack.c.h.b16 %v1042
    %v2503 = vunpack.c.l.b16 %v1043
    %v2504 = vunpack.c.h.b16 %v1043
    %v2505 = vunpack.c.l.b16 %v1044
    %v2506 = vunpack.c.h.b16 %v1044
    %v2507 = vunpack.c.l.b16 %v1045
    %v2508 = vunpack.c.h.b16 %v1045
    %v2509 = vunpack.c.l.b16 %v1046
    %v2510 = vunpack.c.h.b16 %v1046
    %v2511 = vunpack.c.l.b16 %v1047
    %v2512 = vunpack.c.h.b16 %v1047
    %v2513 = vunpack.c.l.b16 %v1048
    %v2514 = vunpack.c.h.b16 %v1048
    %v2515 = vunpack.c.l.b16 %v1049
    %v2516 = vunpack.c.h.b16 %v1049
    %v2517 = vunpack.c.l.b16 %v1050
    %v2518 = vunpack.c.h.b16 %v1050
    %v2519 = vunpack.c.l.b16 %v1051
    %v2520 = vunpack.c.h.b16 %v1051
    %v2521 = vunpack.c.l.b16 %v1052
    %v2522 = vunpack.c.h.b16 %v1052
    %v2523 = vunpack.c.l.b16 %v1053
    %v2524 = vunpack.c.h.b16 %v1053
    %v2525 = vunpack.c.l.b16 %v1054
    %v2526 = vunpack.c.h.b16 %v1054
    %v2527 = vunpack.c.l.b16 %v1055
    %v2528 = vunpack.c.h.b16 %v1055
    %v2529 = vunpack.c.l.b16 %v1056
    %v2530 = vunpack.c.h.b16 %v1056
    %v2531 = vunpack.c.l.b16 %v1057
    %v2532 = vunpack.c.h.b16 %v1057
    %v2533 = vunpack.c.l.b16 %v1058
    %v2534 = vunpack.c.h.b16 %v1058
    %v2535 = vunpack.c.l.b16 %v1059
    %v2536 = vunpack.c.h.b16 %v1059
    %v2537 = vunpack.c.l.b16 %v1060
    %v2538 = vunpack.c.h.b16 %v1060
    %v2539 = vunpack.c.l.b16 %v1061
    %v2540 = vunpack.c.h.b16 %v1061
    %v2541 = vunpack.c.l.b16 %v1062
    %v2542 = vunpack.c.h.b16 %v1062
    %v2543 = vunpack.c.l.b16 %v1063
    %v2544 = vunpack.c.h.b16 %v1063
    %v2545 = vunpack.c.l.b16 %v1064
    %v2546 = vunpack.c.h.b16 %v1064
    %v2547 = vunpack.c.l.b16 %v1065
    %v2548 = vunpack.c.h.b16 %v1065
    %v2549 = vunpack.c.l.b16 %v1066
    %v2550 = vunpack.c.h.b16 %v1066
    %v2551 = vunpack.c.l.b16 %v1067
    %v2552 = vunpack.c.h.b16 %v1067
    %v2553 = vunpack.c.l.b16 %v1068
    %v2554 = vunpack.c.h.b16 %v1068
    %v2555 = vunpack.c.l.b16 %v1069
    %v2556 = vunpack.c.h.b16 %v1069
    %v2557 = vunpack.c.l.b16 %v1070
    %v2558 = vunpack.c.h.b16 %v1070
    %v2559 = vunpack.c.l.b16 %v1071
    %v2560 = vunpack.c.h.b16 %v1071
    %v2561 = vunpack.c.l.b16 %v1072
    %v2562 = vunpack.c.h.b16 %v1072
    %v2563 = vunpack.c.l.b16 %v1073
    %v2564 = vunpack.c.h.b16 %v1073
    %v2565 = vunpack.c.l.b16 %v1074
    %v2566 = vunpack.c.h.b16 %v1074
    %v2567 = vunpack.c.l.b16 %v1075
    %v2568 = vunpack.c.h.b16 %v1075
    %v2569 = vunpack.c.l.b16 %v1076
    %v2570 = vunpack.c.h.b16 %v1076
    %v2571 = vunpack.c.l.b16 %v1077
    %v2572 = vunpack.c.h.b16 %v1077
    %v2573 = vunpack.c.l.b16 %v1078
    %v2574 = vunpack.c.h.b16 %v1078
    %v2575 = vunpack.c.l.b16 %v1079
    %v2576 = vunpack.c.h.b16 %v1079
    %v2577 = vunpack.c.l.b16 %v1080
    %v2578 = vunpack.c.h.b16 %v1080
    %v2579 = vunpack.c.l.b16 %v1081
    %v2580 = vunpack.c.h.b16 %v1081
    %v2581 = vunpack.c.l.b16 %v1082
    %v2582 = vunpack.c.h.b16 %v1082
    %v2583 = vunpack.c.l.b16 %v1083
    %v2584 = vunpack.c.h.b16 %v1083
    %v2585 = vunpack.c.l.b16 %v1084
    %v2586 = vunpack.c.h.b16 %v1084
    %v2587 = vunpack.c.l.b16 %v1085
    %v2588 = vunpack.c.h.b16 %v1085
    %v2589 = vunpack.c.l.b16 %v1086
    %v2590 = vunpack.c.h.b16 %v1086
    %v2591 = vunpack.c.l.b16 %v1087
    %v2592 = vunpack.c.h.b16 %v1087
    %v2593 = vunpack.c.l.b16 %v1088
    %v2594 = vunpack.c.h.b16 %v1088
    %v2595 = vunpack.c.l.b16 %v1089
    %v2596 = vunpack.c.h.b16 %v1089
    %v2597 = vunpack.c.l.b16 %v1090
    %v2598 = vunpack.c.h.b16 %v1090
    %v2599 = vunpack.c.l.b16 %v1091
    %v2600 = vunpack.c.h.b16 %v1091
    %v2601 = vunpack.c.l.b16 %v1092
    %v2602 = vunpack.c.h.b16 %v1092
    %v2603 = vunpack.c.l.b16 %v1093
    %v2604 = vunpack.c.h.b16 %v1093
    %v2605 = vunpack.c.l.b16 %v1094
    %v2606 = vunpack.c.h.b16 %v1094
    %v2607 = vunpack.c.l.b16 %v1095
    %v2608 = vunpack.c.h.b16 %v1095
    %v2609 = vunpack.c.l.b16 %v1096
    %v2610 = vunpack.c.h.b16 %v1096
    %v2611 = vunpack.c.l.b16 %v1097
    %v2612 = vunpack.c.h.b16 %v1097
    %v2613 = vunpack.c.l.b16 %v1098
    %v2614 = vunpack.c.h.b16 %v1098
    %v2615 = vunpack.c.l.b16 %v1099
    %v2616 = vunpack.c.h.b16 %v1099
    %v2617 = vunpack.c.l.b16 %v1100
    %v2618 = vunpack.c.h.b16 %v1100
    %v2619 = vunpack.c.l.b16 %v1101
    %v2620 = vunpack.c.h.b16 %v1101
    %v2621 = vunpack.c.l.b16 %v1102
    %v2622 = vunpack.c.h.b16 %v1102
    %v2623 = vunpack.c.l.b16 %v1103
    %v2624 = vunpack.c.h.b16 %v1103
    %v2625 = vunpack.c.l.b16 %v1104
    %v2626 = vunpack.c.h.b16 %v1104
    %v2627 = vunpack.c.l.b16 %v1105
    %v2628 = vunpack.c.h.b16 %v1105
    %v2629 = vunpack.c.l.b16 %v1106
    %v2630 = vunpack.c.h.b16 %v1106
    %v2631 = vunpack.c.l.b16 %v1107
    %v2632 = vunpack.c.h.b16 %v1107
    %v2633 = vunpack.c.l.b16 %v1108
    %v2634 = vunpack.c.h.b16 %v1108
    %v2635 = vunpack.c.l.b16 %v1109
    %v2636 = vunpack.c.h.b16 %v1109
    %v2637 = vunpack.c.l.b16 %v1110
    %v2638 = vunpack.c.h.b16 %v1110
    %v2639 = vunpack.c.l.b16 %v1111
    %v2640 = vunpack.c.h.b16 %v1111
    %v2641 = vunpack.c.l.b16 %v1112
    %v2642 = vunpack.c.h.b16 %v1112
    %v2643 = vunpack.c.l.b16 %v1113
    %v2644 = vunpack.c.h.b16 %v1113
    %v2645 = vunpack.c.l.b16 %v1114
    %v2646 = vunpack.c.h.b16 %v1114
    %v2647 = vunpack.c.l.b16 %v1115
    %v2648 = vunpack.c.h.b16 %v1115
    %v2649 = vunpack.c.l.b16 %v1116
    %v2650 = vunpack.c.h.b16 %v1116
    %v2651 = vunpack.c.l.b16 %v1117
    %v2652 = vunpack.c.h.b16 %v1117
    %v2653 = vunpack.c.l.b16 %v1118
    %v2654 = vunpack.c.h.b16 %v1118
    %v2655 = vunpack.c.l.b16 %v1119
    %v2656 = vunpack.c.h.b16 %v1119
    %v2657 = vunpack.c.l.b16 %v1120
    %v2658 = vunpack.c.h.b16 %v1120
    %v2659 = vunpack.c.l.b16 %v1121
    %v2660 = vunpack.c.h.b16 %v1121
    %v2661 = vunpack.c.l.b16 %v1122
    %v2662 = vunpack.c.h.b16 %v1122
    %v2663 = vunpack.c.l.b16 %v1123
    %v2664 = vunpack.c.h.b16 %v1123
    %v2665 = vunpack.c.l.b16 %v1124
    %v2666 = vunpack.c.h.b16 %v1124
    %v2667 = vunpack.c.l.b16 %v1125
    %v2668 = vunpack.c.h.b16 %v1125
    %v2669 = vunpack.c.l.b16 %v1126
    %v2670 = vunpack.c.h.b16 %v1126
    %v2671 = vunpack.c.l.b16 %v1127
    %v2672 = vunpack.c.h.b16 %v1127
    %v2673 = vunpack.c.l.b16 %v1128
    %v2674 = vunpack.c.h.b16 %v1128
    %v2675 = vunpack.c.l.b16 %v1129
    %v2676 = vunpack.c.h.b16 %v1129
    %v2677 = vunpack.c.l.b16 %v1130
    %v2678 = vunpack.c.h.b16 %v1130
    %v2679 = vunpack.c.l.b16 %v1131
    %v2680 = vunpack.c.h.b16 %v1131
    %v2681 = vunpack.c.l.b16 %v1132
    %v2682 = vunpack.c.h.b16 %v1132
    %v2683 = vunpack.c.l.b16 %v1133
    %v2684 = vunpack.c.h.b16 %v1133
    %v2685 = vunpack.c.l.b16 %v1134
    %v2686 = vunpack.c.h.b16 %v1134
    %v2687 = vunpack.c.l.b16 %v1135
    %v2688 = vunpack.c.h.b16 %v1135
    %v2689 = vunpack.c.l.b16 %v1136
    %v2690 = vunpack.c.h.b16 %v1136
    %v2691 = vunpack.c.l.b16 %v1137
    %v2692 = vunpack.c.h.b16 %v1137
    %v2693 = vunpack.c.l.b16 %v1138
    %v2694 = vunpack.c.h.b16 %v1138
    %v2695 = vunpack.c.l.b16 %v1139
    %v2696 = vunpack.c.h.b16 %v1139
    %v2697 = vunpack.c.l.b16 %v1140
    %v2698 = vunpack.c.h.b16 %v1140
    %v2699 = vunpack.c.l.b16 %v1141
    %v2700 = vunpack.c.h.b16 %v1141
    %v2701 = vunpack.c.l.b16 %v1142
    %v2702 = vunpack.c.h.b16 %v1142
    %v2703 = vunpack.c.l.b16 %v1143
    %v2704 = vunpack.c.h.b16 %v1143
    %v2705 = vunpack.c.l.b16 %v1144
    %v2706 = vunpack.c.h.b16 %v1144
    %v2707 = vunpack.c.l.b16 %v1145
    %v2708 = vunpack.c.h.b16 %v1145
    %v2709 = vunpack.c.l.b16 %v1146
    %v2710 = vunpack.c.h.b16 %v1146
    %v2711 = vunpack.c.l.b16 %v1147
    %v2712 = vunpack.c.h.b16 %v1147
    %v2713 = vunpack.c.l.b16 %v1148
    %v2714 = vunpack.c.h.b16 %v1148
    %v2715 = vunpack.c.l.b16 %v1149
    %v2716 = vunpack.c.h.b16 %v1149
    %v2717 = vunpack.c.l.b16 %v1150
    %v2718 = vunpack.c.h.b16 %v1150
    %v2719 = vunpack.c.l.b16 %v1151
    %v2720 = vunpack.c.h.b16 %v1151
    %v2721 = vunpack.c.l.b16 %v1152
    %v2722 = vunpack.c.h.b16 %v1152
    %v2723 = vunpack.c.l.b16 %v1153
    %v2724 = vunpack.c.h.b16 %v1153
    %v2725 = vunpack.c.l.b16 %v1154
    %v2726 = vunpack.c.h.b16 %v1154
    %v2727 = vunpack.c.l.b16 %v1155
    %v2728 = vunpack.c.h.b16 %v1155
    %v2729 = vunpack.c.l.b16 %v1156
    %v2730 = vunpack.c.h.b16 %v1156
    %v2731 = vunpack.c.l.b16 %v1157
    %v2732 = vunpack.c.h.b16 %v1157
    %v2733 = vunpack.c.l.b16 %v1158
    %v2734 = vunpack.c.h.b16 %v1158
    %v2735 = vunpack.c.l.b16 %v1159
    %v2736 = vunpack.c.h.b16 %v1159
    %v2737 = vunpack.c.l.b16 %v1160
    %v2738 = vunpack.c.h.b16 %v1160
    %v2739 = vpack.c.b16 %v1723, %v1715
    %v2740 = vpack.c.b16 %v1724, %v1716
    %v2741 = vpack.c.b16 %v1725, %v1717
    %v2742 = vpack.c.b16 %v1726, %v1718
    %v2743 = vpack.c.b16 %v1727, %v1719
    %v2744 = vpack.c.b16 %v1728, %v1720
    %v2745 = vpack.c.b16 %v1729, %v1721
    %v2746 = vpack.c.b16 %v1730, %v1722
    %v2747 = vpack.c.b16 %v1739, %v1731
    %v2748 = vpack.c.b16 %v1740, %v1732
    %v2749 = vpack.c.b16 %v1741, %v1733
    %v2750 = vpack.c.b16 %v1742, %v1734
    %v2751 = vpack.c.b16 %v1743, %v1735
    %v2752 = vpack.c.b16 %v1744, %v1736
    %v2753 = vpack.c.b16 %v1745, %v1737
    %v2754 = vpack.c.b16 %v1746, %v1738
    %v2755 = vpack.c.b16 %v1755, %v1747
    %v2756 = vpack.c.b16 %v1756, %v1748
    %v2757 = vpack.c.b16 %v1757, %v1749
    %v2758 = vpack.c.b16 %v1758, %v1750
    %v2759 = vpack.c.b16 %v1759, %v1751
    %v2760 = vpack.c.b16 %v1760, %v1752
    %v2761 = vpack.c.b16 %v1761, %v1753
    %v2762 = vpack.c.b16 %v1762, %v1754
    %v2763 = vpack.c.b16 %v1771, %v1763
    %v2764 = vpack.c.b16 %v1772, %v1764
    %v2765 = vpack.c.b16 %v1773, %v1765
    %v2766 = vpack.c.b16 %v1774, %v1766
    %v2767 = vpack.c.b16 %v1775, %v1767
    %v2768 = vpack.c.b16 %v1776, %v1768
    %v2769 = vpack.c.b16 %v1777, %v1769
    %v2770 = vpack.c.b16 %v1778, %v1770
    %v2771 = vpack.c.b16 %v1787, %v1779
    %v2772 = vpack.c.b16 %v1788, %v1780
    %v2773 = vpack.c.b16 %v1789, %v1781
    %v2774 = vpack.c.b16 %v1790, %v1782
    %v2775 = vpack.c.b16 %v1791, %v1783
    %v2776 = vpack.c.b16 %v1792, %v1784
    %v2777 = vpack.c.b16 %v1793, %v1785
    %v2778 = vpack.c.b16 %v1794, %v1786
    %v2779 = vpack.c.b16 %v1803, %v1795
    %v2780 = vpack.c.b16 %v1804, %v1796
    %v2781 = vpack.c.b16 %v1805, %v1797
    %v2782 = vpack.c.b16 %v1806, %v1798
    %v2783 = vpack.c.b16 %v1807, %v1799
    %v2784 = vpack.c.b16 %v1808, %v1800
    %v2785 = vpack.c.b16 %v1809, %v1801
    %v2786 = vpack.c.b16 %v1810, %v1802
    %v2787 = vpack.c.b16 %v1819, %v1811
    %v2788 = vpack.c.b16 %v1820, %v1812
    %v2789 = vpack.c.b16 %v1821, %v1813
    %v2790 = vpack.c.b16 %v1822, %v1814
    %v2791 = vpack.c.b16 %v1823, %v1815
    %v2792 = vpack.c.b16 %v1824, %v1816
    %v2793 = vpack.c.b16 %v1825, %v1817
    %v2794 = vpack.c.b16 %v1826, %v1818
    %v2795 = vpack.c.b16 %v1835, %v1827
    %v2796 = vpack.c.b16 %v1836, %v1828
    %v2797 = vpack.c.b16 %v1837, %v1829
    %v2798 = vpack.c.b16 %v1838, %v1830
    %v2799 = vpack.c.b16 %v1839, %v1831
    %v2800 = vpack.c.b16 %v1840, %v1832
    %v2801 = vpack.c.b16 %v1841, %v1833
    %v2802 = vpack.c.b16 %v1842, %v1834
    %v2803 = vpack.c.b16 %v1851, %v1843
    %v2804 = vpack.c.b16 %v1852, %v1844
    %v2805 = vpack.c.b16 %v1853, %v1845
    %v2806 = vpack.c.b16 %v1854, %v1846
    %v2807 = vpack.c.b16 %v1855, %v1847
    %v2808 = vpack.c.b16 %v1856, %v1848
    %v2809 = vpack.c.b16 %v1857, %v1849
    %v2810 = vpack.c.b16 %v1858, %v1850
    %v2811 = vpack.c.b16 %v1867, %v1859
    %v2812 = vpack.c.b16 %v1868, %v1860
    %v2813 = vpack.c.b16 %v1869, %v1861
    %v2814 = vpack.c.b16 %v1870, %v1862
    %v2815 = vpack.c.b16 %v1871, %v1863
    %v2816 = vpack.c.b16 %v1872, %v1864
    %v2817 = vpack.c.b16 %v1873, %v1865
    %v2818 = vpack.c.b16 %v1874, %v1866
    %v2819 = vpack.c.b16 %v1883, %v1875
    %v2820 = vpack.c.b16 %v1884, %v1876
    %v2821 = vpack.c.b16 %v1885, %v1877
    %v2822 = vpack.c.b16 %v1886, %v1878
    %v2823 = vpack.c.b16 %v1887, %v1879
    %v2824 = vpack.c.b16 %v1888, %v1880
    %v2825 = vpack.c.b16 %v1889, %v1881
    %v2826 = vpack.c.b16 %v1890, %v1882
    %v2827 = vpack.c.b16 %v1899, %v1891
    %v2828 = vpack.c.b16 %v1900, %v1892
    %v2829 = vpack.c.b16 %v1901, %v1893
    %v2830 = vpack.c.b16 %v1902, %v1894
    %v2831 = vpack.c.b16 %v1903, %v1895
    %v2832 = vpack.c.b16 %v1904, %v1896
    %v2833 = vpack.c.b16 %v1905, %v1897
    %v2834 = vpack.c.b16 %v1906, %v1898
    %v2835 = vpack.c.b16 %v1915, %v1907
    %v2836 = vpack.c.b16 %v1916, %v1908
    %v2837 = vpack.c.b16 %v1917, %v1909
    %v2838 = vpack.c.b16 %v1918, %v1910
    %v2839 = vpack.c.b16 %v1919, %v1911
    %v2840 = vpack.c.b16 %v1920, %v1912
    %v2841 = vpack.c.b16 %v1921, %v1913
    %v2842 = vpack.c.b16 %v1922, %v1914
    %v2843 = vpack.c.b16 %v1931, %v1923
    %v2844 = vpack.c.b16 %v1932, %v1924
    %v2845 = vpack.c.b16 %v1933, %v1925
    %v2846 = vpack.c.b16 %v1934, %v1926
    %v2847 = vpack.c.b16 %v1935, %v1927
    %v2848 = vpack.c.b16 %v1936, %v1928
    %v2849 = vpack.c.b16 %v1937, %v1929
    %v2850 = vpack.c.b16 %v1938, %v1930
    %v2851 = vpack.c.b16 %v1947, %v1939
    %v2852 = vpack.c.b16 %v1948, %v1940
    %v2853 = vpack.c.b16 %v1949, %v1941
    %v2854 = vpack.c.b16 %v1950, %v1942
    %v2855 = vpack.c.b16 %v1951, %v1943
    %v2856 = vpack.c.b16 %v1952, %v1944
    %v2857 = vpack.c.b16 %v1953, %v1945
    %v2858 = vpack.c.b16 %v1954, %v1946
    %v2859 = vpack.c.b16 %v1963, %v1955
    %v2860 = vpack.c.b16 %v1964, %v1956
    %v2861 = vpack.c.b16 %v1965, %v1957
    %v2862 = vpack.c.b16 %v1966, %v1958
    %v2863 = vpack.c.b16 %v1967, %v1959
    %v2864 = vpack.c.b16 %v1968, %v1960
    %v2865 = vpack.c.b16 %v1969, %v1961
    %v2866 = vpack.c.b16 %v1970, %v1962
    %v2867 = vpack.c.b16 %v1979, %v1971
    %v2868 = vpack.c.b16 %v1980, %v1972
    %v2869 = vpack.c.b16 %v1981, %v1973
    %v2870 = vpack.c.b16 %v1982, %v1974
    %v2871 = vpack.c.b16 %v1983, %v1975
    %v2872 = vpack.c.b16 %v1984, %v1976
    %v2873 = vpack.c.b16 %v1985, %v1977
    %v2874 = vpack.c.b16 %v1986, %v1978
    %v2875 = vpack.c.b16 %v1995, %v1987
    %v2876 = vpack.c.b16 %v1996, %v1988
    %v2877 = vpack.c.b16 %v1997, %v1989
    %v2878 = vpack.c.b16 %v1998, %v1990
    %v2879 = vpack.c.b16 %v1999, %v1991
    %v2880 = vpack.c.b16 %v2000, %v1992
    %v2881 = vpack.c.b16 %v2001, %v1993
    %v2882 = vpack.c.b16 %v2002, %v1994
    %v2883 = vpack.c.b16 %v2011, %v2003
    %v2884 = vpack.c.b16 %v2012, %v2004
    %v2885 = vpack.c.b16 %v2013, %v2005
    %v2886 = vpack.c.b16 %v2014, %v2006
    %v2887 = vpack.c.b16 %v2015, %v2007
    %v2888 = vpack.c.b16 %v2016, %v2008
    %v2889 = vpack.c.b16 %v2017, %v2009
    %v2890 = vpack.c.b16 %v2018, %v2010
    %v2891 = vpack.c.b16 %v2027, %v2019
    %v2892 = vpack.c.b16 %v2028, %v2020
    %v2893 = vpack.c.b16 %v2029, %v2021
    %v2894 = vpack.c.b16 %v2030, %v2022
    %v2895 = vpack.c.b16 %v2031, %v2023
    %v2896 = vpack.c.b16 %v2032, %v2024
    %v2897 = vpack.c.b16 %v2033, %v2025
    %v2898 = vpack.c.b16 %v2034, %v2026
    %v2899 = vpack.c.b16 %v2043, %v2035
    %v2900 = vpack.c.b16 %v2044, %v2036
    %v2901 = vpack.c.b16 %v2045, %v2037
    %v2902 = vpack.c.b16 %v2046, %v2038
    %v2903 = vpack.c.b16 %v2047, %v2039
    %v2904 = vpack.c.b16 %v2048, %v2040
    %v2905 = vpack.c.b16 %v2049, %v2041
    %v2906 = vpack.c.b16 %v2050, %v2042
    %v2907 = vpack.c.b16 %v2059, %v2051
    %v2908 = vpack.c.b16 %v2060, %v2052
    %v2909 = vpack.c.b16 %v2061, %v2053
    %v2910 = vpack.c.b16 %v2062, %v2054
    %v2911 = vpack.c.b16 %v2063, %v2055
    %v2912 = vpack.c.b16 %v2064, %v2056
    %v2913 = vpack.c.b16 %v2065, %v2057
    %v2914 = vpack.c.b16 %v2066, %v2058
    %v2915 = vpack.c.b16 %v2075, %v2067
    %v2916 = vpack.c.b16 %v2076, %v2068
    %v2917 = vpack.c.b16 %v2077, %v2069
    %v2918 = vpack.c.b16 %v2078, %v2070
    %v2919 = vpack.c.b16 %v2079, %v2071
    %v2920 = vpack.c.b16 %v2080, %v2072
    %v2921 = vpack.c.b16 %v2081, %v2073
    %v2922 = vpack.c.b16 %v2082, %v2074
    %v2923 = vpack.c.b16 %v2091, %v2083
    %v2924 = vpack.c.b16 %v2092, %v2084
    %v2925 = vpack.c.b16 %v2093, %v2085
    %v2926 = vpack.c.b16 %v2094, %v2086
    %v2927 = vpack.c.b16 %v2095, %v2087
    %v2928 = vpack.c.b16 %v2096, %v2088
    %v2929 = vpack.c.b16 %v2097, %v2089
    %v2930 = vpack.c.b16 %v2098, %v2090
    %v2931 = vpack.c.b16 %v2107, %v2099
    %v2932 = vpack.c.b16 %v2108, %v2100
    %v2933 = vpack.c.b16 %v2109, %v2101
    %v2934 = vpack.c.b16 %v2110, %v2102
    %v2935 = vpack.c.b16 %v2111, %v2103
    %v2936 = vpack.c.b16 %v2112, %v2104
    %v2937 = vpack.c.b16 %v2113, %v2105
    %v2938 = vpack.c.b16 %v2114, %v2106
    %v2939 = vpack.c.b16 %v2123, %v2115
    %v2940 = vpack.c.b16 %v2124, %v2116
    %v2941 = vpack.c.b16 %v2125, %v2117
    %v2942 = vpack.c.b16 %v2126, %v2118
    %v2943 = vpack.c.b16 %v2127, %v2119
    %v2944 = vpack.c.b16 %v2128, %v2120
    %v2945 = vpack.c.b16 %v2129, %v2121
    %v2946 = vpack.c.b16 %v2130, %v2122
    %v2947 = vpack.c.b16 %v2139, %v2131
    %v2948 = vpack.c.b16 %v2140, %v2132
    %v2949 = vpack.c.b16 %v2141, %v2133
    %v2950 = vpack.c.b16 %v2142, %v2134
    %v2951 = vpack.c.b16 %v2143, %v2135
    %v2952 = vpack.c.b16 %v2144, %v2136
    %v2953 = vpack.c.b16 %v2145, %v2137
    %v2954 = vpack.c.b16 %v2146, %v2138
    %v2955 = vpack.c.b16 %v2155, %v2147
    %v2956 = vpack.c.b16 %v2156, %v2148
    %v2957 = vpack.c.b16 %v2157, %v2149
    %v2958 = vpack.c.b16 %v2158, %v2150
    %v2959 = vpack.c.b16 %v2159, %v2151
    %v2960 = vpack.c.b16 %v2160, %v2152
    %v2961 = vpack.c.b16 %v2161, %v2153
    %v2962 = vpack.c.b16 %v2162, %v2154
    %v2963 = vpack.c.b16 %v2171, %v2163
    %v2964 = vpack.c.b16 %v2172, %v2164
    %v2965 = vpack.c.b16 %v2173, %v2165
    %v2966 = vpack.c.b16 %v2174, %v2166
    %v2967 = vpack.c.b16 %v2175, %v2167
    %v2968 = vpack.c.b16 %v2176, %v2168
    %v2969 = vpack.c.b16 %v2177, %v2169
    %v2970 = vpack.c.b16 %v2178, %v2170
    %v2971 = vpack.c.b16 %v2187, %v2179
    %v2972 = vpack.c.b16 %v2188, %v2180
    %v2973 = vpack.c.b16 %v2189, %v2181
    %v2974 = vpack.c.b16 %v2190, %v2182
    %v2975 = vpack.c.b16 %v2191, %v2183
    %v2976 = vpack.c.b16 %v2192, %v2184
    %v2977 = vpack.c.b16 %v2193, %v2185
    %v2978 = vpack.c.b16 %v2194, %v2186
    %v2979 = vpack.c.b16 %v2203, %v2195
    %v2980 = vpack.c.b16 %v2204, %v2196
    %v2981 = vpack.c.b16 %v2205, %v2197
    %v2982 = vpack.c.b16 %v2206, %v2198
    %v2983 = vpack.c.b16 %v2207, %v2199
    %v2984 = vpack.c.b16 %v2208, %v2200
    %v2985 = vpack.c.b16 %v2209, %v2201
    %v2986 = vpack.c.b16 %v2210, %v2202
    %v2987 = vpack.c.b16 %v2219, %v2211
    %v2988 = vpack.c.b16 %v2220, %v2212
    %v2989 = vpack.c.b16 %v2221, %v2213
    %v2990 = vpack.c.b16 %v2222, %v2214
    %v2991 = vpack.c.b16 %v2223, %v2215
    %v2992 = vpack.c.b16 %v2224, %v2216
    %v2993 = vpack.c.b16 %v2225, %v2217
    %v2994 = vpack.c.b16 %v2226, %v2218
    %v2995 = vpack.c.b16 %v2235, %v2227
    %v2996 = vpack.c.b16 %v2236, %v2228
    %v2997 = vpack.c.b16 %v2237, %v2229
    %v2998 = vpack.c.b16 %v2238, %v2230
    %v2999 = vpack.c.b16 %v2239, %v2231
    %v3000 = vpack.c.b16 %v2240, %v2232
    %v3001 = vpack.c.b16 %v2241, %v2233
    %v3002 = vpack.c.b16 %v2242, %v2234
    %v3003 = vpack.c.b16 %v2251, %v2243
    %v3004 = vpack.c.b16 %v2252, %v2244
    %v3005 = vpack.c.b16 %v2253, %v2245
    %v3006 = vpack.c.b16 %v2254, %v2246
    %v3007 = vpack.c.b16 %v2255, %v2247
    %v3008 = vpack.c.b16 %v2256, %v2248
    %v3009 = vpack.c.b16 %v2257, %v2249
    %v3010 = vpack.c.b16 %v2258, %v2250
    %v3011 = vpack.c.b16 %v2267, %v2259
    %v3012 = vpack.c.b16 %v2268, %v2260
    %v3013 = vpack.c.b16 %v2269, %v2261
    %v3014 = vpack.c.b16 %v2270, %v2262
    %v3015 = vpack.c.b16 %v2271, %v2263
    %v3016 = vpack.c.b16 %v2272, %v2264
    %v3017 = vpack.c.b16 %v2273, %v2265
    %v3018 = vpack.c.b16 %v2274, %v2266
    %v3019 = vpack.c.b16 %v2283, %v2275
    %v3020 = vpack.c.b16 %v2284, %v2276
    %v3021 = vpack.c.b16 %v2285, %v2277
    %v3022 = vpack.c.b16 %v2286, %v2278
    %v3023 = vpack.c.b16 %v2287, %v2279
    %v3024 = vpack.c.b16 %v2288, %v2280
    %v3025 = vpack.c.b16 %v2289, %v2281
    %v3026 = vpack.c.b16 %v2290, %v2282
    %v3027 = vpack.c.b16 %v2299, %v2291
    %v3028 = vpack.c.b16 %v2300, %v2292
    %v3029 = vpack.c.b16 %v2301, %v2293
    %v3030 = vpack.c.b16 %v2302, %v2294
    %v3031 = vpack.c.b16 %v2303, %v2295
    %v3032 = vpack.c.b16 %v2304, %v2296
    %v3033 = vpack.c.b16 %v2305, %v2297
    %v3034 = vpack.c.b16 %v2306, %v2298
    %v3035 = vpack.c.b16 %v2315, %v2307
    %v3036 = vpack.c.b16 %v2316, %v2308
    %v3037 = vpack.c.b16 %v2317, %v2309
    %v3038 = vpack.c.b16 %v2318, %v2310
    %v3039 = vpack.c.b16 %v2319, %v2311
    %v3040 = vpack.c.b16 %v2320, %v2312
    %v3041 = vpack.c.b16 %v2321, %v2313
    %v3042 = vpack.c.b16 %v2322, %v2314
    %v3043 = vpack.c.b16 %v2331, %v2323
    %v3044 = vpack.c.b16 %v2332, %v2324
    %v3045 = vpack.c.b16 %v2333, %v2325
    %v3046 = vpack.c.b16 %v2334, %v2326
    %v3047 = vpack.c.b16 %v2335, %v2327
    %v3048 = vpack.c.b16 %v2336, %v2328
    %v3049 = vpack.c.b16 %v2337, %v2329
    %v3050 = vpack.c.b16 %v2338, %v2330
    %v3051 = vpack.c.b16 %v2347, %v2339
    %v3052 = vpack.c.b16 %v2348, %v2340
    %v3053 = vpack.c.b16 %v2349, %v2341
    %v3054 = vpack.c.b16 %v2350, %v2342
    %v3055 = vpack.c.b16 %v2351, %v2343
    %v3056 = vpack.c.b16 %v2352, %v2344
    %v3057 = vpack.c.b16 %v2353, %v2345
    %v3058 = vpack.c.b16 %v2354, %v2346
    %v3059 = vpack.c.b16 %v2363, %v2355
    %v3060 = vpack.c.b16 %v2364, %v2356
    %v3061 = vpack.c.b16 %v2365, %v2357
    %v3062 = vpack.c.b16 %v2366, %v2358
    %v3063 = vpack.c.b16 %v2367, %v2359
    %v3064 = vpack.c.b16 %v2368, %v2360
    %v3065 = vpack.c.b16 %v2369, %v2361
    %v3066 = vpack.c.b16 %v2370, %v2362
    %v3067 = vpack.c.b16 %v2379, %v2371
    %v3068 = vpack.c.b16 %v2380, %v2372
    %v3069 = vpack.c.b16 %v2381, %v2373
    %v3070 = vpack.c.b16 %v2382, %v2374
    %v3071 = vpack.c.b16 %v2383, %v2375
    %v3072 = vpack.c.b16 %v2384, %v2376
    %v3073 = vpack.c.b16 %v2385, %v2377
    %v3074 = vpack.c.b16 %v2386, %v2378
    %v3075 = vpack.c.b16 %v2395, %v2387
    %v3076 = vpack.c.b16 %v2396, %v2388
    %v3077 = vpack.c.b16 %v2397, %v2389
    %v3078 = vpack.c.b16 %v2398, %v2390
    %v3079 = vpack.c.b16 %v2399, %v2391
    %v3080 = vpack.c.b16 %v2400, %v2392
    %v3081 = vpack.c.b16 %v2401, %v2393
    %v3082 = vpack.c.b16 %v2402, %v2394
    %v3083 = vpack.c.b16 %v2411, %v2403
    %v3084 = vpack.c.b16 %v2412, %v2404
    %v3085 = vpack.c.b16 %v2413, %v2405
    %v3086 = vpack.c.b16 %v2414, %v2406
    %v3087 = vpack.c.b16 %v2415, %v2407
    %v3088 = vpack.c.b16 %v2416, %v2408
    %v3089 = vpack.c.b16 %v2417, %v2409
    %v3090 = vpack.c.b16 %v2418, %v2410
    %v3091 = vpack.c.b16 %v2427, %v2419
    %v3092 = vpack.c.b16 %v2428, %v2420
    %v3093 = vpack.c.b16 %v2429, %v2421
    %v3094 = vpack.c.b16 %v2430, %v2422
    %v3095 = vpack.c.b16 %v2431, %v2423
    %v3096 = vpack.c.b16 %v2432, %v2424
    %v3097 = vpack.c.b16 %v2433, %v2425
    %v3098 = vpack.c.b16 %v2434, %v2426
    %v3099 = vpack.c.b16 %v2443, %v2435
    %v3100 = vpack.c.b16 %v2444, %v2436
    %v3101 = vpack.c.b16 %v2445, %v2437
    %v3102 = vpack.c.b16 %v2446, %v2438
    %v3103 = vpack.c.b16 %v2447, %v2439
    %v3104 = vpack.c.b16 %v2448, %v2440
    %v3105 = vpack.c.b16 %v2449, %v2441
    %v3106 = vpack.c.b16 %v2450, %v2442
    %v3107 = vpack.c.b16 %v2459, %v2451
    %v3108 = vpack.c.b16 %v2460, %v2452
    %v3109 = vpack.c.b16 %v2461, %v2453
    %v3110 = vpack.c.b16 %v2462, %v2454
    %v3111 = vpack.c.b16 %v2463, %v2455
    %v3112 = vpack.c.b16 %v2464, %v2456
    %v3113 = vpack.c.b16 %v2465, %v2457
    %v3114 = vpack.c.b16 %v2466, %v2458
    %v3115 = vpack.c.b16 %v2475, %v2467
    %v3116 = vpack.c.b16 %v2476, %v2468
    %v3117 = vpack.c.b16 %v2477, %v2469
    %v3118 = vpack.c.b16 %v2478, %v2470
    %v3119 = vpack.c.b16 %v2479, %v2471
    %v3120 = vpack.c.b16 %v2480, %v2472
    %v3121 = vpack.c.b16 %v2481, %v2473
    %v3122 = vpack.c.b16 %v2482, %v2474
    %v3123 = vpack.c.b16 %v2491, %v2483
    %v3124 = vpack.c.b16 %v2492, %v2484
    %v3125 = vpack.c.b16 %v2493, %v2485
    %v3126 = vpack.c.b16 %v2494, %v2486
    %v3127 = vpack.c.b16 %v2495, %v2487
    %v3128 = vpack.c.b16 %v2496, %v2488
    %v3129 = vpack.c.b16 %v2497, %v2489
    %v3130 = vpack.c.b16 %v2498, %v2490
    %v3131 = vpack.c.b16 %v2507, %v2499
    %v3132 = vpack.c.b16 %v2508, %v2500
    %v3133 = vpack.c.b16 %v2509, %v2501
    %v3134 = vpack.c.b16 %v2510, %v2502
    %v3135 = vpack.c.b16 %v2511, %v2503
    %v3136 = vpack.c.b16 %v2512, %v2504
    %v3137 = vpack.c.b16 %v2513, %v2505
    %v3138 = vpack.c.b16 %v2514, %v2506
    %v3139 = vpack.c.b16 %v2523, %v2515
    %v3140 = vpack.c.b16 %v2524, %v2516
    %v3141 = vpack.c.b16 %v2525, %v2517
    %v3142 = vpack.c.b16 %v2526, %v2518
    %v3143 = vpack.c.b16 %v2527, %v2519
    %v3144 = vpack.c.b16 %v2528, %v2520
    %v3145 = vpack.c.b16 %v2529, %v2521
    %v3146 = vpack.c.b16 %v2530, %v2522
    %v3147 = vpack.c.b16 %v2539, %v2531
    %v3148 = vpack.c.b16 %v2540, %v2532
    %v3149 = vpack.c.b16 %v2541, %v2533
    %v3150 = vpack.c.b16 %v2542, %v2534
    %v3151 = vpack.c.b16 %v2543, %v2535
    %v3152 = vpack.c.b16 %v2544, %v2536
    %v3153 = vpack.c.b16 %v2545, %v2537
    %v3154 = vpack.c.b16 %v2546, %v2538
    %v3155 = vpack.c.b16 %v2555, %v2547
    %v3156 = vpack.c.b16 %v2556, %v2548
    %v3157 = vpack.c.b16 %v2557, %v2549
    %v3158 = vpack.c.b16 %v2558, %v2550
    %v3159 = vpack.c.b16 %v2559, %v2551
    %v3160 = vpack.c.b16 %v2560, %v2552
    %v3161 = vpack.c.b16 %v2561, %v2553
    %v3162 = vpack.c.b16 %v2562, %v2554
    %v3163 = vpack.c.b16 %v2571, %v2563
    %v3164 = vpack.c.b16 %v2572, %v2564
    %v3165 = vpack.c.b16 %v2573, %v2565
    %v3166 = vpack.c.b16 %v2574, %v2566
    %v3167 = vpack.c.b16 %v2575, %v2567
    %v3168 = vpack.c.b16 %v2576, %v2568
    %v3169 = vpack.c.b16 %v2577, %v2569
    %v3170 = vpack.c.b16 %v2578, %v2570
    %v3171 = vpack.c.b16 %v2587, %v2579
    %v3172 = vpack.c.b16 %v2588, %v2580
    %v3173 = vpack.c.b16 %v2589, %v2581
    %v3174 = vpack.c.b16 %v2590, %v2582
    %v3175 = vpack.c.b16 %v2591, %v2583
    %v3176 = vpack.c.b16 %v2592, %v2584
    %v3177 = vpack.c.b16 %v2593, %v2585
    %v3178 = vpack.c.b16 %v2594, %v2586
    %v3179 = vpack.c.b16 %v2603, %v2595
    %v3180 = vpack.c.b16 %v2604, %v2596
    %v3181 = vpack.c.b16 %v2605, %v2597
    %v3182 = vpack.c.b16 %v2606, %v2598
    %v3183 = vpack.c.b16 %v2607, %v2599
    %v3184 = vpack.c.b16 %v2608, %v2600
    %v3185 = vpack.c.b16 %v2609, %v2601
    %v3186 = vpack.c.b16 %v2610, %v2602
    %v3187 = vpack.c.b16 %v2619, %v2611
    %v3188 = vpack.c.b16 %v2620, %v2612
    %v3189 = vpack.c.b16 %v2621, %v2613
    %v3190 = vpack.c.b16 %v2622, %v2614
    %v3191 = vpack.c.b16 %v2623, %v2615
    %v3192 = vpack.c.b16 %v2624, %v2616
    %v3193 = vpack.c.b16 %v2625, %v2617
    %v3194 = vpack.c.b16 %v2626, %v2618
    %v3195 = vpack.c.b16 %v2635, %v2627
    %v3196 = vpack.c.b16 %v2636, %v2628
    %v3197 = vpack.c.b16 %v2637, %v2629
    %v3198 = vpack.c.b16 %v2638, %v2630
    %v3199 = vpack.c.b16 %v2639, %v2631
    %v3200 = vpack.c.b16 %v2640, %v2632
    %v3201 = vpack.c.b16 %v2641, %v2633
    %v3202 = vpack.c.b16 %v2642, %v2634
    %v3203 = vpack.c.b16 %v2651, %v2643
    %v3204 = vpack.c.b16 %v2652, %v2644
    %v3205 = vpack.c.b16 %v2653, %v2645
    %v3206 = vpack.c.b16 %v2654, %v2646
    %v3207 = vpack.c.b16 %v2655, %v2647
    %v3208 = vpack.c.b16 %v2656, %v2648
    %v3209 = vpack.c.b16 %v2657, %v2649
    %v3210 = vpack.c.b16 %v2658, %v2650
    %v3211 = vpack.c.b16 %v2667, %v2659
    %v3212 = vpack.c.b16 %v2668, %v2660
    %v3213 = vpack.c.b16 %v2669, %v2661
    %v3214 = vpack.c.b16 %v2670, %v2662
    %v3215 = vpack.c.b16 %v2671, %v2663
    %v3216 = vpack.c.b16 %v2672, %v2664
    %v3217 = vpack.c.b16 %v2673, %v2665
    %v3218 = vpack.c.b16 %v2674, %v2666
    %v3219 = vpack.c.b16 %v2683, %v2675
    %v3220 = vpack.c.b16 %v2684, %v2676
    %v3221 = vpack.c.b16 %v2685, %v2677
    %v3222 = vpack.c.b16 %v2686, %v2678
    %v3223 = vpack.c.b16 %v2687, %v2679
    %v3224 = vpack.c.b16 %v2688, %v2680
    %v3225 = vpack.c.b16 %v2689, %v2681
    %v3226 = vpack.c.b16 %v2690, %v2682
    %v3227 = vpack.c.b16 %v2699, %v2691
    %v3228 = vpack.c.b16 %v2700, %v2692
    %v3229 = vpack.c.b16 %v2701, %v2693
    %v3230 = vpack.c.b16 %v2702, %v2694
    %v3231 = vpack.c.b16 %v2703, %v2695
    %v3232 = vpack.c.b16 %v2704, %v2696
    %v3233 = vpack.c.b16 %v2705, %v2697
    %v3234 = vpack.c.b16 %v2706, %v2698
    %v3235 = vpack.c.b16 %v2715, %v2707
    %v3236 = vpack.c.b16 %v2716, %v2708
    %v3237 = vpack.c.b16 %v2717, %v2709
    %v3238 = vpack.c.b16 %v2718, %v2710
    %v3239 = vpack.c.b16 %v2719, %v2711
    %v3240 = vpack.c.b16 %v2720, %v2712
    %v3241 = vpack.c.b16 %v2721, %v2713
    %v3242 = vpack.c.b16 %v2722, %v2714
    %v3243 = vpack.c.b16 %v2731, %v2723
    %v3244 = vpack.c.b16 %v2732, %v2724
    %v3245 = vpack.c.b16 %v2733, %v2725
    %v3246 = vpack.c.b16 %v2734, %v2726
    %v3247 = vpack.c.b16 %v2735, %v2727
    %v3248 = vpack.c.b16 %v2736, %v2728
    %v3249 = vpack.c.b16 %v2737, %v2729
    %v3250 = vpack.c.b16 %v2738, %v2730
    %3763 = vmatprep.subr.bf16.mxu0 %v2796
    %3764 = vmatpush1.bf16.msra.mxu0 %v2795
    %3765 = vmatprep.subr.bf16.mxu0 %v2788
    %3766 = vmatpush1.bf16.msra.mxu0 %v2787
    %3767 = vmatprep.subr.bf16.mxu0 %v2780
    %3768 = vmatpush1.bf16.msra.mxu0 %v2779
    %3769 = vmatprep.subr.bf16.mxu0 %v2772
    %3770 = vmatpush1.bf16.msra.mxu0 %v2771
    %3771 = vmatprep.subr.bf16.mxu0 %v2764
    %3772 = vmatpush1.bf16.msra.mxu0 %v2763
    %3773 = vmatprep.subr.bf16.mxu0 %v2756
    %3774 = vmatpush1.bf16.msra.mxu0 %v2755
    %3775 = vmatprep.subr.bf16.mxu0 %v2748
    %3776 = vmatpush1.bf16.msra.mxu0 %v2747
    %3777 = vmatprep.subr.bf16.mxu0 %v2740
    %3778 = vmatpush1.bf16.msra.mxu0 %v2739
    %3779 = vmatprep.subr.bf16.mxu0 %v2860
    %3780 = vmatpush2.bf16.msra.mxu0 %v2859
    %3781 = vmatprep.subr.bf16.mxu0 %v2852
    %3782 = vmatpush2.bf16.msra.mxu0 %v2851
    %3783 = vmatprep.subr.bf16.mxu0 %v2844
    %3784 = vmatpush2.bf16.msra.mxu0 %v2843
    %3785 = vmatprep.subr.bf16.mxu0 %v2836
    %3786 = vmatpush2.bf16.msra.mxu0 %v2835
    %3787 = vmatprep.subr.bf16.mxu0 %v2828
    %3788 = vmatpush2.bf16.msra.mxu0 %v2827
    %3789 = vmatprep.subr.bf16.mxu0 %v2820
    %3790 = vmatpush2.bf16.msra.mxu0 %v2819
    %3791 = vmatprep.subr.bf16.mxu0 %v2812
    %3792 = vmatpush2.bf16.msra.mxu0 %v2811
    %3793 = vmatprep.subr.bf16.mxu0 %v2804
    %3794 = vmatpush2.bf16.msra.mxu0 %v2803
    %3795 = vmatprep.mubr.bf16.mxu0 %v642
    %3796 = vmatmul.mubr.bf16.gmra.mxu0 %v641
    %v3797 = vpop.f32.mrf.mxu0
    %v3798 = vadd.f32 %v1166, %v3797
    %v3799 = vpop.f32.mrf.mxu0
    %v3800 = vadd.f32 %v1170, %v3799
    %v3801 = vpop.f32.mrf.mxu0
    %v3802 = vpop.f32.mrf.mxu0
    %3803 = vdwg.mxu0
    %3804 = vmatprep.subr.bf16.mxu0 %v2924
    %3805 = vmatpush1.bf16.msra.mxu0 %v2923
    %3806 = vmatprep.subr.bf16.mxu0 %v2916
    %3807 = vmatpush1.bf16.msra.mxu0 %v2915
    %3808 = vmatprep.subr.bf16.mxu0 %v2908
    %3809 = vmatpush1.bf16.msra.mxu0 %v2907
    %3810 = vmatprep.subr.bf16.mxu0 %v2900
    %3811 = vmatpush1.bf16.msra.mxu0 %v2899
    %3812 = vmatprep.subr.bf16.mxu0 %v2892
    %3813 = vmatpush1.bf16.msra.mxu0 %v2891
    %3814 = vmatprep.subr.bf16.mxu0 %v2884
    %3815 = vmatpush1.bf16.msra.mxu0 %v2883
    %3816 = vmatprep.subr.bf16.mxu0 %v2876
    %3817 = vmatpush1.bf16.msra.mxu0 %v2875
    %3818 = vmatprep.subr.bf16.mxu0 %v2868
    %3819 = vmatpush1.bf16.msra.mxu0 %v2867
    %3820 = vmatprep.subr.bf16.mxu0 %v2988
    %3821 = vmatpush2.bf16.msra.mxu0 %v2987
    %3822 = vmatprep.subr.bf16.mxu0 %v2980
    %3823 = vmatpush2.bf16.msra.mxu0 %v2979
    %3824 = vmatprep.subr.bf16.mxu0 %v2972
    %3825 = vmatpush2.bf16.msra.mxu0 %v2971
    %3826 = vmatprep.subr.bf16.mxu0 %v2964
    %3827 = vmatpush2.bf16.msra.mxu0 %v2963
    %3828 = vmatprep.subr.bf16.mxu0 %v2956
    %3829 = vmatpush2.bf16.msra.mxu0 %v2955
    %3830 = vmatprep.subr.bf16.mxu0 %v2948
    %3831 = vmatpush2.bf16.msra.mxu0 %v2947
    %3832 = vmatprep.subr.bf16.mxu0 %v2940
    %3833 = vmatpush2.bf16.msra.mxu0 %v2939
    %3834 = vmatprep.subr.bf16.mxu0 %v2932
    %3835 = vmatpush2.bf16.msra.mxu0 %v2931
    %3836 = vmatprep.mubr.bf16.mxu0 %v644
    %3837 = vmatmul.mubr.bf16.gmra.mxu0 %v643
    %v3838 = vpop.f32.mrf.mxu0
    %v3839 = vadd.f32 %v3798, %v3838
    %v3840 = vpop.f32.mrf.mxu0
    %v3841 = vadd.f32 %v3800, %v3840
    %v3842 = vpop.f32.mrf.mxu0
    %v3843 = vpop.f32.mrf.mxu0
    %3844 = vdwg.mxu0
    %3845 = vmatprep.subr.bf16.mxu0 %v3052
    %3846 = vmatpush1.bf16.msra.mxu0 %v3051
    %3847 = vmatprep.subr.bf16.mxu0 %v3044
    %3848 = vmatpush1.bf16.msra.mxu0 %v3043
    %3849 = vmatprep.subr.bf16.mxu0 %v3036
    %3850 = vmatpush1.bf16.msra.mxu0 %v3035
    %3851 = vmatprep.subr.bf16.mxu0 %v3028
    %3852 = vmatpush1.bf16.msra.mxu0 %v3027
    %3853 = vmatprep.subr.bf16.mxu0 %v3020
    %3854 = vmatpush1.bf16.msra.mxu0 %v3019
    %3855 = vmatprep.subr.bf16.mxu0 %v3012
    %3856 = vmatpush1.bf16.msra.mxu0 %v3011
    %3857 = vmatprep.subr.bf16.mxu0 %v3004
    %3858 = vmatpush1.bf16.msra.mxu0 %v3003
    %3859 = vmatprep.subr.bf16.mxu0 %v2996
    %3860 = vmatpush1.bf16.msra.mxu0 %v2995
    %3861 = vmatprep.subr.bf16.mxu0 %v3116
    %3862 = vmatpush2.bf16.msra.mxu0 %v3115
    %3863 = vmatprep.subr.bf16.mxu0 %v3108
    %3864 = vmatpush2.bf16.msra.mxu0 %v3107
    %3865 = vmatprep.subr.bf16.mxu0 %v3100
    %3866 = vmatpush2.bf16.msra.mxu0 %v3099
    %3867 = vmatprep.subr.bf16.mxu0 %v3092
    %3868 = vmatpush2.bf16.msra.mxu0 %v3091
    %3869 = vmatprep.subr.bf16.mxu0 %v3084
    %3870 = vmatpush2.bf16.msra.mxu0 %v3083
    %3871 = vmatprep.subr.bf16.mxu0 %v3076
    %3872 = vmatpush2.bf16.msra.mxu0 %v3075
    %3873 = vmatprep.subr.bf16.mxu0 %v3068
    %3874 = vmatpush2.bf16.msra.mxu0 %v3067
    %3875 = vmatprep.subr.bf16.mxu0 %v3060
    %3876 = vmatpush2.bf16.msra.mxu0 %v3059
    %3877 = vmatprep.mubr.bf16.mxu0 %v646
    %3878 = vmatmul.mubr.bf16.gmra.mxu0 %v645
    %v3879 = vpop.f32.mrf.mxu0
    %v3880 = vadd.f32 %v3839, %v3879
    %v3881 = vpop.f32.mrf.mxu0
    %v3882 = vadd.f32 %v3841, %v3881
    %v3883 = vpop.f32.mrf.mxu0
    %v3884 = vpop.f32.mrf.mxu0
    %3885 = vdwg.mxu0
    %3886 = vmatprep.subr.bf16.mxu0 %v3180
    %3887 = vmatpush1.bf16.msra.mxu0 %v3179
    %3888 = vmatprep.subr.bf16.mxu0 %v3172
    %3889 = vmatpush1.bf16.msra.mxu0 %v3171
    %3890 = vmatprep.subr.bf16.mxu0 %v3164
    %3891 = vmatpush1.bf16.msra.mxu0 %v3163
    %3892 = vmatprep.subr.bf16.mxu0 %v3156
    %3893 = vmatpush1.bf16.msra.mxu0 %v3155
    %3894 = vmatprep.subr.bf16.mxu0 %v3148
    %3895 = vmatpush1.bf16.msra.mxu0 %v3147
    %3896 = vmatprep.subr.bf16.mxu0 %v3140
    %3897 = vmatpush1.bf16.msra.mxu0 %v3139
    %3898 = vmatprep.subr.bf16.mxu0 %v3132
    %3899 = vmatpush1.bf16.msra.mxu0 %v3131
    %3900 = vmatprep.subr.bf16.mxu0 %v3124
    %3901 = vmatpush1.bf16.msra.mxu0 %v3123
    %3902 = vmatprep.subr.bf16.mxu0 %v3244
    %3903 = vmatpush2.bf16.msra.mxu0 %v3243
    %3904 = vmatprep.subr.bf16.mxu0 %v3236
    %3905 = vmatpush2.bf16.msra.mxu0 %v3235
    %3906 = vmatprep.subr.bf16.mxu0 %v3228
    %3907 = vmatpush2.bf16.msra.mxu0 %v3227
    %3908 = vmatprep.subr.bf16.mxu0 %v3220
    %3909 = vmatpush2.bf16.msra.mxu0 %v3219
    %3910 = vmatprep.subr.bf16.mxu0 %v3212
    %3911 = vmatpush2.bf16.msra.mxu0 %v3211
    %3912 = vmatprep.subr.bf16.mxu0 %v3204
    %3913 = vmatpush2.bf16.msra.mxu0 %v3203
    %3914 = vmatprep.subr.bf16.mxu0 %v3196
    %3915 = vmatpush2.bf16.msra.mxu0 %v3195
    %3916 = vmatprep.subr.bf16.mxu0 %v3188
    %3917 = vmatpush2.bf16.msra.mxu0 %v3187
    %3918 = vmatprep.mubr.bf16.mxu0 %v648
    %3919 = vmatmul.mubr.bf16.gmra.mxu0 %v647
    %v3920 = vpop.f32.mrf.mxu0
    %v3921 = vadd.f32 %v3880, %v3920
    %v3922 = vpop.f32.mrf.mxu0
    %v3923 = vadd.f32 %v3882, %v3922
    %v3924 = vpop.f32.mrf.mxu0
    %v3925 = vpop.f32.mrf.mxu0
    %3926 = vdwg.mxu0
    %3927 = vmatprep.subr.bf16.mxu0 %v2798
    %3928 = vmatpush1.bf16.msra.mxu0 %v2797
    %3929 = vmatprep.subr.bf16.mxu0 %v2790
    %3930 = vmatpush1.bf16.msra.mxu0 %v2789
    %3931 = vmatprep.subr.bf16.mxu0 %v2782
    %3932 = vmatpush1.bf16.msra.mxu0 %v2781
    %3933 = vmatprep.subr.bf16.mxu0 %v2774
    %3934 = vmatpush1.bf16.msra.mxu0 %v2773
    %3935 = vmatprep.subr.bf16.mxu0 %v2766
    %3936 = vmatpush1.bf16.msra.mxu0 %v2765
    %3937 = vmatprep.subr.bf16.mxu0 %v2758
    %3938 = vmatpush1.bf16.msra.mxu0 %v2757
    %3939 = vmatprep.subr.bf16.mxu0 %v2750
    %3940 = vmatpush1.bf16.msra.mxu0 %v2749
    %3941 = vmatprep.subr.bf16.mxu0 %v2742
    %3942 = vmatpush1.bf16.msra.mxu0 %v2741
    %3943 = vmatprep.subr.bf16.mxu0 %v2862
    %3944 = vmatpush2.bf16.msra.mxu0 %v2861
    %3945 = vmatprep.subr.bf16.mxu0 %v2854
    %3946 = vmatpush2.bf16.msra.mxu0 %v2853
    %3947 = vmatprep.subr.bf16.mxu0 %v2846
    %3948 = vmatpush2.bf16.msra.mxu0 %v2845
    %3949 = vmatprep.subr.bf16.mxu0 %v2838
    %3950 = vmatpush2.bf16.msra.mxu0 %v2837
    %3951 = vmatprep.subr.bf16.mxu0 %v2830
    %3952 = vmatpush2.bf16.msra.mxu0 %v2829
    %3953 = vmatprep.subr.bf16.mxu0 %v2822
    %3954 = vmatpush2.bf16.msra.mxu0 %v2821
    %3955 = vmatprep.subr.bf16.mxu0 %v2814
    %3956 = vmatpush2.bf16.msra.mxu0 %v2813
    %3957 = vmatprep.subr.bf16.mxu0 %v2806
    %3958 = vmatpush2.bf16.msra.mxu0 %v2805
    %3959 = vmatprep.mubr.bf16.mxu0 %v642
    %3960 = vmatmul.mubr.bf16.gmra.mxu0 %v641
    %v3961 = vpop.f32.mrf.mxu0
    %v3962 = vadd.f32 %v1174, %v3961
    %v3963 = vpop.f32.mrf.mxu0
    %v3964 = vadd.f32 %v1178, %v3963
    %v3965 = vpop.f32.mrf.mxu0
    %v3966 = vpop.f32.mrf.mxu0
    %3967 = vdwg.mxu0
    %3968 = vmatprep.subr.bf16.mxu0 %v2926
    %3969 = vmatpush1.bf16.msra.mxu0 %v2925
    %3970 = vmatprep.subr.bf16.mxu0 %v2918
    %3971 = vmatpush1.bf16.msra.mxu0 %v2917
    %3972 = vmatprep.subr.bf16.mxu0 %v2910
    %3973 = vmatpush1.bf16.msra.mxu0 %v2909
    %3974 = vmatprep.subr.bf16.mxu0 %v2902
    %3975 = vmatpush1.bf16.msra.mxu0 %v2901
    %3976 = vmatprep.subr.bf16.mxu0 %v2894
    %3977 = vmatpush1.bf16.msra.mxu0 %v2893
    %3978 = vmatprep.subr.bf16.mxu0 %v2886
    %3979 = vmatpush1.bf16.msra.mxu0 %v2885
    %3980 = vmatprep.subr.bf16.mxu0 %v2878
    %3981 = vmatpush1.bf16.msra.mxu0 %v2877
    %3982 = vmatprep.subr.bf16.mxu0 %v2870
    %3983 = vmatpush1.bf16.msra.mxu0 %v2869
    %3984 = vmatprep.subr.bf16.mxu0 %v2990
    %3985 = vmatpush2.bf16.msra.mxu0 %v2989
    %3986 = vmatprep.subr.bf16.mxu0 %v2982
    %3987 = vmatpush2.bf16.msra.mxu0 %v2981
    %3988 = vmatprep.subr.bf16.mxu0 %v2974
    %3989 = vmatpush2.bf16.msra.mxu0 %v2973
    %3990 = vmatprep.subr.bf16.mxu0 %v2966
    %3991 = vmatpush2.bf16.msra.mxu0 %v2965
    %3992 = vmatprep.subr.bf16.mxu0 %v2958
    %3993 = vmatpush2.bf16.msra.mxu0 %v2957
    %3994 = vmatprep.subr.bf16.mxu0 %v2950
    %3995 = vmatpush2.bf16.msra.mxu0 %v2949
    %3996 = vmatprep.subr.bf16.mxu0 %v2942
    %3997 = vmatpush2.bf16.msra.mxu0 %v2941
    %3998 = vmatprep.subr.bf16.mxu0 %v2934
    %3999 = vmatpush2.bf16.msra.mxu0 %v2933
    %4000 = vmatprep.mubr.bf16.mxu0 %v644
    %4001 = vmatmul.mubr.bf16.gmra.mxu0 %v643
    %v4002 = vpop.f32.mrf.mxu0
    %v4003 = vadd.f32 %v3962, %v4002
    %v4004 = vpop.f32.mrf.mxu0
    %v4005 = vadd.f32 %v3964, %v4004
    %v4006 = vpop.f32.mrf.mxu0
    %v4007 = vpop.f32.mrf.mxu0
    %4008 = vdwg.mxu0
    %4009 = vmatprep.subr.bf16.mxu0 %v3054
    %4010 = vmatpush1.bf16.msra.mxu0 %v3053
    %4011 = vmatprep.subr.bf16.mxu0 %v3046
    %4012 = vmatpush1.bf16.msra.mxu0 %v3045
    %4013 = vmatprep.subr.bf16.mxu0 %v3038
    %4014 = vmatpush1.bf16.msra.mxu0 %v3037
    %4015 = vmatprep.subr.bf16.mxu0 %v3030
    %4016 = vmatpush1.bf16.msra.mxu0 %v3029
    %4017 = vmatprep.subr.bf16.mxu0 %v3022
    %4018 = vmatpush1.bf16.msra.mxu0 %v3021
    %4019 = vmatprep.subr.bf16.mxu0 %v3014
    %4020 = vmatpush1.bf16.msra.mxu0 %v3013
    %4021 = vmatprep.subr.bf16.mxu0 %v3006
    %4022 = vmatpush1.bf16.msra.mxu0 %v3005
    %4023 = vmatprep.subr.bf16.mxu0 %v2998
    %4024 = vmatpush1.bf16.msra.mxu0 %v2997
    %4025 = vmatprep.subr.bf16.mxu0 %v3118
    %4026 = vmatpush2.bf16.msra.mxu0 %v3117
    %4027 = vmatprep.subr.bf16.mxu0 %v3110
    %4028 = vmatpush2.bf16.msra.mxu0 %v3109
    %4029 = vmatprep.subr.bf16.mxu0 %v3102
    %4030 = vmatpush2.bf16.msra.mxu0 %v3101
    %4031 = vmatprep.subr.bf16.mxu0 %v3094
    %4032 = vmatpush2.bf16.msra.mxu0 %v3093
    %4033 = vmatprep.subr.bf16.mxu0 %v3086
    %4034 = vmatpush2.bf16.msra.mxu0 %v3085
    %4035 = vmatprep.subr.bf16.mxu0 %v3078
    %4036 = vmatpush2.bf16.msra.mxu0 %v3077
    %4037 = vmatprep.subr.bf16.mxu0 %v3070
    %4038 = vmatpush2.bf16.msra.mxu0 %v3069
    %4039 = vmatprep.subr.bf16.mxu0 %v3062
    %4040 = vmatpush2.bf16.msra.mxu0 %v3061
    %4041 = vmatprep.mubr.bf16.mxu0 %v646
    %4042 = vmatmul.mubr.bf16.gmra.mxu0 %v645
    %v4043 = vpop.f32.mrf.mxu0
    %v4044 = vadd.f32 %v4003, %v4043
    %v4045 = vpop.f32.mrf.mxu0
    %v4046 = vadd.f32 %v4005, %v4045
    %v4047 = vpop.f32.mrf.mxu0
    %v4048 = vpop.f32.mrf.mxu0
    %4049 = vdwg.mxu0
    %4050 = vmatprep.subr.bf16.mxu0 %v3182
    %4051 = vmatpush1.bf16.msra.mxu0 %v3181
    %4052 = vmatprep.subr.bf16.mxu0 %v3174
    %4053 = vmatpush1.bf16.msra.mxu0 %v3173
    %4054 = vmatprep.subr.bf16.mxu0 %v3166
    %4055 = vmatpush1.bf16.msra.mxu0 %v3165
    %4056 = vmatprep.subr.bf16.mxu0 %v3158
    %4057 = vmatpush1.bf16.msra.mxu0 %v3157
    %4058 = vmatprep.subr.bf16.mxu0 %v3150
    %4059 = vmatpush1.bf16.msra.mxu0 %v3149
    %4060 = vmatprep.subr.bf16.mxu0 %v3142
    %4061 = vmatpush1.bf16.msra.mxu0 %v3141
    %4062 = vmatprep.subr.bf16.mxu0 %v3134
    %4063 = vmatpush1.bf16.msra.mxu0 %v3133
    %4064 = vmatprep.subr.bf16.mxu0 %v3126
    %4065 = vmatpush1.bf16.msra.mxu0 %v3125
    %4066 = vmatprep.subr.bf16.mxu0 %v3246
    %4067 = vmatpush2.bf16.msra.mxu0 %v3245
    %4068 = vmatprep.subr.bf16.mxu0 %v3238
    %4069 = vmatpush2.bf16.msra.mxu0 %v3237
    %4070 = vmatprep.subr.bf16.mxu0 %v3230
    %4071 = vmatpush2.bf16.msra.mxu0 %v3229
    %4072 = vmatprep.subr.bf16.mxu0 %v3222
    %4073 = vmatpush2.bf16.msra.mxu0 %v3221
    %4074 = vmatprep.subr.bf16.mxu0 %v3214
    %4075 = vmatpush2.bf16.msra.mxu0 %v3213
    %4076 = vmatprep.subr.bf16.mxu0 %v3206
    %4077 = vmatpush2.bf16.msra.mxu0 %v3205
    %4078 = vmatprep.subr.bf16.mxu0 %v3198
    %4079 = vmatpush2.bf16.msra.mxu0 %v3197
    %4080 = vmatprep.subr.bf16.mxu0 %v3190
    %4081 = vmatpush2.bf16.msra.mxu0 %v3189
    %4082 = vmatprep.mubr.bf16.mxu0 %v648
    %4083 = vmatmul.mubr.bf16.gmra.mxu0 %v647
    %v4084 = vpop.f32.mrf.mxu0
    %v4085 = vadd.f32 %v4044, %v4084
    %v4086 = vpop.f32.mrf.mxu0
    %v4087 = vadd.f32 %v4046, %v4086
    %v4088 = vpop.f32.mrf.mxu0
    %v4089 = vpop.f32.mrf.mxu0
    %4090 = vdwg.mxu0
    %4091 = vmatprep.subr.bf16.mxu0 %v2800
    %4092 = vmatpush1.bf16.msra.mxu0 %v2799
    %4093 = vmatprep.subr.bf16.mxu0 %v2792
    %4094 = vmatpush1.bf16.msra.mxu0 %v2791
    %4095 = vmatprep.subr.bf16.mxu0 %v2784
    %4096 = vmatpush1.bf16.msra.mxu0 %v2783
    %4097 = vmatprep.subr.bf16.mxu0 %v2776
    %4098 = vmatpush1.bf16.msra.mxu0 %v2775
    %4099 = vmatprep.subr.bf16.mxu0 %v2768
    %4100 = vmatpush1.bf16.msra.mxu0 %v2767
    %4101 = vmatprep.subr.bf16.mxu0 %v2760
    %4102 = vmatpush1.bf16.msra.mxu0 %v2759
    %4103 = vmatprep.subr.bf16.mxu0 %v2752
    %4104 = vmatpush1.bf16.msra.mxu0 %v2751
    %4105 = vmatprep.subr.bf16.mxu0 %v2744
    %4106 = vmatpush1.bf16.msra.mxu0 %v2743
    %4107 = vmatprep.subr.bf16.mxu0 %v2864
    %4108 = vmatpush2.bf16.msra.mxu0 %v2863
    %4109 = vmatprep.subr.bf16.mxu0 %v2856
    %4110 = vmatpush2.bf16.msra.mxu0 %v2855
    %4111 = vmatprep.subr.bf16.mxu0 %v2848
    %4112 = vmatpush2.bf16.msra.mxu0 %v2847
    %4113 = vmatprep.subr.bf16.mxu0 %v2840
    %4114 = vmatpush2.bf16.msra.mxu0 %v2839
    %4115 = vmatprep.subr.bf16.mxu0 %v2832
    %4116 = vmatpush2.bf16.msra.mxu0 %v2831
    %4117 = vmatprep.subr.bf16.mxu0 %v2824
    %4118 = vmatpush2.bf16.msra.mxu0 %v2823
    %4119 = vmatprep.subr.bf16.mxu0 %v2816
    %4120 = vmatpush2.bf16.msra.mxu0 %v2815
    %4121 = vmatprep.subr.bf16.mxu0 %v2808
    %4122 = vmatpush2.bf16.msra.mxu0 %v2807
    %4123 = vmatprep.mubr.bf16.mxu0 %v642
    %4124 = vmatmul.mubr.bf16.gmra.mxu0 %v641
    %v4125 = vpop.f32.mrf.mxu0
    %v4126 = vadd.f32 %v1182, %v4125
    %v4127 = vpop.f32.mrf.mxu0
    %v4128 = vadd.f32 %v1186, %v4127
    %v4129 = vpop.f32.mrf.mxu0
    %v4130 = vpop.f32.mrf.mxu0
    %4131 = vdwg.mxu0
    %4132 = vmatprep.subr.bf16.mxu0 %v2928
    %4133 = vmatpush1.bf16.msra.mxu0 %v2927
    %4134 = vmatprep.subr.bf16.mxu0 %v2920
    %4135 = vmatpush1.bf16.msra.mxu0 %v2919
    %4136 = vmatprep.subr.bf16.mxu0 %v2912
    %4137 = vmatpush1.bf16.msra.mxu0 %v2911
    %4138 = vmatprep.subr.bf16.mxu0 %v2904
    %4139 = vmatpush1.bf16.msra.mxu0 %v2903
    %4140 = vmatprep.subr.bf16.mxu0 %v2896
    %4141 = vmatpush1.bf16.msra.mxu0 %v2895
    %4142 = vmatprep.subr.bf16.mxu0 %v2888
    %4143 = vmatpush1.bf16.msra.mxu0 %v2887
    %4144 = vmatprep.subr.bf16.mxu0 %v2880
    %4145 = vmatpush1.bf16.msra.mxu0 %v2879
    %4146 = vmatprep.subr.bf16.mxu0 %v2872
    %4147 = vmatpush1.bf16.msra.mxu0 %v2871
    %4148 = vmatprep.subr.bf16.mxu0 %v2992
    %4149 = vmatpush2.bf16.msra.mxu0 %v2991
    %4150 = vmatprep.subr.bf16.mxu0 %v2984
    %4151 = vmatpush2.bf16.msra.mxu0 %v2983
    %4152 = vmatprep.subr.bf16.mxu0 %v2976
    %4153 = vmatpush2.bf16.msra.mxu0 %v2975
    %4154 = vmatprep.subr.bf16.mxu0 %v2968
    %4155 = vmatpush2.bf16.msra.mxu0 %v2967
    %4156 = vmatprep.subr.bf16.mxu0 %v2960
    %4157 = vmatpush2.bf16.msra.mxu0 %v2959
    %4158 = vmatprep.subr.bf16.mxu0 %v2952
    %4159 = vmatpush2.bf16.msra.mxu0 %v2951
    %4160 = vmatprep.subr.bf16.mxu0 %v2944
    %4161 = vmatpush2.bf16.msra.mxu0 %v2943
    %4162 = vmatprep.subr.bf16.mxu0 %v2936
    %4163 = vmatpush2.bf16.msra.mxu0 %v2935
    %4164 = vmatprep.mubr.bf16.mxu0 %v644
    %4165 = vmatmul.mubr.bf16.gmra.mxu0 %v643
    %v4166 = vpop.f32.mrf.mxu0
    %v4167 = vadd.f32 %v4126, %v4166
    %v4168 = vpop.f32.mrf.mxu0
    %v4169 = vadd.f32 %v4128, %v4168
    %v4170 = vpop.f32.mrf.mxu0
    %v4171 = vpop.f32.mrf.mxu0
    %4172 = vdwg.mxu0
    %4173 = vmatprep.subr.bf16.mxu0 %v3056
    %4174 = vmatpush1.bf16.msra.mxu0 %v3055
    %4175 = vmatprep.subr.bf16.mxu0 %v3048
    %4176 = vmatpush1.bf16.msra.mxu0 %v3047
    %4177 = vmatprep.subr.bf16.mxu0 %v3040
    %4178 = vmatpush1.bf16.msra.mxu0 %v3039
    %4179 = vmatprep.subr.bf16.mxu0 %v3032
    %4180 = vmatpush1.bf16.msra.mxu0 %v3031
    %4181 = vmatprep.subr.bf16.mxu0 %v3024
    %4182 = vmatpush1.bf16.msra.mxu0 %v3023
    %4183 = vmatprep.subr.bf16.mxu0 %v3016
    %4184 = vmatpush1.bf16.msra.mxu0 %v3015
    %4185 = vmatprep.subr.bf16.mxu0 %v3008
    %4186 = vmatpush1.bf16.msra.mxu0 %v3007
    %4187 = vmatprep.subr.bf16.mxu0 %v3000
    %4188 = vmatpush1.bf16.msra.mxu0 %v2999
    %4189 = vmatprep.subr.bf16.mxu0 %v3120
    %4190 = vmatpush2.bf16.msra.mxu0 %v3119
    %4191 = vmatprep.subr.bf16.mxu0 %v3112
    %4192 = vmatpush2.bf16.msra.mxu0 %v3111
    %4193 = vmatprep.subr.bf16.mxu0 %v3104
    %4194 = vmatpush2.bf16.msra.mxu0 %v3103
    %4195 = vmatprep.subr.bf16.mxu0 %v3096
    %4196 = vmatpush2.bf16.msra.mxu0 %v3095
    %4197 = vmatprep.subr.bf16.mxu0 %v3088
    %4198 = vmatpush2.bf16.msra.mxu0 %v3087
    %4199 = vmatprep.subr.bf16.mxu0 %v3080
    %4200 = vmatpush2.bf16.msra.mxu0 %v3079
    %4201 = vmatprep.subr.bf16.mxu0 %v3072
    %4202 = vmatpush2.bf16.msra.mxu0 %v3071
    %4203 = vmatprep.subr.bf16.mxu0 %v3064
    %4204 = vmatpush2.bf16.msra.mxu0 %v3063
    %4205 = vmatprep.mubr.bf16.mxu0 %v646
    %4206 = vmatmul.mubr.bf16.gmra.mxu0 %v645
    %v4207 = vpop.f32.mrf.mxu0
    %v4208 = vadd.f32 %v4167, %v4207
    %v4209 = vpop.f32.mrf.mxu0
    %v4210 = vadd.f32 %v4169, %v4209
    %v4211 = vpop.f32.mrf.mxu0
    %v4212 = vpop.f32.mrf.mxu0
    %4213 = vdwg.mxu0
    %4214 = vmatprep.subr.bf16.mxu0 %v3184
    %4215 = vmatpush1.bf16.msra.mxu0 %v3183
    %4216 = vmatprep.subr.bf16.mxu0 %v3176
    %4217 = vmatpush1.bf16.msra.mxu0 %v3175
    %4218 = vmatprep.subr.bf16.mxu0 %v3168
    %4219 = vmatpush1.bf16.msra.mxu0 %v3167
    %4220 = vmatprep.subr.bf16.mxu0 %v3160
    %4221 = vmatpush1.bf16.msra.mxu0 %v3159
    %4222 = vmatprep.subr.bf16.mxu0 %v3152
    %4223 = vmatpush1.bf16.msra.mxu0 %v3151
    %4224 = vmatprep.subr.bf16.mxu0 %v3144
    %4225 = vmatpush1.bf16.msra.mxu0 %v3143
    %4226 = vmatprep.subr.bf16.mxu0 %v3136
    %4227 = vmatpush1.bf16.msra.mxu0 %v3135
    %4228 = vmatprep.subr.bf16.mxu0 %v3128
    %4229 = vmatpush1.bf16.msra.mxu0 %v3127
    %4230 = vmatprep.subr.bf16.mxu0 %v3248
    %4231 = vmatpush2.bf16.msra.mxu0 %v3247
    %4232 = vmatprep.subr.bf16.mxu0 %v3240
    %4233 = vmatpush2.bf16.msra.mxu0 %v3239
    %4234 = vmatprep.subr.bf16.mxu0 %v3232
    %4235 = vmatpush2.bf16.msra.mxu0 %v3231
    %4236 = vmatprep.subr.bf16.mxu0 %v3224
    %4237 = vmatpush2.bf16.msra.mxu0 %v3223
    %4238 = vmatprep.subr.bf16.mxu0 %v3216
    %4239 = vmatpush2.bf16.msra.mxu0 %v3215
    %4240 = vmatprep.subr.bf16.mxu0 %v3208
    %4241 = vmatpush2.bf16.msra.mxu0 %v3207
    %4242 = vmatprep.subr.bf16.mxu0 %v3200
    %4243 = vmatpush2.bf16.msra.mxu0 %v3199
    %4244 = vmatprep.subr.bf16.mxu0 %v3192
    %4245 = vmatpush2.bf16.msra.mxu0 %v3191
    %4246 = vmatprep.mubr.bf16.mxu0 %v648
    %4247 = vmatmul.mubr.bf16.gmra.mxu0 %v647
    %v4248 = vpop.f32.mrf.mxu0
    %v4249 = vadd.f32 %v4208, %v4248
    %v4250 = vpop.f32.mrf.mxu0
    %v4251 = vadd.f32 %v4210, %v4250
    %v4252 = vpop.f32.mrf.mxu0
    %v4253 = vpop.f32.mrf.mxu0
    %4254 = vdwg.mxu0
    %4255 = vmatprep.subr.bf16.mxu0 %v2802
    %4256 = vmatpush1.bf16.msra.mxu0 %v2801
    %4257 = vmatprep.subr.bf16.mxu0 %v2794
    %4258 = vmatpush1.bf16.msra.mxu0 %v2793
    %4259 = vmatprep.subr.bf16.mxu0 %v2786
    %4260 = vmatpush1.bf16.msra.mxu0 %v2785
    %4261 = vmatprep.subr.bf16.mxu0 %v2778
    %4262 = vmatpush1.bf16.msra.mxu0 %v2777
    %4263 = vmatprep.subr.bf16.mxu0 %v2770
    %4264 = vmatpush1.bf16.msra.mxu0 %v2769
    %4265 = vmatprep.subr.bf16.mxu0 %v2762
    %4266 = vmatpush1.bf16.msra.mxu0 %v2761
    %4267 = vmatprep.subr.bf16.mxu0 %v2754
    %4268 = vmatpush1.bf16.msra.mxu0 %v2753
    %4269 = vmatprep.subr.bf16.mxu0 %v2746
    %4270 = vmatpush1.bf16.msra.mxu0 %v2745
    %4271 = vmatprep.subr.bf16.mxu0 %v2866
    %4272 = vmatpush2.bf16.msra.mxu0 %v2865
    %4273 = vmatprep.subr.bf16.mxu0 %v2858
    %4274 = vmatpush2.bf16.msra.mxu0 %v2857
    %4275 = vmatprep.subr.bf16.mxu0 %v2850
    %4276 = vmatpush2.bf16.msra.mxu0 %v2849
    %4277 = vmatprep.subr.bf16.mxu0 %v2842
    %4278 = vmatpush2.bf16.msra.mxu0 %v2841
    %4279 = vmatprep.subr.bf16.mxu0 %v2834
    %4280 = vmatpush2.bf16.msra.mxu0 %v2833
    %4281 = vmatprep.subr.bf16.mxu0 %v2826
    %4282 = vmatpush2.bf16.msra.mxu0 %v2825
    %4283 = vmatprep.subr.bf16.mxu0 %v2818
    %4284 = vmatpush2.bf16.msra.mxu0 %v2817
    %4285 = vmatprep.subr.bf16.mxu0 %v2810
    %4286 = vmatpush2.bf16.msra.mxu0 %v2809
    %4287 = vmatprep.mubr.bf16.mxu0 %v642
    %4288 = vmatmul.mubr.bf16.gmra.mxu0 %v641
    %v4289 = vpop.f32.mrf.mxu0
    %v4290 = vadd.f32 %v1190, %v4289
    %v4291 = vpop.f32.mrf.mxu0
    %v4292 = vadd.f32 %v1194, %v4291
    %v4293 = vpop.f32.mrf.mxu0
    %v4294 = vpop.f32.mrf.mxu0
    %4295 = vdwg.mxu0
    %4296 = vmatprep.subr.bf16.mxu0 %v2930
    %4297 = vmatpush1.bf16.msra.mxu0 %v2929
    %4298 = vmatprep.subr.bf16.mxu0 %v2922
    %4299 = vmatpush1.bf16.msra.mxu0 %v2921
    %4300 = vmatprep.subr.bf16.mxu0 %v2914
    %4301 = vmatpush1.bf16.msra.mxu0 %v2913
    %4302 = vmatprep.subr.bf16.mxu0 %v2906
    %4303 = vmatpush1.bf16.msra.mxu0 %v2905
    %4304 = vmatprep.subr.bf16.mxu0 %v2898
    %4305 = vmatpush1.bf16.msra.mxu0 %v2897
    %4306 = vmatprep.subr.bf16.mxu0 %v2890
    %4307 = vmatpush1.bf16.msra.mxu0 %v2889
    %4308 = vmatprep.subr.bf16.mxu0 %v2882
    %4309 = vmatpush1.bf16.msra.mxu0 %v2881
    %4310 = vmatprep.subr.bf16.mxu0 %v2874
    %4311 = vmatpush1.bf16.msra.mxu0 %v2873
    %4312 = vmatprep.subr.bf16.mxu0 %v2994
    %4313 = vmatpush2.bf16.msra.mxu0 %v2993
    %4314 = vmatprep.subr.bf16.mxu0 %v2986
    %4315 = vmatpush2.bf16.msra.mxu0 %v2985
    %4316 = vmatprep.subr.bf16.mxu0 %v2978
    %4317 = vmatpush2.bf16.msra.mxu0 %v2977
    %4318 = vmatprep.subr.bf16.mxu0 %v2970
    %4319 = vmatpush2.bf16.msra.mxu0 %v2969
    %4320 = vmatprep.subr.bf16.mxu0 %v2962
    %4321 = vmatpush2.bf16.msra.mxu0 %v2961
    %4322 = vmatprep.subr.bf16.mxu0 %v2954
    %4323 = vmatpush2.bf16.msra.mxu0 %v2953
    %4324 = vmatprep.subr.bf16.mxu0 %v2946
    %4325 = vmatpush2.bf16.msra.mxu0 %v2945
    %4326 = vmatprep.subr.bf16.mxu0 %v2938
    %4327 = vmatpush2.bf16.msra.mxu0 %v2937
    %4328 = vmatprep.mubr.bf16.mxu0 %v644
    %4329 = vmatmul.mubr.bf16.gmra.mxu0 %v643
    %v4330 = vpop.f32.mrf.mxu0
    %v4331 = vadd.f32 %v4290, %v4330
    %v4332 = vpop.f32.mrf.mxu0
    %v4333 = vadd.f32 %v4292, %v4332
    %v4334 = vpop.f32.mrf.mxu0
    %v4335 = vpop.f32.mrf.mxu0
    %4336 = vdwg.mxu0
    %4337 = vmatprep.subr.bf16.mxu0 %v3058
    %4338 = vmatpush1.bf16.msra.mxu0 %v3057
    %4339 = vmatprep.subr.bf16.mxu0 %v3050
    %4340 = vmatpush1.bf16.msra.mxu0 %v3049
    %4341 = vmatprep.subr.bf16.mxu0 %v3042
    %4342 = vmatpush1.bf16.msra.mxu0 %v3041
    %4343 = vmatprep.subr.bf16.mxu0 %v3034
    %4344 = vmatpush1.bf16.msra.mxu0 %v3033
    %4345 = vmatprep.subr.bf16.mxu0 %v3026
    %4346 = vmatpush1.bf16.msra.mxu0 %v3025
    %4347 = vmatprep.subr.bf16.mxu0 %v3018
    %4348 = vmatpush1.bf16.msra.mxu0 %v3017
    %4349 = vmatprep.subr.bf16.mxu0 %v3010
    %4350 = vmatpush1.bf16.msra.mxu0 %v3009
    %4351 = vmatprep.subr.bf16.mxu0 %v3002
    %4352 = vmatpush1.bf16.msra.mxu0 %v3001
    %4353 = vmatprep.subr.bf16.mxu0 %v3122
    %4354 = vmatpush2.bf16.msra.mxu0 %v3121
    %4355 = vmatprep.subr.bf16.mxu0 %v3114
    %4356 = vmatpush2.bf16.msra.mxu0 %v3113
    %4357 = vmatprep.subr.bf16.mxu0 %v3106
    %4358 = vmatpush2.bf16.msra.mxu0 %v3105
    %4359 = vmatprep.subr.bf16.mxu0 %v3098
    %4360 = vmatpush2.bf16.msra.mxu0 %v3097
    %4361 = vmatprep.subr.bf16.mxu0 %v3090
    %4362 = vmatpush2.bf16.msra.mxu0 %v3089
    %4363 = vmatprep.subr.bf16.mxu0 %v3082
    %4364 = vmatpush2.bf16.msra.mxu0 %v3081
    %4365 = vmatprep.subr.bf16.mxu0 %v3074
    %4366 = vmatpush2.bf16.msra.mxu0 %v3073
    %4367 = vmatprep.subr.bf16.mxu0 %v3066
    %4368 = vmatpush2.bf16.msra.mxu0 %v3065
    %4369 = vmatprep.mubr.bf16.mxu0 %v646
    %4370 = vmatmul.mubr.bf16.gmra.mxu0 %v645
    %v4371 = vpop.f32.mrf.mxu0
    %v4372 = vadd.f32 %v4331, %v4371
    %v4373 = vpop.f32.mrf.mxu0
    %v4374 = vadd.f32 %v4333, %v4373
    %v4375 = vpop.f32.mrf.mxu0
    %v4376 = vpop.f32.mrf.mxu0
    %4377 = vdwg.mxu0
    %4378 = vmatprep.subr.bf16.mxu0 %v3186
    %4379 = vmatpush1.bf16.msra.mxu0 %v3185
    %4380 = vmatprep.subr.bf16.mxu0 %v3178
    %4381 = vmatpush1.bf16.msra.mxu0 %v3177
    %4382 = vmatprep.subr.bf16.mxu0 %v3170
    %4383 = vmatpush1.bf16.msra.mxu0 %v3169
    %4384 = vmatprep.subr.bf16.mxu0 %v3162
    %4385 = vmatpush1.bf16.msra.mxu0 %v3161
    %4386 = vmatprep.subr.bf16.mxu0 %v3154
    %4387 = vmatpush1.bf16.msra.mxu0 %v3153
    %4388 = vmatprep.subr.bf16.mxu0 %v3146
    %4389 = vmatpush1.bf16.msra.mxu0 %v3145
    %4390 = vmatprep.subr.bf16.mxu0 %v3138
    %4391 = vmatpush1.bf16.msra.mxu0 %v3137
    %4392 = vmatprep.subr.bf16.mxu0 %v3130
    %4393 = vmatpush1.bf16.msra.mxu0 %v3129
    %4394 = vmatprep.subr.bf16.mxu0 %v3250
    %4395 = vmatpush2.bf16.msra.mxu0 %v3249
    %4396 = vmatprep.subr.bf16.mxu0 %v3242
    %4397 = vmatpush2.bf16.msra.mxu0 %v3241
    %4398 = vmatprep.subr.bf16.mxu0 %v3234
    %4399 = vmatpush2.bf16.msra.mxu0 %v3233
    %4400 = vmatprep.subr.bf16.mxu0 %v3226
    %4401 = vmatpush2.bf16.msra.mxu0 %v3225
    %4402 = vmatprep.subr.bf16.mxu0 %v3218
    %4403 = vmatpush2.bf16.msra.mxu0 %v3217
    %4404 = vmatprep.subr.bf16.mxu0 %v3210
    %4405 = vmatpush2.bf16.msra.mxu0 %v3209
    %4406 = vmatprep.subr.bf16.mxu0 %v3202
    %4407 = vmatpush2.bf16.msra.mxu0 %v3201
    %4408 = vmatprep.subr.bf16.mxu0 %v3194
    %4409 = vmatpush2.bf16.msra.mxu0 %v3193
    %4410 = vmatprep.mubr.bf16.mxu0 %v648
    %4411 = vmatmul.mubr.bf16.gmra.mxu0 %v647
    %v4412 = vpop.f32.mrf.mxu0
    %v4413 = vadd.f32 %v4372, %v4412
    %v4414 = vpop.f32.mrf.mxu0
    %v4415 = vadd.f32 %v4374, %v4414
    %v4416 = vpop.f32.mrf.mxu0
    %v4417 = vpop.f32.mrf.mxu0
    %4418 = vdwg.mxu0
    %vm4419 = vcmp.gt.f32.partialorder %v3921, 0.0
    %vm4420 = vcmp.gt.f32.partialorder %v3923, 0.0
    %vm4421 = vcmp.gt.f32.partialorder %v4085, 0.0
    %vm4422 = vcmp.gt.f32.partialorder %v4087, 0.0
    %vm4423 = vcmp.gt.f32.partialorder %v4249, 0.0
    %vm4424 = vcmp.gt.f32.partialorder %v4251, 0.0
    %vm4425 = vcmp.gt.f32.partialorder %v4413, 0.0
    %vm4426 = vcmp.gt.f32.partialorder %v4415, 0.0
    %v4427 = vmul.f32 %v3921, 0.2
    %v4428 = vmul.f32 %v3923, 0.2
    %v4429 = vmul.f32 %v4085, 0.2
    %v4430 = vmul.f32 %v4087, 0.2
    %v4431 = vmul.f32 %v4249, 0.2
    %v4432 = vmul.f32 %v4251, 0.2
    %v4433 = vmul.f32 %v4413, 0.2
    %v4434 = vmul.f32 %v4415, 0.2
    %v4435 = vsel %vm4419, %v3921, %v4427
    %v4436 = vsel %vm4420, %v3923, %v4428
    %v4437 = vsel %vm4421, %v4085, %v4429
    %v4438 = vsel %vm4422, %v4087, %v4430
    %v4439 = vsel %vm4423, %v4249, %v4431
    %v4440 = vsel %vm4424, %v4251, %v4432
    %v4441 = vsel %vm4425, %v4413, %v4433
    %v4442 = vsel %vm4426, %v4415, %v4434
    %v4443 = vpack.c.bf16 %v4435, %v4435
    %v4444 = vpack.c.bf16 %v4436, %v4436
    %v4445 = vpack.c.bf16 %v4437, %v4437
    %v4446 = vpack.c.bf16 %v4438, %v4438
    %v4447 = vpack.c.bf16 %v4439, %v4439
    %v4448 = vpack.c.bf16 %v4440, %v4440
    %v4449 = vpack.c.bf16 %v4441, %v4441
    %v4450 = vpack.c.bf16 %v4442, %v4442
    %v4451 = vld [vmem:[#allocation12] sm:$0xf]
    %v4452 = vld [vmem:[#allocation12 + $0x4] sm:$0xf]
    %v4453 = vld [vmem:[#allocation12 + $0x8] sm:$0xf]
    %v4454 = vld [vmem:[#allocation12 + $0xc] sm:$0xf]
    %v4455 = vld [vmem:[#allocation12 + $0x10] sm:$0xf]
    %v4456 = vld [vmem:[#allocation12 + $0x14] sm:$0xf]
    %v4457 = vld [vmem:[#allocation12 + $0x18] sm:$0xf]
    %v4458 = vld [vmem:[#allocation12 + $0x1c] sm:$0xf]
    %v4459 = vld [vmem:[#allocation12 + $0x20] sm:$0xf]
    %v4460 = vld [vmem:[#allocation12 + $0x24] sm:$0xf]
    %v4461 = vld [vmem:[#allocation12 + $0x28] sm:$0xf]
    %v4462 = vld [vmem:[#allocation12 + $0x2c] sm:$0xf]
    %v4463 = vld [vmem:[#allocation12 + $0x30] sm:$0xf]
    %v4464 = vld [vmem:[#allocation12 + $0x34] sm:$0xf]
    %v4465 = vld [vmem:[#allocation12 + $0x38] sm:$0xf]
    %v4466 = vld [vmem:[#allocation12 + $0x3c] sm:$0xf]
    %v4467 = vld [vmem:[#allocation12 + $0x40] sm:$0xf]
    %v4468 = vld [vmem:[#allocation12 + $0x44] sm:$0xf]
    %v4469 = vld [vmem:[#allocation12 + $0x48] sm:$0xf]
    %v4470 = vld [vmem:[#allocation12 + $0x4c] sm:$0xf]
    %v4471 = vld [vmem:[#allocation12 + $0x50] sm:$0xf]
    %v4472 = vld [vmem:[#allocation12 + $0x54] sm:$0xf]
    %v4473 = vld [vmem:[#allocation12 + $0x58] sm:$0xf]
    %v4474 = vld [vmem:[#allocation12 + $0x5c] sm:$0xf]
    %v4475 = vld [vmem:[#allocation12 + $0x60] sm:$0xf]
    %v4476 = vld [vmem:[#allocation12 + $0x64] sm:$0xf]
    %v4477 = vld [vmem:[#allocation12 + $0x68] sm:$0xf]
    %v4478 = vld [vmem:[#allocation12 + $0x6c] sm:$0xf]
    %v4479 = vld [vmem:[#allocation12 + $0x70] sm:$0xf]
    %v4480 = vld [vmem:[#allocation12 + $0x74] sm:$0xf]
    %v4481 = vld [vmem:[#allocation12 + $0x78] sm:$0xf]
    %v4482 = vld [vmem:[#allocation12 + $0x7c] sm:$0xf]
    %v4483 = vld [vmem:[#allocation12 + $0x80] sm:$0xf]
    %v4484 = vld [vmem:[#allocation12 + $0x84] sm:$0xf]
    %v4485 = vld [vmem:[#allocation12 + $0x88] sm:$0xf]
    %v4486 = vld [vmem:[#allocation12 + $0x8c] sm:$0xf]
    %v4487 = vld [vmem:[#allocation12 + $0x90] sm:$0xf]
    %v4488 = vld [vmem:[#allocation12 + $0x94] sm:$0xf]
    %v4489 = vld [vmem:[#allocation12 + $0x98] sm:$0xf]
    %v4490 = vld [vmem:[#allocation12 + $0x9c] sm:$0xf]
    %v4491 = vld [vmem:[#allocation12 + $0xa0] sm:$0xf]
    %v4492 = vld [vmem:[#allocation12 + $0xa4] sm:$0xf]
    %v4493 = vld [vmem:[#allocation12 + $0xa8] sm:$0xf]
    %v4494 = vld [vmem:[#allocation12 + $0xac] sm:$0xf]
    %v4495 = vld [vmem:[#allocation12 + $0xb0] sm:$0xf]
    %v4496 = vld [vmem:[#allocation12 + $0xb4] sm:$0xf]
    %v4497 = vld [vmem:[#allocation12 + $0xb8] sm:$0xf]
    %v4498 = vld [vmem:[#allocation12 + $0xbc] sm:$0xf]
    %v4499 = vld [vmem:[#allocation12 + $0xc0] sm:$0xf]
    %v4500 = vld [vmem:[#allocation12 + $0xc4] sm:$0xf]
    %v4501 = vld [vmem:[#allocation12 + $0xc8] sm:$0xf]
    %v4502 = vld [vmem:[#allocation12 + $0xcc] sm:$0xf]
    %v4503 = vld [vmem:[#allocation12 + $0xd0] sm:$0xf]
    %v4504 = vld [vmem:[#allocation12 + $0xd4] sm:$0xf]
    %v4505 = vld [vmem:[#allocation12 + $0xd8] sm:$0xf]
    %v4506 = vld [vmem:[#allocation12 + $0xdc] sm:$0xf]
    %v4507 = vld [vmem:[#allocation12 + $0xe0] sm:$0xf]
    %v4508 = vld [vmem:[#allocation12 + $0xe4] sm:$0xf]
    %v4509 = vld [vmem:[#allocation12 + $0xe8] sm:$0xf]
    %v4510 = vld [vmem:[#allocation12 + $0xec] sm:$0xf]
    %v4511 = vld [vmem:[#allocation12 + $0xf0] sm:$0xf]
    %v4512 = vld [vmem:[#allocation12 + $0xf4] sm:$0xf]
    %v4513 = vld [vmem:[#allocation12 + $0xf8] sm:$0xf]
    %v4514 = vld [vmem:[#allocation12 + $0xfc] sm:$0xf]
    %v4515 = vld [vmem:[#allocation12 + $0x100] sm:$0xf]
    %v4516 = vld [vmem:[#allocation12 + $0x104] sm:$0xf]
    %v4517 = vld [vmem:[#allocation12 + $0x108] sm:$0xf]
    %v4518 = vld [vmem:[#allocation12 + $0x10c] sm:$0xf]
    %v4519 = vld [vmem:[#allocation12 + $0x110] sm:$0xf]
    %v4520 = vld [vmem:[#allocation12 + $0x114] sm:$0xf]
    %v4521 = vld [vmem:[#allocation12 + $0x118] sm:$0xf]
    %v4522 = vld [vmem:[#allocation12 + $0x11c] sm:$0xf]
    %v4523 = vld [vmem:[#allocation12 + $0x120] sm:$0xf]
    %v4524 = vld [vmem:[#allocation12 + $0x124] sm:$0xf]
    %v4525 = vld [vmem:[#allocation12 + $0x128] sm:$0xf]
    %v4526 = vld [vmem:[#allocation12 + $0x12c] sm:$0xf]
    %v4527 = vld [vmem:[#allocation12 + $0x130] sm:$0xf]
    %v4528 = vld [vmem:[#allocation12 + $0x134] sm:$0xf]
    %v4529 = vld [vmem:[#allocation12 + $0x138] sm:$0xf]
    %v4530 = vld [vmem:[#allocation12 + $0x13c] sm:$0xf]
    %v4531 = vld [vmem:[#allocation12 + $0x140] sm:$0xf]
    %v4532 = vld [vmem:[#allocation12 + $0x144] sm:$0xf]
    %v4533 = vld [vmem:[#allocation12 + $0x148] sm:$0xf]
    %v4534 = vld [vmem:[#allocation12 + $0x14c] sm:$0xf]
    %v4535 = vld [vmem:[#allocation12 + $0x150] sm:$0xf]
    %v4536 = vld [vmem:[#allocation12 + $0x154] sm:$0xf]
    %v4537 = vld [vmem:[#allocation12 + $0x158] sm:$0xf]
    %v4538 = vld [vmem:[#allocation12 + $0x15c] sm:$0xf]
    %v4539 = vld [vmem:[#allocation12 + $0x160] sm:$0xf]
    %v4540 = vld [vmem:[#allocation12 + $0x164] sm:$0xf]
    %v4541 = vld [vmem:[#allocation12 + $0x168] sm:$0xf]
    %v4542 = vld [vmem:[#allocation12 + $0x16c] sm:$0xf]
    %v4543 = vld [vmem:[#allocation12 + $0x170] sm:$0xf]
    %v4544 = vld [vmem:[#allocation12 + $0x174] sm:$0xf]
    %v4545 = vld [vmem:[#allocation12 + $0x178] sm:$0xf]
    %v4546 = vld [vmem:[#allocation12 + $0x17c] sm:$0xf]
    %v4547 = vld [vmem:[#allocation12 + $0x180] sm:$0xf]
    %v4548 = vld [vmem:[#allocation12 + $0x184] sm:$0xf]
    %v4549 = vld [vmem:[#allocation12 + $0x188] sm:$0xf]
    %v4550 = vld [vmem:[#allocation12 + $0x18c] sm:$0xf]
    %v4551 = vld [vmem:[#allocation12 + $0x190] sm:$0xf]
    %v4552 = vld [vmem:[#allocation12 + $0x194] sm:$0xf]
    %v4553 = vld [vmem:[#allocation12 + $0x198] sm:$0xf]
    %v4554 = vld [vmem:[#allocation12 + $0x19c] sm:$0xf]
    %v4555 = vld [vmem:[#allocation12 + $0x1a0] sm:$0xf]
    %v4556 = vld [vmem:[#allocation12 + $0x1a4] sm:$0xf]
    %v4557 = vld [vmem:[#allocation12 + $0x1a8] sm:$0xf]
    %v4558 = vld [vmem:[#allocation12 + $0x1ac] sm:$0xf]
    %v4559 = vld [vmem:[#allocation12 + $0x1b0] sm:$0xf]
    %v4560 = vld [vmem:[#allocation12 + $0x1b4] sm:$0xf]
    %v4561 = vld [vmem:[#allocation12 + $0x1b8] sm:$0xf]
    %v4562 = vld [vmem:[#allocation12 + $0x1bc] sm:$0xf]
    %v4563 = vld [vmem:[#allocation12 + $0x1c0] sm:$0xf]
    %v4564 = vld [vmem:[#allocation12 + $0x1c4] sm:$0xf]
    %v4565 = vld [vmem:[#allocation12 + $0x1c8] sm:$0xf]
    %v4566 = vld [vmem:[#allocation12 + $0x1cc] sm:$0xf]
    %v4567 = vld [vmem:[#allocation12 + $0x1d0] sm:$0xf]
    %v4568 = vld [vmem:[#allocation12 + $0x1d4] sm:$0xf]
    %v4569 = vld [vmem:[#allocation12 + $0x1d8] sm:$0xf]
    %v4570 = vld [vmem:[#allocation12 + $0x1dc] sm:$0xf]
    %v4571 = vld [vmem:[#allocation12 + $0x1e0] sm:$0xf]
    %v4572 = vld [vmem:[#allocation12 + $0x1e4] sm:$0xf]
    %v4573 = vld [vmem:[#allocation12 + $0x1e8] sm:$0xf]
    %v4574 = vld [vmem:[#allocation12 + $0x1ec] sm:$0xf]
    %v4575 = vld [vmem:[#allocation12 + $0x1f0] sm:$0xf]
    %v4576 = vld [vmem:[#allocation12 + $0x1f4] sm:$0xf]
    %v4577 = vld [vmem:[#allocation12 + $0x1f8] sm:$0xf]
    %v4578 = vld [vmem:[#allocation12 + $0x1fc] sm:$0xf]
    %v4579 = vld [vmem:[#allocation14] sm:$0x1]
    %v4581 = vlaneseq
    %v4582 = vshrl.u32 %v4581, 7
    %v4583 = vsub.s32 0, %v4582
    %v4584 = vrot.slane %v4579, %v4583
    %v4714 = vunpack.c.l.b16 %v4451
    %v4715 = vunpack.c.l.b16 %v4452
    %v4716 = vunpack.c.l.b16 %v4453
    %v4717 = vunpack.c.l.b16 %v4454
    %v4718 = vunpack.c.l.b16 %v4455
    %v4719 = vunpack.c.l.b16 %v4456
    %v4720 = vunpack.c.l.b16 %v4457
    %v4721 = vunpack.c.l.b16 %v4458
    %v4722 = vunpack.c.l.b16 %v4459
    %v4723 = vunpack.c.l.b16 %v4460
    %v4724 = vunpack.c.l.b16 %v4461
    %v4725 = vunpack.c.l.b16 %v4462
    %v4726 = vunpack.c.l.b16 %v4463
    %v4727 = vunpack.c.l.b16 %v4464
    %v4728 = vunpack.c.l.b16 %v4465
    %v4729 = vunpack.c.l.b16 %v4466
    %v4730 = vunpack.c.l.b16 %v4467
    %v4731 = vunpack.c.l.b16 %v4468
    %v4732 = vunpack.c.l.b16 %v4469
    %v4733 = vunpack.c.l.b16 %v4470
    %v4734 = vunpack.c.l.b16 %v4471
    %v4735 = vunpack.c.l.b16 %v4472
    %v4736 = vunpack.c.l.b16 %v4473
    %v4737 = vunpack.c.l.b16 %v4474
    %v4738 = vunpack.c.l.b16 %v4475
    %v4739 = vunpack.c.l.b16 %v4476
    %v4740 = vunpack.c.l.b16 %v4477
    %v4741 = vunpack.c.l.b16 %v4478
    %v4742 = vunpack.c.l.b16 %v4479
    %v4743 = vunpack.c.l.b16 %v4480
    %v4744 = vunpack.c.l.b16 %v4481
    %v4745 = vunpack.c.l.b16 %v4482
    %v4746 = vunpack.c.l.b16 %v4483
    %v4747 = vunpack.c.l.b16 %v4484
    %v4748 = vunpack.c.l.b16 %v4485
    %v4749 = vunpack.c.l.b16 %v4486
    %v4750 = vunpack.c.l.b16 %v4487
    %v4751 = vunpack.c.l.b16 %v4488
    %v4752 = vunpack.c.l.b16 %v4489
    %v4753 = vunpack.c.l.b16 %v4490
    %v4754 = vunpack.c.l.b16 %v4491
    %v4755 = vunpack.c.l.b16 %v4492
    %v4756 = vunpack.c.l.b16 %v4493
    %v4757 = vunpack.c.l.b16 %v4494
    %v4758 = vunpack.c.l.b16 %v4495
    %v4759 = vunpack.c.l.b16 %v4496
    %v4760 = vunpack.c.l.b16 %v4497
    %v4761 = vunpack.c.l.b16 %v4498
    %v4762 = vunpack.c.l.b16 %v4499
    %v4763 = vunpack.c.l.b16 %v4500
    %v4764 = vunpack.c.l.b16 %v4501
    %v4765 = vunpack.c.l.b16 %v4502
    %v4766 = vunpack.c.l.b16 %v4503
    %v4767 = vunpack.c.l.b16 %v4504
    %v4768 = vunpack.c.l.b16 %v4505
    %v4769 = vunpack.c.l.b16 %v4506
    %v4770 = vunpack.c.l.b16 %v4507
    %v4771 = vunpack.c.l.b16 %v4508
    %v4772 = vunpack.c.l.b16 %v4509
    %v4773 = vunpack.c.l.b16 %v4510
    %v4774 = vunpack.c.l.b16 %v4511
    %v4775 = vunpack.c.l.b16 %v4512
    %v4776 = vunpack.c.l.b16 %v4513
    %v4777 = vunpack.c.l.b16 %v4514
    %v4778 = vunpack.c.l.b16 %v4515
    %v4779 = vunpack.c.l.b16 %v4516
    %v4780 = vunpack.c.l.b16 %v4517
    %v4781 = vunpack.c.l.b16 %v4518
    %v4782 = vunpack.c.l.b16 %v4519
    %v4783 = vunpack.c.l.b16 %v4520
    %v4784 = vunpack.c.l.b16 %v4521
    %v4785 = vunpack.c.l.b16 %v4522
    %v4786 = vunpack.c.l.b16 %v4523
    %v4787 = vunpack.c.l.b16 %v4524
    %v4788 = vunpack.c.l.b16 %v4525
    %v4789 = vunpack.c.l.b16 %v4526
    %v4790 = vunpack.c.l.b16 %v4527
    %v4791 = vunpack.c.l.b16 %v4528
    %v4792 = vunpack.c.l.b16 %v4529
    %v4793 = vunpack.c.l.b16 %v4530
    %v4794 = vunpack.c.l.b16 %v4531
    %v4795 = vunpack.c.l.b16 %v4532
    %v4796 = vunpack.c.l.b16 %v4533
    %v4797 = vunpack.c.l.b16 %v4534
    %v4798 = vunpack.c.l.b16 %v4535
    %v4799 = vunpack.c.l.b16 %v4536
    %v4800 = vunpack.c.l.b16 %v4537
    %v4801 = vunpack.c.l.b16 %v4538
    %v4802 = vunpack.c.l.b16 %v4539
    %v4803 = vunpack.c.l.b16 %v4540
    %v4804 = vunpack.c.l.b16 %v4541
    %v4805 = vunpack.c.l.b16 %v4542
    %v4806 = vunpack.c.l.b16 %v4543
    %v4807 = vunpack.c.l.b16 %v4544
    %v4808 = vunpack.c.l.b16 %v4545
    %v4809 = vunpack.c.l.b16 %v4546
    %v4810 = vunpack.c.l.b16 %v4547
    %v4811 = vunpack.c.l.b16 %v4548
    %v4812 = vunpack.c.l.b16 %v4549
    %v4813 = vunpack.c.l.b16 %v4550
    %v4814 = vunpack.c.l.b16 %v4551
    %v4815 = vunpack.c.l.b16 %v4552
    %v4816 = vunpack.c.l.b16 %v4553
    %v4817 = vunpack.c.l.b16 %v4554
    %v4818 = vunpack.c.l.b16 %v4555
    %v4819 = vunpack.c.l.b16 %v4556
    %v4820 = vunpack.c.l.b16 %v4557
    %v4821 = vunpack.c.l.b16 %v4558
    %v4822 = vunpack.c.l.b16 %v4559
    %v4823 = vunpack.c.l.b16 %v4560
    %v4824 = vunpack.c.l.b16 %v4561
    %v4825 = vunpack.c.l.b16 %v4562
    %v4826 = vunpack.c.l.b16 %v4563
    %v4827 = vunpack.c.l.b16 %v4564
    %v4828 = vunpack.c.l.b16 %v4565
    %v4829 = vunpack.c.l.b16 %v4566
    %v4830 = vunpack.c.l.b16 %v4567
    %v4831 = vunpack.c.l.b16 %v4568
    %v4832 = vunpack.c.l.b16 %v4569
    %v4833 = vunpack.c.l.b16 %v4570
    %v4834 = vunpack.c.l.b16 %v4571
    %v4835 = vunpack.c.l.b16 %v4572
    %v4836 = vunpack.c.l.b16 %v4573
    %v4837 = vunpack.c.l.b16 %v4574
    %v4838 = vunpack.c.l.b16 %v4575
    %v4839 = vunpack.c.l.b16 %v4576
    %v4840 = vunpack.c.l.b16 %v4577
    %v4841 = vunpack.c.l.b16 %v4578
    %v4842 = vpack.c.b16 %v4715, %v4714
    %v4843 = vpack.c.b16 %v4717, %v4716
    %v4844 = vpack.c.b16 %v4719, %v4718
    %v4845 = vpack.c.b16 %v4721, %v4720
    %v4846 = vpack.c.b16 %v4723, %v4722
    %v4847 = vpack.c.b16 %v4725, %v4724
    %v4848 = vpack.c.b16 %v4727, %v4726
    %v4849 = vpack.c.b16 %v4729, %v4728
    %v4850 = vpack.c.b16 %v4731, %v4730
    %v4851 = vpack.c.b16 %v4733, %v4732
    %v4852 = vpack.c.b16 %v4735, %v4734
    %v4853 = vpack.c.b16 %v4737, %v4736
    %v4854 = vpack.c.b16 %v4739, %v4738
    %v4855 = vpack.c.b16 %v4741, %v4740
    %v4856 = vpack.c.b16 %v4743, %v4742
    %v4857 = vpack.c.b16 %v4745, %v4744
    %v4858 = vpack.c.b16 %v4747, %v4746
    %v4859 = vpack.c.b16 %v4749, %v4748
    %v4860 = vpack.c.b16 %v4751, %v4750
    %v4861 = vpack.c.b16 %v4753, %v4752
    %v4862 = vpack.c.b16 %v4755, %v4754
    %v4863 = vpack.c.b16 %v4757, %v4756
    %v4864 = vpack.c.b16 %v4759, %v4758
    %v4865 = vpack.c.b16 %v4761, %v4760
    %v4866 = vpack.c.b16 %v4763, %v4762
    %v4867 = vpack.c.b16 %v4765, %v4764
    %v4868 = vpack.c.b16 %v4767, %v4766
    %v4869 = vpack.c.b16 %v4769, %v4768
    %v4870 = vpack.c.b16 %v4771, %v4770
    %v4871 = vpack.c.b16 %v4773, %v4772
    %v4872 = vpack.c.b16 %v4775, %v4774
    %v4873 = vpack.c.b16 %v4777, %v4776
    %v4874 = vpack.c.b16 %v4779, %v4778
    %v4875 = vpack.c.b16 %v4781, %v4780
    %v4876 = vpack.c.b16 %v4783, %v4782
    %v4877 = vpack.c.b16 %v4785, %v4784
    %v4878 = vpack.c.b16 %v4787, %v4786
    %v4879 = vpack.c.b16 %v4789, %v4788
    %v4880 = vpack.c.b16 %v4791, %v4790
    %v4881 = vpack.c.b16 %v4793, %v4792
    %v4882 = vpack.c.b16 %v4795, %v4794
    %v4883 = vpack.c.b16 %v4797, %v4796
    %v4884 = vpack.c.b16 %v4799, %v4798
    %v4885 = vpack.c.b16 %v4801, %v4800
    %v4886 = vpack.c.b16 %v4803, %v4802
    %v4887 = vpack.c.b16 %v4805, %v4804
    %v4888 = vpack.c.b16 %v4807, %v4806
    %v4889 = vpack.c.b16 %v4809, %v4808
    %v4890 = vpack.c.b16 %v4811, %v4810
    %v4891 = vpack.c.b16 %v4813, %v4812
    %v4892 = vpack.c.b16 %v4815, %v4814
    %v4893 = vpack.c.b16 %v4817, %v4816
    %v4894 = vpack.c.b16 %v4819, %v4818
    %v4895 = vpack.c.b16 %v4821, %v4820
    %v4896 = vpack.c.b16 %v4823, %v4822
    %v4897 = vpack.c.b16 %v4825, %v4824
    %v4898 = vpack.c.b16 %v4827, %v4826
    %v4899 = vpack.c.b16 %v4829, %v4828
    %v4900 = vpack.c.b16 %v4831, %v4830
    %v4901 = vpack.c.b16 %v4833, %v4832
    %v4902 = vpack.c.b16 %v4835, %v4834
    %v4903 = vpack.c.b16 %v4837, %v4836
    %v4904 = vpack.c.b16 %v4839, %v4838
    %v4905 = vpack.c.b16 %v4841, %v4840
    %4970 = vmatprep.subr.bf16.mxu0 0
    %4971 = vmatpush1.bf16.msra.mxu0 %v4849
    %4972 = vmatprep.subr.bf16.mxu0 0
    %4973 = vmatpush1.bf16.msra.mxu0 %v4848
    %4974 = vmatprep.subr.bf16.mxu0 0
    %4975 = vmatpush1.bf16.msra.mxu0 %v4847
    %4976 = vmatprep.subr.bf16.mxu0 0
    %4977 = vmatpush1.bf16.msra.mxu0 %v4846
    %4978 = vmatprep.subr.bf16.mxu0 0
    %4979 = vmatpush1.bf16.msra.mxu0 %v4845
    %4980 = vmatprep.subr.bf16.mxu0 0
    %4981 = vmatpush1.bf16.msra.mxu0 %v4844
    %4982 = vmatprep.subr.bf16.mxu0 0
    %4983 = vmatpush1.bf16.msra.mxu0 %v4843
    %4984 = vmatprep.subr.bf16.mxu0 0
    %4985 = vmatpush1.bf16.msra.mxu0 %v4842
    %4986 = vmatprep.subr.bf16.mxu0 0
    %4987 = vmatpush2.bf16.msra.mxu0 %v4857
    %4988 = vmatprep.subr.bf16.mxu0 0
    %4989 = vmatpush2.bf16.msra.mxu0 %v4856
    %4990 = vmatprep.subr.bf16.mxu0 0
    %4991 = vmatpush2.bf16.msra.mxu0 %v4855
    %4992 = vmatprep.subr.bf16.mxu0 0
    %4993 = vmatpush2.bf16.msra.mxu0 %v4854
    %4994 = vmatprep.subr.bf16.mxu0 0
    %4995 = vmatpush2.bf16.msra.mxu0 %v4853
    %4996 = vmatprep.subr.bf16.mxu0 0
    %4997 = vmatpush2.bf16.msra.mxu0 %v4852
    %4998 = vmatprep.subr.bf16.mxu0 0
    %4999 = vmatpush2.bf16.msra.mxu0 %v4851
    %5000 = vmatprep.subr.bf16.mxu0 0
    %5001 = vmatpush2.bf16.msra.mxu0 %v4850
    %5002 = vmatprep.mubr.bf16.mxu0 %v4444
    %5003 = vmatmul.mubr.bf16.gmra.mxu0 %v4443
    %v5004 = vpop.f32.mrf.mxu0
    %v5005 = vadd.f32 %v4584, %v5004
    %v5006 = vpop.f32.mrf.mxu0
    %v5007 = vpop.f32.mrf.mxu0
    %v5008 = vpop.f32.mrf.mxu0
    %5009 = vdwg.mxu0
    %5010 = vmatprep.subr.bf16.mxu0 0
    %5011 = vmatpush1.bf16.msra.mxu0 %v4865
    %5012 = vmatprep.subr.bf16.mxu0 0
    %5013 = vmatpush1.bf16.msra.mxu0 %v4864
    %5014 = vmatprep.subr.bf16.mxu0 0
    %5015 = vmatpush1.bf16.msra.mxu0 %v4863
    %5016 = vmatprep.subr.bf16.mxu0 0
    %5017 = vmatpush1.bf16.msra.mxu0 %v4862
    %5018 = vmatprep.subr.bf16.mxu0 0
    %5019 = vmatpush1.bf16.msra.mxu0 %v4861
    %5020 = vmatprep.subr.bf16.mxu0 0
    %5021 = vmatpush1.bf16.msra.mxu0 %v4860
    %5022 = vmatprep.subr.bf16.mxu0 0
    %5023 = vmatpush1.bf16.msra.mxu0 %v4859
    %5024 = vmatprep.subr.bf16.mxu0 0
    %5025 = vmatpush1.bf16.msra.mxu0 %v4858
    %5026 = vmatprep.subr.bf16.mxu0 0
    %5027 = vmatpush2.bf16.msra.mxu0 %v4873
    %5028 = vmatprep.subr.bf16.mxu0 0
    %5029 = vmatpush2.bf16.msra.mxu0 %v4872
    %5030 = vmatprep.subr.bf16.mxu0 0
    %5031 = vmatpush2.bf16.msra.mxu0 %v4871
    %5032 = vmatprep.subr.bf16.mxu0 0
    %5033 = vmatpush2.bf16.msra.mxu0 %v4870
    %5034 = vmatprep.subr.bf16.mxu0 0
    %5035 = vmatpush2.bf16.msra.mxu0 %v4869
    %5036 = vmatprep.subr.bf16.mxu0 0
    %5037 = vmatpush2.bf16.msra.mxu0 %v4868
    %5038 = vmatprep.subr.bf16.mxu0 0
    %5039 = vmatpush2.bf16.msra.mxu0 %v4867
    %5040 = vmatprep.subr.bf16.mxu0 0
    %5041 = vmatpush2.bf16.msra.mxu0 %v4866
    %5042 = vmatprep.mubr.bf16.mxu0 %v4446
    %5043 = vmatmul.mubr.bf16.gmra.mxu0 %v4445
    %v5044 = vpop.f32.mrf.mxu0
    %v5045 = vadd.f32 %v5005, %v5044
    %v5046 = vpop.f32.mrf.mxu0
    %v5047 = vpop.f32.mrf.mxu0
    %v5048 = vpop.f32.mrf.mxu0
    %5049 = vdwg.mxu0
    %5050 = vmatprep.subr.bf16.mxu0 0
    %5051 = vmatpush1.bf16.msra.mxu0 %v4881
    %5052 = vmatprep.subr.bf16.mxu0 0
    %5053 = vmatpush1.bf16.msra.mxu0 %v4880
    %5054 = vmatprep.subr.bf16.mxu0 0
    %5055 = vmatpush1.bf16.msra.mxu0 %v4879
    %5056 = vmatprep.subr.bf16.mxu0 0
    %5057 = vmatpush1.bf16.msra.mxu0 %v4878
    %5058 = vmatprep.subr.bf16.mxu0 0
    %5059 = vmatpush1.bf16.msra.mxu0 %v4877
    %5060 = vmatprep.subr.bf16.mxu0 0
    %5061 = vmatpush1.bf16.msra.mxu0 %v4876
    %5062 = vmatprep.subr.bf16.mxu0 0
    %5063 = vmatpush1.bf16.msra.mxu0 %v4875
    %5064 = vmatprep.subr.bf16.mxu0 0
    %5065 = vmatpush1.bf16.msra.mxu0 %v4874
    %5066 = vmatprep.subr.bf16.mxu0 0
    %5067 = vmatpush2.bf16.msra.mxu0 %v4889
    %5068 = vmatprep.subr.bf16.mxu0 0
    %5069 = vmatpush2.bf16.msra.mxu0 %v4888
    %5070 = vmatprep.subr.bf16.mxu0 0
    %5071 = vmatpush2.bf16.msra.mxu0 %v4887
    %5072 = vmatprep.subr.bf16.mxu0 0
    %5073 = vmatpush2.bf16.msra.mxu0 %v4886
    %5074 = vmatprep.subr.bf16.mxu0 0
    %5075 = vmatpush2.bf16.msra.mxu0 %v4885
    %5076 = vmatprep.subr.bf16.mxu0 0
    %5077 = vmatpush2.bf16.msra.mxu0 %v4884
    %5078 = vmatprep.subr.bf16.mxu0 0
    %5079 = vmatpush2.bf16.msra.mxu0 %v4883
    %5080 = vmatprep.subr.bf16.mxu0 0
    %5081 = vmatpush2.bf16.msra.mxu0 %v4882
    %5082 = vmatprep.mubr.bf16.mxu0 %v4448
    %5083 = vmatmul.mubr.bf16.gmra.mxu0 %v4447
    %v5084 = vpop.f32.mrf.mxu0
    %v5085 = vadd.f32 %v5045, %v5084
    %v5086 = vpop.f32.mrf.mxu0
    %v5087 = vpop.f32.mrf.mxu0
    %v5088 = vpop.f32.mrf.mxu0
    %5089 = vdwg.mxu0
    %5090 = vmatprep.subr.bf16.mxu0 0
    %5091 = vmatpush1.bf16.msra.mxu0 %v4897
    %5092 = vmatprep.subr.bf16.mxu0 0
    %5093 = vmatpush1.bf16.msra.mxu0 %v4896
    %5094 = vmatprep.subr.bf16.mxu0 0
    %5095 = vmatpush1.bf16.msra.mxu0 %v4895
    %5096 = vmatprep.subr.bf16.mxu0 0
    %5097 = vmatpush1.bf16.msra.mxu0 %v4894
    %5098 = vmatprep.subr.bf16.mxu0 0
    %5099 = vmatpush1.bf16.msra.mxu0 %v4893
    %5100 = vmatprep.subr.bf16.mxu0 0
    %5101 = vmatpush1.bf16.msra.mxu0 %v4892
    %5102 = vmatprep.subr.bf16.mxu0 0
    %5103 = vmatpush1.bf16.msra.mxu0 %v4891
    %5104 = vmatprep.subr.bf16.mxu0 0
    %5105 = vmatpush1.bf16.msra.mxu0 %v4890
    %5106 = vmatprep.subr.bf16.mxu0 0
    %5107 = vmatpush2.bf16.msra.mxu0 %v4905
    %5108 = vmatprep.subr.bf16.mxu0 0
    %5109 = vmatpush2.bf16.msra.mxu0 %v4904
    %5110 = vmatprep.subr.bf16.mxu0 0
    %5111 = vmatpush2.bf16.msra.mxu0 %v4903
    %5112 = vmatprep.subr.bf16.mxu0 0
    %5113 = vmatpush2.bf16.msra.mxu0 %v4902
    %5114 = vmatprep.subr.bf16.mxu0 0
    %5115 = vmatpush2.bf16.msra.mxu0 %v4901
    %5116 = vmatprep.subr.bf16.mxu0 0
    %5117 = vmatpush2.bf16.msra.mxu0 %v4900
    %5118 = vmatprep.subr.bf16.mxu0 0
    %5119 = vmatpush2.bf16.msra.mxu0 %v4899
    %5120 = vmatprep.subr.bf16.mxu0 0
    %5121 = vmatpush2.bf16.msra.mxu0 %v4898
    %5122 = vmatprep.mubr.bf16.mxu0 %v4450
    %5123 = vmatmul.mubr.bf16.gmra.mxu0 %v4449
    %v5124 = vpop.f32.mrf.mxu0
    %v5125 = vadd.f32 %v5085, %v5124
    %v5126 = vpop.f32.mrf.mxu0
    %v5127 = vpop.f32.mrf.mxu0
    %v5128 = vpop.f32.mrf.mxu0
    %5129 = vdwg.mxu0
    %vm5130 = vcmp.gt.f32.partialorder %v5125, 0.0
    %v5131 = vmul.f32 %v5125, 0.2
    %v5132 = vsel %vm5130, %v5125, %v5131
    %5133 = vst [vmem:[#allocation2] sm:$0x3] %v5132
    %s5134 = scalar_lea.vmem [#allocation12], 512
    %v5135 = vld [vmem:[%s5134] sm:$0xf]
    %v5136 = vld [vmem:[%s5134 + $0x4] sm:$0xf]
    %v5137 = vld [vmem:[%s5134 + $0x8] sm:$0xf]
    %v5138 = vld [vmem:[%s5134 + $0xc] sm:$0xf]
    %v5139 = vld [vmem:[%s5134 + $0x10] sm:$0xf]
    %v5140 = vld [vmem:[%s5134 + $0x14] sm:$0xf]
    %v5141 = vld [vmem:[%s5134 + $0x18] sm:$0xf]
    %v5142 = vld [vmem:[%s5134 + $0x1c] sm:$0xf]
    %v5143 = vld [vmem:[%s5134 + $0x20] sm:$0xf]
    %v5144 = vld [vmem:[%s5134 + $0x24] sm:$0xf]
    %v5145 = vld [vmem:[%s5134 + $0x28] sm:$0xf]
    %v5146 = vld [vmem:[%s5134 + $0x2c] sm:$0xf]
    %v5147 = vld [vmem:[%s5134 + $0x30] sm:$0xf]
    %v5148 = vld [vmem:[%s5134 + $0x34] sm:$0xf]
    %v5149 = vld [vmem:[%s5134 + $0x38] sm:$0xf]
    %v5150 = vld [vmem:[%s5134 + $0x3c] sm:$0xf]
    %v5151 = vld [vmem:[%s5134 + $0x40] sm:$0xf]
    %v5152 = vld [vmem:[%s5134 + $0x44] sm:$0xf]
    %v5153 = vld [vmem:[%s5134 + $0x48] sm:$0xf]
    %v5154 = vld [vmem:[%s5134 + $0x4c] sm:$0xf]
    %v5155 = vld [vmem:[%s5134 + $0x50] sm:$0xf]
    %v5156 = vld [vmem:[%s5134 + $0x54] sm:$0xf]
    %v5157 = vld [vmem:[%s5134 + $0x58] sm:$0xf]
    %v5158 = vld [vmem:[%s5134 + $0x5c] sm:$0xf]
    %v5159 = vld [vmem:[%s5134 + $0x60] sm:$0xf]
    %v5160 = vld [vmem:[%s5134 + $0x64] sm:$0xf]
    %v5161 = vld [vmem:[%s5134 + $0x68] sm:$0xf]
    %v5162 = vld [vmem:[%s5134 + $0x6c] sm:$0xf]
    %v5163 = vld [vmem:[%s5134 + $0x70] sm:$0xf]
    %v5164 = vld [vmem:[%s5134 + $0x74] sm:$0xf]
    %v5165 = vld [vmem:[%s5134 + $0x78] sm:$0xf]
    %v5166 = vld [vmem:[%s5134 + $0x7c] sm:$0xf]
    %v5167 = vld [vmem:[%s5134 + $0x80] sm:$0xf]
    %v5168 = vld [vmem:[%s5134 + $0x84] sm:$0xf]
    %v5169 = vld [vmem:[%s5134 + $0x88] sm:$0xf]
    %v5170 = vld [vmem:[%s5134 + $0x8c] sm:$0xf]
    %v5171 = vld [vmem:[%s5134 + $0x90] sm:$0xf]
    %v5172 = vld [vmem:[%s5134 + $0x94] sm:$0xf]
    %v5173 = vld [vmem:[%s5134 + $0x98] sm:$0xf]
    %v5174 = vld [vmem:[%s5134 + $0x9c] sm:$0xf]
    %v5175 = vld [vmem:[%s5134 + $0xa0] sm:$0xf]
    %v5176 = vld [vmem:[%s5134 + $0xa4] sm:$0xf]
    %v5177 = vld [vmem:[%s5134 + $0xa8] sm:$0xf]
    %v5178 = vld [vmem:[%s5134 + $0xac] sm:$0xf]
    %v5179 = vld [vmem:[%s5134 + $0xb0] sm:$0xf]
    %v5180 = vld [vmem:[%s5134 + $0xb4] sm:$0xf]
    %v5181 = vld [vmem:[%s5134 + $0xb8] sm:$0xf]
    %v5182 = vld [vmem:[%s5134 + $0xbc] sm:$0xf]
    %v5183 = vld [vmem:[%s5134 + $0xc0] sm:$0xf]
    %v5184 = vld [vmem:[%s5134 + $0xc4] sm:$0xf]
    %v5185 = vld [vmem:[%s5134 + $0xc8] sm:$0xf]
    %v5186 = vld [vmem:[%s5134 + $0xcc] sm:$0xf]
    %v5187 = vld [vmem:[%s5134 + $0xd0] sm:$0xf]
    %v5188 = vld [vmem:[%s5134 + $0xd4] sm:$0xf]
    %v5189 = vld [vmem:[%s5134 + $0xd8] sm:$0xf]
    %v5190 = vld [vmem:[%s5134 + $0xdc] sm:$0xf]
    %v5191 = vld [vmem:[%s5134 + $0xe0] sm:$0xf]
    %v5192 = vld [vmem:[%s5134 + $0xe4] sm:$0xf]
    %v5193 = vld [vmem:[%s5134 + $0xe8] sm:$0xf]
    %v5194 = vld [vmem:[%s5134 + $0xec] sm:$0xf]
    %v5195 = vld [vmem:[%s5134 + $0xf0] sm:$0xf]
    %v5196 = vld [vmem:[%s5134 + $0xf4] sm:$0xf]
    %v5197 = vld [vmem:[%s5134 + $0xf8] sm:$0xf]
    %v5198 = vld [vmem:[%s5134 + $0xfc] sm:$0xf]
    %v5199 = vld [vmem:[%s5134 + $0x100] sm:$0xf]
    %v5200 = vld [vmem:[%s5134 + $0x104] sm:$0xf]
    %v5201 = vld [vmem:[%s5134 + $0x108] sm:$0xf]
    %v5202 = vld [vmem:[%s5134 + $0x10c] sm:$0xf]
    %v5203 = vld [vmem:[%s5134 + $0x110] sm:$0xf]
    %v5204 = vld [vmem:[%s5134 + $0x114] sm:$0xf]
    %v5205 = vld [vmem:[%s5134 + $0x118] sm:$0xf]
    %v5206 = vld [vmem:[%s5134 + $0x11c] sm:$0xf]
    %v5207 = vld [vmem:[%s5134 + $0x120] sm:$0xf]
    %v5208 = vld [vmem:[%s5134 + $0x124] sm:$0xf]
    %v5209 = vld [vmem:[%s5134 + $0x128] sm:$0xf]
    %v5210 = vld [vmem:[%s5134 + $0x12c] sm:$0xf]
    %v5211 = vld [vmem:[%s5134 + $0x130] sm:$0xf]
    %v5212 = vld [vmem:[%s5134 + $0x134] sm:$0xf]
    %v5213 = vld [vmem:[%s5134 + $0x138] sm:$0xf]
    %v5214 = vld [vmem:[%s5134 + $0x13c] sm:$0xf]
    %v5215 = vld [vmem:[%s5134 + $0x140] sm:$0xf]
    %v5216 = vld [vmem:[%s5134 + $0x144] sm:$0xf]
    %v5217 = vld [vmem:[%s5134 + $0x148] sm:$0xf]
    %v5218 = vld [vmem:[%s5134 + $0x14c] sm:$0xf]
    %v5219 = vld [vmem:[%s5134 + $0x150] sm:$0xf]
    %v5220 = vld [vmem:[%s5134 + $0x154] sm:$0xf]
    %v5221 = vld [vmem:[%s5134 + $0x158] sm:$0xf]
    %v5222 = vld [vmem:[%s5134 + $0x15c] sm:$0xf]
    %v5223 = vld [vmem:[%s5134 + $0x160] sm:$0xf]
    %v5224 = vld [vmem:[%s5134 + $0x164] sm:$0xf]
    %v5225 = vld [vmem:[%s5134 + $0x168] sm:$0xf]
    %v5226 = vld [vmem:[%s5134 + $0x16c] sm:$0xf]
    %v5227 = vld [vmem:[%s5134 + $0x170] sm:$0xf]
    %v5228 = vld [vmem:[%s5134 + $0x174] sm:$0xf]
    %v5229 = vld [vmem:[%s5134 + $0x178] sm:$0xf]
    %v5230 = vld [vmem:[%s5134 + $0x17c] sm:$0xf]
    %v5231 = vld [vmem:[%s5134 + $0x180] sm:$0xf]
    %v5232 = vld [vmem:[%s5134 + $0x184] sm:$0xf]
    %v5233 = vld [vmem:[%s5134 + $0x188] sm:$0xf]
    %v5234 = vld [vmem:[%s5134 + $0x18c] sm:$0xf]
    %v5235 = vld [vmem:[%s5134 + $0x190] sm:$0xf]
    %v5236 = vld [vmem:[%s5134 + $0x194] sm:$0xf]
    %v5237 = vld [vmem:[%s5134 + $0x198] sm:$0xf]
    %v5238 = vld [vmem:[%s5134 + $0x19c] sm:$0xf]
    %v5239 = vld [vmem:[%s5134 + $0x1a0] sm:$0xf]
    %v5240 = vld [vmem:[%s5134 + $0x1a4] sm:$0xf]
    %v5241 = vld [vmem:[%s5134 + $0x1a8] sm:$0xf]
    %v5242 = vld [vmem:[%s5134 + $0x1ac] sm:$0xf]
    %v5243 = vld [vmem:[%s5134 + $0x1b0] sm:$0xf]
    %v5244 = vld [vmem:[%s5134 + $0x1b4] sm:$0xf]
    %v5245 = vld [vmem:[%s5134 + $0x1b8] sm:$0xf]
    %v5246 = vld [vmem:[%s5134 + $0x1bc] sm:$0xf]
    %v5247 = vld [vmem:[%s5134 + $0x1c0] sm:$0xf]
    %v5248 = vld [vmem:[%s5134 + $0x1c4] sm:$0xf]
    %v5249 = vld [vmem:[%s5134 + $0x1c8] sm:$0xf]
    %v5250 = vld [vmem:[%s5134 + $0x1cc] sm:$0xf]
    %v5251 = vld [vmem:[%s5134 + $0x1d0] sm:$0xf]
    %v5252 = vld [vmem:[%s5134 + $0x1d4] sm:$0xf]
    %v5253 = vld [vmem:[%s5134 + $0x1d8] sm:$0xf]
    %v5254 = vld [vmem:[%s5134 + $0x1dc] sm:$0xf]
    %v5255 = vld [vmem:[%s5134 + $0x1e0] sm:$0xf]
    %v5256 = vld [vmem:[%s5134 + $0x1e4] sm:$0xf]
    %v5257 = vld [vmem:[%s5134 + $0x1e8] sm:$0xf]
    %v5258 = vld [vmem:[%s5134 + $0x1ec] sm:$0xf]
    %v5259 = vld [vmem:[%s5134 + $0x1f0] sm:$0xf]
    %v5260 = vld [vmem:[%s5134 + $0x1f4] sm:$0xf]
    %v5261 = vld [vmem:[%s5134 + $0x1f8] sm:$0xf]
    %v5262 = vld [vmem:[%s5134 + $0x1fc] sm:$0xf]
    %s5263 = scalar_lea.vmem [#allocation14], 1
    %v5264 = vld [vmem:[%s5263] sm:$0x1]
    %v5266 = vlaneseq
    %v5267 = vshrl.u32 %v5266, 7
    %v5268 = vsub.s32 0, %v5267
    %v5269 = vrot.slane %v5264, %v5268
    %v5399 = vunpack.c.l.b16 %v5135
    %v5400 = vunpack.c.l.b16 %v5136
    %v5401 = vunpack.c.l.b16 %v5137
    %v5402 = vunpack.c.l.b16 %v5138
    %v5403 = vunpack.c.l.b16 %v5139
    %v5404 = vunpack.c.l.b16 %v5140
    %v5405 = vunpack.c.l.b16 %v5141
    %v5406 = vunpack.c.l.b16 %v5142
    %v5407 = vunpack.c.l.b16 %v5143
    %v5408 = vunpack.c.l.b16 %v5144
    %v5409 = vunpack.c.l.b16 %v5145
    %v5410 = vunpack.c.l.b16 %v5146
    %v5411 = vunpack.c.l.b16 %v5147
    %v5412 = vunpack.c.l.b16 %v5148
    %v5413 = vunpack.c.l.b16 %v5149
    %v5414 = vunpack.c.l.b16 %v5150
    %v5415 = vunpack.c.l.b16 %v5151
    %v5416 = vunpack.c.l.b16 %v5152
    %v5417 = vunpack.c.l.b16 %v5153
    %v5418 = vunpack.c.l.b16 %v5154
    %v5419 = vunpack.c.l.b16 %v5155
    %v5420 = vunpack.c.l.b16 %v5156
    %v5421 = vunpack.c.l.b16 %v5157
    %v5422 = vunpack.c.l.b16 %v5158
    %v5423 = vunpack.c.l.b16 %v5159
    %v5424 = vunpack.c.l.b16 %v5160
    %v5425 = vunpack.c.l.b16 %v5161
    %v5426 = vunpack.c.l.b16 %v5162
    %v5427 = vunpack.c.l.b16 %v5163
    %v5428 = vunpack.c.l.b16 %v5164
    %v5429 = vunpack.c.l.b16 %v5165
    %v5430 = vunpack.c.l.b16 %v5166
    %v5431 = vunpack.c.l.b16 %v5167
    %v5432 = vunpack.c.l.b16 %v5168
    %v5433 = vunpack.c.l.b16 %v5169
    %v5434 = vunpack.c.l.b16 %v5170
    %v5435 = vunpack.c.l.b16 %v5171
    %v5436 = vunpack.c.l.b16 %v5172
    %v5437 = vunpack.c.l.b16 %v5173
    %v5438 = vunpack.c.l.b16 %v5174
    %v5439 = vunpack.c.l.b16 %v5175
    %v5440 = vunpack.c.l.b16 %v5176
    %v5441 = vunpack.c.l.b16 %v5177
    %v5442 = vunpack.c.l.b16 %v5178
    %v5443 = vunpack.c.l.b16 %v5179
    %v5444 = vunpack.c.l.b16 %v5180
    %v5445 = vunpack.c.l.b16 %v5181
    %v5446 = vunpack.c.l.b16 %v5182
    %v5447 = vunpack.c.l.b16 %v5183
    %v5448 = vunpack.c.l.b16 %v5184
    %v5449 = vunpack.c.l.b16 %v5185
    %v5450 = vunpack.c.l.b16 %v5186
    %v5451 = vunpack.c.l.b16 %v5187
    %v5452 = vunpack.c.l.b16 %v5188
    %v5453 = vunpack.c.l.b16 %v5189
    %v5454 = vunpack.c.l.b16 %v5190
    %v5455 = vunpack.c.l.b16 %v5191
    %v5456 = vunpack.c.l.b16 %v5192
    %v5457 = vunpack.c.l.b16 %v5193
    %v5458 = vunpack.c.l.b16 %v5194
    %v5459 = vunpack.c.l.b16 %v5195
    %v5460 = vunpack.c.l.b16 %v5196
    %v5461 = vunpack.c.l.b16 %v5197
    %v5462 = vunpack.c.l.b16 %v5198
    %v5463 = vunpack.c.l.b16 %v5199
    %v5464 = vunpack.c.l.b16 %v5200
    %v5465 = vunpack.c.l.b16 %v5201
    %v5466 = vunpack.c.l.b16 %v5202
    %v5467 = vunpack.c.l.b16 %v5203
    %v5468 = vunpack.c.l.b16 %v5204
    %v5469 = vunpack.c.l.b16 %v5205
    %v5470 = vunpack.c.l.b16 %v5206
    %v5471 = vunpack.c.l.b16 %v5207
    %v5472 = vunpack.c.l.b16 %v5208
    %v5473 = vunpack.c.l.b16 %v5209
    %v5474 = vunpack.c.l.b16 %v5210
    %v5475 = vunpack.c.l.b16 %v5211
    %v5476 = vunpack.c.l.b16 %v5212
    %v5477 = vunpack.c.l.b16 %v5213
    %v5478 = vunpack.c.l.b16 %v5214
    %v5479 = vunpack.c.l.b16 %v5215
    %v5480 = vunpack.c.l.b16 %v5216
    %v5481 = vunpack.c.l.b16 %v5217
    %v5482 = vunpack.c.l.b16 %v5218
    %v5483 = vunpack.c.l.b16 %v5219
    %v5484 = vunpack.c.l.b16 %v5220
    %v5485 = vunpack.c.l.b16 %v5221
    %v5486 = vunpack.c.l.b16 %v5222
    %v5487 = vunpack.c.l.b16 %v5223
    %v5488 = vunpack.c.l.b16 %v5224
    %v5489 = vunpack.c.l.b16 %v5225
    %v5490 = vunpack.c.l.b16 %v5226
    %v5491 = vunpack.c.l.b16 %v5227
    %v5492 = vunpack.c.l.b16 %v5228
    %v5493 = vunpack.c.l.b16 %v5229
    %v5494 = vunpack.c.l.b16 %v5230
    %v5495 = vunpack.c.l.b16 %v5231
    %v5496 = vunpack.c.l.b16 %v5232
    %v5497 = vunpack.c.l.b16 %v5233
    %v5498 = vunpack.c.l.b16 %v5234
    %v5499 = vunpack.c.l.b16 %v5235
    %v5500 = vunpack.c.l.b16 %v5236
    %v5501 = vunpack.c.l.b16 %v5237
    %v5502 = vunpack.c.l.b16 %v5238
    %v5503 = vunpack.c.l.b16 %v5239
    %v5504 = vunpack.c.l.b16 %v5240
    %v5505 = vunpack.c.l.b16 %v5241
    %v5506 = vunpack.c.l.b16 %v5242
    %v5507 = vunpack.c.l.b16 %v5243
    %v5508 = vunpack.c.l.b16 %v5244
    %v5509 = vunpack.c.l.b16 %v5245
    %v5510 = vunpack.c.l.b16 %v5246
    %v5511 = vunpack.c.l.b16 %v5247
    %v5512 = vunpack.c.l.b16 %v5248
    %v5513 = vunpack.c.l.b16 %v5249
    %v5514 = vunpack.c.l.b16 %v5250
    %v5515 = vunpack.c.l.b16 %v5251
    %v5516 = vunpack.c.l.b16 %v5252
    %v5517 = vunpack.c.l.b16 %v5253
    %v5518 = vunpack.c.l.b16 %v5254
    %v5519 = vunpack.c.l.b16 %v5255
    %v5520 = vunpack.c.l.b16 %v5256
    %v5521 = vunpack.c.l.b16 %v5257
    %v5522 = vunpack.c.l.b16 %v5258
    %v5523 = vunpack.c.l.b16 %v5259
    %v5524 = vunpack.c.l.b16 %v5260
    %v5525 = vunpack.c.l.b16 %v5261
    %v5526 = vunpack.c.l.b16 %v5262
    %v5527 = vpack.c.b16 %v5400, %v5399
    %v5528 = vpack.c.b16 %v5402, %v5401
    %v5529 = vpack.c.b16 %v5404, %v5403
    %v5530 = vpack.c.b16 %v5406, %v5405
    %v5531 = vpack.c.b16 %v5408, %v5407
    %v5532 = vpack.c.b16 %v5410, %v5409
    %v5533 = vpack.c.b16 %v5412, %v5411
    %v5534 = vpack.c.b16 %v5414, %v5413
    %v5535 = vpack.c.b16 %v5416, %v5415
    %v5536 = vpack.c.b16 %v5418, %v5417
    %v5537 = vpack.c.b16 %v5420, %v5419
    %v5538 = vpack.c.b16 %v5422, %v5421
    %v5539 = vpack.c.b16 %v5424, %v5423
    %v5540 = vpack.c.b16 %v5426, %v5425
    %v5541 = vpack.c.b16 %v5428, %v5427
    %v5542 = vpack.c.b16 %v5430, %v5429
    %v5543 = vpack.c.b16 %v5432, %v5431
    %v5544 = vpack.c.b16 %v5434, %v5433
    %v5545 = vpack.c.b16 %v5436, %v5435
    %v5546 = vpack.c.b16 %v5438, %v5437
    %v5547 = vpack.c.b16 %v5440, %v5439
    %v5548 = vpack.c.b16 %v5442, %v5441
    %v5549 = vpack.c.b16 %v5444, %v5443
    %v5550 = vpack.c.b16 %v5446, %v5445
    %v5551 = vpack.c.b16 %v5448, %v5447
    %v5552 = vpack.c.b16 %v5450, %v5449
    %v5553 = vpack.c.b16 %v5452, %v5451
    %v5554 = vpack.c.b16 %v5454, %v5453
    %v5555 = vpack.c.b16 %v5456, %v5455
    %v5556 = vpack.c.b16 %v5458, %v5457
    %v5557 = vpack.c.b16 %v5460, %v5459
    %v5558 = vpack.c.b16 %v5462, %v5461
    %v5559 = vpack.c.b16 %v5464, %v5463
    %v5560 = vpack.c.b16 %v5466, %v5465
    %v5561 = vpack.c.b16 %v5468, %v5467
    %v5562 = vpack.c.b16 %v5470, %v5469
    %v5563 = vpack.c.b16 %v5472, %v5471
    %v5564 = vpack.c.b16 %v5474, %v5473
    %v5565 = vpack.c.b16 %v5476, %v5475
    %v5566 = vpack.c.b16 %v5478, %v5477
    %v5567 = vpack.c.b16 %v5480, %v5479
    %v5568 = vpack.c.b16 %v5482, %v5481
    %v5569 = vpack.c.b16 %v5484, %v5483
    %v5570 = vpack.c.b16 %v5486, %v5485
    %v5571 = vpack.c.b16 %v5488, %v5487
    %v5572 = vpack.c.b16 %v5490, %v5489
    %v5573 = vpack.c.b16 %v5492, %v5491
    %v5574 = vpack.c.b16 %v5494, %v5493
    %v5575 = vpack.c.b16 %v5496, %v5495
    %v5576 = vpack.c.b16 %v5498, %v5497
    %v5577 = vpack.c.b16 %v5500, %v5499
    %v5578 = vpack.c.b16 %v5502, %v5501
    %v5579 = vpack.c.b16 %v5504, %v5503
    %v5580 = vpack.c.b16 %v5506, %v5505
    %v5581 = vpack.c.b16 %v5508, %v5507
    %v5582 = vpack.c.b16 %v5510, %v5509
    %v5583 = vpack.c.b16 %v5512, %v5511
    %v5584 = vpack.c.b16 %v5514, %v5513
    %v5585 = vpack.c.b16 %v5516, %v5515
    %v5586 = vpack.c.b16 %v5518, %v5517
    %v5587 = vpack.c.b16 %v5520, %v5519
    %v5588 = vpack.c.b16 %v5522, %v5521
    %v5589 = vpack.c.b16 %v5524, %v5523
    %v5590 = vpack.c.b16 %v5526, %v5525
    %5655 = vmatprep.subr.bf16.mxu0 0
    %5656 = vmatpush1.bf16.msra.mxu0 %v5534
    %5657 = vmatprep.subr.bf16.mxu0 0
    %5658 = vmatpush1.bf16.msra.mxu0 %v5533
    %5659 = vmatprep.subr.bf16.mxu0 0
    %5660 = vmatpush1.bf16.msra.mxu0 %v5532
    %5661 = vmatprep.subr.bf16.mxu0 0
    %5662 = vmatpush1.bf16.msra.mxu0 %v5531
    %5663 = vmatprep.subr.bf16.mxu0 0
    %5664 = vmatpush1.bf16.msra.mxu0 %v5530
    %5665 = vmatprep.subr.bf16.mxu0 0
    %5666 = vmatpush1.bf16.msra.mxu0 %v5529
    %5667 = vmatprep.subr.bf16.mxu0 0
    %5668 = vmatpush1.bf16.msra.mxu0 %v5528
    %5669 = vmatprep.subr.bf16.mxu0 0
    %5670 = vmatpush1.bf16.msra.mxu0 %v5527
    %5671 = vmatprep.subr.bf16.mxu0 0
    %5672 = vmatpush2.bf16.msra.mxu0 %v5542
    %5673 = vmatprep.subr.bf16.mxu0 0
    %5674 = vmatpush2.bf16.msra.mxu0 %v5541
    %5675 = vmatprep.subr.bf16.mxu0 0
    %5676 = vmatpush2.bf16.msra.mxu0 %v5540
    %5677 = vmatprep.subr.bf16.mxu0 0
    %5678 = vmatpush2.bf16.msra.mxu0 %v5539
    %5679 = vmatprep.subr.bf16.mxu0 0
    %5680 = vmatpush2.bf16.msra.mxu0 %v5538
    %5681 = vmatprep.subr.bf16.mxu0 0
    %5682 = vmatpush2.bf16.msra.mxu0 %v5537
    %5683 = vmatprep.subr.bf16.mxu0 0
    %5684 = vmatpush2.bf16.msra.mxu0 %v5536
    %5685 = vmatprep.subr.bf16.mxu0 0
    %5686 = vmatpush2.bf16.msra.mxu0 %v5535
    %5687 = vmatprep.mubr.bf16.mxu0 %v4444
    %5688 = vmatmul.mubr.bf16.gmra.mxu0 %v4443
    %v5689 = vpop.f32.mrf.mxu0
    %v5690 = vadd.f32 %v5269, %v5689
    %v5691 = vpop.f32.mrf.mxu0
    %v5692 = vpop.f32.mrf.mxu0
    %v5693 = vpop.f32.mrf.mxu0
    %5694 = vdwg.mxu0
    %5695 = vmatprep.subr.bf16.mxu0 0
    %5696 = vmatpush1.bf16.msra.mxu0 %v5550
    %5697 = vmatprep.subr.bf16.mxu0 0
    %5698 = vmatpush1.bf16.msra.mxu0 %v5549
    %5699 = vmatprep.subr.bf16.mxu0 0
    %5700 = vmatpush1.bf16.msra.mxu0 %v5548
    %5701 = vmatprep.subr.bf16.mxu0 0
    %5702 = vmatpush1.bf16.msra.mxu0 %v5547
    %5703 = vmatprep.subr.bf16.mxu0 0
    %5704 = vmatpush1.bf16.msra.mxu0 %v5546
    %5705 = vmatprep.subr.bf16.mxu0 0
    %5706 = vmatpush1.bf16.msra.mxu0 %v5545
    %5707 = vmatprep.subr.bf16.mxu0 0
    %5708 = vmatpush1.bf16.msra.mxu0 %v5544
    %5709 = vmatprep.subr.bf16.mxu0 0
    %5710 = vmatpush1.bf16.msra.mxu0 %v5543
    %5711 = vmatprep.subr.bf16.mxu0 0
    %5712 = vmatpush2.bf16.msra.mxu0 %v5558
    %5713 = vmatprep.subr.bf16.mxu0 0
    %5714 = vmatpush2.bf16.msra.mxu0 %v5557
    %5715 = vmatprep.subr.bf16.mxu0 0
    %5716 = vmatpush2.bf16.msra.mxu0 %v5556
    %5717 = vmatprep.subr.bf16.mxu0 0
    %5718 = vmatpush2.bf16.msra.mxu0 %v5555
    %5719 = vmatprep.subr.bf16.mxu0 0
    %5720 = vmatpush2.bf16.msra.mxu0 %v5554
    %5721 = vmatprep.subr.bf16.mxu0 0
    %5722 = vmatpush2.bf16.msra.mxu0 %v5553
    %5723 = vmatprep.subr.bf16.mxu0 0
    %5724 = vmatpush2.bf16.msra.mxu0 %v5552
    %5725 = vmatprep.subr.bf16.mxu0 0
    %5726 = vmatpush2.bf16.msra.mxu0 %v5551
    %5727 = vmatprep.mubr.bf16.mxu0 %v4446
    %5728 = vmatmul.mubr.bf16.gmra.mxu0 %v4445
    %v5729 = vpop.f32.mrf.mxu0
    %v5730 = vadd.f32 %v5690, %v5729
    %v5731 = vpop.f32.mrf.mxu0
    %v5732 = vpop.f32.mrf.mxu0
    %v5733 = vpop.f32.mrf.mxu0
    %5734 = vdwg.mxu0
    %5735 = vmatprep.subr.bf16.mxu0 0
    %5736 = vmatpush1.bf16.msra.mxu0 %v5566
    %5737 = vmatprep.subr.bf16.mxu0 0
    %5738 = vmatpush1.bf16.msra.mxu0 %v5565
    %5739 = vmatprep.subr.bf16.mxu0 0
    %5740 = vmatpush1.bf16.msra.mxu0 %v5564
    %5741 = vmatprep.subr.bf16.mxu0 0
    %5742 = vmatpush1.bf16.msra.mxu0 %v5563
    %5743 = vmatprep.subr.bf16.mxu0 0
    %5744 = vmatpush1.bf16.msra.mxu0 %v5562
    %5745 = vmatprep.subr.bf16.mxu0 0
    %5746 = vmatpush1.bf16.msra.mxu0 %v5561
    %5747 = vmatprep.subr.bf16.mxu0 0
    %5748 = vmatpush1.bf16.msra.mxu0 %v5560
    %5749 = vmatprep.subr.bf16.mxu0 0
    %5750 = vmatpush1.bf16.msra.mxu0 %v5559
    %5751 = vmatprep.subr.bf16.mxu0 0
    %5752 = vmatpush2.bf16.msra.mxu0 %v5574
    %5753 = vmatprep.subr.bf16.mxu0 0
    %5754 = vmatpush2.bf16.msra.mxu0 %v5573
    %5755 = vmatprep.subr.bf16.mxu0 0
    %5756 = vmatpush2.bf16.msra.mxu0 %v5572
    %5757 = vmatprep.subr.bf16.mxu0 0
    %5758 = vmatpush2.bf16.msra.mxu0 %v5571
    %5759 = vmatprep.subr.bf16.mxu0 0
    %5760 = vmatpush2.bf16.msra.mxu0 %v5570
    %5761 = vmatprep.subr.bf16.mxu0 0
    %5762 = vmatpush2.bf16.msra.mxu0 %v5569
    %5763 = vmatprep.subr.bf16.mxu0 0
    %5764 = vmatpush2.bf16.msra.mxu0 %v5568
    %5765 = vmatprep.subr.bf16.mxu0 0
    %5766 = vmatpush2.bf16.msra.mxu0 %v5567
    %5767 = vmatprep.mubr.bf16.mxu0 %v4448
    %5768 = vmatmul.mubr.bf16.gmra.mxu0 %v4447
    %v5769 = vpop.f32.mrf.mxu0
    %v5770 = vadd.f32 %v5730, %v5769
    %v5771 = vpop.f32.mrf.mxu0
    %v5772 = vpop.f32.mrf.mxu0
    %v5773 = vpop.f32.mrf.mxu0
    %5774 = vdwg.mxu0
    %5775 = vmatprep.subr.bf16.mxu0 0
    %5776 = vmatpush1.bf16.msra.mxu0 %v5582
    %5777 = vmatprep.subr.bf16.mxu0 0
    %5778 = vmatpush1.bf16.msra.mxu0 %v5581
    %5779 = vmatprep.subr.bf16.mxu0 0
    %5780 = vmatpush1.bf16.msra.mxu0 %v5580
    %5781 = vmatprep.subr.bf16.mxu0 0
    %5782 = vmatpush1.bf16.msra.mxu0 %v5579
    %5783 = vmatprep.subr.bf16.mxu0 0
    %5784 = vmatpush1.bf16.msra.mxu0 %v5578
    %5785 = vmatprep.subr.bf16.mxu0 0
    %5786 = vmatpush1.bf16.msra.mxu0 %v5577
    %5787 = vmatprep.subr.bf16.mxu0 0
    %5788 = vmatpush1.bf16.msra.mxu0 %v5576
    %5789 = vmatprep.subr.bf16.mxu0 0
    %5790 = vmatpush1.bf16.msra.mxu0 %v5575
    %5791 = vmatprep.subr.bf16.mxu0 0
    %5792 = vmatpush2.bf16.msra.mxu0 %v5590
    %5793 = vmatprep.subr.bf16.mxu0 0
    %5794 = vmatpush2.bf16.msra.mxu0 %v5589
    %5795 = vmatprep.subr.bf16.mxu0 0
    %5796 = vmatpush2.bf16.msra.mxu0 %v5588
    %5797 = vmatprep.subr.bf16.mxu0 0
    %5798 = vmatpush2.bf16.msra.mxu0 %v5587
    %5799 = vmatprep.subr.bf16.mxu0 0
    %5800 = vmatpush2.bf16.msra.mxu0 %v5586
    %5801 = vmatprep.subr.bf16.mxu0 0
    %5802 = vmatpush2.bf16.msra.mxu0 %v5585
    %5803 = vmatprep.subr.bf16.mxu0 0
    %5804 = vmatpush2.bf16.msra.mxu0 %v5584
    %5805 = vmatprep.subr.bf16.mxu0 0
    %5806 = vmatpush2.bf16.msra.mxu0 %v5583
    %5807 = vmatprep.mubr.bf16.mxu0 %v4450
    %5808 = vmatmul.mubr.bf16.gmra.mxu0 %v4449
    %v5809 = vpop.f32.mrf.mxu0
    %v5810 = vadd.f32 %v5770, %v5809
    %v5811 = vpop.f32.mrf.mxu0
    %v5812 = vpop.f32.mrf.mxu0
    %v5813 = vpop.f32.mrf.mxu0
    %5814 = vdwg.mxu0
    %vm5815 = vcmp.gt.f32.partialorder %v5810, 0.0
    %v5816 = vmul.f32 %v5810, 0.2
    %v5817 = vsel %vm5815, %v5810, %v5816
    %5818 = vst [vmem:[#allocation2 + $0x2] sm:$0x3] %v5817
    %s5819 = scalar_lea.vmem [#allocation12], 1024
    %v5820 = vld [vmem:[%s5819] sm:$0xf]
    %v5821 = vld [vmem:[%s5819 + $0x4] sm:$0xf]
    %v5822 = vld [vmem:[%s5819 + $0x8] sm:$0xf]
    %v5823 = vld [vmem:[%s5819 + $0xc] sm:$0xf]
    %v5824 = vld [vmem:[%s5819 + $0x10] sm:$0xf]
    %v5825 = vld [vmem:[%s5819 + $0x14] sm:$0xf]
    %v5826 = vld [vmem:[%s5819 + $0x18] sm:$0xf]
    %v5827 = vld [vmem:[%s5819 + $0x1c] sm:$0xf]
    %v5828 = vld [vmem:[%s5819 + $0x20] sm:$0xf]
    %v5829 = vld [vmem:[%s5819 + $0x24] sm:$0xf]
    %v5830 = vld [vmem:[%s5819 + $0x28] sm:$0xf]
    %v5831 = vld [vmem:[%s5819 + $0x2c] sm:$0xf]
    %v5832 = vld [vmem:[%s5819 + $0x30] sm:$0xf]
    %v5833 = vld [vmem:[%s5819 + $0x34] sm:$0xf]
    %v5834 = vld [vmem:[%s5819 + $0x38] sm:$0xf]
    %v5835 = vld [vmem:[%s5819 + $0x3c] sm:$0xf]
    %v5836 = vld [vmem:[%s5819 + $0x40] sm:$0xf]
    %v5837 = vld [vmem:[%s5819 + $0x44] sm:$0xf]
    %v5838 = vld [vmem:[%s5819 + $0x48] sm:$0xf]
    %v5839 = vld [vmem:[%s5819 + $0x4c] sm:$0xf]
    %v5840 = vld [vmem:[%s5819 + $0x50] sm:$0xf]
    %v5841 = vld [vmem:[%s5819 + $0x54] sm:$0xf]
    %v5842 = vld [vmem:[%s5819 + $0x58] sm:$0xf]
    %v5843 = vld [vmem:[%s5819 + $0x5c] sm:$0xf]
    %v5844 = vld [vmem:[%s5819 + $0x60] sm:$0xf]
    %v5845 = vld [vmem:[%s5819 + $0x64] sm:$0xf]
    %v5846 = vld [vmem:[%s5819 + $0x68] sm:$0xf]
    %v5847 = vld [vmem:[%s5819 + $0x6c] sm:$0xf]
    %v5848 = vld [vmem:[%s5819 + $0x70] sm:$0xf]
    %v5849 = vld [vmem:[%s5819 + $0x74] sm:$0xf]
    %v5850 = vld [vmem:[%s5819 + $0x78] sm:$0xf]
    %v5851 = vld [vmem:[%s5819 + $0x7c] sm:$0xf]
    %v5852 = vld [vmem:[%s5819 + $0x80] sm:$0xf]
    %v5853 = vld [vmem:[%s5819 + $0x84] sm:$0xf]
    %v5854 = vld [vmem:[%s5819 + $0x88] sm:$0xf]
    %v5855 = vld [vmem:[%s5819 + $0x8c] sm:$0xf]
    %v5856 = vld [vmem:[%s5819 + $0x90] sm:$0xf]
    %v5857 = vld [vmem:[%s5819 + $0x94] sm:$0xf]
    %v5858 = vld [vmem:[%s5819 + $0x98] sm:$0xf]
    %v5859 = vld [vmem:[%s5819 + $0x9c] sm:$0xf]
    %v5860 = vld [vmem:[%s5819 + $0xa0] sm:$0xf]
    %v5861 = vld [vmem:[%s5819 + $0xa4] sm:$0xf]
    %v5862 = vld [vmem:[%s5819 + $0xa8] sm:$0xf]
    %v5863 = vld [vmem:[%s5819 + $0xac] sm:$0xf]
    %v5864 = vld [vmem:[%s5819 + $0xb0] sm:$0xf]
    %v5865 = vld [vmem:[%s5819 + $0xb4] sm:$0xf]
    %v5866 = vld [vmem:[%s5819 + $0xb8] sm:$0xf]
    %v5867 = vld [vmem:[%s5819 + $0xbc] sm:$0xf]
    %v5868 = vld [vmem:[%s5819 + $0xc0] sm:$0xf]
    %v5869 = vld [vmem:[%s5819 + $0xc4] sm:$0xf]
    %v5870 = vld [vmem:[%s5819 + $0xc8] sm:$0xf]
    %v5871 = vld [vmem:[%s5819 + $0xcc] sm:$0xf]
    %v5872 = vld [vmem:[%s5819 + $0xd0] sm:$0xf]
    %v5873 = vld [vmem:[%s5819 + $0xd4] sm:$0xf]
    %v5874 = vld [vmem:[%s5819 + $0xd8] sm:$0xf]
    %v5875 = vld [vmem:[%s5819 + $0xdc] sm:$0xf]
    %v5876 = vld [vmem:[%s5819 + $0xe0] sm:$0xf]
    %v5877 = vld [vmem:[%s5819 + $0xe4] sm:$0xf]
    %v5878 = vld [vmem:[%s5819 + $0xe8] sm:$0xf]
    %v5879 = vld [vmem:[%s5819 + $0xec] sm:$0xf]
    %v5880 = vld [vmem:[%s5819 + $0xf0] sm:$0xf]
    %v5881 = vld [vmem:[%s5819 + $0xf4] sm:$0xf]
    %v5882 = vld [vmem:[%s5819 + $0xf8] sm:$0xf]
    %v5883 = vld [vmem:[%s5819 + $0xfc] sm:$0xf]
    %v5884 = vld [vmem:[%s5819 + $0x100] sm:$0xf]
    %v5885 = vld [vmem:[%s5819 + $0x104] sm:$0xf]
    %v5886 = vld [vmem:[%s5819 + $0x108] sm:$0xf]
    %v5887 = vld [vmem:[%s5819 + $0x10c] sm:$0xf]
    %v5888 = vld [vmem:[%s5819 + $0x110] sm:$0xf]
    %v5889 = vld [vmem:[%s5819 + $0x114] sm:$0xf]
    %v5890 = vld [vmem:[%s5819 + $0x118] sm:$0xf]
    %v5891 = vld [vmem:[%s5819 + $0x11c] sm:$0xf]
    %v5892 = vld [vmem:[%s5819 + $0x120] sm:$0xf]
    %v5893 = vld [vmem:[%s5819 + $0x124] sm:$0xf]
    %v5894 = vld [vmem:[%s5819 + $0x128] sm:$0xf]
    %v5895 = vld [vmem:[%s5819 + $0x12c] sm:$0xf]
    %v5896 = vld [vmem:[%s5819 + $0x130] sm:$0xf]
    %v5897 = vld [vmem:[%s5819 + $0x134] sm:$0xf]
    %v5898 = vld [vmem:[%s5819 + $0x138] sm:$0xf]
    %v5899 = vld [vmem:[%s5819 + $0x13c] sm:$0xf]
    %v5900 = vld [vmem:[%s5819 + $0x140] sm:$0xf]
    %v5901 = vld [vmem:[%s5819 + $0x144] sm:$0xf]
    %v5902 = vld [vmem:[%s5819 + $0x148] sm:$0xf]
    %v5903 = vld [vmem:[%s5819 + $0x14c] sm:$0xf]
    %v5904 = vld [vmem:[%s5819 + $0x150] sm:$0xf]
    %v5905 = vld [vmem:[%s5819 + $0x154] sm:$0xf]
    %v5906 = vld [vmem:[%s5819 + $0x158] sm:$0xf]
    %v5907 = vld [vmem:[%s5819 + $0x15c] sm:$0xf]
    %v5908 = vld [vmem:[%s5819 + $0x160] sm:$0xf]
    %v5909 = vld [vmem:[%s5819 + $0x164] sm:$0xf]
    %v5910 = vld [vmem:[%s5819 + $0x168] sm:$0xf]
    %v5911 = vld [vmem:[%s5819 + $0x16c] sm:$0xf]
    %v5912 = vld [vmem:[%s5819 + $0x170] sm:$0xf]
    %v5913 = vld [vmem:[%s5819 + $0x174] sm:$0xf]
    %v5914 = vld [vmem:[%s5819 + $0x178] sm:$0xf]
    %v5915 = vld [vmem:[%s5819 + $0x17c] sm:$0xf]
    %v5916 = vld [vmem:[%s5819 + $0x180] sm:$0xf]
    %v5917 = vld [vmem:[%s5819 + $0x184] sm:$0xf]
    %v5918 = vld [vmem:[%s5819 + $0x188] sm:$0xf]
    %v5919 = vld [vmem:[%s5819 + $0x18c] sm:$0xf]
    %v5920 = vld [vmem:[%s5819 + $0x190] sm:$0xf]
    %v5921 = vld [vmem:[%s5819 + $0x194] sm:$0xf]
    %v5922 = vld [vmem:[%s5819 + $0x198] sm:$0xf]
    %v5923 = vld [vmem:[%s5819 + $0x19c] sm:$0xf]
    %v5924 = vld [vmem:[%s5819 + $0x1a0] sm:$0xf]
    %v5925 = vld [vmem:[%s5819 + $0x1a4] sm:$0xf]
    %v5926 = vld [vmem:[%s5819 + $0x1a8] sm:$0xf]
    %v5927 = vld [vmem:[%s5819 + $0x1ac] sm:$0xf]
    %v5928 = vld [vmem:[%s5819 + $0x1b0] sm:$0xf]
    %v5929 = vld [vmem:[%s5819 + $0x1b4] sm:$0xf]
    %v5930 = vld [vmem:[%s5819 + $0x1b8] sm:$0xf]
    %v5931 = vld [vmem:[%s5819 + $0x1bc] sm:$0xf]
    %v5932 = vld [vmem:[%s5819 + $0x1c0] sm:$0xf]
    %v5933 = vld [vmem:[%s5819 + $0x1c4] sm:$0xf]
    %v5934 = vld [vmem:[%s5819 + $0x1c8] sm:$0xf]
    %v5935 = vld [vmem:[%s5819 + $0x1cc] sm:$0xf]
    %v5936 = vld [vmem:[%s5819 + $0x1d0] sm:$0xf]
    %v5937 = vld [vmem:[%s5819 + $0x1d4] sm:$0xf]
    %v5938 = vld [vmem:[%s5819 + $0x1d8] sm:$0xf]
    %v5939 = vld [vmem:[%s5819 + $0x1dc] sm:$0xf]
    %v5940 = vld [vmem:[%s5819 + $0x1e0] sm:$0xf]
    %v5941 = vld [vmem:[%s5819 + $0x1e4] sm:$0xf]
    %v5942 = vld [vmem:[%s5819 + $0x1e8] sm:$0xf]
    %v5943 = vld [vmem:[%s5819 + $0x1ec] sm:$0xf]
    %v5944 = vld [vmem:[%s5819 + $0x1f0] sm:$0xf]
    %v5945 = vld [vmem:[%s5819 + $0x1f4] sm:$0xf]
    %v5946 = vld [vmem:[%s5819 + $0x1f8] sm:$0xf]
    %v5947 = vld [vmem:[%s5819 + $0x1fc] sm:$0xf]
    %s5948 = scalar_lea.vmem [#allocation14], 2
    %v5949 = vld [vmem:[%s5948] sm:$0x1]
    %v5951 = vlaneseq
    %v5952 = vshrl.u32 %v5951, 7
    %v5953 = vsub.s32 0, %v5952
    %v5954 = vrot.slane %v5949, %v5953
    %v6084 = vunpack.c.l.b16 %v5820
    %v6085 = vunpack.c.l.b16 %v5821
    %v6086 = vunpack.c.l.b16 %v5822
    %v6087 = vunpack.c.l.b16 %v5823
    %v6088 = vunpack.c.l.b16 %v5824
    %v6089 = vunpack.c.l.b16 %v5825
    %v6090 = vunpack.c.l.b16 %v5826
    %v6091 = vunpack.c.l.b16 %v5827
    %v6092 = vunpack.c.l.b16 %v5828
    %v6093 = vunpack.c.l.b16 %v5829
    %v6094 = vunpack.c.l.b16 %v5830
    %v6095 = vunpack.c.l.b16 %v5831
    %v6096 = vunpack.c.l.b16 %v5832
    %v6097 = vunpack.c.l.b16 %v5833
    %v6098 = vunpack.c.l.b16 %v5834
    %v6099 = vunpack.c.l.b16 %v5835
    %v6100 = vunpack.c.l.b16 %v5836
    %v6101 = vunpack.c.l.b16 %v5837
    %v6102 = vunpack.c.l.b16 %v5838
    %v6103 = vunpack.c.l.b16 %v5839
    %v6104 = vunpack.c.l.b16 %v5840
    %v6105 = vunpack.c.l.b16 %v5841
    %v6106 = vunpack.c.l.b16 %v5842
    %v6107 = vunpack.c.l.b16 %v5843
    %v6108 = vunpack.c.l.b16 %v5844
    %v6109 = vunpack.c.l.b16 %v5845
    %v6110 = vunpack.c.l.b16 %v5846
    %v6111 = vunpack.c.l.b16 %v5847
    %v6112 = vunpack.c.l.b16 %v5848
    %v6113 = vunpack.c.l.b16 %v5849
    %v6114 = vunpack.c.l.b16 %v5850
    %v6115 = vunpack.c.l.b16 %v5851
    %v6116 = vunpack.c.l.b16 %v5852
    %v6117 = vunpack.c.l.b16 %v5853
    %v6118 = vunpack.c.l.b16 %v5854
    %v6119 = vunpack.c.l.b16 %v5855
    %v6120 = vunpack.c.l.b16 %v5856
    %v6121 = vunpack.c.l.b16 %v5857
    %v6122 = vunpack.c.l.b16 %v5858
    %v6123 = vunpack.c.l.b16 %v5859
    %v6124 = vunpack.c.l.b16 %v5860
    %v6125 = vunpack.c.l.b16 %v5861
    %v6126 = vunpack.c.l.b16 %v5862
    %v6127 = vunpack.c.l.b16 %v5863
    %v6128 = vunpack.c.l.b16 %v5864
    %v6129 = vunpack.c.l.b16 %v5865
    %v6130 = vunpack.c.l.b16 %v5866
    %v6131 = vunpack.c.l.b16 %v5867
    %v6132 = vunpack.c.l.b16 %v5868
    %v6133 = vunpack.c.l.b16 %v5869
    %v6134 = vunpack.c.l.b16 %v5870
    %v6135 = vunpack.c.l.b16 %v5871
    %v6136 = vunpack.c.l.b16 %v5872
    %v6137 = vunpack.c.l.b16 %v5873
    %v6138 = vunpack.c.l.b16 %v5874
    %v6139 = vunpack.c.l.b16 %v5875
    %v6140 = vunpack.c.l.b16 %v5876
    %v6141 = vunpack.c.l.b16 %v5877
    %v6142 = vunpack.c.l.b16 %v5878
    %v6143 = vunpack.c.l.b16 %v5879
    %v6144 = vunpack.c.l.b16 %v5880
    %v6145 = vunpack.c.l.b16 %v5881
    %v6146 = vunpack.c.l.b16 %v5882
    %v6147 = vunpack.c.l.b16 %v5883
    %v6148 = vunpack.c.l.b16 %v5884
    %v6149 = vunpack.c.l.b16 %v5885
    %v6150 = vunpack.c.l.b16 %v5886
    %v6151 = vunpack.c.l.b16 %v5887
    %v6152 = vunpack.c.l.b16 %v5888
    %v6153 = vunpack.c.l.b16 %v5889
    %v6154 = vunpack.c.l.b16 %v5890
    %v6155 = vunpack.c.l.b16 %v5891
    %v6156 = vunpack.c.l.b16 %v5892
    %v6157 = vunpack.c.l.b16 %v5893
    %v6158 = vunpack.c.l.b16 %v5894
    %v6159 = vunpack.c.l.b16 %v5895
    %v6160 = vunpack.c.l.b16 %v5896
    %v6161 = vunpack.c.l.b16 %v5897
    %v6162 = vunpack.c.l.b16 %v5898
    %v6163 = vunpack.c.l.b16 %v5899
    %v6164 = vunpack.c.l.b16 %v5900
    %v6165 = vunpack.c.l.b16 %v5901
    %v6166 = vunpack.c.l.b16 %v5902
    %v6167 = vunpack.c.l.b16 %v5903
    %v6168 = vunpack.c.l.b16 %v5904
    %v6169 = vunpack.c.l.b16 %v5905
    %v6170 = vunpack.c.l.b16 %v5906
    %v6171 = vunpack.c.l.b16 %v5907
    %v6172 = vunpack.c.l.b16 %v5908
    %v6173 = vunpack.c.l.b16 %v5909
    %v6174 = vunpack.c.l.b16 %v5910
    %v6175 = vunpack.c.l.b16 %v5911
    %v6176 = vunpack.c.l.b16 %v5912
    %v6177 = vunpack.c.l.b16 %v5913
    %v6178 = vunpack.c.l.b16 %v5914
    %v6179 = vunpack.c.l.b16 %v5915
    %v6180 = vunpack.c.l.b16 %v5916
    %v6181 = vunpack.c.l.b16 %v5917
    %v6182 = vunpack.c.l.b16 %v5918
    %v6183 = vunpack.c.l.b16 %v5919
    %v6184 = vunpack.c.l.b16 %v5920
    %v6185 = vunpack.c.l.b16 %v5921
    %v6186 = vunpack.c.l.b16 %v5922
    %v6187 = vunpack.c.l.b16 %v5923
    %v6188 = vunpack.c.l.b16 %v5924
    %v6189 = vunpack.c.l.b16 %v5925
    %v6190 = vunpack.c.l.b16 %v5926
    %v6191 = vunpack.c.l.b16 %v5927
    %v6192 = vunpack.c.l.b16 %v5928
    %v6193 = vunpack.c.l.b16 %v5929
    %v6194 = vunpack.c.l.b16 %v5930
    %v6195 = vunpack.c.l.b16 %v5931
    %v6196 = vunpack.c.l.b16 %v5932
    %v6197 = vunpack.c.l.b16 %v5933
    %v6198 = vunpack.c.l.b16 %v5934
    %v6199 = vunpack.c.l.b16 %v5935
    %v6200 = vunpack.c.l.b16 %v5936
    %v6201 = vunpack.c.l.b16 %v5937
    %v6202 = vunpack.c.l.b16 %v5938
    %v6203 = vunpack.c.l.b16 %v5939
    %v6204 = vunpack.c.l.b16 %v5940
    %v6205 = vunpack.c.l.b16 %v5941
    %v6206 = vunpack.c.l.b16 %v5942
    %v6207 = vunpack.c.l.b16 %v5943
    %v6208 = vunpack.c.l.b16 %v5944
    %v6209 = vunpack.c.l.b16 %v5945
    %v6210 = vunpack.c.l.b16 %v5946
    %v6211 = vunpack.c.l.b16 %v5947
    %v6212 = vpack.c.b16 %v6085, %v6084
    %v6213 = vpack.c.b16 %v6087, %v6086
    %v6214 = vpack.c.b16 %v6089, %v6088
    %v6215 = vpack.c.b16 %v6091, %v6090
    %v6216 = vpack.c.b16 %v6093, %v6092
    %v6217 = vpack.c.b16 %v6095, %v6094
    %v6218 = vpack.c.b16 %v6097, %v6096
    %v6219 = vpack.c.b16 %v6099, %v6098
    %v6220 = vpack.c.b16 %v6101, %v6100
    %v6221 = vpack.c.b16 %v6103, %v6102
    %v6222 = vpack.c.b16 %v6105, %v6104
    %v6223 = vpack.c.b16 %v6107, %v6106
    %v6224 = vpack.c.b16 %v6109, %v6108
    %v6225 = vpack.c.b16 %v6111, %v6110
    %v6226 = vpack.c.b16 %v6113, %v6112
    %v6227 = vpack.c.b16 %v6115, %v6114
    %v6228 = vpack.c.b16 %v6117, %v6116
    %v6229 = vpack.c.b16 %v6119, %v6118
    %v6230 = vpack.c.b16 %v6121, %v6120
    %v6231 = vpack.c.b16 %v6123, %v6122
    %v6232 = vpack.c.b16 %v6125, %v6124
    %v6233 = vpack.c.b16 %v6127, %v6126
    %v6234 = vpack.c.b16 %v6129, %v6128
    %v6235 = vpack.c.b16 %v6131, %v6130
    %v6236 = vpack.c.b16 %v6133, %v6132
    %v6237 = vpack.c.b16 %v6135, %v6134
    %v6238 = vpack.c.b16 %v6137, %v6136
    %v6239 = vpack.c.b16 %v6139, %v6138
    %v6240 = vpack.c.b16 %v6141, %v6140
    %v6241 = vpack.c.b16 %v6143, %v6142
    %v6242 = vpack.c.b16 %v6145, %v6144
    %v6243 = vpack.c.b16 %v6147, %v6146
    %v6244 = vpack.c.b16 %v6149, %v6148
    %v6245 = vpack.c.b16 %v6151, %v6150
    %v6246 = vpack.c.b16 %v6153, %v6152
    %v6247 = vpack.c.b16 %v6155, %v6154
    %v6248 = vpack.c.b16 %v6157, %v6156
    %v6249 = vpack.c.b16 %v6159, %v6158
    %v6250 = vpack.c.b16 %v6161, %v6160
    %v6251 = vpack.c.b16 %v6163, %v6162
    %v6252 = vpack.c.b16 %v6165, %v6164
    %v6253 = vpack.c.b16 %v6167, %v6166
    %v6254 = vpack.c.b16 %v6169, %v6168
    %v6255 = vpack.c.b16 %v6171, %v6170
    %v6256 = vpack.c.b16 %v6173, %v6172
    %v6257 = vpack.c.b16 %v6175, %v6174
    %v6258 = vpack.c.b16 %v6177, %v6176
    %v6259 = vpack.c.b16 %v6179, %v6178
    %v6260 = vpack.c.b16 %v6181, %v6180
    %v6261 = vpack.c.b16 %v6183, %v6182
    %v6262 = vpack.c.b16 %v6185, %v6184
    %v6263 = vpack.c.b16 %v6187, %v6186
    %v6264 = vpack.c.b16 %v6189, %v6188
    %v6265 = vpack.c.b16 %v6191, %v6190
    %v6266 = vpack.c.b16 %v6193, %v6192
    %v6267 = vpack.c.b16 %v6195, %v6194
    %v6268 = vpack.c.b16 %v6197, %v6196
    %v6269 = vpack.c.b16 %v6199, %v6198
    %v6270 = vpack.c.b16 %v6201, %v6200
    %v6271 = vpack.c.b16 %v6203, %v6202
    %v6272 = vpack.c.b16 %v6205, %v6204
    %v6273 = vpack.c.b16 %v6207, %v6206
    %v6274 = vpack.c.b16 %v6209, %v6208
    %v6275 = vpack.c.b16 %v6211, %v6210
    %6340 = vmatprep.subr.bf16.mxu0 0
    %6341 = vmatpush1.bf16.msra.mxu0 %v6219
    %6342 = vmatprep.subr.bf16.mxu0 0
    %6343 = vmatpush1.bf16.msra.mxu0 %v6218
    %6344 = vmatprep.subr.bf16.mxu0 0
    %6345 = vmatpush1.bf16.msra.mxu0 %v6217
    %6346 = vmatprep.subr.bf16.mxu0 0
    %6347 = vmatpush1.bf16.msra.mxu0 %v6216
    %6348 = vmatprep.subr.bf16.mxu0 0
    %6349 = vmatpush1.bf16.msra.mxu0 %v6215
    %6350 = vmatprep.subr.bf16.mxu0 0
    %6351 = vmatpush1.bf16.msra.mxu0 %v6214
    %6352 = vmatprep.subr.bf16.mxu0 0
    %6353 = vmatpush1.bf16.msra.mxu0 %v6213
    %6354 = vmatprep.subr.bf16.mxu0 0
    %6355 = vmatpush1.bf16.msra.mxu0 %v6212
    %6356 = vmatprep.subr.bf16.mxu0 0
    %6357 = vmatpush2.bf16.msra.mxu0 %v6227
    %6358 = vmatprep.subr.bf16.mxu0 0
    %6359 = vmatpush2.bf16.msra.mxu0 %v6226
    %6360 = vmatprep.subr.bf16.mxu0 0
    %6361 = vmatpush2.bf16.msra.mxu0 %v6225
    %6362 = vmatprep.subr.bf16.mxu0 0
    %6363 = vmatpush2.bf16.msra.mxu0 %v6224
    %6364 = vmatprep.subr.bf16.mxu0 0
    %6365 = vmatpush2.bf16.msra.mxu0 %v6223
    %6366 = vmatprep.subr.bf16.mxu0 0
    %6367 = vmatpush2.bf16.msra.mxu0 %v6222
    %6368 = vmatprep.subr.bf16.mxu0 0
    %6369 = vmatpush2.bf16.msra.mxu0 %v6221
    %6370 = vmatprep.subr.bf16.mxu0 0
    %6371 = vmatpush2.bf16.msra.mxu0 %v6220
    %6372 = vmatprep.mubr.bf16.mxu0 %v4444
    %6373 = vmatmul.mubr.bf16.gmra.mxu0 %v4443
    %v6374 = vpop.f32.mrf.mxu0
    %v6375 = vadd.f32 %v5954, %v6374
    %v6376 = vpop.f32.mrf.mxu0
    %v6377 = vpop.f32.mrf.mxu0
    %v6378 = vpop.f32.mrf.mxu0
    %6379 = vdwg.mxu0
    %6380 = vmatprep.subr.bf16.mxu0 0
    %6381 = vmatpush1.bf16.msra.mxu0 %v6235
    %6382 = vmatprep.subr.bf16.mxu0 0
    %6383 = vmatpush1.bf16.msra.mxu0 %v6234
    %6384 = vmatprep.subr.bf16.mxu0 0
    %6385 = vmatpush1.bf16.msra.mxu0 %v6233
    %6386 = vmatprep.subr.bf16.mxu0 0
    %6387 = vmatpush1.bf16.msra.mxu0 %v6232
    %6388 = vmatprep.subr.bf16.mxu0 0
    %6389 = vmatpush1.bf16.msra.mxu0 %v6231
    %6390 = vmatprep.subr.bf16.mxu0 0
    %6391 = vmatpush1.bf16.msra.mxu0 %v6230
    %6392 = vmatprep.subr.bf16.mxu0 0
    %6393 = vmatpush1.bf16.msra.mxu0 %v6229
    %6394 = vmatprep.subr.bf16.mxu0 0
    %6395 = vmatpush1.bf16.msra.mxu0 %v6228
    %6396 = vmatprep.subr.bf16.mxu0 0
    %6397 = vmatpush2.bf16.msra.mxu0 %v6243
    %6398 = vmatprep.subr.bf16.mxu0 0
    %6399 = vmatpush2.bf16.msra.mxu0 %v6242
    %6400 = vmatprep.subr.bf16.mxu0 0
    %6401 = vmatpush2.bf16.msra.mxu0 %v6241
    %6402 = vmatprep.subr.bf16.mxu0 0
    %6403 = vmatpush2.bf16.msra.mxu0 %v6240
    %6404 = vmatprep.subr.bf16.mxu0 0
    %6405 = vmatpush2.bf16.msra.mxu0 %v6239
    %6406 = vmatprep.subr.bf16.mxu0 0
    %6407 = vmatpush2.bf16.msra.mxu0 %v6238
    %6408 = vmatprep.subr.bf16.mxu0 0
    %6409 = vmatpush2.bf16.msra.mxu0 %v6237
    %6410 = vmatprep.subr.bf16.mxu0 0
    %6411 = vmatpush2.bf16.msra.mxu0 %v6236
    %6412 = vmatprep.mubr.bf16.mxu0 %v4446
    %6413 = vmatmul.mubr.bf16.gmra.mxu0 %v4445
    %v6414 = vpop.f32.mrf.mxu0
    %v6415 = vadd.f32 %v6375, %v6414
    %v6416 = vpop.f32.mrf.mxu0
    %v6417 = vpop.f32.mrf.mxu0
    %v6418 = vpop.f32.mrf.mxu0
    %6419 = vdwg.mxu0
    %6420 = vmatprep.subr.bf16.mxu0 0
    %6421 = vmatpush1.bf16.msra.mxu0 %v6251
    %6422 = vmatprep.subr.bf16.mxu0 0
    %6423 = vmatpush1.bf16.msra.mxu0 %v6250
    %6424 = vmatprep.subr.bf16.mxu0 0
    %6425 = vmatpush1.bf16.msra.mxu0 %v6249
    %6426 = vmatprep.subr.bf16.mxu0 0
    %6427 = vmatpush1.bf16.msra.mxu0 %v6248
    %6428 = vmatprep.subr.bf16.mxu0 0
    %6429 = vmatpush1.bf16.msra.mxu0 %v6247
    %6430 = vmatprep.subr.bf16.mxu0 0
    %6431 = vmatpush1.bf16.msra.mxu0 %v6246
    %6432 = vmatprep.subr.bf16.mxu0 0
    %6433 = vmatpush1.bf16.msra.mxu0 %v6245
    %6434 = vmatprep.subr.bf16.mxu0 0
    %6435 = vmatpush1.bf16.msra.mxu0 %v6244
    %6436 = vmatprep.subr.bf16.mxu0 0
    %6437 = vmatpush2.bf16.msra.mxu0 %v6259
    %6438 = vmatprep.subr.bf16.mxu0 0
    %6439 = vmatpush2.bf16.msra.mxu0 %v6258
    %6440 = vmatprep.subr.bf16.mxu0 0
    %6441 = vmatpush2.bf16.msra.mxu0 %v6257
    %6442 = vmatprep.subr.bf16.mxu0 0
    %6443 = vmatpush2.bf16.msra.mxu0 %v6256
    %6444 = vmatprep.subr.bf16.mxu0 0
    %6445 = vmatpush2.bf16.msra.mxu0 %v6255
    %6446 = vmatprep.subr.bf16.mxu0 0
    %6447 = vmatpush2.bf16.msra.mxu0 %v6254
    %6448 = vmatprep.subr.bf16.mxu0 0
    %6449 = vmatpush2.bf16.msra.mxu0 %v6253
    %6450 = vmatprep.subr.bf16.mxu0 0
    %6451 = vmatpush2.bf16.msra.mxu0 %v6252
    %6452 = vmatprep.mubr.bf16.mxu0 %v4448
    %6453 = vmatmul.mubr.bf16.gmra.mxu0 %v4447
    %v6454 = vpop.f32.mrf.mxu0
    %v6455 = vadd.f32 %v6415, %v6454
    %v6456 = vpop.f32.mrf.mxu0
    %v6457 = vpop.f32.mrf.mxu0
    %v6458 = vpop.f32.mrf.mxu0
    %6459 = vdwg.mxu0
    %6460 = vmatprep.subr.bf16.mxu0 0
    %6461 = vmatpush1.bf16.msra.mxu0 %v6267
    %6462 = vmatprep.subr.bf16.mxu0 0
    %6463 = vmatpush1.bf16.msra.mxu0 %v6266
    %6464 = vmatprep.subr.bf16.mxu0 0
    %6465 = vmatpush1.bf16.msra.mxu0 %v6265
    %6466 = vmatprep.subr.bf16.mxu0 0
    %6467 = vmatpush1.bf16.msra.mxu0 %v6264
    %6468 = vmatprep.subr.bf16.mxu0 0
    %6469 = vmatpush1.bf16.msra.mxu0 %v6263
    %6470 = vmatprep.subr.bf16.mxu0 0
    %6471 = vmatpush1.bf16.msra.mxu0 %v6262
    %6472 = vmatprep.subr.bf16.mxu0 0
    %6473 = vmatpush1.bf16.msra.mxu0 %v6261
    %6474 = vmatprep.subr.bf16.mxu0 0
    %6475 = vmatpush1.bf16.msra.mxu0 %v6260
    %6476 = vmatprep.subr.bf16.mxu0 0
    %6477 = vmatpush2.bf16.msra.mxu0 %v6275
    %6478 = vmatprep.subr.bf16.mxu0 0
    %6479 = vmatpush2.bf16.msra.mxu0 %v6274
    %6480 = vmatprep.subr.bf16.mxu0 0
    %6481 = vmatpush2.bf16.msra.mxu0 %v6273
    %6482 = vmatprep.subr.bf16.mxu0 0
    %6483 = vmatpush2.bf16.msra.mxu0 %v6272
    %6484 = vmatprep.subr.bf16.mxu0 0
    %6485 = vmatpush2.bf16.msra.mxu0 %v6271
    %6486 = vmatprep.subr.bf16.mxu0 0
    %6487 = vmatpush2.bf16.msra.mxu0 %v6270
    %6488 = vmatprep.subr.bf16.mxu0 0
    %6489 = vmatpush2.bf16.msra.mxu0 %v6269
    %6490 = vmatprep.subr.bf16.mxu0 0
    %6491 = vmatpush2.bf16.msra.mxu0 %v6268
    %6492 = vmatprep.mubr.bf16.mxu0 %v4450
    %6493 = vmatmul.mubr.bf16.gmra.mxu0 %v4449
    %v6494 = vpop.f32.mrf.mxu0
    %v6495 = vadd.f32 %v6455, %v6494
    %v6496 = vpop.f32.mrf.mxu0
    %v6497 = vpop.f32.mrf.mxu0
    %v6498 = vpop.f32.mrf.mxu0
    %6499 = vdwg.mxu0
    %vm6500 = vcmp.gt.f32.partialorder %v6495, 0.0
    %v6501 = vmul.f32 %v6495, 0.2
    %v6502 = vsel %vm6500, %v6495, %v6501
    %6503 = vst [vmem:[#allocation2 + $0x4] sm:$0x3] %v6502
    %s6504 = scalar_lea.vmem [#allocation12], 1536
    %v6505 = vld [vmem:[%s6504] sm:$0xf]
    %v6506 = vld [vmem:[%s6504 + $0x4] sm:$0xf]
    %v6507 = vld [vmem:[%s6504 + $0x8] sm:$0xf]
    %v6508 = vld [vmem:[%s6504 + $0xc] sm:$0xf]
    %v6509 = vld [vmem:[%s6504 + $0x10] sm:$0xf]
    %v6510 = vld [vmem:[%s6504 + $0x14] sm:$0xf]
    %v6511 = vld [vmem:[%s6504 + $0x18] sm:$0xf]
    %v6512 = vld [vmem:[%s6504 + $0x1c] sm:$0xf]
    %v6513 = vld [vmem:[%s6504 + $0x20] sm:$0xf]
    %v6514 = vld [vmem:[%s6504 + $0x24] sm:$0xf]
    %v6515 = vld [vmem:[%s6504 + $0x28] sm:$0xf]
    %v6516 = vld [vmem:[%s6504 + $0x2c] sm:$0xf]
    %v6517 = vld [vmem:[%s6504 + $0x30] sm:$0xf]
    %v6518 = vld [vmem:[%s6504 + $0x34] sm:$0xf]
    %v6519 = vld [vmem:[%s6504 + $0x38] sm:$0xf]
    %v6520 = vld [vmem:[%s6504 + $0x3c] sm:$0xf]
    %v6521 = vld [vmem:[%s6504 + $0x40] sm:$0xf]
    %v6522 = vld [vmem:[%s6504 + $0x44] sm:$0xf]
    %v6523 = vld [vmem:[%s6504 + $0x48] sm:$0xf]
    %v6524 = vld [vmem:[%s6504 + $0x4c] sm:$0xf]
    %v6525 = vld [vmem:[%s6504 + $0x50] sm:$0xf]
    %v6526 = vld [vmem:[%s6504 + $0x54] sm:$0xf]
    %v6527 = vld [vmem:[%s6504 + $0x58] sm:$0xf]
    %v6528 = vld [vmem:[%s6504 + $0x5c] sm:$0xf]
    %v6529 = vld [vmem:[%s6504 + $0x60] sm:$0xf]
    %v6530 = vld [vmem:[%s6504 + $0x64] sm:$0xf]
    %v6531 = vld [vmem:[%s6504 + $0x68] sm:$0xf]
    %v6532 = vld [vmem:[%s6504 + $0x6c] sm:$0xf]
    %v6533 = vld [vmem:[%s6504 + $0x70] sm:$0xf]
    %v6534 = vld [vmem:[%s6504 + $0x74] sm:$0xf]
    %v6535 = vld [vmem:[%s6504 + $0x78] sm:$0xf]
    %v6536 = vld [vmem:[%s6504 + $0x7c] sm:$0xf]
    %v6537 = vld [vmem:[%s6504 + $0x80] sm:$0xf]
    %v6538 = vld [vmem:[%s6504 + $0x84] sm:$0xf]
    %v6539 = vld [vmem:[%s6504 + $0x88] sm:$0xf]
    %v6540 = vld [vmem:[%s6504 + $0x8c] sm:$0xf]
    %v6541 = vld [vmem:[%s6504 + $0x90] sm:$0xf]
    %v6542 = vld [vmem:[%s6504 + $0x94] sm:$0xf]
    %v6543 = vld [vmem:[%s6504 + $0x98] sm:$0xf]
    %v6544 = vld [vmem:[%s6504 + $0x9c] sm:$0xf]
    %v6545 = vld [vmem:[%s6504 + $0xa0] sm:$0xf]
    %v6546 = vld [vmem:[%s6504 + $0xa4] sm:$0xf]
    %v6547 = vld [vmem:[%s6504 + $0xa8] sm:$0xf]
    %v6548 = vld [vmem:[%s6504 + $0xac] sm:$0xf]
    %v6549 = vld [vmem:[%s6504 + $0xb0] sm:$0xf]
    %v6550 = vld [vmem:[%s6504 + $0xb4] sm:$0xf]
    %v6551 = vld [vmem:[%s6504 + $0xb8] sm:$0xf]
    %v6552 = vld [vmem:[%s6504 + $0xbc] sm:$0xf]
    %v6553 = vld [vmem:[%s6504 + $0xc0] sm:$0xf]
    %v6554 = vld [vmem:[%s6504 + $0xc4] sm:$0xf]
    %v6555 = vld [vmem:[%s6504 + $0xc8] sm:$0xf]
    %v6556 = vld [vmem:[%s6504 + $0xcc] sm:$0xf]
    %v6557 = vld [vmem:[%s6504 + $0xd0] sm:$0xf]
    %v6558 = vld [vmem:[%s6504 + $0xd4] sm:$0xf]
    %v6559 = vld [vmem:[%s6504 + $0xd8] sm:$0xf]
    %v6560 = vld [vmem:[%s6504 + $0xdc] sm:$0xf]
    %v6561 = vld [vmem:[%s6504 + $0xe0] sm:$0xf]
    %v6562 = vld [vmem:[%s6504 + $0xe4] sm:$0xf]
    %v6563 = vld [vmem:[%s6504 + $0xe8] sm:$0xf]
    %v6564 = vld [vmem:[%s6504 + $0xec] sm:$0xf]
    %v6565 = vld [vmem:[%s6504 + $0xf0] sm:$0xf]
    %v6566 = vld [vmem:[%s6504 + $0xf4] sm:$0xf]
    %v6567 = vld [vmem:[%s6504 + $0xf8] sm:$0xf]
    %v6568 = vld [vmem:[%s6504 + $0xfc] sm:$0xf]
    %v6569 = vld [vmem:[%s6504 + $0x100] sm:$0xf]
    %v6570 = vld [vmem:[%s6504 + $0x104] sm:$0xf]
    %v6571 = vld [vmem:[%s6504 + $0x108] sm:$0xf]
    %v6572 = vld [vmem:[%s6504 + $0x10c] sm:$0xf]
    %v6573 = vld [vmem:[%s6504 + $0x110] sm:$0xf]
    %v6574 = vld [vmem:[%s6504 + $0x114] sm:$0xf]
    %v6575 = vld [vmem:[%s6504 + $0x118] sm:$0xf]
    %v6576 = vld [vmem:[%s6504 + $0x11c] sm:$0xf]
    %v6577 = vld [vmem:[%s6504 + $0x120] sm:$0xf]
    %v6578 = vld [vmem:[%s6504 + $0x124] sm:$0xf]
    %v6579 = vld [vmem:[%s6504 + $0x128] sm:$0xf]
    %v6580 = vld [vmem:[%s6504 + $0x12c] sm:$0xf]
    %v6581 = vld [vmem:[%s6504 + $0x130] sm:$0xf]
    %v6582 = vld [vmem:[%s6504 + $0x134] sm:$0xf]
    %v6583 = vld [vmem:[%s6504 + $0x138] sm:$0xf]
    %v6584 = vld [vmem:[%s6504 + $0x13c] sm:$0xf]
    %v6585 = vld [vmem:[%s6504 + $0x140] sm:$0xf]
    %v6586 = vld [vmem:[%s6504 + $0x144] sm:$0xf]
    %v6587 = vld [vmem:[%s6504 + $0x148] sm:$0xf]
    %v6588 = vld [vmem:[%s6504 + $0x14c] sm:$0xf]
    %v6589 = vld [vmem:[%s6504 + $0x150] sm:$0xf]
    %v6590 = vld [vmem:[%s6504 + $0x154] sm:$0xf]
    %v6591 = vld [vmem:[%s6504 + $0x158] sm:$0xf]
    %v6592 = vld [vmem:[%s6504 + $0x15c] sm:$0xf]
    %v6593 = vld [vmem:[%s6504 + $0x160] sm:$0xf]
    %v6594 = vld [vmem:[%s6504 + $0x164] sm:$0xf]
    %v6595 = vld [vmem:[%s6504 + $0x168] sm:$0xf]
    %v6596 = vld [vmem:[%s6504 + $0x16c] sm:$0xf]
    %v6597 = vld [vmem:[%s6504 + $0x170] sm:$0xf]
    %v6598 = vld [vmem:[%s6504 + $0x174] sm:$0xf]
    %v6599 = vld [vmem:[%s6504 + $0x178] sm:$0xf]
    %v6600 = vld [vmem:[%s6504 + $0x17c] sm:$0xf]
    %v6601 = vld [vmem:[%s6504 + $0x180] sm:$0xf]
    %v6602 = vld [vmem:[%s6504 + $0x184] sm:$0xf]
    %v6603 = vld [vmem:[%s6504 + $0x188] sm:$0xf]
    %v6604 = vld [vmem:[%s6504 + $0x18c] sm:$0xf]
    %v6605 = vld [vmem:[%s6504 + $0x190] sm:$0xf]
    %v6606 = vld [vmem:[%s6504 + $0x194] sm:$0xf]
    %v6607 = vld [vmem:[%s6504 + $0x198] sm:$0xf]
    %v6608 = vld [vmem:[%s6504 + $0x19c] sm:$0xf]
    %v6609 = vld [vmem:[%s6504 + $0x1a0] sm:$0xf]
    %v6610 = vld [vmem:[%s6504 + $0x1a4] sm:$0xf]
    %v6611 = vld [vmem:[%s6504 + $0x1a8] sm:$0xf]
    %v6612 = vld [vmem:[%s6504 + $0x1ac] sm:$0xf]
    %v6613 = vld [vmem:[%s6504 + $0x1b0] sm:$0xf]
    %v6614 = vld [vmem:[%s6504 + $0x1b4] sm:$0xf]
    %v6615 = vld [vmem:[%s6504 + $0x1b8] sm:$0xf]
    %v6616 = vld [vmem:[%s6504 + $0x1bc] sm:$0xf]
    %v6617 = vld [vmem:[%s6504 + $0x1c0] sm:$0xf]
    %v6618 = vld [vmem:[%s6504 + $0x1c4] sm:$0xf]
    %v6619 = vld [vmem:[%s6504 + $0x1c8] sm:$0xf]
    %v6620 = vld [vmem:[%s6504 + $0x1cc] sm:$0xf]
    %v6621 = vld [vmem:[%s6504 + $0x1d0] sm:$0xf]
    %v6622 = vld [vmem:[%s6504 + $0x1d4] sm:$0xf]
    %v6623 = vld [vmem:[%s6504 + $0x1d8] sm:$0xf]
    %v6624 = vld [vmem:[%s6504 + $0x1dc] sm:$0xf]
    %v6625 = vld [vmem:[%s6504 + $0x1e0] sm:$0xf]
    %v6626 = vld [vmem:[%s6504 + $0x1e4] sm:$0xf]
    %v6627 = vld [vmem:[%s6504 + $0x1e8] sm:$0xf]
    %v6628 = vld [vmem:[%s6504 + $0x1ec] sm:$0xf]
    %v6629 = vld [vmem:[%s6504 + $0x1f0] sm:$0xf]
    %v6630 = vld [vmem:[%s6504 + $0x1f4] sm:$0xf]
    %v6631 = vld [vmem:[%s6504 + $0x1f8] sm:$0xf]
    %v6632 = vld [vmem:[%s6504 + $0x1fc] sm:$0xf]
    %s6633 = scalar_lea.vmem [#allocation14], 3
    %v6634 = vld [vmem:[%s6633] sm:$0x1]
    %v6636 = vlaneseq
    %v6637 = vshrl.u32 %v6636, 7
    %v6638 = vsub.s32 0, %v6637
    %v6639 = vrot.slane %v6634, %v6638
    %v6769 = vunpack.c.l.b16 %v6505
    %v6770 = vunpack.c.l.b16 %v6506
    %v6771 = vunpack.c.l.b16 %v6507
    %v6772 = vunpack.c.l.b16 %v6508
    %v6773 = vunpack.c.l.b16 %v6509
    %v6774 = vunpack.c.l.b16 %v6510
    %v6775 = vunpack.c.l.b16 %v6511
    %v6776 = vunpack.c.l.b16 %v6512
    %v6777 = vunpack.c.l.b16 %v6513
    %v6778 = vunpack.c.l.b16 %v6514
    %v6779 = vunpack.c.l.b16 %v6515
    %v6780 = vunpack.c.l.b16 %v6516
    %v6781 = vunpack.c.l.b16 %v6517
    %v6782 = vunpack.c.l.b16 %v6518
    %v6783 = vunpack.c.l.b16 %v6519
    %v6784 = vunpack.c.l.b16 %v6520
    %v6785 = vunpack.c.l.b16 %v6521
    %v6786 = vunpack.c.l.b16 %v6522
    %v6787 = vunpack.c.l.b16 %v6523
    %v6788 = vunpack.c.l.b16 %v6524
    %v6789 = vunpack.c.l.b16 %v6525
    %v6790 = vunpack.c.l.b16 %v6526
    %v6791 = vunpack.c.l.b16 %v6527
    %v6792 = vunpack.c.l.b16 %v6528
    %v6793 = vunpack.c.l.b16 %v6529
    %v6794 = vunpack.c.l.b16 %v6530
    %v6795 = vunpack.c.l.b16 %v6531
    %v6796 = vunpack.c.l.b16 %v6532
    %v6797 = vunpack.c.l.b16 %v6533
    %v6798 = vunpack.c.l.b16 %v6534
    %v6799 = vunpack.c.l.b16 %v6535
    %v6800 = vunpack.c.l.b16 %v6536
    %v6801 = vunpack.c.l.b16 %v6537
    %v6802 = vunpack.c.l.b16 %v6538
    %v6803 = vunpack.c.l.b16 %v6539
    %v6804 = vunpack.c.l.b16 %v6540
    %v6805 = vunpack.c.l.b16 %v6541
    %v6806 = vunpack.c.l.b16 %v6542
    %v6807 = vunpack.c.l.b16 %v6543
    %v6808 = vunpack.c.l.b16 %v6544
    %v6809 = vunpack.c.l.b16 %v6545
    %v6810 = vunpack.c.l.b16 %v6546
    %v6811 = vunpack.c.l.b16 %v6547
    %v6812 = vunpack.c.l.b16 %v6548
    %v6813 = vunpack.c.l.b16 %v6549
    %v6814 = vunpack.c.l.b16 %v6550
    %v6815 = vunpack.c.l.b16 %v6551
    %v6816 = vunpack.c.l.b16 %v6552
    %v6817 = vunpack.c.l.b16 %v6553
    %v6818 = vunpack.c.l.b16 %v6554
    %v6819 = vunpack.c.l.b16 %v6555
    %v6820 = vunpack.c.l.b16 %v6556
    %v6821 = vunpack.c.l.b16 %v6557
    %v6822 = vunpack.c.l.b16 %v6558
    %v6823 = vunpack.c.l.b16 %v6559
    %v6824 = vunpack.c.l.b16 %v6560
    %v6825 = vunpack.c.l.b16 %v6561
    %v6826 = vunpack.c.l.b16 %v6562
    %v6827 = vunpack.c.l.b16 %v6563
    %v6828 = vunpack.c.l.b16 %v6564
    %v6829 = vunpack.c.l.b16 %v6565
    %v6830 = vunpack.c.l.b16 %v6566
    %v6831 = vunpack.c.l.b16 %v6567
    %v6832 = vunpack.c.l.b16 %v6568
    %v6833 = vunpack.c.l.b16 %v6569
    %v6834 = vunpack.c.l.b16 %v6570
    %v6835 = vunpack.c.l.b16 %v6571
    %v6836 = vunpack.c.l.b16 %v6572
    %v6837 = vunpack.c.l.b16 %v6573
    %v6838 = vunpack.c.l.b16 %v6574
    %v6839 = vunpack.c.l.b16 %v6575
    %v6840 = vunpack.c.l.b16 %v6576
    %v6841 = vunpack.c.l.b16 %v6577
    %v6842 = vunpack.c.l.b16 %v6578
    %v6843 = vunpack.c.l.b16 %v6579
    %v6844 = vunpack.c.l.b16 %v6580
    %v6845 = vunpack.c.l.b16 %v6581
    %v6846 = vunpack.c.l.b16 %v6582
    %v6847 = vunpack.c.l.b16 %v6583
    %v6848 = vunpack.c.l.b16 %v6584
    %v6849 = vunpack.c.l.b16 %v6585
    %v6850 = vunpack.c.l.b16 %v6586
    %v6851 = vunpack.c.l.b16 %v6587
    %v6852 = vunpack.c.l.b16 %v6588
    %v6853 = vunpack.c.l.b16 %v6589
    %v6854 = vunpack.c.l.b16 %v6590
    %v6855 = vunpack.c.l.b16 %v6591
    %v6856 = vunpack.c.l.b16 %v6592
    %v6857 = vunpack.c.l.b16 %v6593
    %v6858 = vunpack.c.l.b16 %v6594
    %v6859 = vunpack.c.l.b16 %v6595
    %v6860 = vunpack.c.l.b16 %v6596
    %v6861 = vunpack.c.l.b16 %v6597
    %v6862 = vunpack.c.l.b16 %v6598
    %v6863 = vunpack.c.l.b16 %v6599
    %v6864 = vunpack.c.l.b16 %v6600
    %v6865 = vunpack.c.l.b16 %v6601
    %v6866 = vunpack.c.l.b16 %v6602
    %v6867 = vunpack.c.l.b16 %v6603
    %v6868 = vunpack.c.l.b16 %v6604
    %v6869 = vunpack.c.l.b16 %v6605
    %v6870 = vunpack.c.l.b16 %v6606
    %v6871 = vunpack.c.l.b16 %v6607
    %v6872 = vunpack.c.l.b16 %v6608
    %v6873 = vunpack.c.l.b16 %v6609
    %v6874 = vunpack.c.l.b16 %v6610
    %v6875 = vunpack.c.l.b16 %v6611
    %v6876 = vunpack.c.l.b16 %v6612
    %v6877 = vunpack.c.l.b16 %v6613
    %v6878 = vunpack.c.l.b16 %v6614
    %v6879 = vunpack.c.l.b16 %v6615
    %v6880 = vunpack.c.l.b16 %v6616
    %v6881 = vunpack.c.l.b16 %v6617
    %v6882 = vunpack.c.l.b16 %v6618
    %v6883 = vunpack.c.l.b16 %v6619
    %v6884 = vunpack.c.l.b16 %v6620
    %v6885 = vunpack.c.l.b16 %v6621
    %v6886 = vunpack.c.l.b16 %v6622
    %v6887 = vunpack.c.l.b16 %v6623
    %v6888 = vunpack.c.l.b16 %v6624
    %v6889 = vunpack.c.l.b16 %v6625
    %v6890 = vunpack.c.l.b16 %v6626
    %v6891 = vunpack.c.l.b16 %v6627
    %v6892 = vunpack.c.l.b16 %v6628
    %v6893 = vunpack.c.l.b16 %v6629
    %v6894 = vunpack.c.l.b16 %v6630
    %v6895 = vunpack.c.l.b16 %v6631
    %v6896 = vunpack.c.l.b16 %v6632
    %v6897 = vpack.c.b16 %v6770, %v6769
    %v6898 = vpack.c.b16 %v6772, %v6771
    %v6899 = vpack.c.b16 %v6774, %v6773
    %v6900 = vpack.c.b16 %v6776, %v6775
    %v6901 = vpack.c.b16 %v6778, %v6777
    %v6902 = vpack.c.b16 %v6780, %v6779
    %v6903 = vpack.c.b16 %v6782, %v6781
    %v6904 = vpack.c.b16 %v6784, %v6783
    %v6905 = vpack.c.b16 %v6786, %v6785
    %v6906 = vpack.c.b16 %v6788, %v6787
    %v6907 = vpack.c.b16 %v6790, %v6789
    %v6908 = vpack.c.b16 %v6792, %v6791
    %v6909 = vpack.c.b16 %v6794, %v6793
    %v6910 = vpack.c.b16 %v6796, %v6795
    %v6911 = vpack.c.b16 %v6798, %v6797
    %v6912 = vpack.c.b16 %v6800, %v6799
    %v6913 = vpack.c.b16 %v6802, %v6801
    %v6914 = vpack.c.b16 %v6804, %v6803
    %v6915 = vpack.c.b16 %v6806, %v6805
    %v6916 = vpack.c.b16 %v6808, %v6807
    %v6917 = vpack.c.b16 %v6810, %v6809
    %v6918 = vpack.c.b16 %v6812, %v6811
    %v6919 = vpack.c.b16 %v6814, %v6813
    %v6920 = vpack.c.b16 %v6816, %v6815
    %v6921 = vpack.c.b16 %v6818, %v6817
    %v6922 = vpack.c.b16 %v6820, %v6819
    %v6923 = vpack.c.b16 %v6822, %v6821
    %v6924 = vpack.c.b16 %v6824, %v6823
    %v6925 = vpack.c.b16 %v6826, %v6825
    %v6926 = vpack.c.b16 %v6828, %v6827
    %v6927 = vpack.c.b16 %v6830, %v6829
    %v6928 = vpack.c.b16 %v6832, %v6831
    %v6929 = vpack.c.b16 %v6834, %v6833
    %v6930 = vpack.c.b16 %v6836, %v6835
    %v6931 = vpack.c.b16 %v6838, %v6837
    %v6932 = vpack.c.b16 %v6840, %v6839
    %v6933 = vpack.c.b16 %v6842, %v6841
    %v6934 = vpack.c.b16 %v6844, %v6843
    %v6935 = vpack.c.b16 %v6846, %v6845
    %v6936 = vpack.c.b16 %v6848, %v6847
    %v6937 = vpack.c.b16 %v6850, %v6849
    %v6938 = vpack.c.b16 %v6852, %v6851
    %v6939 = vpack.c.b16 %v6854, %v6853
    %v6940 = vpack.c.b16 %v6856, %v6855
    %v6941 = vpack.c.b16 %v6858, %v6857
    %v6942 = vpack.c.b16 %v6860, %v6859
    %v6943 = vpack.c.b16 %v6862, %v6861
    %v6944 = vpack.c.b16 %v6864, %v6863
    %v6945 = vpack.c.b16 %v6866, %v6865
    %v6946 = vpack.c.b16 %v6868, %v6867
    %v6947 = vpack.c.b16 %v6870, %v6869
    %v6948 = vpack.c.b16 %v6872, %v6871
    %v6949 = vpack.c.b16 %v6874, %v6873
    %v6950 = vpack.c.b16 %v6876, %v6875
    %v6951 = vpack.c.b16 %v6878, %v6877
    %v6952 = vpack.c.b16 %v6880, %v6879
    %v6953 = vpack.c.b16 %v6882, %v6881
    %v6954 = vpack.c.b16 %v6884, %v6883
    %v6955 = vpack.c.b16 %v6886, %v6885
    %v6956 = vpack.c.b16 %v6888, %v6887
    %v6957 = vpack.c.b16 %v6890, %v6889
    %v6958 = vpack.c.b16 %v6892, %v6891
    %v6959 = vpack.c.b16 %v6894, %v6893
    %v6960 = vpack.c.b16 %v6896, %v6895
    %7025 = vmatprep.subr.bf16.mxu0 0
    %7026 = vmatpush1.bf16.msra.mxu0 %v6904
    %7027 = vmatprep.subr.bf16.mxu0 0
    %7028 = vmatpush1.bf16.msra.mxu0 %v6903
    %7029 = vmatprep.subr.bf16.mxu0 0
    %7030 = vmatpush1.bf16.msra.mxu0 %v6902
    %7031 = vmatprep.subr.bf16.mxu0 0
    %7032 = vmatpush1.bf16.msra.mxu0 %v6901
    %7033 = vmatprep.subr.bf16.mxu0 0
    %7034 = vmatpush1.bf16.msra.mxu0 %v6900
    %7035 = vmatprep.subr.bf16.mxu0 0
    %7036 = vmatpush1.bf16.msra.mxu0 %v6899
    %7037 = vmatprep.subr.bf16.mxu0 0
    %7038 = vmatpush1.bf16.msra.mxu0 %v6898
    %7039 = vmatprep.subr.bf16.mxu0 0
    %7040 = vmatpush1.bf16.msra.mxu0 %v6897
    %7041 = vmatprep.subr.bf16.mxu0 0
    %7042 = vmatpush2.bf16.msra.mxu0 %v6912
    %7043 = vmatprep.subr.bf16.mxu0 0
    %7044 = vmatpush2.bf16.msra.mxu0 %v6911
    %7045 = vmatprep.subr.bf16.mxu0 0
    %7046 = vmatpush2.bf16.msra.mxu0 %v6910
    %7047 = vmatprep.subr.bf16.mxu0 0
    %7048 = vmatpush2.bf16.msra.mxu0 %v6909
    %7049 = vmatprep.subr.bf16.mxu0 0
    %7050 = vmatpush2.bf16.msra.mxu0 %v6908
    %7051 = vmatprep.subr.bf16.mxu0 0
    %7052 = vmatpush2.bf16.msra.mxu0 %v6907
    %7053 = vmatprep.subr.bf16.mxu0 0
    %7054 = vmatpush2.bf16.msra.mxu0 %v6906
    %7055 = vmatprep.subr.bf16.mxu0 0
    %7056 = vmatpush2.bf16.msra.mxu0 %v6905
    %7057 = vmatprep.mubr.bf16.mxu0 %v4444
    %7058 = vmatmul.mubr.bf16.gmra.mxu0 %v4443
    %v7059 = vpop.f32.mrf.mxu0
    %v7060 = vadd.f32 %v6639, %v7059
    %v7061 = vpop.f32.mrf.mxu0
    %v7062 = vpop.f32.mrf.mxu0
    %v7063 = vpop.f32.mrf.mxu0
    %7064 = vdwg.mxu0
    %7065 = vmatprep.subr.bf16.mxu0 0
    %7066 = vmatpush1.bf16.msra.mxu0 %v6920
    %7067 = vmatprep.subr.bf16.mxu0 0
    %7068 = vmatpush1.bf16.msra.mxu0 %v6919
    %7069 = vmatprep.subr.bf16.mxu0 0
    %7070 = vmatpush1.bf16.msra.mxu0 %v6918
    %7071 = vmatprep.subr.bf16.mxu0 0
    %7072 = vmatpush1.bf16.msra.mxu0 %v6917
    %7073 = vmatprep.subr.bf16.mxu0 0
    %7074 = vmatpush1.bf16.msra.mxu0 %v6916
    %7075 = vmatprep.subr.bf16.mxu0 0
    %7076 = vmatpush1.bf16.msra.mxu0 %v6915
    %7077 = vmatprep.subr.bf16.mxu0 0
    %7078 = vmatpush1.bf16.msra.mxu0 %v6914
    %7079 = vmatprep.subr.bf16.mxu0 0
    %7080 = vmatpush1.bf16.msra.mxu0 %v6913
    %7081 = vmatprep.subr.bf16.mxu0 0
    %7082 = vmatpush2.bf16.msra.mxu0 %v6928
    %7083 = vmatprep.subr.bf16.mxu0 0
    %7084 = vmatpush2.bf16.msra.mxu0 %v6927
    %7085 = vmatprep.subr.bf16.mxu0 0
    %7086 = vmatpush2.bf16.msra.mxu0 %v6926
    %7087 = vmatprep.subr.bf16.mxu0 0
    %7088 = vmatpush2.bf16.msra.mxu0 %v6925
    %7089 = vmatprep.subr.bf16.mxu0 0
    %7090 = vmatpush2.bf16.msra.mxu0 %v6924
    %7091 = vmatprep.subr.bf16.mxu0 0
    %7092 = vmatpush2.bf16.msra.mxu0 %v6923
    %7093 = vmatprep.subr.bf16.mxu0 0
    %7094 = vmatpush2.bf16.msra.mxu0 %v6922
    %7095 = vmatprep.subr.bf16.mxu0 0
    %7096 = vmatpush2.bf16.msra.mxu0 %v6921
    %7097 = vmatprep.mubr.bf16.mxu0 %v4446
    %7098 = vmatmul.mubr.bf16.gmra.mxu0 %v4445
    %v7099 = vpop.f32.mrf.mxu0
    %v7100 = vadd.f32 %v7060, %v7099
    %v7101 = vpop.f32.mrf.mxu0
    %v7102 = vpop.f32.mrf.mxu0
    %v7103 = vpop.f32.mrf.mxu0
    %7104 = vdwg.mxu0
    %7105 = vmatprep.subr.bf16.mxu0 0
    %7106 = vmatpush1.bf16.msra.mxu0 %v6936
    %7107 = vmatprep.subr.bf16.mxu0 0
    %7108 = vmatpush1.bf16.msra.mxu0 %v6935
    %7109 = vmatprep.subr.bf16.mxu0 0
    %7110 = vmatpush1.bf16.msra.mxu0 %v6934
    %7111 = vmatprep.subr.bf16.mxu0 0
    %7112 = vmatpush1.bf16.msra.mxu0 %v6933
    %7113 = vmatprep.subr.bf16.mxu0 0
    %7114 = vmatpush1.bf16.msra.mxu0 %v6932
    %7115 = vmatprep.subr.bf16.mxu0 0
    %7116 = vmatpush1.bf16.msra.mxu0 %v6931
    %7117 = vmatprep.subr.bf16.mxu0 0
    %7118 = vmatpush1.bf16.msra.mxu0 %v6930
    %7119 = vmatprep.subr.bf16.mxu0 0
    %7120 = vmatpush1.bf16.msra.mxu0 %v6929
    %7121 = vmatprep.subr.bf16.mxu0 0
    %7122 = vmatpush2.bf16.msra.mxu0 %v6944
    %7123 = vmatprep.subr.bf16.mxu0 0
    %7124 = vmatpush2.bf16.msra.mxu0 %v6943
    %7125 = vmatprep.subr.bf16.mxu0 0
    %7126 = vmatpush2.bf16.msra.mxu0 %v6942
    %7127 = vmatprep.subr.bf16.mxu0 0
    %7128 = vmatpush2.bf16.msra.mxu0 %v6941
    %7129 = vmatprep.subr.bf16.mxu0 0
    %7130 = vmatpush2.bf16.msra.mxu0 %v6940
    %7131 = vmatprep.subr.bf16.mxu0 0
    %7132 = vmatpush2.bf16.msra.mxu0 %v6939
    %7133 = vmatprep.subr.bf16.mxu0 0
    %7134 = vmatpush2.bf16.msra.mxu0 %v6938
    %7135 = vmatprep.subr.bf16.mxu0 0
    %7136 = vmatpush2.bf16.msra.mxu0 %v6937
    %7137 = vmatprep.mubr.bf16.mxu0 %v4448
    %7138 = vmatmul.mubr.bf16.gmra.mxu0 %v4447
    %v7139 = vpop.f32.mrf.mxu0
    %v7140 = vadd.f32 %v7100, %v7139
    %v7141 = vpop.f32.mrf.mxu0
    %v7142 = vpop.f32.mrf.mxu0
    %v7143 = vpop.f32.mrf.mxu0
    %7144 = vdwg.mxu0
    %7145 = vmatprep.subr.bf16.mxu0 0
    %7146 = vmatpush1.bf16.msra.mxu0 %v6952
    %7147 = vmatprep.subr.bf16.mxu0 0
    %7148 = vmatpush1.bf16.msra.mxu0 %v6951
    %7149 = vmatprep.subr.bf16.mxu0 0
    %7150 = vmatpush1.bf16.msra.mxu0 %v6950
    %7151 = vmatprep.subr.bf16.mxu0 0
    %7152 = vmatpush1.bf16.msra.mxu0 %v6949
    %7153 = vmatprep.subr.bf16.mxu0 0
    %7154 = vmatpush1.bf16.msra.mxu0 %v6948
    %7155 = vmatprep.subr.bf16.mxu0 0
    %7156 = vmatpush1.bf16.msra.mxu0 %v6947
    %7157 = vmatprep.subr.bf16.mxu0 0
    %7158 = vmatpush1.bf16.msra.mxu0 %v6946
    %7159 = vmatprep.subr.bf16.mxu0 0
    %7160 = vmatpush1.bf16.msra.mxu0 %v6945
    %7161 = vmatprep.subr.bf16.mxu0 0
    %7162 = vmatpush2.bf16.msra.mxu0 %v6960
    %7163 = vmatprep.subr.bf16.mxu0 0
    %7164 = vmatpush2.bf16.msra.mxu0 %v6959
    %7165 = vmatprep.subr.bf16.mxu0 0
    %7166 = vmatpush2.bf16.msra.mxu0 %v6958
    %7167 = vmatprep.subr.bf16.mxu0 0
    %7168 = vmatpush2.bf16.msra.mxu0 %v6957
    %7169 = vmatprep.subr.bf16.mxu0 0
    %7170 = vmatpush2.bf16.msra.mxu0 %v6956
    %7171 = vmatprep.subr.bf16.mxu0 0
    %7172 = vmatpush2.bf16.msra.mxu0 %v6955
    %7173 = vmatprep.subr.bf16.mxu0 0
    %7174 = vmatpush2.bf16.msra.mxu0 %v6954
    %7175 = vmatprep.subr.bf16.mxu0 0
    %7176 = vmatpush2.bf16.msra.mxu0 %v6953
    %7177 = vmatprep.mubr.bf16.mxu0 %v4450
    %7178 = vmatmul.mubr.bf16.gmra.mxu0 %v4449
    %v7179 = vpop.f32.mrf.mxu0
    %v7180 = vadd.f32 %v7140, %v7179
    %v7181 = vpop.f32.mrf.mxu0
    %v7182 = vpop.f32.mrf.mxu0
    %v7183 = vpop.f32.mrf.mxu0
    %7184 = vdwg.mxu0
    %vm7185 = vcmp.gt.f32.partialorder %v7180, 0.0
    %v7186 = vmul.f32 %v7180, 0.2
    %v7187 = vsel %vm7185, %v7180, %v7186
    %7188 = vst [vmem:[#allocation2 + $0x6] sm:$0x3] %v7187
    %s7189 = scalar_lea.vmem [#allocation12], 2048
    %v7190 = vld [vmem:[%s7189] sm:$0xf]
    %v7191 = vld [vmem:[%s7189 + $0x4] sm:$0xf]
    %v7192 = vld [vmem:[%s7189 + $0x8] sm:$0xf]
    %v7193 = vld [vmem:[%s7189 + $0xc] sm:$0xf]
    %v7194 = vld [vmem:[%s7189 + $0x10] sm:$0xf]
    %v7195 = vld [vmem:[%s7189 + $0x14] sm:$0xf]
    %v7196 = vld [vmem:[%s7189 + $0x18] sm:$0xf]
    %v7197 = vld [vmem:[%s7189 + $0x1c] sm:$0xf]
    %v7198 = vld [vmem:[%s7189 + $0x20] sm:$0xf]
    %v7199 = vld [vmem:[%s7189 + $0x24] sm:$0xf]
    %v7200 = vld [vmem:[%s7189 + $0x28] sm:$0xf]
    %v7201 = vld [vmem:[%s7189 + $0x2c] sm:$0xf]
    %v7202 = vld [vmem:[%s7189 + $0x30] sm:$0xf]
    %v7203 = vld [vmem:[%s7189 + $0x34] sm:$0xf]
    %v7204 = vld [vmem:[%s7189 + $0x38] sm:$0xf]
    %v7205 = vld [vmem:[%s7189 + $0x3c] sm:$0xf]
    %v7206 = vld [vmem:[%s7189 + $0x40] sm:$0xf]
    %v7207 = vld [vmem:[%s7189 + $0x44] sm:$0xf]
    %v7208 = vld [vmem:[%s7189 + $0x48] sm:$0xf]
    %v7209 = vld [vmem:[%s7189 + $0x4c] sm:$0xf]
    %v7210 = vld [vmem:[%s7189 + $0x50] sm:$0xf]
    %v7211 = vld [vmem:[%s7189 + $0x54] sm:$0xf]
    %v7212 = vld [vmem:[%s7189 + $0x58] sm:$0xf]
    %v7213 = vld [vmem:[%s7189 + $0x5c] sm:$0xf]
    %v7214 = vld [vmem:[%s7189 + $0x60] sm:$0xf]
    %v7215 = vld [vmem:[%s7189 + $0x64] sm:$0xf]
    %v7216 = vld [vmem:[%s7189 + $0x68] sm:$0xf]
    %v7217 = vld [vmem:[%s7189 + $0x6c] sm:$0xf]
    %v7218 = vld [vmem:[%s7189 + $0x70] sm:$0xf]
    %v7219 = vld [vmem:[%s7189 + $0x74] sm:$0xf]
    %v7220 = vld [vmem:[%s7189 + $0x78] sm:$0xf]
    %v7221 = vld [vmem:[%s7189 + $0x7c] sm:$0xf]
    %v7222 = vld [vmem:[%s7189 + $0x80] sm:$0xf]
    %v7223 = vld [vmem:[%s7189 + $0x84] sm:$0xf]
    %v7224 = vld [vmem:[%s7189 + $0x88] sm:$0xf]
    %v7225 = vld [vmem:[%s7189 + $0x8c] sm:$0xf]
    %v7226 = vld [vmem:[%s7189 + $0x90] sm:$0xf]
    %v7227 = vld [vmem:[%s7189 + $0x94] sm:$0xf]
    %v7228 = vld [vmem:[%s7189 + $0x98] sm:$0xf]
    %v7229 = vld [vmem:[%s7189 + $0x9c] sm:$0xf]
    %v7230 = vld [vmem:[%s7189 + $0xa0] sm:$0xf]
    %v7231 = vld [vmem:[%s7189 + $0xa4] sm:$0xf]
    %v7232 = vld [vmem:[%s7189 + $0xa8] sm:$0xf]
    %v7233 = vld [vmem:[%s7189 + $0xac] sm:$0xf]
    %v7234 = vld [vmem:[%s7189 + $0xb0] sm:$0xf]
    %v7235 = vld [vmem:[%s7189 + $0xb4] sm:$0xf]
    %v7236 = vld [vmem:[%s7189 + $0xb8] sm:$0xf]
    %v7237 = vld [vmem:[%s7189 + $0xbc] sm:$0xf]
    %v7238 = vld [vmem:[%s7189 + $0xc0] sm:$0xf]
    %v7239 = vld [vmem:[%s7189 + $0xc4] sm:$0xf]
    %v7240 = vld [vmem:[%s7189 + $0xc8] sm:$0xf]
    %v7241 = vld [vmem:[%s7189 + $0xcc] sm:$0xf]
    %v7242 = vld [vmem:[%s7189 + $0xd0] sm:$0xf]
    %v7243 = vld [vmem:[%s7189 + $0xd4] sm:$0xf]
    %v7244 = vld [vmem:[%s7189 + $0xd8] sm:$0xf]
    %v7245 = vld [vmem:[%s7189 + $0xdc] sm:$0xf]
    %v7246 = vld [vmem:[%s7189 + $0xe0] sm:$0xf]
    %v7247 = vld [vmem:[%s7189 + $0xe4] sm:$0xf]
    %v7248 = vld [vmem:[%s7189 + $0xe8] sm:$0xf]
    %v7249 = vld [vmem:[%s7189 + $0xec] sm:$0xf]
    %v7250 = vld [vmem:[%s7189 + $0xf0] sm:$0xf]
    %v7251 = vld [vmem:[%s7189 + $0xf4] sm:$0xf]
    %v7252 = vld [vmem:[%s7189 + $0xf8] sm:$0xf]
    %v7253 = vld [vmem:[%s7189 + $0xfc] sm:$0xf]
    %v7254 = vld [vmem:[%s7189 + $0x100] sm:$0xf]
    %v7255 = vld [vmem:[%s7189 + $0x104] sm:$0xf]
    %v7256 = vld [vmem:[%s7189 + $0x108] sm:$0xf]
    %v7257 = vld [vmem:[%s7189 + $0x10c] sm:$0xf]
    %v7258 = vld [vmem:[%s7189 + $0x110] sm:$0xf]
    %v7259 = vld [vmem:[%s7189 + $0x114] sm:$0xf]
    %v7260 = vld [vmem:[%s7189 + $0x118] sm:$0xf]
    %v7261 = vld [vmem:[%s7189 + $0x11c] sm:$0xf]
    %v7262 = vld [vmem:[%s7189 + $0x120] sm:$0xf]
    %v7263 = vld [vmem:[%s7189 + $0x124] sm:$0xf]
    %v7264 = vld [vmem:[%s7189 + $0x128] sm:$0xf]
    %v7265 = vld [vmem:[%s7189 + $0x12c] sm:$0xf]
    %v7266 = vld [vmem:[%s7189 + $0x130] sm:$0xf]
    %v7267 = vld [vmem:[%s7189 + $0x134] sm:$0xf]
    %v7268 = vld [vmem:[%s7189 + $0x138] sm:$0xf]
    %v7269 = vld [vmem:[%s7189 + $0x13c] sm:$0xf]
    %v7270 = vld [vmem:[%s7189 + $0x140] sm:$0xf]
    %v7271 = vld [vmem:[%s7189 + $0x144] sm:$0xf]
    %v7272 = vld [vmem:[%s7189 + $0x148] sm:$0xf]
    %v7273 = vld [vmem:[%s7189 + $0x14c] sm:$0xf]
    %v7274 = vld [vmem:[%s7189 + $0x150] sm:$0xf]
    %v7275 = vld [vmem:[%s7189 + $0x154] sm:$0xf]
    %v7276 = vld [vmem:[%s7189 + $0x158] sm:$0xf]
    %v7277 = vld [vmem:[%s7189 + $0x15c] sm:$0xf]
    %v7278 = vld [vmem:[%s7189 + $0x160] sm:$0xf]
    %v7279 = vld [vmem:[%s7189 + $0x164] sm:$0xf]
    %v7280 = vld [vmem:[%s7189 + $0x168] sm:$0xf]
    %v7281 = vld [vmem:[%s7189 + $0x16c] sm:$0xf]
    %v7282 = vld [vmem:[%s7189 + $0x170] sm:$0xf]
    %v7283 = vld [vmem:[%s7189 + $0x174] sm:$0xf]
    %v7284 = vld [vmem:[%s7189 + $0x178] sm:$0xf]
    %v7285 = vld [vmem:[%s7189 + $0x17c] sm:$0xf]
    %v7286 = vld [vmem:[%s7189 + $0x180] sm:$0xf]
    %v7287 = vld [vmem:[%s7189 + $0x184] sm:$0xf]
    %v7288 = vld [vmem:[%s7189 + $0x188] sm:$0xf]
    %v7289 = vld [vmem:[%s7189 + $0x18c] sm:$0xf]
    %v7290 = vld [vmem:[%s7189 + $0x190] sm:$0xf]
    %v7291 = vld [vmem:[%s7189 + $0x194] sm:$0xf]
    %v7292 = vld [vmem:[%s7189 + $0x198] sm:$0xf]
    %v7293 = vld [vmem:[%s7189 + $0x19c] sm:$0xf]
    %v7294 = vld [vmem:[%s7189 + $0x1a0] sm:$0xf]
    %v7295 = vld [vmem:[%s7189 + $0x1a4] sm:$0xf]
    %v7296 = vld [vmem:[%s7189 + $0x1a8] sm:$0xf]
    %v7297 = vld [vmem:[%s7189 + $0x1ac] sm:$0xf]
    %v7298 = vld [vmem:[%s7189 + $0x1b0] sm:$0xf]
    %v7299 = vld [vmem:[%s7189 + $0x1b4] sm:$0xf]
    %v7300 = vld [vmem:[%s7189 + $0x1b8] sm:$0xf]
    %v7301 = vld [vmem:[%s7189 + $0x1bc] sm:$0xf]
    %v7302 = vld [vmem:[%s7189 + $0x1c0] sm:$0xf]
    %v7303 = vld [vmem:[%s7189 + $0x1c4] sm:$0xf]
    %v7304 = vld [vmem:[%s7189 + $0x1c8] sm:$0xf]
    %v7305 = vld [vmem:[%s7189 + $0x1cc] sm:$0xf]
    %v7306 = vld [vmem:[%s7189 + $0x1d0] sm:$0xf]
    %v7307 = vld [vmem:[%s7189 + $0x1d4] sm:$0xf]
    %v7308 = vld [vmem:[%s7189 + $0x1d8] sm:$0xf]
    %v7309 = vld [vmem:[%s7189 + $0x1dc] sm:$0xf]
    %v7310 = vld [vmem:[%s7189 + $0x1e0] sm:$0xf]
    %v7311 = vld [vmem:[%s7189 + $0x1e4] sm:$0xf]
    %v7312 = vld [vmem:[%s7189 + $0x1e8] sm:$0xf]
    %v7313 = vld [vmem:[%s7189 + $0x1ec] sm:$0xf]
    %v7314 = vld [vmem:[%s7189 + $0x1f0] sm:$0xf]
    %v7315 = vld [vmem:[%s7189 + $0x1f4] sm:$0xf]
    %v7316 = vld [vmem:[%s7189 + $0x1f8] sm:$0xf]
    %v7317 = vld [vmem:[%s7189 + $0x1fc] sm:$0xf]
    %s7318 = scalar_lea.vmem [#allocation14], 4
    %v7319 = vld [vmem:[%s7318] sm:$0x1]
    %v7321 = vlaneseq
    %v7322 = vshrl.u32 %v7321, 7
    %v7323 = vsub.s32 0, %v7322
    %v7324 = vrot.slane %v7319, %v7323
    %v7454 = vunpack.c.l.b16 %v7190
    %v7455 = vunpack.c.l.b16 %v7191
    %v7456 = vunpack.c.l.b16 %v7192
    %v7457 = vunpack.c.l.b16 %v7193
    %v7458 = vunpack.c.l.b16 %v7194
    %v7459 = vunpack.c.l.b16 %v7195
    %v7460 = vunpack.c.l.b16 %v7196
    %v7461 = vunpack.c.l.b16 %v7197
    %v7462 = vunpack.c.l.b16 %v7198
    %v7463 = vunpack.c.l.b16 %v7199
    %v7464 = vunpack.c.l.b16 %v7200
    %v7465 = vunpack.c.l.b16 %v7201
    %v7466 = vunpack.c.l.b16 %v7202
    %v7467 = vunpack.c.l.b16 %v7203
    %v7468 = vunpack.c.l.b16 %v7204
    %v7469 = vunpack.c.l.b16 %v7205
    %v7470 = vunpack.c.l.b16 %v7206
    %v7471 = vunpack.c.l.b16 %v7207
    %v7472 = vunpack.c.l.b16 %v7208
    %v7473 = vunpack.c.l.b16 %v7209
    %v7474 = vunpack.c.l.b16 %v7210
    %v7475 = vunpack.c.l.b16 %v7211
    %v7476 = vunpack.c.l.b16 %v7212
    %v7477 = vunpack.c.l.b16 %v7213
    %v7478 = vunpack.c.l.b16 %v7214
    %v7479 = vunpack.c.l.b16 %v7215
    %v7480 = vunpack.c.l.b16 %v7216
    %v7481 = vunpack.c.l.b16 %v7217
    %v7482 = vunpack.c.l.b16 %v7218
    %v7483 = vunpack.c.l.b16 %v7219
    %v7484 = vunpack.c.l.b16 %v7220
    %v7485 = vunpack.c.l.b16 %v7221
    %v7486 = vunpack.c.l.b16 %v7222
    %v7487 = vunpack.c.l.b16 %v7223
    %v7488 = vunpack.c.l.b16 %v7224
    %v7489 = vunpack.c.l.b16 %v7225
    %v7490 = vunpack.c.l.b16 %v7226
    %v7491 = vunpack.c.l.b16 %v7227
    %v7492 = vunpack.c.l.b16 %v7228
    %v7493 = vunpack.c.l.b16 %v7229
    %v7494 = vunpack.c.l.b16 %v7230
    %v7495 = vunpack.c.l.b16 %v7231
    %v7496 = vunpack.c.l.b16 %v7232
    %v7497 = vunpack.c.l.b16 %v7233
    %v7498 = vunpack.c.l.b16 %v7234
    %v7499 = vunpack.c.l.b16 %v7235
    %v7500 = vunpack.c.l.b16 %v7236
    %v7501 = vunpack.c.l.b16 %v7237
    %v7502 = vunpack.c.l.b16 %v7238
    %v7503 = vunpack.c.l.b16 %v7239
    %v7504 = vunpack.c.l.b16 %v7240
    %v7505 = vunpack.c.l.b16 %v7241
    %v7506 = vunpack.c.l.b16 %v7242
    %v7507 = vunpack.c.l.b16 %v7243
    %v7508 = vunpack.c.l.b16 %v7244
    %v7509 = vunpack.c.l.b16 %v7245
    %v7510 = vunpack.c.l.b16 %v7246
    %v7511 = vunpack.c.l.b16 %v7247
    %v7512 = vunpack.c.l.b16 %v7248
    %v7513 = vunpack.c.l.b16 %v7249
    %v7514 = vunpack.c.l.b16 %v7250
    %v7515 = vunpack.c.l.b16 %v7251
    %v7516 = vunpack.c.l.b16 %v7252
    %v7517 = vunpack.c.l.b16 %v7253
    %v7518 = vunpack.c.l.b16 %v7254
    %v7519 = vunpack.c.l.b16 %v7255
    %v7520 = vunpack.c.l.b16 %v7256
    %v7521 = vunpack.c.l.b16 %v7257
    %v7522 = vunpack.c.l.b16 %v7258
    %v7523 = vunpack.c.l.b16 %v7259
    %v7524 = vunpack.c.l.b16 %v7260
    %v7525 = vunpack.c.l.b16 %v7261
    %v7526 = vunpack.c.l.b16 %v7262
    %v7527 = vunpack.c.l.b16 %v7263
    %v7528 = vunpack.c.l.b16 %v7264
    %v7529 = vunpack.c.l.b16 %v7265
    %v7530 = vunpack.c.l.b16 %v7266
    %v7531 = vunpack.c.l.b16 %v7267
    %v7532 = vunpack.c.l.b16 %v7268
    %v7533 = vunpack.c.l.b16 %v7269
    %v7534 = vunpack.c.l.b16 %v7270
    %v7535 = vunpack.c.l.b16 %v7271
    %v7536 = vunpack.c.l.b16 %v7272
    %v7537 = vunpack.c.l.b16 %v7273
    %v7538 = vunpack.c.l.b16 %v7274
    %v7539 = vunpack.c.l.b16 %v7275
    %v7540 = vunpack.c.l.b16 %v7276
    %v7541 = vunpack.c.l.b16 %v7277
    %v7542 = vunpack.c.l.b16 %v7278
    %v7543 = vunpack.c.l.b16 %v7279
    %v7544 = vunpack.c.l.b16 %v7280
    %v7545 = vunpack.c.l.b16 %v7281
    %v7546 = vunpack.c.l.b16 %v7282
    %v7547 = vunpack.c.l.b16 %v7283
    %v7548 = vunpack.c.l.b16 %v7284
    %v7549 = vunpack.c.l.b16 %v7285
    %v7550 = vunpack.c.l.b16 %v7286
    %v7551 = vunpack.c.l.b16 %v7287
    %v7552 = vunpack.c.l.b16 %v7288
    %v7553 = vunpack.c.l.b16 %v7289
    %v7554 = vunpack.c.l.b16 %v7290
    %v7555 = vunpack.c.l.b16 %v7291
    %v7556 = vunpack.c.l.b16 %v7292
    %v7557 = vunpack.c.l.b16 %v7293
    %v7558 = vunpack.c.l.b16 %v7294
    %v7559 = vunpack.c.l.b16 %v7295
    %v7560 = vunpack.c.l.b16 %v7296
    %v7561 = vunpack.c.l.b16 %v7297
    %v7562 = vunpack.c.l.b16 %v7298
    %v7563 = vunpack.c.l.b16 %v7299
    %v7564 = vunpack.c.l.b16 %v7300
    %v7565 = vunpack.c.l.b16 %v7301
    %v7566 = vunpack.c.l.b16 %v7302
    %v7567 = vunpack.c.l.b16 %v7303
    %v7568 = vunpack.c.l.b16 %v7304
    %v7569 = vunpack.c.l.b16 %v7305
    %v7570 = vunpack.c.l.b16 %v7306
    %v7571 = vunpack.c.l.b16 %v7307
    %v7572 = vunpack.c.l.b16 %v7308
    %v7573 = vunpack.c.l.b16 %v7309
    %v7574 = vunpack.c.l.b16 %v7310
    %v7575 = vunpack.c.l.b16 %v7311
    %v7576 = vunpack.c.l.b16 %v7312
    %v7577 = vunpack.c.l.b16 %v7313
    %v7578 = vunpack.c.l.b16 %v7314
    %v7579 = vunpack.c.l.b16 %v7315
    %v7580 = vunpack.c.l.b16 %v7316
    %v7581 = vunpack.c.l.b16 %v7317
    %v7582 = vpack.c.b16 %v7455, %v7454
    %v7583 = vpack.c.b16 %v7457, %v7456
    %v7584 = vpack.c.b16 %v7459, %v7458
    %v7585 = vpack.c.b16 %v7461, %v7460
    %v7586 = vpack.c.b16 %v7463, %v7462
    %v7587 = vpack.c.b16 %v7465, %v7464
    %v7588 = vpack.c.b16 %v7467, %v7466
    %v7589 = vpack.c.b16 %v7469, %v7468
    %v7590 = vpack.c.b16 %v7471, %v7470
    %v7591 = vpack.c.b16 %v7473, %v7472
    %v7592 = vpack.c.b16 %v7475, %v7474
    %v7593 = vpack.c.b16 %v7477, %v7476
    %v7594 = vpack.c.b16 %v7479, %v7478
    %v7595 = vpack.c.b16 %v7481, %v7480
    %v7596 = vpack.c.b16 %v7483, %v7482
    %v7597 = vpack.c.b16 %v7485, %v7484
    %v7598 = vpack.c.b16 %v7487, %v7486
    %v7599 = vpack.c.b16 %v7489, %v7488
    %v7600 = vpack.c.b16 %v7491, %v7490
    %v7601 = vpack.c.b16 %v7493, %v7492
    %v7602 = vpack.c.b16 %v7495, %v7494
    %v7603 = vpack.c.b16 %v7497, %v7496
    %v7604 = vpack.c.b16 %v7499, %v7498
    %v7605 = vpack.c.b16 %v7501, %v7500
    %v7606 = vpack.c.b16 %v7503, %v7502
    %v7607 = vpack.c.b16 %v7505, %v7504
    %v7608 = vpack.c.b16 %v7507, %v7506
    %v7609 = vpack.c.b16 %v7509, %v7508
    %v7610 = vpack.c.b16 %v7511, %v7510
    %v7611 = vpack.c.b16 %v7513, %v7512
    %v7612 = vpack.c.b16 %v7515, %v7514
    %v7613 = vpack.c.b16 %v7517, %v7516
    %v7614 = vpack.c.b16 %v7519, %v7518
    %v7615 = vpack.c.b16 %v7521, %v7520
    %v7616 = vpack.c.b16 %v7523, %v7522
    %v7617 = vpack.c.b16 %v7525, %v7524
    %v7618 = vpack.c.b16 %v7527, %v7526
    %v7619 = vpack.c.b16 %v7529, %v7528
    %v7620 = vpack.c.b16 %v7531, %v7530
    %v7621 = vpack.c.b16 %v7533, %v7532
    %v7622 = vpack.c.b16 %v7535, %v7534
    %v7623 = vpack.c.b16 %v7537, %v7536
    %v7624 = vpack.c.b16 %v7539, %v7538
    %v7625 = vpack.c.b16 %v7541, %v7540
    %v7626 = vpack.c.b16 %v7543, %v7542
    %v7627 = vpack.c.b16 %v7545, %v7544
    %v7628 = vpack.c.b16 %v7547, %v7546
    %v7629 = vpack.c.b16 %v7549, %v7548
    %v7630 = vpack.c.b16 %v7551, %v7550
    %v7631 = vpack.c.b16 %v7553, %v7552
    %v7632 = vpack.c.b16 %v7555, %v7554
    %v7633 = vpack.c.b16 %v7557, %v7556
    %v7634 = vpack.c.b16 %v7559, %v7558
    %v7635 = vpack.c.b16 %v7561, %v7560
    %v7636 = vpack.c.b16 %v7563, %v7562
    %v7637 = vpack.c.b16 %v7565, %v7564
    %v7638 = vpack.c.b16 %v7567, %v7566
    %v7639 = vpack.c.b16 %v7569, %v7568
    %v7640 = vpack.c.b16 %v7571, %v7570
    %v7641 = vpack.c.b16 %v7573, %v7572
    %v7642 = vpack.c.b16 %v7575, %v7574
    %v7643 = vpack.c.b16 %v7577, %v7576
    %v7644 = vpack.c.b16 %v7579, %v7578
    %v7645 = vpack.c.b16 %v7581, %v7580
    %7710 = vmatprep.subr.bf16.mxu0 0
    %7711 = vmatpush1.bf16.msra.mxu0 %v7589
    %7712 = vmatprep.subr.bf16.mxu0 0
    %7713 = vmatpush1.bf16.msra.mxu0 %v7588
    %7714 = vmatprep.subr.bf16.mxu0 0
    %7715 = vmatpush1.bf16.msra.mxu0 %v7587
    %7716 = vmatprep.subr.bf16.mxu0 0
    %7717 = vmatpush1.bf16.msra.mxu0 %v7586
    %7718 = vmatprep.subr.bf16.mxu0 0
    %7719 = vmatpush1.bf16.msra.mxu0 %v7585
    %7720 = vmatprep.subr.bf16.mxu0 0
    %7721 = vmatpush1.bf16.msra.mxu0 %v7584
    %7722 = vmatprep.subr.bf16.mxu0 0
    %7723 = vmatpush1.bf16.msra.mxu0 %v7583
    %7724 = vmatprep.subr.bf16.mxu0 0
    %7725 = vmatpush1.bf16.msra.mxu0 %v7582
    %7726 = vmatprep.subr.bf16.mxu0 0
    %7727 = vmatpush2.bf16.msra.mxu0 %v7597
    %7728 = vmatprep.subr.bf16.mxu0 0
    %7729 = vmatpush2.bf16.msra.mxu0 %v7596
    %7730 = vmatprep.subr.bf16.mxu0 0
    %7731 = vmatpush2.bf16.msra.mxu0 %v7595
    %7732 = vmatprep.subr.bf16.mxu0 0
    %7733 = vmatpush2.bf16.msra.mxu0 %v7594
    %7734 = vmatprep.subr.bf16.mxu0 0
    %7735 = vmatpush2.bf16.msra.mxu0 %v7593
    %7736 = vmatprep.subr.bf16.mxu0 0
    %7737 = vmatpush2.bf16.msra.mxu0 %v7592
    %7738 = vmatprep.subr.bf16.mxu0 0
    %7739 = vmatpush2.bf16.msra.mxu0 %v7591
    %7740 = vmatprep.subr.bf16.mxu0 0
    %7741 = vmatpush2.bf16.msra.mxu0 %v7590
    %7742 = vmatprep.mubr.bf16.mxu0 %v4444
    %7743 = vmatmul.mubr.bf16.gmra.mxu0 %v4443
    %v7744 = vpop.f32.mrf.mxu0
    %v7745 = vadd.f32 %v7324, %v7744
    %v7746 = vpop.f32.mrf.mxu0
    %v7747 = vpop.f32.mrf.mxu0
    %v7748 = vpop.f32.mrf.mxu0
    %7749 = vdwg.mxu0
    %7750 = vmatprep.subr.bf16.mxu0 0
    %7751 = vmatpush1.bf16.msra.mxu0 %v7605
    %7752 = vmatprep.subr.bf16.mxu0 0
    %7753 = vmatpush1.bf16.msra.mxu0 %v7604
    %7754 = vmatprep.subr.bf16.mxu0 0
    %7755 = vmatpush1.bf16.msra.mxu0 %v7603
    %7756 = vmatprep.subr.bf16.mxu0 0
    %7757 = vmatpush1.bf16.msra.mxu0 %v7602
    %7758 = vmatprep.subr.bf16.mxu0 0
    %7759 = vmatpush1.bf16.msra.mxu0 %v7601
    %7760 = vmatprep.subr.bf16.mxu0 0
    %7761 = vmatpush1.bf16.msra.mxu0 %v7600
    %7762 = vmatprep.subr.bf16.mxu0 0
    %7763 = vmatpush1.bf16.msra.mxu0 %v7599
    %7764 = vmatprep.subr.bf16.mxu0 0
    %7765 = vmatpush1.bf16.msra.mxu0 %v7598
    %7766 = vmatprep.subr.bf16.mxu0 0
    %7767 = vmatpush2.bf16.msra.mxu0 %v7613
    %7768 = vmatprep.subr.bf16.mxu0 0
    %7769 = vmatpush2.bf16.msra.mxu0 %v7612
    %7770 = vmatprep.subr.bf16.mxu0 0
    %7771 = vmatpush2.bf16.msra.mxu0 %v7611
    %7772 = vmatprep.subr.bf16.mxu0 0
    %7773 = vmatpush2.bf16.msra.mxu0 %v7610
    %7774 = vmatprep.subr.bf16.mxu0 0
    %7775 = vmatpush2.bf16.msra.mxu0 %v7609
    %7776 = vmatprep.subr.bf16.mxu0 0
    %7777 = vmatpush2.bf16.msra.mxu0 %v7608
    %7778 = vmatprep.subr.bf16.mxu0 0
    %7779 = vmatpush2.bf16.msra.mxu0 %v7607
    %7780 = vmatprep.subr.bf16.mxu0 0
    %7781 = vmatpush2.bf16.msra.mxu0 %v7606
    %7782 = vmatprep.mubr.bf16.mxu0 %v4446
    %7783 = vmatmul.mubr.bf16.gmra.mxu0 %v4445
    %v7784 = vpop.f32.mrf.mxu0
    %v7785 = vadd.f32 %v7745, %v7784
    %v7786 = vpop.f32.mrf.mxu0
    %v7787 = vpop.f32.mrf.mxu0
    %v7788 = vpop.f32.mrf.mxu0
    %7789 = vdwg.mxu0
    %7790 = vmatprep.subr.bf16.mxu0 0
    %7791 = vmatpush1.bf16.msra.mxu0 %v7621
    %7792 = vmatprep.subr.bf16.mxu0 0
    %7793 = vmatpush1.bf16.msra.mxu0 %v7620
    %7794 = vmatprep.subr.bf16.mxu0 0
    %7795 = vmatpush1.bf16.msra.mxu0 %v7619
    %7796 = vmatprep.subr.bf16.mxu0 0
    %7797 = vmatpush1.bf16.msra.mxu0 %v7618
    %7798 = vmatprep.subr.bf16.mxu0 0
    %7799 = vmatpush1.bf16.msra.mxu0 %v7617
    %7800 = vmatprep.subr.bf16.mxu0 0
    %7801 = vmatpush1.bf16.msra.mxu0 %v7616
    %7802 = vmatprep.subr.bf16.mxu0 0
    %7803 = vmatpush1.bf16.msra.mxu0 %v7615
    %7804 = vmatprep.subr.bf16.mxu0 0
    %7805 = vmatpush1.bf16.msra.mxu0 %v7614
    %7806 = vmatprep.subr.bf16.mxu0 0
    %7807 = vmatpush2.bf16.msra.mxu0 %v7629
    %7808 = vmatprep.subr.bf16.mxu0 0
    %7809 = vmatpush2.bf16.msra.mxu0 %v7628
    %7810 = vmatprep.subr.bf16.mxu0 0
    %7811 = vmatpush2.bf16.msra.mxu0 %v7627
    %7812 = vmatprep.subr.bf16.mxu0 0
    %7813 = vmatpush2.bf16.msra.mxu0 %v7626
    %7814 = vmatprep.subr.bf16.mxu0 0
    %7815 = vmatpush2.bf16.msra.mxu0 %v7625
    %7816 = vmatprep.subr.bf16.mxu0 0
    %7817 = vmatpush2.bf16.msra.mxu0 %v7624
    %7818 = vmatprep.subr.bf16.mxu0 0
    %7819 = vmatpush2.bf16.msra.mxu0 %v7623
    %7820 = vmatprep.subr.bf16.mxu0 0
    %7821 = vmatpush2.bf16.msra.mxu0 %v7622
    %7822 = vmatprep.mubr.bf16.mxu0 %v4448
    %7823 = vmatmul.mubr.bf16.gmra.mxu0 %v4447
    %v7824 = vpop.f32.mrf.mxu0
    %v7825 = vadd.f32 %v7785, %v7824
    %v7826 = vpop.f32.mrf.mxu0
    %v7827 = vpop.f32.mrf.mxu0
    %v7828 = vpop.f32.mrf.mxu0
    %7829 = vdwg.mxu0
    %7830 = vmatprep.subr.bf16.mxu0 0
    %7831 = vmatpush1.bf16.msra.mxu0 %v7637
    %7832 = vmatprep.subr.bf16.mxu0 0
    %7833 = vmatpush1.bf16.msra.mxu0 %v7636
    %7834 = vmatprep.subr.bf16.mxu0 0
    %7835 = vmatpush1.bf16.msra.mxu0 %v7635
    %7836 = vmatprep.subr.bf16.mxu0 0
    %7837 = vmatpush1.bf16.msra.mxu0 %v7634
    %7838 = vmatprep.subr.bf16.mxu0 0
    %7839 = vmatpush1.bf16.msra.mxu0 %v7633
    %7840 = vmatprep.subr.bf16.mxu0 0
    %7841 = vmatpush1.bf16.msra.mxu0 %v7632
    %7842 = vmatprep.subr.bf16.mxu0 0
    %7843 = vmatpush1.bf16.msra.mxu0 %v7631
    %7844 = vmatprep.subr.bf16.mxu0 0
    %7845 = vmatpush1.bf16.msra.mxu0 %v7630
    %7846 = vmatprep.subr.bf16.mxu0 0
    %7847 = vmatpush2.bf16.msra.mxu0 %v7645
    %7848 = vmatprep.subr.bf16.mxu0 0
    %7849 = vmatpush2.bf16.msra.mxu0 %v7644
    %7850 = vmatprep.subr.bf16.mxu0 0
    %7851 = vmatpush2.bf16.msra.mxu0 %v7643
    %7852 = vmatprep.subr.bf16.mxu0 0
    %7853 = vmatpush2.bf16.msra.mxu0 %v7642
    %7854 = vmatprep.subr.bf16.mxu0 0
    %7855 = vmatpush2.bf16.msra.mxu0 %v7641
    %7856 = vmatprep.subr.bf16.mxu0 0
    %7857 = vmatpush2.bf16.msra.mxu0 %v7640
    %7858 = vmatprep.subr.bf16.mxu0 0
    %7859 = vmatpush2.bf16.msra.mxu0 %v7639
    %7860 = vmatprep.subr.bf16.mxu0 0
    %7861 = vmatpush2.bf16.msra.mxu0 %v7638
    %7862 = vmatprep.mubr.bf16.mxu0 %v4450
    %7863 = vmatmul.mubr.bf16.gmra.mxu0 %v4449
    %v7864 = vpop.f32.mrf.mxu0
    %v7865 = vadd.f32 %v7825, %v7864
    %v7866 = vpop.f32.mrf.mxu0
    %v7867 = vpop.f32.mrf.mxu0
    %v7868 = vpop.f32.mrf.mxu0
    %7869 = vdwg.mxu0
    %vm7870 = vcmp.gt.f32.partialorder %v7865, 0.0
    %v7871 = vmul.f32 %v7865, 0.2
    %v7872 = vsel %vm7870, %v7865, %v7871
    %7873 = vst [vmem:[#allocation2 + $0x8] sm:$0x3] %v7872
    %s7874 = scalar_lea.vmem [#allocation12], 2560
    %v7875 = vld [vmem:[%s7874] sm:$0xf]
    %v7876 = vld [vmem:[%s7874 + $0x4] sm:$0xf]
    %v7877 = vld [vmem:[%s7874 + $0x8] sm:$0xf]
    %v7878 = vld [vmem:[%s7874 + $0xc] sm:$0xf]
    %v7879 = vld [vmem:[%s7874 + $0x10] sm:$0xf]
    %v7880 = vld [vmem:[%s7874 + $0x14] sm:$0xf]
    %v7881 = vld [vmem:[%s7874 + $0x18] sm:$0xf]
    %v7882 = vld [vmem:[%s7874 + $0x1c] sm:$0xf]
    %v7883 = vld [vmem:[%s7874 + $0x20] sm:$0xf]
    %v7884 = vld [vmem:[%s7874 + $0x24] sm:$0xf]
    %v7885 = vld [vmem:[%s7874 + $0x28] sm:$0xf]
    %v7886 = vld [vmem:[%s7874 + $0x2c] sm:$0xf]
    %v7887 = vld [vmem:[%s7874 + $0x30] sm:$0xf]
    %v7888 = vld [vmem:[%s7874 + $0x34] sm:$0xf]
    %v7889 = vld [vmem:[%s7874 + $0x38] sm:$0xf]
    %v7890 = vld [vmem:[%s7874 + $0x3c] sm:$0xf]
    %v7891 = vld [vmem:[%s7874 + $0x40] sm:$0xf]
    %v7892 = vld [vmem:[%s7874 + $0x44] sm:$0xf]
    %v7893 = vld [vmem:[%s7874 + $0x48] sm:$0xf]
    %v7894 = vld [vmem:[%s7874 + $0x4c] sm:$0xf]
    %v7895 = vld [vmem:[%s7874 + $0x50] sm:$0xf]
    %v7896 = vld [vmem:[%s7874 + $0x54] sm:$0xf]
    %v7897 = vld [vmem:[%s7874 + $0x58] sm:$0xf]
    %v7898 = vld [vmem:[%s7874 + $0x5c] sm:$0xf]
    %v7899 = vld [vmem:[%s7874 + $0x60] sm:$0xf]
    %v7900 = vld [vmem:[%s7874 + $0x64] sm:$0xf]
    %v7901 = vld [vmem:[%s7874 + $0x68] sm:$0xf]
    %v7902 = vld [vmem:[%s7874 + $0x6c] sm:$0xf]
    %v7903 = vld [vmem:[%s7874 + $0x70] sm:$0xf]
    %v7904 = vld [vmem:[%s7874 + $0x74] sm:$0xf]
    %v7905 = vld [vmem:[%s7874 + $0x78] sm:$0xf]
    %v7906 = vld [vmem:[%s7874 + $0x7c] sm:$0xf]
    %v7907 = vld [vmem:[%s7874 + $0x80] sm:$0xf]
    %v7908 = vld [vmem:[%s7874 + $0x84] sm:$0xf]
    %v7909 = vld [vmem:[%s7874 + $0x88] sm:$0xf]
    %v7910 = vld [vmem:[%s7874 + $0x8c] sm:$0xf]
    %v7911 = vld [vmem:[%s7874 + $0x90] sm:$0xf]
    %v7912 = vld [vmem:[%s7874 + $0x94] sm:$0xf]
    %v7913 = vld [vmem:[%s7874 + $0x98] sm:$0xf]
    %v7914 = vld [vmem:[%s7874 + $0x9c] sm:$0xf]
    %v7915 = vld [vmem:[%s7874 + $0xa0] sm:$0xf]
    %v7916 = vld [vmem:[%s7874 + $0xa4] sm:$0xf]
    %v7917 = vld [vmem:[%s7874 + $0xa8] sm:$0xf]
    %v7918 = vld [vmem:[%s7874 + $0xac] sm:$0xf]
    %v7919 = vld [vmem:[%s7874 + $0xb0] sm:$0xf]
    %v7920 = vld [vmem:[%s7874 + $0xb4] sm:$0xf]
    %v7921 = vld [vmem:[%s7874 + $0xb8] sm:$0xf]
    %v7922 = vld [vmem:[%s7874 + $0xbc] sm:$0xf]
    %v7923 = vld [vmem:[%s7874 + $0xc0] sm:$0xf]
    %v7924 = vld [vmem:[%s7874 + $0xc4] sm:$0xf]
    %v7925 = vld [vmem:[%s7874 + $0xc8] sm:$0xf]
    %v7926 = vld [vmem:[%s7874 + $0xcc] sm:$0xf]
    %v7927 = vld [vmem:[%s7874 + $0xd0] sm:$0xf]
    %v7928 = vld [vmem:[%s7874 + $0xd4] sm:$0xf]
    %v7929 = vld [vmem:[%s7874 + $0xd8] sm:$0xf]
    %v7930 = vld [vmem:[%s7874 + $0xdc] sm:$0xf]
    %v7931 = vld [vmem:[%s7874 + $0xe0] sm:$0xf]
    %v7932 = vld [vmem:[%s7874 + $0xe4] sm:$0xf]
    %v7933 = vld [vmem:[%s7874 + $0xe8] sm:$0xf]
    %v7934 = vld [vmem:[%s7874 + $0xec] sm:$0xf]
    %v7935 = vld [vmem:[%s7874 + $0xf0] sm:$0xf]
    %v7936 = vld [vmem:[%s7874 + $0xf4] sm:$0xf]
    %v7937 = vld [vmem:[%s7874 + $0xf8] sm:$0xf]
    %v7938 = vld [vmem:[%s7874 + $0xfc] sm:$0xf]
    %v7939 = vld [vmem:[%s7874 + $0x100] sm:$0xf]
    %v7940 = vld [vmem:[%s7874 + $0x104] sm:$0xf]
    %v7941 = vld [vmem:[%s7874 + $0x108] sm:$0xf]
    %v7942 = vld [vmem:[%s7874 + $0x10c] sm:$0xf]
    %v7943 = vld [vmem:[%s7874 + $0x110] sm:$0xf]
    %v7944 = vld [vmem:[%s7874 + $0x114] sm:$0xf]
    %v7945 = vld [vmem:[%s7874 + $0x118] sm:$0xf]
    %v7946 = vld [vmem:[%s7874 + $0x11c] sm:$0xf]
    %v7947 = vld [vmem:[%s7874 + $0x120] sm:$0xf]
    %v7948 = vld [vmem:[%s7874 + $0x124] sm:$0xf]
    %v7949 = vld [vmem:[%s7874 + $0x128] sm:$0xf]
    %v7950 = vld [vmem:[%s7874 + $0x12c] sm:$0xf]
    %v7951 = vld [vmem:[%s7874 + $0x130] sm:$0xf]
    %v7952 = vld [vmem:[%s7874 + $0x134] sm:$0xf]
    %v7953 = vld [vmem:[%s7874 + $0x138] sm:$0xf]
    %v7954 = vld [vmem:[%s7874 + $0x13c] sm:$0xf]
    %v7955 = vld [vmem:[%s7874 + $0x140] sm:$0xf]
    %v7956 = vld [vmem:[%s7874 + $0x144] sm:$0xf]
    %v7957 = vld [vmem:[%s7874 + $0x148] sm:$0xf]
    %v7958 = vld [vmem:[%s7874 + $0x14c] sm:$0xf]
    %v7959 = vld [vmem:[%s7874 + $0x150] sm:$0xf]
    %v7960 = vld [vmem:[%s7874 + $0x154] sm:$0xf]
    %v7961 = vld [vmem:[%s7874 + $0x158] sm:$0xf]
    %v7962 = vld [vmem:[%s7874 + $0x15c] sm:$0xf]
    %v7963 = vld [vmem:[%s7874 + $0x160] sm:$0xf]
    %v7964 = vld [vmem:[%s7874 + $0x164] sm:$0xf]
    %v7965 = vld [vmem:[%s7874 + $0x168] sm:$0xf]
    %v7966 = vld [vmem:[%s7874 + $0x16c] sm:$0xf]
    %v7967 = vld [vmem:[%s7874 + $0x170] sm:$0xf]
    %v7968 = vld [vmem:[%s7874 + $0x174] sm:$0xf]
    %v7969 = vld [vmem:[%s7874 + $0x178] sm:$0xf]
    %v7970 = vld [vmem:[%s7874 + $0x17c] sm:$0xf]
    %v7971 = vld [vmem:[%s7874 + $0x180] sm:$0xf]
    %v7972 = vld [vmem:[%s7874 + $0x184] sm:$0xf]
    %v7973 = vld [vmem:[%s7874 + $0x188] sm:$0xf]
    %v7974 = vld [vmem:[%s7874 + $0x18c] sm:$0xf]
    %v7975 = vld [vmem:[%s7874 + $0x190] sm:$0xf]
    %v7976 = vld [vmem:[%s7874 + $0x194] sm:$0xf]
    %v7977 = vld [vmem:[%s7874 + $0x198] sm:$0xf]
    %v7978 = vld [vmem:[%s7874 + $0x19c] sm:$0xf]
    %v7979 = vld [vmem:[%s7874 + $0x1a0] sm:$0xf]
    %v7980 = vld [vmem:[%s7874 + $0x1a4] sm:$0xf]
    %v7981 = vld [vmem:[%s7874 + $0x1a8] sm:$0xf]
    %v7982 = vld [vmem:[%s7874 + $0x1ac] sm:$0xf]
    %v7983 = vld [vmem:[%s7874 + $0x1b0] sm:$0xf]
    %v7984 = vld [vmem:[%s7874 + $0x1b4] sm:$0xf]
    %v7985 = vld [vmem:[%s7874 + $0x1b8] sm:$0xf]
    %v7986 = vld [vmem:[%s7874 + $0x1bc] sm:$0xf]
    %v7987 = vld [vmem:[%s7874 + $0x1c0] sm:$0xf]
    %v7988 = vld [vmem:[%s7874 + $0x1c4] sm:$0xf]
    %v7989 = vld [vmem:[%s7874 + $0x1c8] sm:$0xf]
    %v7990 = vld [vmem:[%s7874 + $0x1cc] sm:$0xf]
    %v7991 = vld [vmem:[%s7874 + $0x1d0] sm:$0xf]
    %v7992 = vld [vmem:[%s7874 + $0x1d4] sm:$0xf]
    %v7993 = vld [vmem:[%s7874 + $0x1d8] sm:$0xf]
    %v7994 = vld [vmem:[%s7874 + $0x1dc] sm:$0xf]
    %v7995 = vld [vmem:[%s7874 + $0x1e0] sm:$0xf]
    %v7996 = vld [vmem:[%s7874 + $0x1e4] sm:$0xf]
    %v7997 = vld [vmem:[%s7874 + $0x1e8] sm:$0xf]
    %v7998 = vld [vmem:[%s7874 + $0x1ec] sm:$0xf]
    %v7999 = vld [vmem:[%s7874 + $0x1f0] sm:$0xf]
    %v8000 = vld [vmem:[%s7874 + $0x1f4] sm:$0xf]
    %v8001 = vld [vmem:[%s7874 + $0x1f8] sm:$0xf]
    %v8002 = vld [vmem:[%s7874 + $0x1fc] sm:$0xf]
    %s8003 = scalar_lea.vmem [#allocation14], 5
    %v8004 = vld [vmem:[%s8003] sm:$0x1]
    %v8006 = vlaneseq
    %v8007 = vshrl.u32 %v8006, 7
    %v8008 = vsub.s32 0, %v8007
    %v8009 = vrot.slane %v8004, %v8008
    %v8139 = vunpack.c.l.b16 %v7875
    %v8140 = vunpack.c.l.b16 %v7876
    %v8141 = vunpack.c.l.b16 %v7877
    %v8142 = vunpack.c.l.b16 %v7878
    %v8143 = vunpack.c.l.b16 %v7879
    %v8144 = vunpack.c.l.b16 %v7880
    %v8145 = vunpack.c.l.b16 %v7881
    %v8146 = vunpack.c.l.b16 %v7882
    %v8147 = vunpack.c.l.b16 %v7883
    %v8148 = vunpack.c.l.b16 %v7884
    %v8149 = vunpack.c.l.b16 %v7885
    %v8150 = vunpack.c.l.b16 %v7886
    %v8151 = vunpack.c.l.b16 %v7887
    %v8152 = vunpack.c.l.b16 %v7888
    %v8153 = vunpack.c.l.b16 %v7889
    %v8154 = vunpack.c.l.b16 %v7890
    %v8155 = vunpack.c.l.b16 %v7891
    %v8156 = vunpack.c.l.b16 %v7892
    %v8157 = vunpack.c.l.b16 %v7893
    %v8158 = vunpack.c.l.b16 %v7894
    %v8159 = vunpack.c.l.b16 %v7895
    %v8160 = vunpack.c.l.b16 %v7896
    %v8161 = vunpack.c.l.b16 %v7897
    %v8162 = vunpack.c.l.b16 %v7898
    %v8163 = vunpack.c.l.b16 %v7899
    %v8164 = vunpack.c.l.b16 %v7900
    %v8165 = vunpack.c.l.b16 %v7901
    %v8166 = vunpack.c.l.b16 %v7902
    %v8167 = vunpack.c.l.b16 %v7903
    %v8168 = vunpack.c.l.b16 %v7904
    %v8169 = vunpack.c.l.b16 %v7905
    %v8170 = vunpack.c.l.b16 %v7906
    %v8171 = vunpack.c.l.b16 %v7907
    %v8172 = vunpack.c.l.b16 %v7908
    %v8173 = vunpack.c.l.b16 %v7909
    %v8174 = vunpack.c.l.b16 %v7910
    %v8175 = vunpack.c.l.b16 %v7911
    %v8176 = vunpack.c.l.b16 %v7912
    %v8177 = vunpack.c.l.b16 %v7913
    %v8178 = vunpack.c.l.b16 %v7914
    %v8179 = vunpack.c.l.b16 %v7915
    %v8180 = vunpack.c.l.b16 %v7916
    %v8181 = vunpack.c.l.b16 %v7917
    %v8182 = vunpack.c.l.b16 %v7918
    %v8183 = vunpack.c.l.b16 %v7919
    %v8184 = vunpack.c.l.b16 %v7920
    %v8185 = vunpack.c.l.b16 %v7921
    %v8186 = vunpack.c.l.b16 %v7922
    %v8187 = vunpack.c.l.b16 %v7923
    %v8188 = vunpack.c.l.b16 %v7924
    %v8189 = vunpack.c.l.b16 %v7925
    %v8190 = vunpack.c.l.b16 %v7926
    %v8191 = vunpack.c.l.b16 %v7927
    %v8192 = vunpack.c.l.b16 %v7928
    %v8193 = vunpack.c.l.b16 %v7929
    %v8194 = vunpack.c.l.b16 %v7930
    %v8195 = vunpack.c.l.b16 %v7931
    %v8196 = vunpack.c.l.b16 %v7932
    %v8197 = vunpack.c.l.b16 %v7933
    %v8198 = vunpack.c.l.b16 %v7934
    %v8199 = vunpack.c.l.b16 %v7935
    %v8200 = vunpack.c.l.b16 %v7936
    %v8201 = vunpack.c.l.b16 %v7937
    %v8202 = vunpack.c.l.b16 %v7938
    %v8203 = vunpack.c.l.b16 %v7939
    %v8204 = vunpack.c.l.b16 %v7940
    %v8205 = vunpack.c.l.b16 %v7941
    %v8206 = vunpack.c.l.b16 %v7942
    %v8207 = vunpack.c.l.b16 %v7943
    %v8208 = vunpack.c.l.b16 %v7944
    %v8209 = vunpack.c.l.b16 %v7945
    %v8210 = vunpack.c.l.b16 %v7946
    %v8211 = vunpack.c.l.b16 %v7947
    %v8212 = vunpack.c.l.b16 %v7948
    %v8213 = vunpack.c.l.b16 %v7949
    %v8214 = vunpack.c.l.b16 %v7950
    %v8215 = vunpack.c.l.b16 %v7951
    %v8216 = vunpack.c.l.b16 %v7952
    %v8217 = vunpack.c.l.b16 %v7953
    %v8218 = vunpack.c.l.b16 %v7954
    %v8219 = vunpack.c.l.b16 %v7955
    %v8220 = vunpack.c.l.b16 %v7956
    %v8221 = vunpack.c.l.b16 %v7957
    %v8222 = vunpack.c.l.b16 %v7958
    %v8223 = vunpack.c.l.b16 %v7959
    %v8224 = vunpack.c.l.b16 %v7960
    %v8225 = vunpack.c.l.b16 %v7961
    %v8226 = vunpack.c.l.b16 %v7962
    %v8227 = vunpack.c.l.b16 %v7963
    %v8228 = vunpack.c.l.b16 %v7964
    %v8229 = vunpack.c.l.b16 %v7965
    %v8230 = vunpack.c.l.b16 %v7966
    %v8231 = vunpack.c.l.b16 %v7967
    %v8232 = vunpack.c.l.b16 %v7968
    %v8233 = vunpack.c.l.b16 %v7969
    %v8234 = vunpack.c.l.b16 %v7970
    %v8235 = vunpack.c.l.b16 %v7971
    %v8236 = vunpack.c.l.b16 %v7972
    %v8237 = vunpack.c.l.b16 %v7973
    %v8238 = vunpack.c.l.b16 %v7974
    %v8239 = vunpack.c.l.b16 %v7975
    %v8240 = vunpack.c.l.b16 %v7976
    %v8241 = vunpack.c.l.b16 %v7977
    %v8242 = vunpack.c.l.b16 %v7978
    %v8243 = vunpack.c.l.b16 %v7979
    %v8244 = vunpack.c.l.b16 %v7980
    %v8245 = vunpack.c.l.b16 %v7981
    %v8246 = vunpack.c.l.b16 %v7982
    %v8247 = vunpack.c.l.b16 %v7983
    %v8248 = vunpack.c.l.b16 %v7984
    %v8249 = vunpack.c.l.b16 %v7985
    %v8250 = vunpack.c.l.b16 %v7986
    %v8251 = vunpack.c.l.b16 %v7987
    %v8252 = vunpack.c.l.b16 %v7988
    %v8253 = vunpack.c.l.b16 %v7989
    %v8254 = vunpack.c.l.b16 %v7990
    %v8255 = vunpack.c.l.b16 %v7991
    %v8256 = vunpack.c.l.b16 %v7992
    %v8257 = vunpack.c.l.b16 %v7993
    %v8258 = vunpack.c.l.b16 %v7994
    %v8259 = vunpack.c.l.b16 %v7995
    %v8260 = vunpack.c.l.b16 %v7996
    %v8261 = vunpack.c.l.b16 %v7997
    %v8262 = vunpack.c.l.b16 %v7998
    %v8263 = vunpack.c.l.b16 %v7999
    %v8264 = vunpack.c.l.b16 %v8000
    %v8265 = vunpack.c.l.b16 %v8001
    %v8266 = vunpack.c.l.b16 %v8002
    %v8267 = vpack.c.b16 %v8140, %v8139
    %v8268 = vpack.c.b16 %v8142, %v8141
    %v8269 = vpack.c.b16 %v8144, %v8143
    %v8270 = vpack.c.b16 %v8146, %v8145
    %v8271 = vpack.c.b16 %v8148, %v8147
    %v8272 = vpack.c.b16 %v8150, %v8149
    %v8273 = vpack.c.b16 %v8152, %v8151
    %v8274 = vpack.c.b16 %v8154, %v8153
    %v8275 = vpack.c.b16 %v8156, %v8155
    %v8276 = vpack.c.b16 %v8158, %v8157
    %v8277 = vpack.c.b16 %v8160, %v8159
    %v8278 = vpack.c.b16 %v8162, %v8161
    %v8279 = vpack.c.b16 %v8164, %v8163
    %v8280 = vpack.c.b16 %v8166, %v8165
    %v8281 = vpack.c.b16 %v8168, %v8167
    %v8282 = vpack.c.b16 %v8170, %v8169
    %v8283 = vpack.c.b16 %v8172, %v8171
    %v8284 = vpack.c.b16 %v8174, %v8173
    %v8285 = vpack.c.b16 %v8176, %v8175
    %v8286 = vpack.c.b16 %v8178, %v8177
    %v8287 = vpack.c.b16 %v8180, %v8179
    %v8288 = vpack.c.b16 %v8182, %v8181
    %v8289 = vpack.c.b16 %v8184, %v8183
    %v8290 = vpack.c.b16 %v8186, %v8185
    %v8291 = vpack.c.b16 %v8188, %v8187
    %v8292 = vpack.c.b16 %v8190, %v8189
    %v8293 = vpack.c.b16 %v8192, %v8191
    %v8294 = vpack.c.b16 %v8194, %v8193
    %v8295 = vpack.c.b16 %v8196, %v8195
    %v8296 = vpack.c.b16 %v8198, %v8197
    %v8297 = vpack.c.b16 %v8200, %v8199
    %v8298 = vpack.c.b16 %v8202, %v8201
    %v8299 = vpack.c.b16 %v8204, %v8203
    %v8300 = vpack.c.b16 %v8206, %v8205
    %v8301 = vpack.c.b16 %v8208, %v8207
    %v8302 = vpack.c.b16 %v8210, %v8209
    %v8303 = vpack.c.b16 %v8212, %v8211
    %v8304 = vpack.c.b16 %v8214, %v8213
    %v8305 = vpack.c.b16 %v8216, %v8215
    %v8306 = vpack.c.b16 %v8218, %v8217
    %v8307 = vpack.c.b16 %v8220, %v8219
    %v8308 = vpack.c.b16 %v8222, %v8221
    %v8309 = vpack.c.b16 %v8224, %v8223
    %v8310 = vpack.c.b16 %v8226, %v8225
    %v8311 = vpack.c.b16 %v8228, %v8227
    %v8312 = vpack.c.b16 %v8230, %v8229
    %v8313 = vpack.c.b16 %v8232, %v8231
    %v8314 = vpack.c.b16 %v8234, %v8233
    %v8315 = vpack.c.b16 %v8236, %v8235
    %v8316 = vpack.c.b16 %v8238, %v8237
    %v8317 = vpack.c.b16 %v8240, %v8239
    %v8318 = vpack.c.b16 %v8242, %v8241
    %v8319 = vpack.c.b16 %v8244, %v8243
    %v8320 = vpack.c.b16 %v8246, %v8245
    %v8321 = vpack.c.b16 %v8248, %v8247
    %v8322 = vpack.c.b16 %v8250, %v8249
    %v8323 = vpack.c.b16 %v8252, %v8251
    %v8324 = vpack.c.b16 %v8254, %v8253
    %v8325 = vpack.c.b16 %v8256, %v8255
    %v8326 = vpack.c.b16 %v8258, %v8257
    %v8327 = vpack.c.b16 %v8260, %v8259
    %v8328 = vpack.c.b16 %v8262, %v8261
    %v8329 = vpack.c.b16 %v8264, %v8263
    %v8330 = vpack.c.b16 %v8266, %v8265
    %8395 = vmatprep.subr.bf16.mxu0 0
    %8396 = vmatpush1.bf16.msra.mxu0 %v8274
    %8397 = vmatprep.subr.bf16.mxu0 0
    %8398 = vmatpush1.bf16.msra.mxu0 %v8273
    %8399 = vmatprep.subr.bf16.mxu0 0
    %8400 = vmatpush1.bf16.msra.mxu0 %v8272
    %8401 = vmatprep.subr.bf16.mxu0 0
    %8402 = vmatpush1.bf16.msra.mxu0 %v8271
    %8403 = vmatprep.subr.bf16.mxu0 0
    %8404 = vmatpush1.bf16.msra.mxu0 %v8270
    %8405 = vmatprep.subr.bf16.mxu0 0
    %8406 = vmatpush1.bf16.msra.mxu0 %v8269
    %8407 = vmatprep.subr.bf16.mxu0 0
    %8408 = vmatpush1.bf16.msra.mxu0 %v8268
    %8409 = vmatprep.subr.bf16.mxu0 0
    %8410 = vmatpush1.bf16.msra.mxu0 %v8267
    %8411 = vmatprep.subr.bf16.mxu0 0
    %8412 = vmatpush2.bf16.msra.mxu0 %v8282
    %8413 = vmatprep.subr.bf16.mxu0 0
    %8414 = vmatpush2.bf16.msra.mxu0 %v8281
    %8415 = vmatprep.subr.bf16.mxu0 0
    %8416 = vmatpush2.bf16.msra.mxu0 %v8280
    %8417 = vmatprep.subr.bf16.mxu0 0
    %8418 = vmatpush2.bf16.msra.mxu0 %v8279
    %8419 = vmatprep.subr.bf16.mxu0 0
    %8420 = vmatpush2.bf16.msra.mxu0 %v8278
    %8421 = vmatprep.subr.bf16.mxu0 0
    %8422 = vmatpush2.bf16.msra.mxu0 %v8277
    %8423 = vmatprep.subr.bf16.mxu0 0
    %8424 = vmatpush2.bf16.msra.mxu0 %v8276
    %8425 = vmatprep.subr.bf16.mxu0 0
    %8426 = vmatpush2.bf16.msra.mxu0 %v8275
    %8427 = vmatprep.mubr.bf16.mxu0 %v4444
    %8428 = vmatmul.mubr.bf16.gmra.mxu0 %v4443
    %v8429 = vpop.f32.mrf.mxu0
    %v8430 = vadd.f32 %v8009, %v8429
    %v8431 = vpop.f32.mrf.mxu0
    %v8432 = vpop.f32.mrf.mxu0
    %v8433 = vpop.f32.mrf.mxu0
    %8434 = vdwg.mxu0
    %8435 = vmatprep.subr.bf16.mxu0 0
    %8436 = vmatpush1.bf16.msra.mxu0 %v8290
    %8437 = vmatprep.subr.bf16.mxu0 0
    %8438 = vmatpush1.bf16.msra.mxu0 %v8289
    %8439 = vmatprep.subr.bf16.mxu0 0
    %8440 = vmatpush1.bf16.msra.mxu0 %v8288
    %8441 = vmatprep.subr.bf16.mxu0 0
    %8442 = vmatpush1.bf16.msra.mxu0 %v8287
    %8443 = vmatprep.subr.bf16.mxu0 0
    %8444 = vmatpush1.bf16.msra.mxu0 %v8286
    %8445 = vmatprep.subr.bf16.mxu0 0
    %8446 = vmatpush1.bf16.msra.mxu0 %v8285
    %8447 = vmatprep.subr.bf16.mxu0 0
    %8448 = vmatpush1.bf16.msra.mxu0 %v8284
    %8449 = vmatprep.subr.bf16.mxu0 0
    %8450 = vmatpush1.bf16.msra.mxu0 %v8283
    %8451 = vmatprep.subr.bf16.mxu0 0
    %8452 = vmatpush2.bf16.msra.mxu0 %v8298
    %8453 = vmatprep.subr.bf16.mxu0 0
    %8454 = vmatpush2.bf16.msra.mxu0 %v8297
    %8455 = vmatprep.subr.bf16.mxu0 0
    %8456 = vmatpush2.bf16.msra.mxu0 %v8296
    %8457 = vmatprep.subr.bf16.mxu0 0
    %8458 = vmatpush2.bf16.msra.mxu0 %v8295
    %8459 = vmatprep.subr.bf16.mxu0 0
    %8460 = vmatpush2.bf16.msra.mxu0 %v8294
    %8461 = vmatprep.subr.bf16.mxu0 0
    %8462 = vmatpush2.bf16.msra.mxu0 %v8293
    %8463 = vmatprep.subr.bf16.mxu0 0
    %8464 = vmatpush2.bf16.msra.mxu0 %v8292
    %8465 = vmatprep.subr.bf16.mxu0 0
    %8466 = vmatpush2.bf16.msra.mxu0 %v8291
    %8467 = vmatprep.mubr.bf16.mxu0 %v4446
    %8468 = vmatmul.mubr.bf16.gmra.mxu0 %v4445
    %v8469 = vpop.f32.mrf.mxu0
    %v8470 = vadd.f32 %v8430, %v8469
    %v8471 = vpop.f32.mrf.mxu0
    %v8472 = vpop.f32.mrf.mxu0
    %v8473 = vpop.f32.mrf.mxu0
    %8474 = vdwg.mxu0
    %8475 = vmatprep.subr.bf16.mxu0 0
    %8476 = vmatpush1.bf16.msra.mxu0 %v8306
    %8477 = vmatprep.subr.bf16.mxu0 0
    %8478 = vmatpush1.bf16.msra.mxu0 %v8305
    %8479 = vmatprep.subr.bf16.mxu0 0
    %8480 = vmatpush1.bf16.msra.mxu0 %v8304
    %8481 = vmatprep.subr.bf16.mxu0 0
    %8482 = vmatpush1.bf16.msra.mxu0 %v8303
    %8483 = vmatprep.subr.bf16.mxu0 0
    %8484 = vmatpush1.bf16.msra.mxu0 %v8302
    %8485 = vmatprep.subr.bf16.mxu0 0
    %8486 = vmatpush1.bf16.msra.mxu0 %v8301
    %8487 = vmatprep.subr.bf16.mxu0 0
    %8488 = vmatpush1.bf16.msra.mxu0 %v8300
    %8489 = vmatprep.subr.bf16.mxu0 0
    %8490 = vmatpush1.bf16.msra.mxu0 %v8299
    %8491 = vmatprep.subr.bf16.mxu0 0
    %8492 = vmatpush2.bf16.msra.mxu0 %v8314
    %8493 = vmatprep.subr.bf16.mxu0 0
    %8494 = vmatpush2.bf16.msra.mxu0 %v8313
    %8495 = vmatprep.subr.bf16.mxu0 0
    %8496 = vmatpush2.bf16.msra.mxu0 %v8312
    %8497 = vmatprep.subr.bf16.mxu0 0
    %8498 = vmatpush2.bf16.msra.mxu0 %v8311
    %8499 = vmatprep.subr.bf16.mxu0 0
    %8500 = vmatpush2.bf16.msra.mxu0 %v8310
    %8501 = vmatprep.subr.bf16.mxu0 0
    %8502 = vmatpush2.bf16.msra.mxu0 %v8309
    %8503 = vmatprep.subr.bf16.mxu0 0
    %8504 = vmatpush2.bf16.msra.mxu0 %v8308
    %8505 = vmatprep.subr.bf16.mxu0 0
    %8506 = vmatpush2.bf16.msra.mxu0 %v8307
    %8507 = vmatprep.mubr.bf16.mxu0 %v4448
    %8508 = vmatmul.mubr.bf16.gmra.mxu0 %v4447
    %v8509 = vpop.f32.mrf.mxu0
    %v8510 = vadd.f32 %v8470, %v8509
    %v8511 = vpop.f32.mrf.mxu0
    %v8512 = vpop.f32.mrf.mxu0
    %v8513 = vpop.f32.mrf.mxu0
    %8514 = vdwg.mxu0
    %8515 = vmatprep.subr.bf16.mxu0 0
    %8516 = vmatpush1.bf16.msra.mxu0 %v8322
    %8517 = vmatprep.subr.bf16.mxu0 0
    %8518 = vmatpush1.bf16.msra.mxu0 %v8321
    %8519 = vmatprep.subr.bf16.mxu0 0
    %8520 = vmatpush1.bf16.msra.mxu0 %v8320
    %8521 = vmatprep.subr.bf16.mxu0 0
    %8522 = vmatpush1.bf16.msra.mxu0 %v8319
    %8523 = vmatprep.subr.bf16.mxu0 0
    %8524 = vmatpush1.bf16.msra.mxu0 %v8318
    %8525 = vmatprep.subr.bf16.mxu0 0
    %8526 = vmatpush1.bf16.msra.mxu0 %v8317
    %8527 = vmatprep.subr.bf16.mxu0 0
    %8528 = vmatpush1.bf16.msra.mxu0 %v8316
    %8529 = vmatprep.subr.bf16.mxu0 0
    %8530 = vmatpush1.bf16.msra.mxu0 %v8315
    %8531 = vmatprep.subr.bf16.mxu0 0
    %8532 = vmatpush2.bf16.msra.mxu0 %v8330
    %8533 = vmatprep.subr.bf16.mxu0 0
    %8534 = vmatpush2.bf16.msra.mxu0 %v8329
    %8535 = vmatprep.subr.bf16.mxu0 0
    %8536 = vmatpush2.bf16.msra.mxu0 %v8328
    %8537 = vmatprep.subr.bf16.mxu0 0
    %8538 = vmatpush2.bf16.msra.mxu0 %v8327
    %8539 = vmatprep.subr.bf16.mxu0 0
    %8540 = vmatpush2.bf16.msra.mxu0 %v8326
    %8541 = vmatprep.subr.bf16.mxu0 0
    %8542 = vmatpush2.bf16.msra.mxu0 %v8325
    %8543 = vmatprep.subr.bf16.mxu0 0
    %8544 = vmatpush2.bf16.msra.mxu0 %v8324
    %8545 = vmatprep.subr.bf16.mxu0 0
    %8546 = vmatpush2.bf16.msra.mxu0 %v8323
    %8547 = vmatprep.mubr.bf16.mxu0 %v4450
    %8548 = vmatmul.mubr.bf16.gmra.mxu0 %v4449
    %v8549 = vpop.f32.mrf.mxu0
    %v8550 = vadd.f32 %v8510, %v8549
    %v8551 = vpop.f32.mrf.mxu0
    %v8552 = vpop.f32.mrf.mxu0
    %v8553 = vpop.f32.mrf.mxu0
    %8554 = vdwg.mxu0
    %vm8555 = vcmp.gt.f32.partialorder %v8550, 0.0
    %v8556 = vmul.f32 %v8550, 0.2
    %v8557 = vsel %vm8555, %v8550, %v8556
    %8558 = vst [vmem:[#allocation2 + $0xa] sm:$0x3] %v8557
    %s8559 = scalar_lea.vmem [#allocation12], 3072
    %v8560 = vld [vmem:[%s8559] sm:$0xf]
    %v8561 = vld [vmem:[%s8559 + $0x4] sm:$0xf]
    %v8562 = vld [vmem:[%s8559 + $0x8] sm:$0xf]
    %v8563 = vld [vmem:[%s8559 + $0xc] sm:$0xf]
    %v8564 = vld [vmem:[%s8559 + $0x10] sm:$0xf]
    %v8565 = vld [vmem:[%s8559 + $0x14] sm:$0xf]
    %v8566 = vld [vmem:[%s8559 + $0x18] sm:$0xf]
    %v8567 = vld [vmem:[%s8559 + $0x1c] sm:$0xf]
    %v8568 = vld [vmem:[%s8559 + $0x20] sm:$0xf]
    %v8569 = vld [vmem:[%s8559 + $0x24] sm:$0xf]
    %v8570 = vld [vmem:[%s8559 + $0x28] sm:$0xf]
    %v8571 = vld [vmem:[%s8559 + $0x2c] sm:$0xf]
    %v8572 = vld [vmem:[%s8559 + $0x30] sm:$0xf]
    %v8573 = vld [vmem:[%s8559 + $0x34] sm:$0xf]
    %v8574 = vld [vmem:[%s8559 + $0x38] sm:$0xf]
    %v8575 = vld [vmem:[%s8559 + $0x3c] sm:$0xf]
    %v8576 = vld [vmem:[%s8559 + $0x40] sm:$0xf]
    %v8577 = vld [vmem:[%s8559 + $0x44] sm:$0xf]
    %v8578 = vld [vmem:[%s8559 + $0x48] sm:$0xf]
    %v8579 = vld [vmem:[%s8559 + $0x4c] sm:$0xf]
    %v8580 = vld [vmem:[%s8559 + $0x50] sm:$0xf]
    %v8581 = vld [vmem:[%s8559 + $0x54] sm:$0xf]
    %v8582 = vld [vmem:[%s8559 + $0x58] sm:$0xf]
    %v8583 = vld [vmem:[%s8559 + $0x5c] sm:$0xf]
    %v8584 = vld [vmem:[%s8559 + $0x60] sm:$0xf]
    %v8585 = vld [vmem:[%s8559 + $0x64] sm:$0xf]
    %v8586 = vld [vmem:[%s8559 + $0x68] sm:$0xf]
    %v8587 = vld [vmem:[%s8559 + $0x6c] sm:$0xf]
    %v8588 = vld [vmem:[%s8559 + $0x70] sm:$0xf]
    %v8589 = vld [vmem:[%s8559 + $0x74] sm:$0xf]
    %v8590 = vld [vmem:[%s8559 + $0x78] sm:$0xf]
    %v8591 = vld [vmem:[%s8559 + $0x7c] sm:$0xf]
    %v8592 = vld [vmem:[%s8559 + $0x80] sm:$0xf]
    %v8593 = vld [vmem:[%s8559 + $0x84] sm:$0xf]
    %v8594 = vld [vmem:[%s8559 + $0x88] sm:$0xf]
    %v8595 = vld [vmem:[%s8559 + $0x8c] sm:$0xf]
    %v8596 = vld [vmem:[%s8559 + $0x90] sm:$0xf]
    %v8597 = vld [vmem:[%s8559 + $0x94] sm:$0xf]
    %v8598 = vld [vmem:[%s8559 + $0x98] sm:$0xf]
    %v8599 = vld [vmem:[%s8559 + $0x9c] sm:$0xf]
    %v8600 = vld [vmem:[%s8559 + $0xa0] sm:$0xf]
    %v8601 = vld [vmem:[%s8559 + $0xa4] sm:$0xf]
    %v8602 = vld [vmem:[%s8559 + $0xa8] sm:$0xf]
    %v8603 = vld [vmem:[%s8559 + $0xac] sm:$0xf]
    %v8604 = vld [vmem:[%s8559 + $0xb0] sm:$0xf]
    %v8605 = vld [vmem:[%s8559 + $0xb4] sm:$0xf]
    %v8606 = vld [vmem:[%s8559 + $0xb8] sm:$0xf]
    %v8607 = vld [vmem:[%s8559 + $0xbc] sm:$0xf]
    %v8608 = vld [vmem:[%s8559 + $0xc0] sm:$0xf]
    %v8609 = vld [vmem:[%s8559 + $0xc4] sm:$0xf]
    %v8610 = vld [vmem:[%s8559 + $0xc8] sm:$0xf]
    %v8611 = vld [vmem:[%s8559 + $0xcc] sm:$0xf]
    %v8612 = vld [vmem:[%s8559 + $0xd0] sm:$0xf]
    %v8613 = vld [vmem:[%s8559 + $0xd4] sm:$0xf]
    %v8614 = vld [vmem:[%s8559 + $0xd8] sm:$0xf]
    %v8615 = vld [vmem:[%s8559 + $0xdc] sm:$0xf]
    %v8616 = vld [vmem:[%s8559 + $0xe0] sm:$0xf]
    %v8617 = vld [vmem:[%s8559 + $0xe4] sm:$0xf]
    %v8618 = vld [vmem:[%s8559 + $0xe8] sm:$0xf]
    %v8619 = vld [vmem:[%s8559 + $0xec] sm:$0xf]
    %v8620 = vld [vmem:[%s8559 + $0xf0] sm:$0xf]
    %v8621 = vld [vmem:[%s8559 + $0xf4] sm:$0xf]
    %v8622 = vld [vmem:[%s8559 + $0xf8] sm:$0xf]
    %v8623 = vld [vmem:[%s8559 + $0xfc] sm:$0xf]
    %v8624 = vld [vmem:[%s8559 + $0x100] sm:$0xf]
    %v8625 = vld [vmem:[%s8559 + $0x104] sm:$0xf]
    %v8626 = vld [vmem:[%s8559 + $0x108] sm:$0xf]
    %v8627 = vld [vmem:[%s8559 + $0x10c] sm:$0xf]
    %v8628 = vld [vmem:[%s8559 + $0x110] sm:$0xf]
    %v8629 = vld [vmem:[%s8559 + $0x114] sm:$0xf]
    %v8630 = vld [vmem:[%s8559 + $0x118] sm:$0xf]
    %v8631 = vld [vmem:[%s8559 + $0x11c] sm:$0xf]
    %v8632 = vld [vmem:[%s8559 + $0x120] sm:$0xf]
    %v8633 = vld [vmem:[%s8559 + $0x124] sm:$0xf]
    %v8634 = vld [vmem:[%s8559 + $0x128] sm:$0xf]
    %v8635 = vld [vmem:[%s8559 + $0x12c] sm:$0xf]
    %v8636 = vld [vmem:[%s8559 + $0x130] sm:$0xf]
    %v8637 = vld [vmem:[%s8559 + $0x134] sm:$0xf]
    %v8638 = vld [vmem:[%s8559 + $0x138] sm:$0xf]
    %v8639 = vld [vmem:[%s8559 + $0x13c] sm:$0xf]
    %v8640 = vld [vmem:[%s8559 + $0x140] sm:$0xf]
    %v8641 = vld [vmem:[%s8559 + $0x144] sm:$0xf]
    %v8642 = vld [vmem:[%s8559 + $0x148] sm:$0xf]
    %v8643 = vld [vmem:[%s8559 + $0x14c] sm:$0xf]
    %v8644 = vld [vmem:[%s8559 + $0x150] sm:$0xf]
    %v8645 = vld [vmem:[%s8559 + $0x154] sm:$0xf]
    %v8646 = vld [vmem:[%s8559 + $0x158] sm:$0xf]
    %v8647 = vld [vmem:[%s8559 + $0x15c] sm:$0xf]
    %v8648 = vld [vmem:[%s8559 + $0x160] sm:$0xf]
    %v8649 = vld [vmem:[%s8559 + $0x164] sm:$0xf]
    %v8650 = vld [vmem:[%s8559 + $0x168] sm:$0xf]
    %v8651 = vld [vmem:[%s8559 + $0x16c] sm:$0xf]
    %v8652 = vld [vmem:[%s8559 + $0x170] sm:$0xf]
    %v8653 = vld [vmem:[%s8559 + $0x174] sm:$0xf]
    %v8654 = vld [vmem:[%s8559 + $0x178] sm:$0xf]
    %v8655 = vld [vmem:[%s8559 + $0x17c] sm:$0xf]
    %v8656 = vld [vmem:[%s8559 + $0x180] sm:$0xf]
    %v8657 = vld [vmem:[%s8559 + $0x184] sm:$0xf]
    %v8658 = vld [vmem:[%s8559 + $0x188] sm:$0xf]
    %v8659 = vld [vmem:[%s8559 + $0x18c] sm:$0xf]
    %v8660 = vld [vmem:[%s8559 + $0x190] sm:$0xf]
    %v8661 = vld [vmem:[%s8559 + $0x194] sm:$0xf]
    %v8662 = vld [vmem:[%s8559 + $0x198] sm:$0xf]
    %v8663 = vld [vmem:[%s8559 + $0x19c] sm:$0xf]
    %v8664 = vld [vmem:[%s8559 + $0x1a0] sm:$0xf]
    %v8665 = vld [vmem:[%s8559 + $0x1a4] sm:$0xf]
    %v8666 = vld [vmem:[%s8559 + $0x1a8] sm:$0xf]
    %v8667 = vld [vmem:[%s8559 + $0x1ac] sm:$0xf]
    %v8668 = vld [vmem:[%s8559 + $0x1b0] sm:$0xf]
    %v8669 = vld [vmem:[%s8559 + $0x1b4] sm:$0xf]
    %v8670 = vld [vmem:[%s8559 + $0x1b8] sm:$0xf]
    %v8671 = vld [vmem:[%s8559 + $0x1bc] sm:$0xf]
    %v8672 = vld [vmem:[%s8559 + $0x1c0] sm:$0xf]
    %v8673 = vld [vmem:[%s8559 + $0x1c4] sm:$0xf]
    %v8674 = vld [vmem:[%s8559 + $0x1c8] sm:$0xf]
    %v8675 = vld [vmem:[%s8559 + $0x1cc] sm:$0xf]
    %v8676 = vld [vmem:[%s8559 + $0x1d0] sm:$0xf]
    %v8677 = vld [vmem:[%s8559 + $0x1d4] sm:$0xf]
    %v8678 = vld [vmem:[%s8559 + $0x1d8] sm:$0xf]
    %v8679 = vld [vmem:[%s8559 + $0x1dc] sm:$0xf]
    %v8680 = vld [vmem:[%s8559 + $0x1e0] sm:$0xf]
    %v8681 = vld [vmem:[%s8559 + $0x1e4] sm:$0xf]
    %v8682 = vld [vmem:[%s8559 + $0x1e8] sm:$0xf]
    %v8683 = vld [vmem:[%s8559 + $0x1ec] sm:$0xf]
    %v8684 = vld [vmem:[%s8559 + $0x1f0] sm:$0xf]
    %v8685 = vld [vmem:[%s8559 + $0x1f4] sm:$0xf]
    %v8686 = vld [vmem:[%s8559 + $0x1f8] sm:$0xf]
    %v8687 = vld [vmem:[%s8559 + $0x1fc] sm:$0xf]
    %s8688 = scalar_lea.vmem [#allocation14], 6
    %v8689 = vld [vmem:[%s8688] sm:$0x1]
    %v8691 = vlaneseq
    %v8692 = vshrl.u32 %v8691, 7
    %v8693 = vsub.s32 0, %v8692
    %v8694 = vrot.slane %v8689, %v8693
    %v8824 = vunpack.c.l.b16 %v8560
    %v8825 = vunpack.c.l.b16 %v8561
    %v8826 = vunpack.c.l.b16 %v8562
    %v8827 = vunpack.c.l.b16 %v8563
    %v8828 = vunpack.c.l.b16 %v8564
    %v8829 = vunpack.c.l.b16 %v8565
    %v8830 = vunpack.c.l.b16 %v8566
    %v8831 = vunpack.c.l.b16 %v8567
    %v8832 = vunpack.c.l.b16 %v8568
    %v8833 = vunpack.c.l.b16 %v8569
    %v8834 = vunpack.c.l.b16 %v8570
    %v8835 = vunpack.c.l.b16 %v8571
    %v8836 = vunpack.c.l.b16 %v8572
    %v8837 = vunpack.c.l.b16 %v8573
    %v8838 = vunpack.c.l.b16 %v8574
    %v8839 = vunpack.c.l.b16 %v8575
    %v8840 = vunpack.c.l.b16 %v8576
    %v8841 = vunpack.c.l.b16 %v8577
    %v8842 = vunpack.c.l.b16 %v8578
    %v8843 = vunpack.c.l.b16 %v8579
    %v8844 = vunpack.c.l.b16 %v8580
    %v8845 = vunpack.c.l.b16 %v8581
    %v8846 = vunpack.c.l.b16 %v8582
    %v8847 = vunpack.c.l.b16 %v8583
    %v8848 = vunpack.c.l.b16 %v8584
    %v8849 = vunpack.c.l.b16 %v8585
    %v8850 = vunpack.c.l.b16 %v8586
    %v8851 = vunpack.c.l.b16 %v8587
    %v8852 = vunpack.c.l.b16 %v8588
    %v8853 = vunpack.c.l.b16 %v8589
    %v8854 = vunpack.c.l.b16 %v8590
    %v8855 = vunpack.c.l.b16 %v8591
    %v8856 = vunpack.c.l.b16 %v8592
    %v8857 = vunpack.c.l.b16 %v8593
    %v8858 = vunpack.c.l.b16 %v8594
    %v8859 = vunpack.c.l.b16 %v8595
    %v8860 = vunpack.c.l.b16 %v8596
    %v8861 = vunpack.c.l.b16 %v8597
    %v8862 = vunpack.c.l.b16 %v8598
    %v8863 = vunpack.c.l.b16 %v8599
    %v8864 = vunpack.c.l.b16 %v8600
    %v8865 = vunpack.c.l.b16 %v8601
    %v8866 = vunpack.c.l.b16 %v8602
    %v8867 = vunpack.c.l.b16 %v8603
    %v8868 = vunpack.c.l.b16 %v8604
    %v8869 = vunpack.c.l.b16 %v8605
    %v8870 = vunpack.c.l.b16 %v8606
    %v8871 = vunpack.c.l.b16 %v8607
    %v8872 = vunpack.c.l.b16 %v8608
    %v8873 = vunpack.c.l.b16 %v8609
    %v8874 = vunpack.c.l.b16 %v8610
    %v8875 = vunpack.c.l.b16 %v8611
    %v8876 = vunpack.c.l.b16 %v8612
    %v8877 = vunpack.c.l.b16 %v8613
    %v8878 = vunpack.c.l.b16 %v8614
    %v8879 = vunpack.c.l.b16 %v8615
    %v8880 = vunpack.c.l.b16 %v8616
    %v8881 = vunpack.c.l.b16 %v8617
    %v8882 = vunpack.c.l.b16 %v8618
    %v8883 = vunpack.c.l.b16 %v8619
    %v8884 = vunpack.c.l.b16 %v8620
    %v8885 = vunpack.c.l.b16 %v8621
    %v8886 = vunpack.c.l.b16 %v8622
    %v8887 = vunpack.c.l.b16 %v8623
    %v8888 = vunpack.c.l.b16 %v8624
    %v8889 = vunpack.c.l.b16 %v8625
    %v8890 = vunpack.c.l.b16 %v8626
    %v8891 = vunpack.c.l.b16 %v8627
    %v8892 = vunpack.c.l.b16 %v8628
    %v8893 = vunpack.c.l.b16 %v8629
    %v8894 = vunpack.c.l.b16 %v8630
    %v8895 = vunpack.c.l.b16 %v8631
    %v8896 = vunpack.c.l.b16 %v8632
    %v8897 = vunpack.c.l.b16 %v8633
    %v8898 = vunpack.c.l.b16 %v8634
    %v8899 = vunpack.c.l.b16 %v8635
    %v8900 = vunpack.c.l.b16 %v8636
    %v8901 = vunpack.c.l.b16 %v8637
    %v8902 = vunpack.c.l.b16 %v8638
    %v8903 = vunpack.c.l.b16 %v8639
    %v8904 = vunpack.c.l.b16 %v8640
    %v8905 = vunpack.c.l.b16 %v8641
    %v8906 = vunpack.c.l.b16 %v8642
    %v8907 = vunpack.c.l.b16 %v8643
    %v8908 = vunpack.c.l.b16 %v8644
    %v8909 = vunpack.c.l.b16 %v8645
    %v8910 = vunpack.c.l.b16 %v8646
    %v8911 = vunpack.c.l.b16 %v8647
    %v8912 = vunpack.c.l.b16 %v8648
    %v8913 = vunpack.c.l.b16 %v8649
    %v8914 = vunpack.c.l.b16 %v8650
    %v8915 = vunpack.c.l.b16 %v8651
    %v8916 = vunpack.c.l.b16 %v8652
    %v8917 = vunpack.c.l.b16 %v8653
    %v8918 = vunpack.c.l.b16 %v8654
    %v8919 = vunpack.c.l.b16 %v8655
    %v8920 = vunpack.c.l.b16 %v8656
    %v8921 = vunpack.c.l.b16 %v8657
    %v8922 = vunpack.c.l.b16 %v8658
    %v8923 = vunpack.c.l.b16 %v8659
    %v8924 = vunpack.c.l.b16 %v8660
    %v8925 = vunpack.c.l.b16 %v8661
    %v8926 = vunpack.c.l.b16 %v8662
    %v8927 = vunpack.c.l.b16 %v8663
    %v8928 = vunpack.c.l.b16 %v8664
    %v8929 = vunpack.c.l.b16 %v8665
    %v8930 = vunpack.c.l.b16 %v8666
    %v8931 = vunpack.c.l.b16 %v8667
    %v8932 = vunpack.c.l.b16 %v8668
    %v8933 = vunpack.c.l.b16 %v8669
    %v8934 = vunpack.c.l.b16 %v8670
    %v8935 = vunpack.c.l.b16 %v8671
    %v8936 = vunpack.c.l.b16 %v8672
    %v8937 = vunpack.c.l.b16 %v8673
    %v8938 = vunpack.c.l.b16 %v8674
    %v8939 = vunpack.c.l.b16 %v8675
    %v8940 = vunpack.c.l.b16 %v8676
    %v8941 = vunpack.c.l.b16 %v8677
    %v8942 = vunpack.c.l.b16 %v8678
    %v8943 = vunpack.c.l.b16 %v8679
    %v8944 = vunpack.c.l.b16 %v8680
    %v8945 = vunpack.c.l.b16 %v8681
    %v8946 = vunpack.c.l.b16 %v8682
    %v8947 = vunpack.c.l.b16 %v8683
    %v8948 = vunpack.c.l.b16 %v8684
    %v8949 = vunpack.c.l.b16 %v8685
    %v8950 = vunpack.c.l.b16 %v8686
    %v8951 = vunpack.c.l.b16 %v8687
    %v8952 = vpack.c.b16 %v8825, %v8824
    %v8953 = vpack.c.b16 %v8827, %v8826
    %v8954 = vpack.c.b16 %v8829, %v8828
    %v8955 = vpack.c.b16 %v8831, %v8830
    %v8956 = vpack.c.b16 %v8833, %v8832
    %v8957 = vpack.c.b16 %v8835, %v8834
    %v8958 = vpack.c.b16 %v8837, %v8836
    %v8959 = vpack.c.b16 %v8839, %v8838
    %v8960 = vpack.c.b16 %v8841, %v8840
    %v8961 = vpack.c.b16 %v8843, %v8842
    %v8962 = vpack.c.b16 %v8845, %v8844
    %v8963 = vpack.c.b16 %v8847, %v8846
    %v8964 = vpack.c.b16 %v8849, %v8848
    %v8965 = vpack.c.b16 %v8851, %v8850
    %v8966 = vpack.c.b16 %v8853, %v8852
    %v8967 = vpack.c.b16 %v8855, %v8854
    %v8968 = vpack.c.b16 %v8857, %v8856
    %v8969 = vpack.c.b16 %v8859, %v8858
    %v8970 = vpack.c.b16 %v8861, %v8860
    %v8971 = vpack.c.b16 %v8863, %v8862
    %v8972 = vpack.c.b16 %v8865, %v8864
    %v8973 = vpack.c.b16 %v8867, %v8866
    %v8974 = vpack.c.b16 %v8869, %v8868
    %v8975 = vpack.c.b16 %v8871, %v8870
    %v8976 = vpack.c.b16 %v8873, %v8872
    %v8977 = vpack.c.b16 %v8875, %v8874
    %v8978 = vpack.c.b16 %v8877, %v8876
    %v8979 = vpack.c.b16 %v8879, %v8878
    %v8980 = vpack.c.b16 %v8881, %v8880
    %v8981 = vpack.c.b16 %v8883, %v8882
    %v8982 = vpack.c.b16 %v8885, %v8884
    %v8983 = vpack.c.b16 %v8887, %v8886
    %v8984 = vpack.c.b16 %v8889, %v8888
    %v8985 = vpack.c.b16 %v8891, %v8890
    %v8986 = vpack.c.b16 %v8893, %v8892
    %v8987 = vpack.c.b16 %v8895, %v8894
    %v8988 = vpack.c.b16 %v8897, %v8896
    %v8989 = vpack.c.b16 %v8899, %v8898
    %v8990 = vpack.c.b16 %v8901, %v8900
    %v8991 = vpack.c.b16 %v8903, %v8902
    %v8992 = vpack.c.b16 %v8905, %v8904
    %v8993 = vpack.c.b16 %v8907, %v8906
    %v8994 = vpack.c.b16 %v8909, %v8908
    %v8995 = vpack.c.b16 %v8911, %v8910
    %v8996 = vpack.c.b16 %v8913, %v8912
    %v8997 = vpack.c.b16 %v8915, %v8914
    %v8998 = vpack.c.b16 %v8917, %v8916
    %v8999 = vpack.c.b16 %v8919, %v8918
    %v9000 = vpack.c.b16 %v8921, %v8920
    %v9001 = vpack.c.b16 %v8923, %v8922
    %v9002 = vpack.c.b16 %v8925, %v8924
    %v9003 = vpack.c.b16 %v8927, %v8926
    %v9004 = vpack.c.b16 %v8929, %v8928
    %v9005 = vpack.c.b16 %v8931, %v8930
    %v9006 = vpack.c.b16 %v8933, %v8932
    %v9007 = vpack.c.b16 %v8935, %v8934
    %v9008 = vpack.c.b16 %v8937, %v8936
    %v9009 = vpack.c.b16 %v8939, %v8938
    %v9010 = vpack.c.b16 %v8941, %v8940
    %v9011 = vpack.c.b16 %v8943, %v8942
    %v9012 = vpack.c.b16 %v8945, %v8944
    %v9013 = vpack.c.b16 %v8947, %v8946
    %v9014 = vpack.c.b16 %v8949, %v8948
    %v9015 = vpack.c.b16 %v8951, %v8950
    %9080 = vmatprep.subr.bf16.mxu0 0
    %9081 = vmatpush1.bf16.msra.mxu0 %v8959
    %9082 = vmatprep.subr.bf16.mxu0 0
    %9083 = vmatpush1.bf16.msra.mxu0 %v8958
    %9084 = vmatprep.subr.bf16.mxu0 0
    %9085 = vmatpush1.bf16.msra.mxu0 %v8957
    %9086 = vmatprep.subr.bf16.mxu0 0
    %9087 = vmatpush1.bf16.msra.mxu0 %v8956
    %9088 = vmatprep.subr.bf16.mxu0 0
    %9089 = vmatpush1.bf16.msra.mxu0 %v8955
    %9090 = vmatprep.subr.bf16.mxu0 0
    %9091 = vmatpush1.bf16.msra.mxu0 %v8954
    %9092 = vmatprep.subr.bf16.mxu0 0
    %9093 = vmatpush1.bf16.msra.mxu0 %v8953
    %9094 = vmatprep.subr.bf16.mxu0 0
    %9095 = vmatpush1.bf16.msra.mxu0 %v8952
    %9096 = vmatprep.subr.bf16.mxu0 0
    %9097 = vmatpush2.bf16.msra.mxu0 %v8967
    %9098 = vmatprep.subr.bf16.mxu0 0
    %9099 = vmatpush2.bf16.msra.mxu0 %v8966
    %9100 = vmatprep.subr.bf16.mxu0 0
    %9101 = vmatpush2.bf16.msra.mxu0 %v8965
    %9102 = vmatprep.subr.bf16.mxu0 0
    %9103 = vmatpush2.bf16.msra.mxu0 %v8964
    %9104 = vmatprep.subr.bf16.mxu0 0
    %9105 = vmatpush2.bf16.msra.mxu0 %v8963
    %9106 = vmatprep.subr.bf16.mxu0 0
    %9107 = vmatpush2.bf16.msra.mxu0 %v8962
    %9108 = vmatprep.subr.bf16.mxu0 0
    %9109 = vmatpush2.bf16.msra.mxu0 %v8961
    %9110 = vmatprep.subr.bf16.mxu0 0
    %9111 = vmatpush2.bf16.msra.mxu0 %v8960
    %9112 = vmatprep.mubr.bf16.mxu0 %v4444
    %9113 = vmatmul.mubr.bf16.gmra.mxu0 %v4443
    %v9114 = vpop.f32.mrf.mxu0
    %v9115 = vadd.f32 %v8694, %v9114
    %v9116 = vpop.f32.mrf.mxu0
    %v9117 = vpop.f32.mrf.mxu0
    %v9118 = vpop.f32.mrf.mxu0
    %9119 = vdwg.mxu0
    %9120 = vmatprep.subr.bf16.mxu0 0
    %9121 = vmatpush1.bf16.msra.mxu0 %v8975
    %9122 = vmatprep.subr.bf16.mxu0 0
    %9123 = vmatpush1.bf16.msra.mxu0 %v8974
    %9124 = vmatprep.subr.bf16.mxu0 0
    %9125 = vmatpush1.bf16.msra.mxu0 %v8973
    %9126 = vmatprep.subr.bf16.mxu0 0
    %9127 = vmatpush1.bf16.msra.mxu0 %v8972
    %9128 = vmatprep.subr.bf16.mxu0 0
    %9129 = vmatpush1.bf16.msra.mxu0 %v8971
    %9130 = vmatprep.subr.bf16.mxu0 0
    %9131 = vmatpush1.bf16.msra.mxu0 %v8970
    %9132 = vmatprep.subr.bf16.mxu0 0
    %9133 = vmatpush1.bf16.msra.mxu0 %v8969
    %9134 = vmatprep.subr.bf16.mxu0 0
    %9135 = vmatpush1.bf16.msra.mxu0 %v8968
    %9136 = vmatprep.subr.bf16.mxu0 0
    %9137 = vmatpush2.bf16.msra.mxu0 %v8983
    %9138 = vmatprep.subr.bf16.mxu0 0
    %9139 = vmatpush2.bf16.msra.mxu0 %v8982
    %9140 = vmatprep.subr.bf16.mxu0 0
    %9141 = vmatpush2.bf16.msra.mxu0 %v8981
    %9142 = vmatprep.subr.bf16.mxu0 0
    %9143 = vmatpush2.bf16.msra.mxu0 %v8980
    %9144 = vmatprep.subr.bf16.mxu0 0
    %9145 = vmatpush2.bf16.msra.mxu0 %v8979
    %9146 = vmatprep.subr.bf16.mxu0 0
    %9147 = vmatpush2.bf16.msra.mxu0 %v8978
    %9148 = vmatprep.subr.bf16.mxu0 0
    %9149 = vmatpush2.bf16.msra.mxu0 %v8977
    %9150 = vmatprep.subr.bf16.mxu0 0
    %9151 = vmatpush2.bf16.msra.mxu0 %v8976
    %9152 = vmatprep.mubr.bf16.mxu0 %v4446
    %9153 = vmatmul.mubr.bf16.gmra.mxu0 %v4445
    %v9154 = vpop.f32.mrf.mxu0
    %v9155 = vadd.f32 %v9115, %v9154
    %v9156 = vpop.f32.mrf.mxu0
    %v9157 = vpop.f32.mrf.mxu0
    %v9158 = vpop.f32.mrf.mxu0
    %9159 = vdwg.mxu0
    %9160 = vmatprep.subr.bf16.mxu0 0
    %9161 = vmatpush1.bf16.msra.mxu0 %v8991
    %9162 = vmatprep.subr.bf16.mxu0 0
    %9163 = vmatpush1.bf16.msra.mxu0 %v8990
    %9164 = vmatprep.subr.bf16.mxu0 0
    %9165 = vmatpush1.bf16.msra.mxu0 %v8989
    %9166 = vmatprep.subr.bf16.mxu0 0
    %9167 = vmatpush1.bf16.msra.mxu0 %v8988
    %9168 = vmatprep.subr.bf16.mxu0 0
    %9169 = vmatpush1.bf16.msra.mxu0 %v8987
    %9170 = vmatprep.subr.bf16.mxu0 0
    %9171 = vmatpush1.bf16.msra.mxu0 %v8986
    %9172 = vmatprep.subr.bf16.mxu0 0
    %9173 = vmatpush1.bf16.msra.mxu0 %v8985
    %9174 = vmatprep.subr.bf16.mxu0 0
    %9175 = vmatpush1.bf16.msra.mxu0 %v8984
    %9176 = vmatprep.subr.bf16.mxu0 0
    %9177 = vmatpush2.bf16.msra.mxu0 %v8999
    %9178 = vmatprep.subr.bf16.mxu0 0
    %9179 = vmatpush2.bf16.msra.mxu0 %v8998
    %9180 = vmatprep.subr.bf16.mxu0 0
    %9181 = vmatpush2.bf16.msra.mxu0 %v8997
    %9182 = vmatprep.subr.bf16.mxu0 0
    %9183 = vmatpush2.bf16.msra.mxu0 %v8996
    %9184 = vmatprep.subr.bf16.mxu0 0
    %9185 = vmatpush2.bf16.msra.mxu0 %v8995
    %9186 = vmatprep.subr.bf16.mxu0 0
    %9187 = vmatpush2.bf16.msra.mxu0 %v8994
    %9188 = vmatprep.subr.bf16.mxu0 0
    %9189 = vmatpush2.bf16.msra.mxu0 %v8993
    %9190 = vmatprep.subr.bf16.mxu0 0
    %9191 = vmatpush2.bf16.msra.mxu0 %v8992
    %9192 = vmatprep.mubr.bf16.mxu0 %v4448
    %9193 = vmatmul.mubr.bf16.gmra.mxu0 %v4447
    %v9194 = vpop.f32.mrf.mxu0
    %v9195 = vadd.f32 %v9155, %v9194
    %v9196 = vpop.f32.mrf.mxu0
    %v9197 = vpop.f32.mrf.mxu0
    %v9198 = vpop.f32.mrf.mxu0
    %9199 = vdwg.mxu0
    %9200 = vmatprep.subr.bf16.mxu0 0
    %9201 = vmatpush1.bf16.msra.mxu0 %v9007
    %9202 = vmatprep.subr.bf16.mxu0 0
    %9203 = vmatpush1.bf16.msra.mxu0 %v9006
    %9204 = vmatprep.subr.bf16.mxu0 0
    %9205 = vmatpush1.bf16.msra.mxu0 %v9005
    %9206 = vmatprep.subr.bf16.mxu0 0
    %9207 = vmatpush1.bf16.msra.mxu0 %v9004
    %9208 = vmatprep.subr.bf16.mxu0 0
    %9209 = vmatpush1.bf16.msra.mxu0 %v9003
    %9210 = vmatprep.subr.bf16.mxu0 0
    %9211 = vmatpush1.bf16.msra.mxu0 %v9002
    %9212 = vmatprep.subr.bf16.mxu0 0
    %9213 = vmatpush1.bf16.msra.mxu0 %v9001
    %9214 = vmatprep.subr.bf16.mxu0 0
    %9215 = vmatpush1.bf16.msra.mxu0 %v9000
    %9216 = vmatprep.subr.bf16.mxu0 0
    %9217 = vmatpush2.bf16.msra.mxu0 %v9015
    %9218 = vmatprep.subr.bf16.mxu0 0
    %9219 = vmatpush2.bf16.msra.mxu0 %v9014
    %9220 = vmatprep.subr.bf16.mxu0 0
    %9221 = vmatpush2.bf16.msra.mxu0 %v9013
    %9222 = vmatprep.subr.bf16.mxu0 0
    %9223 = vmatpush2.bf16.msra.mxu0 %v9012
    %9224 = vmatprep.subr.bf16.mxu0 0
    %9225 = vmatpush2.bf16.msra.mxu0 %v9011
    %9226 = vmatprep.subr.bf16.mxu0 0
    %9227 = vmatpush2.bf16.msra.mxu0 %v9010
    %9228 = vmatprep.subr.bf16.mxu0 0
    %9229 = vmatpush2.bf16.msra.mxu0 %v9009
    %9230 = vmatprep.subr.bf16.mxu0 0
    %9231 = vmatpush2.bf16.msra.mxu0 %v9008
    %9232 = vmatprep.mubr.bf16.mxu0 %v4450
    %9233 = vmatmul.mubr.bf16.gmra.mxu0 %v4449
    %v9234 = vpop.f32.mrf.mxu0
    %v9235 = vadd.f32 %v9195, %v9234
    %v9236 = vpop.f32.mrf.mxu0
    %v9237 = vpop.f32.mrf.mxu0
    %v9238 = vpop.f32.mrf.mxu0
    %9239 = vdwg.mxu0
    %vm9240 = vcmp.gt.f32.partialorder %v9235, 0.0
    %v9241 = vmul.f32 %v9235, 0.2
    %v9242 = vsel %vm9240, %v9235, %v9241
    %9243 = vst [vmem:[#allocation2 + $0xc] sm:$0x3] %v9242
    %s9244 = scalar_lea.vmem [#allocation12], 3584
    %v9245 = vld [vmem:[%s9244] sm:$0xf]
    %v9246 = vld [vmem:[%s9244 + $0x4] sm:$0xf]
    %v9247 = vld [vmem:[%s9244 + $0x8] sm:$0xf]
    %v9248 = vld [vmem:[%s9244 + $0xc] sm:$0xf]
    %v9249 = vld [vmem:[%s9244 + $0x10] sm:$0xf]
    %v9250 = vld [vmem:[%s9244 + $0x14] sm:$0xf]
    %v9251 = vld [vmem:[%s9244 + $0x18] sm:$0xf]
    %v9252 = vld [vmem:[%s9244 + $0x1c] sm:$0xf]
    %v9253 = vld [vmem:[%s9244 + $0x20] sm:$0xf]
    %v9254 = vld [vmem:[%s9244 + $0x24] sm:$0xf]
    %v9255 = vld [vmem:[%s9244 + $0x28] sm:$0xf]
    %v9256 = vld [vmem:[%s9244 + $0x2c] sm:$0xf]
    %v9257 = vld [vmem:[%s9244 + $0x30] sm:$0xf]
    %v9258 = vld [vmem:[%s9244 + $0x34] sm:$0xf]
    %v9259 = vld [vmem:[%s9244 + $0x38] sm:$0xf]
    %v9260 = vld [vmem:[%s9244 + $0x3c] sm:$0xf]
    %v9261 = vld [vmem:[%s9244 + $0x40] sm:$0xf]
    %v9262 = vld [vmem:[%s9244 + $0x44] sm:$0xf]
    %v9263 = vld [vmem:[%s9244 + $0x48] sm:$0xf]
    %v9264 = vld [vmem:[%s9244 + $0x4c] sm:$0xf]
    %v9265 = vld [vmem:[%s9244 + $0x50] sm:$0xf]
    %v9266 = vld [vmem:[%s9244 + $0x54] sm:$0xf]
    %v9267 = vld [vmem:[%s9244 + $0x58] sm:$0xf]
    %v9268 = vld [vmem:[%s9244 + $0x5c] sm:$0xf]
    %v9269 = vld [vmem:[%s9244 + $0x60] sm:$0xf]
    %v9270 = vld [vmem:[%s9244 + $0x64] sm:$0xf]
    %v9271 = vld [vmem:[%s9244 + $0x68] sm:$0xf]
    %v9272 = vld [vmem:[%s9244 + $0x6c] sm:$0xf]
    %v9273 = vld [vmem:[%s9244 + $0x70] sm:$0xf]
    %v9274 = vld [vmem:[%s9244 + $0x74] sm:$0xf]
    %v9275 = vld [vmem:[%s9244 + $0x78] sm:$0xf]
    %v9276 = vld [vmem:[%s9244 + $0x7c] sm:$0xf]
    %v9277 = vld [vmem:[%s9244 + $0x80] sm:$0xf]
    %v9278 = vld [vmem:[%s9244 + $0x84] sm:$0xf]
    %v9279 = vld [vmem:[%s9244 + $0x88] sm:$0xf]
    %v9280 = vld [vmem:[%s9244 + $0x8c] sm:$0xf]
    %v9281 = vld [vmem:[%s9244 + $0x90] sm:$0xf]
    %v9282 = vld [vmem:[%s9244 + $0x94] sm:$0xf]
    %v9283 = vld [vmem:[%s9244 + $0x98] sm:$0xf]
    %v9284 = vld [vmem:[%s9244 + $0x9c] sm:$0xf]
    %v9285 = vld [vmem:[%s9244 + $0xa0] sm:$0xf]
    %v9286 = vld [vmem:[%s9244 + $0xa4] sm:$0xf]
    %v9287 = vld [vmem:[%s9244 + $0xa8] sm:$0xf]
    %v9288 = vld [vmem:[%s9244 + $0xac] sm:$0xf]
    %v9289 = vld [vmem:[%s9244 + $0xb0] sm:$0xf]
    %v9290 = vld [vmem:[%s9244 + $0xb4] sm:$0xf]
    %v9291 = vld [vmem:[%s9244 + $0xb8] sm:$0xf]
    %v9292 = vld [vmem:[%s9244 + $0xbc] sm:$0xf]
    %v9293 = vld [vmem:[%s9244 + $0xc0] sm:$0xf]
    %v9294 = vld [vmem:[%s9244 + $0xc4] sm:$0xf]
    %v9295 = vld [vmem:[%s9244 + $0xc8] sm:$0xf]
    %v9296 = vld [vmem:[%s9244 + $0xcc] sm:$0xf]
    %v9297 = vld [vmem:[%s9244 + $0xd0] sm:$0xf]
    %v9298 = vld [vmem:[%s9244 + $0xd4] sm:$0xf]
    %v9299 = vld [vmem:[%s9244 + $0xd8] sm:$0xf]
    %v9300 = vld [vmem:[%s9244 + $0xdc] sm:$0xf]
    %v9301 = vld [vmem:[%s9244 + $0xe0] sm:$0xf]
    %v9302 = vld [vmem:[%s9244 + $0xe4] sm:$0xf]
    %v9303 = vld [vmem:[%s9244 + $0xe8] sm:$0xf]
    %v9304 = vld [vmem:[%s9244 + $0xec] sm:$0xf]
    %v9305 = vld [vmem:[%s9244 + $0xf0] sm:$0xf]
    %v9306 = vld [vmem:[%s9244 + $0xf4] sm:$0xf]
    %v9307 = vld [vmem:[%s9244 + $0xf8] sm:$0xf]
    %v9308 = vld [vmem:[%s9244 + $0xfc] sm:$0xf]
    %v9309 = vld [vmem:[%s9244 + $0x100] sm:$0xf]
    %v9310 = vld [vmem:[%s9244 + $0x104] sm:$0xf]
    %v9311 = vld [vmem:[%s9244 + $0x108] sm:$0xf]
    %v9312 = vld [vmem:[%s9244 + $0x10c] sm:$0xf]
    %v9313 = vld [vmem:[%s9244 + $0x110] sm:$0xf]
    %v9314 = vld [vmem:[%s9244 + $0x114] sm:$0xf]
    %v9315 = vld [vmem:[%s9244 + $0x118] sm:$0xf]
    %v9316 = vld [vmem:[%s9244 + $0x11c] sm:$0xf]
    %v9317 = vld [vmem:[%s9244 + $0x120] sm:$0xf]
    %v9318 = vld [vmem:[%s9244 + $0x124] sm:$0xf]
    %v9319 = vld [vmem:[%s9244 + $0x128] sm:$0xf]
    %v9320 = vld [vmem:[%s9244 + $0x12c] sm:$0xf]
    %v9321 = vld [vmem:[%s9244 + $0x130] sm:$0xf]
    %v9322 = vld [vmem:[%s9244 + $0x134] sm:$0xf]
    %v9323 = vld [vmem:[%s9244 + $0x138] sm:$0xf]
    %v9324 = vld [vmem:[%s9244 + $0x13c] sm:$0xf]
    %v9325 = vld [vmem:[%s9244 + $0x140] sm:$0xf]
    %v9326 = vld [vmem:[%s9244 + $0x144] sm:$0xf]
    %v9327 = vld [vmem:[%s9244 + $0x148] sm:$0xf]
    %v9328 = vld [vmem:[%s9244 + $0x14c] sm:$0xf]
    %v9329 = vld [vmem:[%s9244 + $0x150] sm:$0xf]
    %v9330 = vld [vmem:[%s9244 + $0x154] sm:$0xf]
    %v9331 = vld [vmem:[%s9244 + $0x158] sm:$0xf]
    %v9332 = vld [vmem:[%s9244 + $0x15c] sm:$0xf]
    %v9333 = vld [vmem:[%s9244 + $0x160] sm:$0xf]
    %v9334 = vld [vmem:[%s9244 + $0x164] sm:$0xf]
    %v9335 = vld [vmem:[%s9244 + $0x168] sm:$0xf]
    %v9336 = vld [vmem:[%s9244 + $0x16c] sm:$0xf]
    %v9337 = vld [vmem:[%s9244 + $0x170] sm:$0xf]
    %v9338 = vld [vmem:[%s9244 + $0x174] sm:$0xf]
    %v9339 = vld [vmem:[%s9244 + $0x178] sm:$0xf]
    %v9340 = vld [vmem:[%s9244 + $0x17c] sm:$0xf]
    %v9341 = vld [vmem:[%s9244 + $0x180] sm:$0xf]
    %v9342 = vld [vmem:[%s9244 + $0x184] sm:$0xf]
    %v9343 = vld [vmem:[%s9244 + $0x188] sm:$0xf]
    %v9344 = vld [vmem:[%s9244 + $0x18c] sm:$0xf]
    %v9345 = vld [vmem:[%s9244 + $0x190] sm:$0xf]
    %v9346 = vld [vmem:[%s9244 + $0x194] sm:$0xf]
    %v9347 = vld [vmem:[%s9244 + $0x198] sm:$0xf]
    %v9348 = vld [vmem:[%s9244 + $0x19c] sm:$0xf]
    %v9349 = vld [vmem:[%s9244 + $0x1a0] sm:$0xf]
    %v9350 = vld [vmem:[%s9244 + $0x1a4] sm:$0xf]
    %v9351 = vld [vmem:[%s9244 + $0x1a8] sm:$0xf]
    %v9352 = vld [vmem:[%s9244 + $0x1ac] sm:$0xf]
    %v9353 = vld [vmem:[%s9244 + $0x1b0] sm:$0xf]
    %v9354 = vld [vmem:[%s9244 + $0x1b4] sm:$0xf]
    %v9355 = vld [vmem:[%s9244 + $0x1b8] sm:$0xf]
    %v9356 = vld [vmem:[%s9244 + $0x1bc] sm:$0xf]
    %v9357 = vld [vmem:[%s9244 + $0x1c0] sm:$0xf]
    %v9358 = vld [vmem:[%s9244 + $0x1c4] sm:$0xf]
    %v9359 = vld [vmem:[%s9244 + $0x1c8] sm:$0xf]
    %v9360 = vld [vmem:[%s9244 + $0x1cc] sm:$0xf]
    %v9361 = vld [vmem:[%s9244 + $0x1d0] sm:$0xf]
    %v9362 = vld [vmem:[%s9244 + $0x1d4] sm:$0xf]
    %v9363 = vld [vmem:[%s9244 + $0x1d8] sm:$0xf]
    %v9364 = vld [vmem:[%s9244 + $0x1dc] sm:$0xf]
    %v9365 = vld [vmem:[%s9244 + $0x1e0] sm:$0xf]
    %v9366 = vld [vmem:[%s9244 + $0x1e4] sm:$0xf]
    %v9367 = vld [vmem:[%s9244 + $0x1e8] sm:$0xf]
    %v9368 = vld [vmem:[%s9244 + $0x1ec] sm:$0xf]
    %v9369 = vld [vmem:[%s9244 + $0x1f0] sm:$0xf]
    %v9370 = vld [vmem:[%s9244 + $0x1f4] sm:$0xf]
    %v9371 = vld [vmem:[%s9244 + $0x1f8] sm:$0xf]
    %v9372 = vld [vmem:[%s9244 + $0x1fc] sm:$0xf]
    %s9373 = scalar_lea.vmem [#allocation14], 7
    %v9374 = vld [vmem:[%s9373] sm:$0x1]
    %v9376 = vlaneseq
    %v9377 = vshrl.u32 %v9376, 7
    %v9378 = vsub.s32 0, %v9377
    %v9379 = vrot.slane %v9374, %v9378
    %v9509 = vunpack.c.l.b16 %v9245
    %v9510 = vunpack.c.l.b16 %v9246
    %v9511 = vunpack.c.l.b16 %v9247
    %v9512 = vunpack.c.l.b16 %v9248
    %v9513 = vunpack.c.l.b16 %v9249
    %v9514 = vunpack.c.l.b16 %v9250
    %v9515 = vunpack.c.l.b16 %v9251
    %v9516 = vunpack.c.l.b16 %v9252
    %v9517 = vunpack.c.l.b16 %v9253
    %v9518 = vunpack.c.l.b16 %v9254
    %v9519 = vunpack.c.l.b16 %v9255
    %v9520 = vunpack.c.l.b16 %v9256
    %v9521 = vunpack.c.l.b16 %v9257
    %v9522 = vunpack.c.l.b16 %v9258
    %v9523 = vunpack.c.l.b16 %v9259
    %v9524 = vunpack.c.l.b16 %v9260
    %v9525 = vunpack.c.l.b16 %v9261
    %v9526 = vunpack.c.l.b16 %v9262
    %v9527 = vunpack.c.l.b16 %v9263
    %v9528 = vunpack.c.l.b16 %v9264
    %v9529 = vunpack.c.l.b16 %v9265
    %v9530 = vunpack.c.l.b16 %v9266
    %v9531 = vunpack.c.l.b16 %v9267
    %v9532 = vunpack.c.l.b16 %v9268
    %v9533 = vunpack.c.l.b16 %v9269
    %v9534 = vunpack.c.l.b16 %v9270
    %v9535 = vunpack.c.l.b16 %v9271
    %v9536 = vunpack.c.l.b16 %v9272
    %v9537 = vunpack.c.l.b16 %v9273
    %v9538 = vunpack.c.l.b16 %v9274
    %v9539 = vunpack.c.l.b16 %v9275
    %v9540 = vunpack.c.l.b16 %v9276
    %v9541 = vunpack.c.l.b16 %v9277
    %v9542 = vunpack.c.l.b16 %v9278
    %v9543 = vunpack.c.l.b16 %v9279
    %v9544 = vunpack.c.l.b16 %v9280
    %v9545 = vunpack.c.l.b16 %v9281
    %v9546 = vunpack.c.l.b16 %v9282
    %v9547 = vunpack.c.l.b16 %v9283
    %v9548 = vunpack.c.l.b16 %v9284
    %v9549 = vunpack.c.l.b16 %v9285
    %v9550 = vunpack.c.l.b16 %v9286
    %v9551 = vunpack.c.l.b16 %v9287
    %v9552 = vunpack.c.l.b16 %v9288
    %v9553 = vunpack.c.l.b16 %v9289
    %v9554 = vunpack.c.l.b16 %v9290
    %v9555 = vunpack.c.l.b16 %v9291
    %v9556 = vunpack.c.l.b16 %v9292
    %v9557 = vunpack.c.l.b16 %v9293
    %v9558 = vunpack.c.l.b16 %v9294
    %v9559 = vunpack.c.l.b16 %v9295
    %v9560 = vunpack.c.l.b16 %v9296
    %v9561 = vunpack.c.l.b16 %v9297
    %v9562 = vunpack.c.l.b16 %v9298
    %v9563 = vunpack.c.l.b16 %v9299
    %v9564 = vunpack.c.l.b16 %v9300
    %v9565 = vunpack.c.l.b16 %v9301
    %v9566 = vunpack.c.l.b16 %v9302
    %v9567 = vunpack.c.l.b16 %v9303
    %v9568 = vunpack.c.l.b16 %v9304
    %v9569 = vunpack.c.l.b16 %v9305
    %v9570 = vunpack.c.l.b16 %v9306
    %v9571 = vunpack.c.l.b16 %v9307
    %v9572 = vunpack.c.l.b16 %v9308
    %v9573 = vunpack.c.l.b16 %v9309
    %v9574 = vunpack.c.l.b16 %v9310
    %v9575 = vunpack.c.l.b16 %v9311
    %v9576 = vunpack.c.l.b16 %v9312
    %v9577 = vunpack.c.l.b16 %v9313
    %v9578 = vunpack.c.l.b16 %v9314
    %v9579 = vunpack.c.l.b16 %v9315
    %v9580 = vunpack.c.l.b16 %v9316
    %v9581 = vunpack.c.l.b16 %v9317
    %v9582 = vunpack.c.l.b16 %v9318
    %v9583 = vunpack.c.l.b16 %v9319
    %v9584 = vunpack.c.l.b16 %v9320
    %v9585 = vunpack.c.l.b16 %v9321
    %v9586 = vunpack.c.l.b16 %v9322
    %v9587 = vunpack.c.l.b16 %v9323
    %v9588 = vunpack.c.l.b16 %v9324
    %v9589 = vunpack.c.l.b16 %v9325
    %v9590 = vunpack.c.l.b16 %v9326
    %v9591 = vunpack.c.l.b16 %v9327
    %v9592 = vunpack.c.l.b16 %v9328
    %v9593 = vunpack.c.l.b16 %v9329
    %v9594 = vunpack.c.l.b16 %v9330
    %v9595 = vunpack.c.l.b16 %v9331
    %v9596 = vunpack.c.l.b16 %v9332
    %v9597 = vunpack.c.l.b16 %v9333
    %v9598 = vunpack.c.l.b16 %v9334
    %v9599 = vunpack.c.l.b16 %v9335
    %v9600 = vunpack.c.l.b16 %v9336
    %v9601 = vunpack.c.l.b16 %v9337
    %v9602 = vunpack.c.l.b16 %v9338
    %v9603 = vunpack.c.l.b16 %v9339
    %v9604 = vunpack.c.l.b16 %v9340
    %v9605 = vunpack.c.l.b16 %v9341
    %v9606 = vunpack.c.l.b16 %v9342
    %v9607 = vunpack.c.l.b16 %v9343
    %v9608 = vunpack.c.l.b16 %v9344
    %v9609 = vunpack.c.l.b16 %v9345
    %v9610 = vunpack.c.l.b16 %v9346
    %v9611 = vunpack.c.l.b16 %v9347
    %v9612 = vunpack.c.l.b16 %v9348
    %v9613 = vunpack.c.l.b16 %v9349
    %v9614 = vunpack.c.l.b16 %v9350
    %v9615 = vunpack.c.l.b16 %v9351
    %v9616 = vunpack.c.l.b16 %v9352
    %v9617 = vunpack.c.l.b16 %v9353
    %v9618 = vunpack.c.l.b16 %v9354
    %v9619 = vunpack.c.l.b16 %v9355
    %v9620 = vunpack.c.l.b16 %v9356
    %v9621 = vunpack.c.l.b16 %v9357
    %v9622 = vunpack.c.l.b16 %v9358
    %v9623 = vunpack.c.l.b16 %v9359
    %v9624 = vunpack.c.l.b16 %v9360
    %v9625 = vunpack.c.l.b16 %v9361
    %v9626 = vunpack.c.l.b16 %v9362
    %v9627 = vunpack.c.l.b16 %v9363
    %v9628 = vunpack.c.l.b16 %v9364
    %v9629 = vunpack.c.l.b16 %v9365
    %v9630 = vunpack.c.l.b16 %v9366
    %v9631 = vunpack.c.l.b16 %v9367
    %v9632 = vunpack.c.l.b16 %v9368
    %v9633 = vunpack.c.l.b16 %v9369
    %v9634 = vunpack.c.l.b16 %v9370
    %v9635 = vunpack.c.l.b16 %v9371
    %v9636 = vunpack.c.l.b16 %v9372
    %v9637 = vpack.c.b16 %v9510, %v9509
    %v9638 = vpack.c.b16 %v9512, %v9511
    %v9639 = vpack.c.b16 %v9514, %v9513
    %v9640 = vpack.c.b16 %v9516, %v9515
    %v9641 = vpack.c.b16 %v9518, %v9517
    %v9642 = vpack.c.b16 %v9520, %v9519
    %v9643 = vpack.c.b16 %v9522, %v9521
    %v9644 = vpack.c.b16 %v9524, %v9523
    %v9645 = vpack.c.b16 %v9526, %v9525
    %v9646 = vpack.c.b16 %v9528, %v9527
    %v9647 = vpack.c.b16 %v9530, %v9529
    %v9648 = vpack.c.b16 %v9532, %v9531
    %v9649 = vpack.c.b16 %v9534, %v9533
    %v9650 = vpack.c.b16 %v9536, %v9535
    %v9651 = vpack.c.b16 %v9538, %v9537
    %v9652 = vpack.c.b16 %v9540, %v9539
    %v9653 = vpack.c.b16 %v9542, %v9541
    %v9654 = vpack.c.b16 %v9544, %v9543
    %v9655 = vpack.c.b16 %v9546, %v9545
    %v9656 = vpack.c.b16 %v9548, %v9547
    %v9657 = vpack.c.b16 %v9550, %v9549
    %v9658 = vpack.c.b16 %v9552, %v9551
    %v9659 = vpack.c.b16 %v9554, %v9553
    %v9660 = vpack.c.b16 %v9556, %v9555
    %v9661 = vpack.c.b16 %v9558, %v9557
    %v9662 = vpack.c.b16 %v9560, %v9559
    %v9663 = vpack.c.b16 %v9562, %v9561
    %v9664 = vpack.c.b16 %v9564, %v9563
    %v9665 = vpack.c.b16 %v9566, %v9565
    %v9666 = vpack.c.b16 %v9568, %v9567
    %v9667 = vpack.c.b16 %v9570, %v9569
    %v9668 = vpack.c.b16 %v9572, %v9571
    %v9669 = vpack.c.b16 %v9574, %v9573
    %v9670 = vpack.c.b16 %v9576, %v9575
    %v9671 = vpack.c.b16 %v9578, %v9577
    %v9672 = vpack.c.b16 %v9580, %v9579
    %v9673 = vpack.c.b16 %v9582, %v9581
    %v9674 = vpack.c.b16 %v9584, %v9583
    %v9675 = vpack.c.b16 %v9586, %v9585
    %v9676 = vpack.c.b16 %v9588, %v9587
    %v9677 = vpack.c.b16 %v9590, %v9589
    %v9678 = vpack.c.b16 %v9592, %v9591
    %v9679 = vpack.c.b16 %v9594, %v9593
    %v9680 = vpack.c.b16 %v9596, %v9595
    %v9681 = vpack.c.b16 %v9598, %v9597
    %v9682 = vpack.c.b16 %v9600, %v9599
    %v9683 = vpack.c.b16 %v9602, %v9601
    %v9684 = vpack.c.b16 %v9604, %v9603
    %v9685 = vpack.c.b16 %v9606, %v9605
    %v9686 = vpack.c.b16 %v9608, %v9607
    %v9687 = vpack.c.b16 %v9610, %v9609
    %v9688 = vpack.c.b16 %v9612, %v9611
    %v9689 = vpack.c.b16 %v9614, %v9613
    %v9690 = vpack.c.b16 %v9616, %v9615
    %v9691 = vpack.c.b16 %v9618, %v9617
    %v9692 = vpack.c.b16 %v9620, %v9619
    %v9693 = vpack.c.b16 %v9622, %v9621
    %v9694 = vpack.c.b16 %v9624, %v9623
    %v9695 = vpack.c.b16 %v9626, %v9625
    %v9696 = vpack.c.b16 %v9628, %v9627
    %v9697 = vpack.c.b16 %v9630, %v9629
    %v9698 = vpack.c.b16 %v9632, %v9631
    %v9699 = vpack.c.b16 %v9634, %v9633
    %v9700 = vpack.c.b16 %v9636, %v9635
    %9765 = vmatprep.subr.bf16.mxu0 0
    %9766 = vmatpush1.bf16.msra.mxu0 %v9644
    %9767 = vmatprep.subr.bf16.mxu0 0
    %9768 = vmatpush1.bf16.msra.mxu0 %v9643
    %9769 = vmatprep.subr.bf16.mxu0 0
    %9770 = vmatpush1.bf16.msra.mxu0 %v9642
    %9771 = vmatprep.subr.bf16.mxu0 0
    %9772 = vmatpush1.bf16.msra.mxu0 %v9641
    %9773 = vmatprep.subr.bf16.mxu0 0
    %9774 = vmatpush1.bf16.msra.mxu0 %v9640
    %9775 = vmatprep.subr.bf16.mxu0 0
    %9776 = vmatpush1.bf16.msra.mxu0 %v9639
    %9777 = vmatprep.subr.bf16.mxu0 0
    %9778 = vmatpush1.bf16.msra.mxu0 %v9638
    %9779 = vmatprep.subr.bf16.mxu0 0
    %9780 = vmatpush1.bf16.msra.mxu0 %v9637
    %9781 = vmatprep.subr.bf16.mxu0 0
    %9782 = vmatpush2.bf16.msra.mxu0 %v9652
    %9783 = vmatprep.subr.bf16.mxu0 0
    %9784 = vmatpush2.bf16.msra.mxu0 %v9651
    %9785 = vmatprep.subr.bf16.mxu0 0
    %9786 = vmatpush2.bf16.msra.mxu0 %v9650
    %9787 = vmatprep.subr.bf16.mxu0 0
    %9788 = vmatpush2.bf16.msra.mxu0 %v9649
    %9789 = vmatprep.subr.bf16.mxu0 0
    %9790 = vmatpush2.bf16.msra.mxu0 %v9648
    %9791 = vmatprep.subr.bf16.mxu0 0
    %9792 = vmatpush2.bf16.msra.mxu0 %v9647
    %9793 = vmatprep.subr.bf16.mxu0 0
    %9794 = vmatpush2.bf16.msra.mxu0 %v9646
    %9795 = vmatprep.subr.bf16.mxu0 0
    %9796 = vmatpush2.bf16.msra.mxu0 %v9645
    %9797 = vmatprep.mubr.bf16.mxu0 %v4444
    %9798 = vmatmul.mubr.bf16.gmra.mxu0 %v4443
    %v9799 = vpop.f32.mrf.mxu0
    %v9800 = vadd.f32 %v9379, %v9799
    %v9801 = vpop.f32.mrf.mxu0
    %v9802 = vpop.f32.mrf.mxu0
    %v9803 = vpop.f32.mrf.mxu0
    %9804 = vdwg.mxu0
    %9805 = vmatprep.subr.bf16.mxu0 0
    %9806 = vmatpush1.bf16.msra.mxu0 %v9660
    %9807 = vmatprep.subr.bf16.mxu0 0
    %9808 = vmatpush1.bf16.msra.mxu0 %v9659
    %9809 = vmatprep.subr.bf16.mxu0 0
    %9810 = vmatpush1.bf16.msra.mxu0 %v9658
    %9811 = vmatprep.subr.bf16.mxu0 0
    %9812 = vmatpush1.bf16.msra.mxu0 %v9657
    %9813 = vmatprep.subr.bf16.mxu0 0
    %9814 = vmatpush1.bf16.msra.mxu0 %v9656
    %9815 = vmatprep.subr.bf16.mxu0 0
    %9816 = vmatpush1.bf16.msra.mxu0 %v9655
    %9817 = vmatprep.subr.bf16.mxu0 0
    %9818 = vmatpush1.bf16.msra.mxu0 %v9654
    %9819 = vmatprep.subr.bf16.mxu0 0
    %9820 = vmatpush1.bf16.msra.mxu0 %v9653
    %9821 = vmatprep.subr.bf16.mxu0 0
    %9822 = vmatpush2.bf16.msra.mxu0 %v9668
    %9823 = vmatprep.subr.bf16.mxu0 0
    %9824 = vmatpush2.bf16.msra.mxu0 %v9667
    %9825 = vmatprep.subr.bf16.mxu0 0
    %9826 = vmatpush2.bf16.msra.mxu0 %v9666
    %9827 = vmatprep.subr.bf16.mxu0 0
    %9828 = vmatpush2.bf16.msra.mxu0 %v9665
    %9829 = vmatprep.subr.bf16.mxu0 0
    %9830 = vmatpush2.bf16.msra.mxu0 %v9664
    %9831 = vmatprep.subr.bf16.mxu0 0
    %9832 = vmatpush2.bf16.msra.mxu0 %v9663
    %9833 = vmatprep.subr.bf16.mxu0 0
    %9834 = vmatpush2.bf16.msra.mxu0 %v9662
    %9835 = vmatprep.subr.bf16.mxu0 0
    %9836 = vmatpush2.bf16.msra.mxu0 %v9661
    %9837 = vmatprep.mubr.bf16.mxu0 %v4446
    %9838 = vmatmul.mubr.bf16.gmra.mxu0 %v4445
    %v9839 = vpop.f32.mrf.mxu0
    %v9840 = vadd.f32 %v9800, %v9839
    %v9841 = vpop.f32.mrf.mxu0
    %v9842 = vpop.f32.mrf.mxu0
    %v9843 = vpop.f32.mrf.mxu0
    %9844 = vdwg.mxu0
    %9845 = vmatprep.subr.bf16.mxu0 0
    %9846 = vmatpush1.bf16.msra.mxu0 %v9676
    %9847 = vmatprep.subr.bf16.mxu0 0
    %9848 = vmatpush1.bf16.msra.mxu0 %v9675
    %9849 = vmatprep.subr.bf16.mxu0 0
    %9850 = vmatpush1.bf16.msra.mxu0 %v9674
    %9851 = vmatprep.subr.bf16.mxu0 0
    %9852 = vmatpush1.bf16.msra.mxu0 %v9673
    %9853 = vmatprep.subr.bf16.mxu0 0
    %9854 = vmatpush1.bf16.msra.mxu0 %v9672
    %9855 = vmatprep.subr.bf16.mxu0 0
    %9856 = vmatpush1.bf16.msra.mxu0 %v9671
    %9857 = vmatprep.subr.bf16.mxu0 0
    %9858 = vmatpush1.bf16.msra.mxu0 %v9670
    %9859 = vmatprep.subr.bf16.mxu0 0
    %9860 = vmatpush1.bf16.msra.mxu0 %v9669
    %9861 = vmatprep.subr.bf16.mxu0 0
    %9862 = vmatpush2.bf16.msra.mxu0 %v9684
    %9863 = vmatprep.subr.bf16.mxu0 0
    %9864 = vmatpush2.bf16.msra.mxu0 %v9683
    %9865 = vmatprep.subr.bf16.mxu0 0
    %9866 = vmatpush2.bf16.msra.mxu0 %v9682
    %9867 = vmatprep.subr.bf16.mxu0 0
    %9868 = vmatpush2.bf16.msra.mxu0 %v9681
    %9869 = vmatprep.subr.bf16.mxu0 0
    %9870 = vmatpush2.bf16.msra.mxu0 %v9680
    %9871 = vmatprep.subr.bf16.mxu0 0
    %9872 = vmatpush2.bf16.msra.mxu0 %v9679
    %9873 = vmatprep.subr.bf16.mxu0 0
    %9874 = vmatpush2.bf16.msra.mxu0 %v9678
    %9875 = vmatprep.subr.bf16.mxu0 0
    %9876 = vmatpush2.bf16.msra.mxu0 %v9677
    %9877 = vmatprep.mubr.bf16.mxu0 %v4448
    %9878 = vmatmul.mubr.bf16.gmra.mxu0 %v4447
    %v9879 = vpop.f32.mrf.mxu0
    %v9880 = vadd.f32 %v9840, %v9879
    %v9881 = vpop.f32.mrf.mxu0
    %v9882 = vpop.f32.mrf.mxu0
    %v9883 = vpop.f32.mrf.mxu0
    %9884 = vdwg.mxu0
    %9885 = vmatprep.subr.bf16.mxu0 0
    %9886 = vmatpush1.bf16.msra.mxu0 %v9692
    %9887 = vmatprep.subr.bf16.mxu0 0
    %9888 = vmatpush1.bf16.msra.mxu0 %v9691
    %9889 = vmatprep.subr.bf16.mxu0 0
    %9890 = vmatpush1.bf16.msra.mxu0 %v9690
    %9891 = vmatprep.subr.bf16.mxu0 0
    %9892 = vmatpush1.bf16.msra.mxu0 %v9689
    %9893 = vmatprep.subr.bf16.mxu0 0
    %9894 = vmatpush1.bf16.msra.mxu0 %v9688
    %9895 = vmatprep.subr.bf16.mxu0 0
    %9896 = vmatpush1.bf16.msra.mxu0 %v9687
    %9897 = vmatprep.subr.bf16.mxu0 0
    %9898 = vmatpush1.bf16.msra.mxu0 %v9686
    %9899 = vmatprep.subr.bf16.mxu0 0
    %9900 = vmatpush1.bf16.msra.mxu0 %v9685
    %9901 = vmatprep.subr.bf16.mxu0 0
    %9902 = vmatpush2.bf16.msra.mxu0 %v9700
    %9903 = vmatprep.subr.bf16.mxu0 0
    %9904 = vmatpush2.bf16.msra.mxu0 %v9699
    %9905 = vmatprep.subr.bf16.mxu0 0
    %9906 = vmatpush2.bf16.msra.mxu0 %v9698
    %9907 = vmatprep.subr.bf16.mxu0 0
    %9908 = vmatpush2.bf16.msra.mxu0 %v9697
    %9909 = vmatprep.subr.bf16.mxu0 0
    %9910 = vmatpush2.bf16.msra.mxu0 %v9696
    %9911 = vmatprep.subr.bf16.mxu0 0
    %9912 = vmatpush2.bf16.msra.mxu0 %v9695
    %9913 = vmatprep.subr.bf16.mxu0 0
    %9914 = vmatpush2.bf16.msra.mxu0 %v9694
    %9915 = vmatprep.subr.bf16.mxu0 0
    %9916 = vmatpush2.bf16.msra.mxu0 %v9693
    %9917 = vmatprep.mubr.bf16.mxu0 %v4450
    %9918 = vmatmul.mubr.bf16.gmra.mxu0 %v4449
    %v9919 = vpop.f32.mrf.mxu0
    %v9920 = vadd.f32 %v9880, %v9919
    %v9921 = vpop.f32.mrf.mxu0
    %v9922 = vpop.f32.mrf.mxu0
    %v9923 = vpop.f32.mrf.mxu0
    %9924 = vdwg.mxu0
    %vm9925 = vcmp.gt.f32.partialorder %v9920, 0.0
    %v9926 = vmul.f32 %v9920, 0.2
    %v9927 = vsel %vm9925, %v9920, %v9926
    %9928 = vst [vmem:[#allocation2 + $0xe] sm:$0x3] %v9927
    %v9929 = vld [vmem:[#allocation2] sm:$0xff]
    %v9930 = vld [vmem:[#allocation2 + $0x8] sm:$0xff]
    %v9931 = vadd.f32 %v9929, %v9930
    %v9932 = vrot.slane %v9931, 4
    %v9933 = vadd.f32 %v9931, %v9932
    %v9934 = vrot.slane %v9933, 2
    %v9935 = vadd.f32 %v9933, %v9934
    %v9936 = vrot.slane %v9935, 1
    %v9937 = vadd.f32 %v9935, %v9936
    %v9938 = vrcp.pop 16.0
    %v9939 = vmul.f32 %v9937, %v9938
    %v9940 = vmul.f32 %v9929, %v9929
    %v9941 = vmul.f32 %v9930, %v9930
    %v9942 = vadd.f32 %v9940, %v9941
    %v9943 = vrot.slane %v9942, 4
    %v9944 = vadd.f32 %v9942, %v9943
    %v9945 = vrot.slane %v9944, 2
    %v9946 = vadd.f32 %v9944, %v9945
    %v9947 = vrot.slane %v9946, 1
    %v9948 = vadd.f32 %v9946, %v9947
    %v9949 = vmul.f32 %v9948, %v9938
    %v9950 = vmul.f32 %v9939, %v9939
    %v9951 = vsub.f32 %v9949, %v9950
    %v9952 = vsub.f32 %v9929, %v9939
    %v9953 = vsub.f32 %v9930, %v9939
    %v9954 = vadd.f32 %v9951, 1e-05
    %v9955 = vrsqrt.pop %v9954
    %v9956 = vmul.f32 %v9952, %v9955
    %v9957 = vmul.f32 %v9953, %v9955
    %v9958 = vld [vmem:[#allocation15] sm:$0x1]
    %v9960 = vlaneseq
    %v9961 = vshrl.u32 %v9960, 7
    %v9962 = vsub.s32 0, %v9961
    %v9963 = vrot.slane %v9958, %v9962
    %v9965 = vmul.f32 %v9956, %v9963
    %v9966 = vmul.f32 %v9957, %v9963
    %v9967 = vld [vmem:[#allocation17] sm:$0x1]
    %v9969 = vlaneseq
    %v9970 = vshrl.u32 %v9969, 7
    %v9971 = vsub.s32 0, %v9970
    %v9972 = vrot.slane %v9967, %v9971
    %v9974 = vadd.f32 %v9965, %v9972
    %v9975 = vadd.f32 %v9966, %v9972
    %v9976 = vpack.c.bf16 %v9975, %v9974
    %v9977 = vld [vmem:[#allocation18] sm:$0xff]
    %v9978 = vld [vmem:[#allocation18 + $0x8] sm:$0xff]
    %v9979 = vld [vmem:[#allocation18 + $0x10] sm:$0xff]
    %v9980 = vld [vmem:[#allocation18 + $0x18] sm:$0xff]
    %v9981 = vld [vmem:[#allocation18 + $0x20] sm:$0xff]
    %v9982 = vld [vmem:[#allocation18 + $0x28] sm:$0xff]
    %v9983 = vld [vmem:[#allocation18 + $0x30] sm:$0xff]
    %v9984 = vld [vmem:[#allocation18 + $0x38] sm:$0xff]
    %v9985 = vld [vmem:[#allocation18 + $0x40] sm:$0xff]
    %v9986 = vld [vmem:[#allocation18 + $0x48] sm:$0xff]
    %v9987 = vld [vmem:[#allocation18 + $0x50] sm:$0xff]
    %v9988 = vld [vmem:[#allocation18 + $0x58] sm:$0xff]
    %v9989 = vld [vmem:[#allocation18 + $0x60] sm:$0xff]
    %v9990 = vld [vmem:[#allocation18 + $0x68] sm:$0xff]
    %v9991 = vld [vmem:[#allocation18 + $0x70] sm:$0xff]
    %v9992 = vld [vmem:[#allocation18 + $0x78] sm:$0xff]
    %v9993 = vld [vmem:[#allocation18 + $0x80] sm:$0xff]
    %v9994 = vld [vmem:[#allocation18 + $0x88] sm:$0xff]
    %v9995 = vld [vmem:[#allocation18 + $0x90] sm:$0xff]
    %v9996 = vld [vmem:[#allocation18 + $0x98] sm:$0xff]
    %v9997 = vld [vmem:[#allocation18 + $0xa0] sm:$0xff]
    %v9998 = vld [vmem:[#allocation18 + $0xa8] sm:$0xff]
    %v9999 = vld [vmem:[#allocation18 + $0xb0] sm:$0xff]
    %v10000 = vld [vmem:[#allocation18 + $0xb8] sm:$0xff]
    %v10001 = vld [vmem:[#allocation18 + $0xc0] sm:$0xff]
    %v10002 = vld [vmem:[#allocation18 + $0xc8] sm:$0xff]
    %v10003 = vld [vmem:[#allocation18 + $0xd0] sm:$0xff]
    %v10004 = vld [vmem:[#allocation18 + $0xd8] sm:$0xff]
    %v10005 = vld [vmem:[#allocation18 + $0xe0] sm:$0xff]
    %v10006 = vld [vmem:[#allocation18 + $0xe8] sm:$0xff]
    %v10007 = vld [vmem:[#allocation18 + $0xf0] sm:$0xff]
    %v10008 = vld [vmem:[#allocation18 + $0xf8] sm:$0xff]
    %v10009 = vld [vmem:[#allocation20] sm:$0xf]
    %v10011 = vlaneseq
    %v10012 = vshrl.u32 %v10011, 7
    %v10013 = vsub.s32 0, %v10012
    %v10014 = vrot.slane %v10009, %v10013
    %v10015 = vlaneseq
    %v10016 = vshrl.u32 %v10015, 7
    %v10017 = vsub.s32 1, %v10016
    %v10018 = vrot.slane %v10009, %v10017
    %v10019 = vlaneseq
    %v10020 = vshrl.u32 %v10019, 7
    %v10021 = vsub.s32 2, %v10020
    %v10022 = vrot.slane %v10009, %v10021
    %v10023 = vlaneseq
    %v10024 = vshrl.u32 %v10023, 7
    %v10025 = vsub.s32 3, %v10024
    %v10026 = vrot.slane %v10009, %v10025
    %v10063 = vunpack.c.l.b16 %v9977
    %v10064 = vunpack.c.h.b16 %v9977
    %v10065 = vunpack.c.l.b16 %v9978
    %v10066 = vunpack.c.h.b16 %v9978
    %v10067 = vunpack.c.l.b16 %v9979
    %v10068 = vunpack.c.h.b16 %v9979
    %v10069 = vunpack.c.l.b16 %v9980
    %v10070 = vunpack.c.h.b16 %v9980
    %v10071 = vunpack.c.l.b16 %v9981
    %v10072 = vunpack.c.h.b16 %v9981
    %v10073 = vunpack.c.l.b16 %v9982
    %v10074 = vunpack.c.h.b16 %v9982
    %v10075 = vunpack.c.l.b16 %v9983
    %v10076 = vunpack.c.h.b16 %v9983
    %v10077 = vunpack.c.l.b16 %v9984
    %v10078 = vunpack.c.h.b16 %v9984
    %v10079 = vunpack.c.l.b16 %v9985
    %v10080 = vunpack.c.h.b16 %v9985
    %v10081 = vunpack.c.l.b16 %v9986
    %v10082 = vunpack.c.h.b16 %v9986
    %v10083 = vunpack.c.l.b16 %v9987
    %v10084 = vunpack.c.h.b16 %v9987
    %v10085 = vunpack.c.l.b16 %v9988
    %v10086 = vunpack.c.h.b16 %v9988
    %v10087 = vunpack.c.l.b16 %v9989
    %v10088 = vunpack.c.h.b16 %v9989
    %v10089 = vunpack.c.l.b16 %v9990
    %v10090 = vunpack.c.h.b16 %v9990
    %v10091 = vunpack.c.l.b16 %v9991
    %v10092 = vunpack.c.h.b16 %v9991
    %v10093 = vunpack.c.l.b16 %v9992
    %v10094 = vunpack.c.h.b16 %v9992
    %v10095 = vunpack.c.l.b16 %v9993
    %v10096 = vunpack.c.h.b16 %v9993
    %v10097 = vunpack.c.l.b16 %v9994
    %v10098 = vunpack.c.h.b16 %v9994
    %v10099 = vunpack.c.l.b16 %v9995
    %v10100 = vunpack.c.h.b16 %v9995
    %v10101 = vunpack.c.l.b16 %v9996
    %v10102 = vunpack.c.h.b16 %v9996
    %v10103 = vunpack.c.l.b16 %v9997
    %v10104 = vunpack.c.h.b16 %v9997
    %v10105 = vunpack.c.l.b16 %v9998
    %v10106 = vunpack.c.h.b16 %v9998
    %v10107 = vunpack.c.l.b16 %v9999
    %v10108 = vunpack.c.h.b16 %v9999
    %v10109 = vunpack.c.l.b16 %v10000
    %v10110 = vunpack.c.h.b16 %v10000
    %v10111 = vunpack.c.l.b16 %v10001
    %v10112 = vunpack.c.h.b16 %v10001
    %v10113 = vunpack.c.l.b16 %v10002
    %v10114 = vunpack.c.h.b16 %v10002
    %v10115 = vunpack.c.l.b16 %v10003
    %v10116 = vunpack.c.h.b16 %v10003
    %v10117 = vunpack.c.l.b16 %v10004
    %v10118 = vunpack.c.h.b16 %v10004
    %v10119 = vunpack.c.l.b16 %v10005
    %v10120 = vunpack.c.h.b16 %v10005
    %v10121 = vunpack.c.l.b16 %v10006
    %v10122 = vunpack.c.h.b16 %v10006
    %v10123 = vunpack.c.l.b16 %v10007
    %v10124 = vunpack.c.h.b16 %v10007
    %v10125 = vunpack.c.l.b16 %v10008
    %v10126 = vunpack.c.h.b16 %v10008
    %v10127 = vpack.c.b16 %v10067, %v10063
    %v10128 = vpack.c.b16 %v10068, %v10064
    %v10129 = vpack.c.b16 %v10069, %v10065
    %v10130 = vpack.c.b16 %v10070, %v10066
    %v10131 = vpack.c.b16 %v10075, %v10071
    %v10132 = vpack.c.b16 %v10076, %v10072
    %v10133 = vpack.c.b16 %v10077, %v10073
    %v10134 = vpack.c.b16 %v10078, %v10074
    %v10135 = vpack.c.b16 %v10083, %v10079
    %v10136 = vpack.c.b16 %v10084, %v10080
    %v10137 = vpack.c.b16 %v10085, %v10081
    %v10138 = vpack.c.b16 %v10086, %v10082
    %v10139 = vpack.c.b16 %v10091, %v10087
    %v10140 = vpack.c.b16 %v10092, %v10088
    %v10141 = vpack.c.b16 %v10093, %v10089
    %v10142 = vpack.c.b16 %v10094, %v10090
    %v10143 = vpack.c.b16 %v10099, %v10095
    %v10144 = vpack.c.b16 %v10100, %v10096
    %v10145 = vpack.c.b16 %v10101, %v10097
    %v10146 = vpack.c.b16 %v10102, %v10098
    %v10147 = vpack.c.b16 %v10107, %v10103
    %v10148 = vpack.c.b16 %v10108, %v10104
    %v10149 = vpack.c.b16 %v10109, %v10105
    %v10150 = vpack.c.b16 %v10110, %v10106
    %v10151 = vpack.c.b16 %v10115, %v10111
    %v10152 = vpack.c.b16 %v10116, %v10112
    %v10153 = vpack.c.b16 %v10117, %v10113
    %v10154 = vpack.c.b16 %v10118, %v10114
    %v10155 = vpack.c.b16 %v10123, %v10119
    %v10156 = vpack.c.b16 %v10124, %v10120
    %v10157 = vpack.c.b16 %v10125, %v10121
    %v10158 = vpack.c.b16 %v10126, %v10122
    %10191 = vmatprep.subr.bf16.mxu0 %v10156
    %10192 = vmatpush1.bf16.msra.mxu0 %v10155
    %10193 = vmatprep.subr.bf16.mxu0 %v10152
    %10194 = vmatpush1.bf16.msra.mxu0 %v10151
    %10195 = vmatprep.subr.bf16.mxu0 %v10148
    %10196 = vmatpush1.bf16.msra.mxu0 %v10147
    %10197 = vmatprep.subr.bf16.mxu0 %v10144
    %10198 = vmatpush1.bf16.msra.mxu0 %v10143
    %10199 = vmatprep.subr.bf16.mxu0 %v10140
    %10200 = vmatpush1.bf16.msra.mxu0 %v10139
    %10201 = vmatprep.subr.bf16.mxu0 %v10136
    %10202 = vmatpush1.bf16.msra.mxu0 %v10135
    %10203 = vmatprep.subr.bf16.mxu0 %v10132
    %10204 = vmatpush1.bf16.msra.mxu0 %v10131
    %10205 = vmatprep.subr.bf16.mxu0 %v10128
    %10206 = vmatpush1.bf16.msra.mxu0 %v10127
    %10207 = vmatprep.subr.bf16.mxu0 0
    %10208 = vmatpush2.bf16.msra.mxu0 0
    %10209 = vmatprep.subr.bf16.mxu0 0
    %10210 = vmatpush2.bf16.msra.mxu0 0
    %10211 = vmatprep.subr.bf16.mxu0 0
    %10212 = vmatpush2.bf16.msra.mxu0 0
    %10213 = vmatprep.subr.bf16.mxu0 0
    %10214 = vmatpush2.bf16.msra.mxu0 0
    %10215 = vmatprep.subr.bf16.mxu0 0
    %10216 = vmatpush2.bf16.msra.mxu0 0
    %10217 = vmatprep.subr.bf16.mxu0 0
    %10218 = vmatpush2.bf16.msra.mxu0 0
    %10219 = vmatprep.subr.bf16.mxu0 0
    %10220 = vmatpush2.bf16.msra.mxu0 0
    %10221 = vmatprep.subr.bf16.mxu0 0
    %10222 = vmatpush2.bf16.msra.mxu0 0
    %10223 = vmatprep.mubr.bf16.mxu0 0
    %10224 = vmatmul.mubr.bf16.gmra.mxu0 %v9976
    %v10225 = vpop.f32.mrf.mxu0
    %v10226 = vadd.f32 %v10014, %v10225
    %v10227 = vpop.f32.mrf.mxu0
    %v10228 = vadd.f32 %v10018, %v10227
    %v10229 = vpop.f32.mrf.mxu0
    %v10230 = vadd.f32 %v10014, %v10229
    %v10231 = vpop.f32.mrf.mxu0
    %v10232 = vadd.f32 %v10018, %v10231
    %10233 = vdwg.mxu0
    %10234 = vmatprep.subr.bf16.mxu0 %v10158
    %10235 = vmatpush1.bf16.msra.mxu0 %v10157
    %10236 = vmatprep.subr.bf16.mxu0 %v10154
    %10237 = vmatpush1.bf16.msra.mxu0 %v10153
    %10238 = vmatprep.subr.bf16.mxu0 %v10150
    %10239 = vmatpush1.bf16.msra.mxu0 %v10149
    %10240 = vmatprep.subr.bf16.mxu0 %v10146
    %10241 = vmatpush1.bf16.msra.mxu0 %v10145
    %10242 = vmatprep.subr.bf16.mxu0 %v10142
    %10243 = vmatpush1.bf16.msra.mxu0 %v10141
    %10244 = vmatprep.subr.bf16.mxu0 %v10138
    %10245 = vmatpush1.bf16.msra.mxu0 %v10137
    %10246 = vmatprep.subr.bf16.mxu0 %v10134
    %10247 = vmatpush1.bf16.msra.mxu0 %v10133
    %10248 = vmatprep.subr.bf16.mxu0 %v10130
    %10249 = vmatpush1.bf16.msra.mxu0 %v10129
    %10250 = vmatprep.subr.bf16.mxu0 0
    %10251 = vmatpush2.bf16.msra.mxu0 0
    %10252 = vmatprep.subr.bf16.mxu0 0
    %10253 = vmatpush2.bf16.msra.mxu0 0
    %10254 = vmatprep.subr.bf16.mxu0 0
    %10255 = vmatpush2.bf16.msra.mxu0 0
    %10256 = vmatprep.subr.bf16.mxu0 0
    %10257 = vmatpush2.bf16.msra.mxu0 0
    %10258 = vmatprep.subr.bf16.mxu0 0
    %10259 = vmatpush2.bf16.msra.mxu0 0
    %10260 = vmatprep.subr.bf16.mxu0 0
    %10261 = vmatpush2.bf16.msra.mxu0 0
    %10262 = vmatprep.subr.bf16.mxu0 0
    %10263 = vmatpush2.bf16.msra.mxu0 0
    %10264 = vmatprep.subr.bf16.mxu0 0
    %10265 = vmatpush2.bf16.msra.mxu0 0
    %10266 = vmatprep.mubr.bf16.mxu0 0
    %10267 = vmatmul.mubr.bf16.gmra.mxu0 %v9976
    %v10268 = vpop.f32.mrf.mxu0
    %v10269 = vadd.f32 %v10022, %v10268
    %v10270 = vpop.f32.mrf.mxu0
    %v10271 = vadd.f32 %v10026, %v10270
    %v10272 = vpop.f32.mrf.mxu0
    %v10273 = vadd.f32 %v10022, %v10272
    %v10274 = vpop.f32.mrf.mxu0
    %v10275 = vadd.f32 %v10026, %v10274
    %10276 = vdwg.mxu0
    %vm10277 = vcmp.gt.f32.partialorder %v10226, 0.0
    %vm10278 = vcmp.gt.f32.partialorder %v10228, 0.0
    %vm10279 = vcmp.gt.f32.partialorder %v10269, 0.0
    %vm10280 = vcmp.gt.f32.partialorder %v10271, 0.0
    %vm10281 = vcmp.gt.f32.partialorder %v10230, 0.0
    %vm10282 = vcmp.gt.f32.partialorder %v10232, 0.0
    %vm10283 = vcmp.gt.f32.partialorder %v10273, 0.0
    %vm10284 = vcmp.gt.f32.partialorder %v10275, 0.0
    %v10285 = vmul.f32 %v10226, 0.2
    %v10286 = vmul.f32 %v10228, 0.2
    %v10287 = vmul.f32 %v10269, 0.2
    %v10288 = vmul.f32 %v10271, 0.2
    %v10289 = vmul.f32 %v10230, 0.2
    %v10290 = vmul.f32 %v10232, 0.2
    %v10291 = vmul.f32 %v10273, 0.2
    %v10292 = vmul.f32 %v10275, 0.2
    %v10293 = vsel %vm10277, %v10226, %v10285
    %v10294 = vsel %vm10278, %v10228, %v10286
    %v10295 = vsel %vm10279, %v10269, %v10287
    %v10296 = vsel %vm10280, %v10271, %v10288
    %v10297 = vsel %vm10281, %v10230, %v10289
    %v10298 = vsel %vm10282, %v10232, %v10290
    %v10299 = vsel %vm10283, %v10273, %v10291
    %v10300 = vsel %vm10284, %v10275, %v10292
    %v10301 = vadd.f32 %v10293, %v10297
    %v10302 = vrot.slane %v10301, 4
    %v10303 = vadd.f32 %v10301, %v10302
    %v10304 = vrot.slane %v10303, 2
    %v10305 = vadd.f32 %v10303, %v10304
    %v10306 = vrot.slane %v10305, 1
    %v10307 = vadd.f32 %v10305, %v10306
    %v10308 = vadd.f32 %v10294, %v10298
    %v10309 = vrot.slane %v10308, 4
    %v10310 = vadd.f32 %v10308, %v10309
    %v10311 = vrot.slane %v10310, 2
    %v10312 = vadd.f32 %v10310, %v10311
    %v10313 = vrot.slane %v10312, 1
    %v10314 = vadd.f32 %v10312, %v10313
    %v10315 = vadd.f32 %v10295, %v10299
    %v10316 = vrot.slane %v10315, 4
    %v10317 = vadd.f32 %v10315, %v10316
    %v10318 = vrot.slane %v10317, 2
    %v10319 = vadd.f32 %v10317, %v10318
    %v10320 = vrot.slane %v10319, 1
    %v10321 = vadd.f32 %v10319, %v10320
    %v10322 = vadd.f32 %v10296, %v10300
    %v10323 = vrot.slane %v10322, 4
    %v10324 = vadd.f32 %v10322, %v10323
    %v10325 = vrot.slane %v10324, 2
    %v10326 = vadd.f32 %v10324, %v10325
    %v10327 = vrot.slane %v10326, 1
    %v10328 = vadd.f32 %v10326, %v10327
    %v10329 = vmul.f32 %v10307, %v9938
    %v10330 = vmul.f32 %v10314, %v9938
    %v10331 = vmul.f32 %v10321, %v9938
    %v10332 = vmul.f32 %v10328, %v9938
    %v10333 = vmul.f32 %v10293, %v10293
    %v10334 = vmul.f32 %v10294, %v10294
    %v10335 = vmul.f32 %v10295, %v10295
    %v10336 = vmul.f32 %v10296, %v10296
    %v10337 = vmul.f32 %v10297, %v10297
    %v10338 = vmul.f32 %v10298, %v10298
    %v10339 = vmul.f32 %v10299, %v10299
    %v10340 = vmul.f32 %v10300, %v10300
    %v10341 = vadd.f32 %v10333, %v10337
    %v10342 = vrot.slane %v10341, 4
    %v10343 = vadd.f32 %v10341, %v10342
    %v10344 = vrot.slane %v10343, 2
    %v10345 = vadd.f32 %v10343, %v10344
    %v10346 = vrot.slane %v10345, 1
    %v10347 = vadd.f32 %v10345, %v10346
    %v10348 = vadd.f32 %v10334, %v10338
    %v10349 = vrot.slane %v10348, 4
    %v10350 = vadd.f32 %v10348, %v10349
    %v10351 = vrot.slane %v10350, 2
    %v10352 = vadd.f32 %v10350, %v10351
    %v10353 = vrot.slane %v10352, 1
    %v10354 = vadd.f32 %v10352, %v10353
    %v10355 = vadd.f32 %v10335, %v10339
    %v10356 = vrot.slane %v10355, 4
    %v10357 = vadd.f32 %v10355, %v10356
    %v10358 = vrot.slane %v10357, 2
    %v10359 = vadd.f32 %v10357, %v10358
    %v10360 = vrot.slane %v10359, 1
    %v10361 = vadd.f32 %v10359, %v10360
    %v10362 = vadd.f32 %v10336, %v10340
    %v10363 = vrot.slane %v10362, 4
    %v10364 = vadd.f32 %v10362, %v10363
    %v10365 = vrot.slane %v10364, 2
    %v10366 = vadd.f32 %v10364, %v10365
    %v10367 = vrot.slane %v10366, 1
    %v10368 = vadd.f32 %v10366, %v10367
    %v10369 = vmul.f32 %v10347, %v9938
    %v10370 = vmul.f32 %v10354, %v9938
    %v10371 = vmul.f32 %v10361, %v9938
    %v10372 = vmul.f32 %v10368, %v9938
    %v10373 = vmul.f32 %v10329, %v10329
    %v10374 = vmul.f32 %v10330, %v10330
    %v10375 = vmul.f32 %v10331, %v10331
    %v10376 = vmul.f32 %v10332, %v10332
    %v10377 = vsub.f32 %v10369, %v10373
    %v10378 = vsub.f32 %v10370, %v10374
    %v10379 = vsub.f32 %v10371, %v10375
    %v10380 = vsub.f32 %v10372, %v10376
    %v10381 = vsub.f32 %v10293, %v10329
    %v10382 = vsub.f32 %v10294, %v10330
    %v10383 = vsub.f32 %v10295, %v10331
    %v10384 = vsub.f32 %v10296, %v10332
    %v10385 = vsub.f32 %v10297, %v10329
    %v10386 = vsub.f32 %v10298, %v10330
    %v10387 = vsub.f32 %v10299, %v10331
    %v10388 = vsub.f32 %v10300, %v10332
    %v10389 = vadd.f32 %v10377, 0.8
    %v10390 = vadd.f32 %v10378, 0.8
    %v10391 = vadd.f32 %v10379, 0.8
    %v10392 = vadd.f32 %v10380, 0.8
    %v10393 = vrsqrt.pop %v10389
    %v10394 = vrsqrt.pop %v10390
    %v10395 = vrsqrt.pop %v10391
    %v10396 = vrsqrt.pop %v10392
    %v10397 = vmul.f32 %v10381, %v10393
    %v10398 = vmul.f32 %v10382, %v10394
    %v10399 = vmul.f32 %v10383, %v10395
    %v10400 = vmul.f32 %v10384, %v10396
    %v10401 = vmul.f32 %v10385, %v10393
    %v10402 = vmul.f32 %v10386, %v10394
    %v10403 = vmul.f32 %v10387, %v10395
    %v10404 = vmul.f32 %v10388, %v10396
    %v10405 = vld [vmem:[#allocation21] sm:$0xf]
    %v10407 = vlaneseq
    %v10408 = vshrl.u32 %v10407, 7
    %v10409 = vsub.s32 0, %v10408
    %v10410 = vrot.slane %v10405, %v10409
    %v10411 = vlaneseq
    %v10412 = vshrl.u32 %v10411, 7
    %v10413 = vsub.s32 1, %v10412
    %v10414 = vrot.slane %v10405, %v10413
    %v10415 = vlaneseq
    %v10416 = vshrl.u32 %v10415, 7
    %v10417 = vsub.s32 2, %v10416
    %v10418 = vrot.slane %v10405, %v10417
    %v10419 = vlaneseq
    %v10420 = vshrl.u32 %v10419, 7
    %v10421 = vsub.s32 3, %v10420
    %v10422 = vrot.slane %v10405, %v10421
    %v10427 = vmul.f32 %v10397, %v10410
    %v10428 = vmul.f32 %v10398, %v10414
    %v10429 = vmul.f32 %v10399, %v10418
    %v10430 = vmul.f32 %v10400, %v10422
    %v10431 = vmul.f32 %v10401, %v10410
    %v10432 = vmul.f32 %v10402, %v10414
    %v10433 = vmul.f32 %v10403, %v10418
    %v10434 = vmul.f32 %v10404, %v10422
    %v10435 = vld [vmem:[#allocation23] sm:$0xf]
    %v10437 = vlaneseq
    %v10438 = vshrl.u32 %v10437, 7
    %v10439 = vsub.s32 0, %v10438
    %v10440 = vrot.slane %v10435, %v10439
    %v10441 = vlaneseq
    %v10442 = vshrl.u32 %v10441, 7
    %v10443 = vsub.s32 1, %v10442
    %v10444 = vrot.slane %v10435, %v10443
    %v10445 = vlaneseq
    %v10446 = vshrl.u32 %v10445, 7
    %v10447 = vsub.s32 2, %v10446
    %v10448 = vrot.slane %v10435, %v10447
    %v10449 = vlaneseq
    %v10450 = vshrl.u32 %v10449, 7
    %v10451 = vsub.s32 3, %v10450
    %v10452 = vrot.slane %v10435, %v10451
    %v10457 = vadd.f32 %v10427, %v10440
    %v10458 = vadd.f32 %v10428, %v10444
    %v10459 = vadd.f32 %v10429, %v10448
    %v10460 = vadd.f32 %v10430, %v10452
    %v10461 = vadd.f32 %v10431, %v10440
    %v10462 = vadd.f32 %v10432, %v10444
    %v10463 = vadd.f32 %v10433, %v10448
    %v10464 = vadd.f32 %v10434, %v10452
    %v10465 = vpack.c.bf16 %v10461, %v10457
    %v10466 = vpack.c.bf16 %v10462, %v10458
    %v10467 = vpack.c.bf16 %v10463, %v10459
    %v10468 = vpack.c.bf16 %v10464, %v10460
    %v10469 = vld [vmem:[#allocation24] sm:$0xf]
    %v10470 = vld [vmem:[#allocation24 + $0x4] sm:$0xf]
    %v10471 = vld [vmem:[#allocation24 + $0x8] sm:$0xf]
    %v10472 = vld [vmem:[#allocation24 + $0xc] sm:$0xf]
    %v10473 = vld [vmem:[#allocation24 + $0x10] sm:$0xf]
    %v10474 = vld [vmem:[#allocation24 + $0x14] sm:$0xf]
    %v10475 = vld [vmem:[#allocation24 + $0x18] sm:$0xf]
    %v10476 = vld [vmem:[#allocation24 + $0x1c] sm:$0xf]
    %v10477 = vld [vmem:[#allocation24 + $0x20] sm:$0xf]
    %v10478 = vld [vmem:[#allocation24 + $0x24] sm:$0xf]
    %v10479 = vld [vmem:[#allocation24 + $0x28] sm:$0xf]
    %v10480 = vld [vmem:[#allocation24 + $0x2c] sm:$0xf]
    %v10481 = vld [vmem:[#allocation24 + $0x30] sm:$0xf]
    %v10482 = vld [vmem:[#allocation24 + $0x34] sm:$0xf]
    %v10483 = vld [vmem:[#allocation24 + $0x38] sm:$0xf]
    %v10484 = vld [vmem:[#allocation24 + $0x3c] sm:$0xf]
    %v10485 = vld [vmem:[#allocation24 + $0x40] sm:$0xf]
    %v10486 = vld [vmem:[#allocation24 + $0x44] sm:$0xf]
    %v10487 = vld [vmem:[#allocation24 + $0x48] sm:$0xf]
    %v10488 = vld [vmem:[#allocation24 + $0x4c] sm:$0xf]
    %v10489 = vld [vmem:[#allocation24 + $0x50] sm:$0xf]
    %v10490 = vld [vmem:[#allocation24 + $0x54] sm:$0xf]
    %v10491 = vld [vmem:[#allocation24 + $0x58] sm:$0xf]
    %v10492 = vld [vmem:[#allocation24 + $0x5c] sm:$0xf]
    %v10493 = vld [vmem:[#allocation24 + $0x60] sm:$0xf]
    %v10494 = vld [vmem:[#allocation24 + $0x64] sm:$0xf]
    %v10495 = vld [vmem:[#allocation24 + $0x68] sm:$0xf]
    %v10496 = vld [vmem:[#allocation24 + $0x6c] sm:$0xf]
    %v10497 = vld [vmem:[#allocation24 + $0x70] sm:$0xf]
    %v10498 = vld [vmem:[#allocation24 + $0x74] sm:$0xf]
    %v10499 = vld [vmem:[#allocation24 + $0x78] sm:$0xf]
    %v10500 = vld [vmem:[#allocation24 + $0x7c] sm:$0xf]
    %v10501 = vld [vmem:[#allocation24 + $0x80] sm:$0xf]
    %v10502 = vld [vmem:[#allocation24 + $0x84] sm:$0xf]
    %v10503 = vld [vmem:[#allocation24 + $0x88] sm:$0xf]
    %v10504 = vld [vmem:[#allocation24 + $0x8c] sm:$0xf]
    %v10505 = vld [vmem:[#allocation24 + $0x90] sm:$0xf]
    %v10506 = vld [vmem:[#allocation24 + $0x94] sm:$0xf]
    %v10507 = vld [vmem:[#allocation24 + $0x98] sm:$0xf]
    %v10508 = vld [vmem:[#allocation24 + $0x9c] sm:$0xf]
    %v10509 = vld [vmem:[#allocation24 + $0xa0] sm:$0xf]
    %v10510 = vld [vmem:[#allocation24 + $0xa4] sm:$0xf]
    %v10511 = vld [vmem:[#allocation24 + $0xa8] sm:$0xf]
    %v10512 = vld [vmem:[#allocation24 + $0xac] sm:$0xf]
    %v10513 = vld [vmem:[#allocation24 + $0xb0] sm:$0xf]
    %v10514 = vld [vmem:[#allocation24 + $0xb4] sm:$0xf]
    %v10515 = vld [vmem:[#allocation24 + $0xb8] sm:$0xf]
    %v10516 = vld [vmem:[#allocation24 + $0xbc] sm:$0xf]
    %v10517 = vld [vmem:[#allocation24 + $0xc0] sm:$0xf]
    %v10518 = vld [vmem:[#allocation24 + $0xc4] sm:$0xf]
    %v10519 = vld [vmem:[#allocation24 + $0xc8] sm:$0xf]
    %v10520 = vld [vmem:[#allocation24 + $0xcc] sm:$0xf]
    %v10521 = vld [vmem:[#allocation24 + $0xd0] sm:$0xf]
    %v10522 = vld [vmem:[#allocation24 + $0xd4] sm:$0xf]
    %v10523 = vld [vmem:[#allocation24 + $0xd8] sm:$0xf]
    %v10524 = vld [vmem:[#allocation24 + $0xdc] sm:$0xf]
    %v10525 = vld [vmem:[#allocation24 + $0xe0] sm:$0xf]
    %v10526 = vld [vmem:[#allocation24 + $0xe4] sm:$0xf]
    %v10527 = vld [vmem:[#allocation24 + $0xe8] sm:$0xf]
    %v10528 = vld [vmem:[#allocation24 + $0xec] sm:$0xf]
    %v10529 = vld [vmem:[#allocation24 + $0xf0] sm:$0xf]
    %v10530 = vld [vmem:[#allocation24 + $0xf4] sm:$0xf]
    %v10531 = vld [vmem:[#allocation24 + $0xf8] sm:$0xf]
    %v10532 = vld [vmem:[#allocation24 + $0xfc] sm:$0xf]
    %v10533 = vld [vmem:[#allocation26] sm:$0x1]
    %v10535 = vlaneseq
    %v10536 = vshrl.u32 %v10535, 7
    %v10537 = vsub.s32 0, %v10536
    %v10538 = vrot.slane %v10533, %v10537
    %v10604 = vunpack.c.l.b16 %v10469
    %v10605 = vunpack.c.l.b16 %v10470
    %v10606 = vunpack.c.l.b16 %v10471
    %v10607 = vunpack.c.l.b16 %v10472
    %v10608 = vunpack.c.l.b16 %v10473
    %v10609 = vunpack.c.l.b16 %v10474
    %v10610 = vunpack.c.l.b16 %v10475
    %v10611 = vunpack.c.l.b16 %v10476
    %v10612 = vunpack.c.l.b16 %v10477
    %v10613 = vunpack.c.l.b16 %v10478
    %v10614 = vunpack.c.l.b16 %v10479
    %v10615 = vunpack.c.l.b16 %v10480
    %v10616 = vunpack.c.l.b16 %v10481
    %v10617 = vunpack.c.l.b16 %v10482
    %v10618 = vunpack.c.l.b16 %v10483
    %v10619 = vunpack.c.l.b16 %v10484
    %v10620 = vunpack.c.l.b16 %v10485
    %v10621 = vunpack.c.l.b16 %v10486
    %v10622 = vunpack.c.l.b16 %v10487
    %v10623 = vunpack.c.l.b16 %v10488
    %v10624 = vunpack.c.l.b16 %v10489
    %v10625 = vunpack.c.l.b16 %v10490
    %v10626 = vunpack.c.l.b16 %v10491
    %v10627 = vunpack.c.l.b16 %v10492
    %v10628 = vunpack.c.l.b16 %v10493
    %v10629 = vunpack.c.l.b16 %v10494
    %v10630 = vunpack.c.l.b16 %v10495
    %v10631 = vunpack.c.l.b16 %v10496
    %v10632 = vunpack.c.l.b16 %v10497
    %v10633 = vunpack.c.l.b16 %v10498
    %v10634 = vunpack.c.l.b16 %v10499
    %v10635 = vunpack.c.l.b16 %v10500
    %v10636 = vunpack.c.l.b16 %v10501
    %v10637 = vunpack.c.l.b16 %v10502
    %v10638 = vunpack.c.l.b16 %v10503
    %v10639 = vunpack.c.l.b16 %v10504
    %v10640 = vunpack.c.l.b16 %v10505
    %v10641 = vunpack.c.l.b16 %v10506
    %v10642 = vunpack.c.l.b16 %v10507
    %v10643 = vunpack.c.l.b16 %v10508
    %v10644 = vunpack.c.l.b16 %v10509
    %v10645 = vunpack.c.l.b16 %v10510
    %v10646 = vunpack.c.l.b16 %v10511
    %v10647 = vunpack.c.l.b16 %v10512
    %v10648 = vunpack.c.l.b16 %v10513
    %v10649 = vunpack.c.l.b16 %v10514
    %v10650 = vunpack.c.l.b16 %v10515
    %v10651 = vunpack.c.l.b16 %v10516
    %v10652 = vunpack.c.l.b16 %v10517
    %v10653 = vunpack.c.l.b16 %v10518
    %v10654 = vunpack.c.l.b16 %v10519
    %v10655 = vunpack.c.l.b16 %v10520
    %v10656 = vunpack.c.l.b16 %v10521
    %v10657 = vunpack.c.l.b16 %v10522
    %v10658 = vunpack.c.l.b16 %v10523
    %v10659 = vunpack.c.l.b16 %v10524
    %v10660 = vunpack.c.l.b16 %v10525
    %v10661 = vunpack.c.l.b16 %v10526
    %v10662 = vunpack.c.l.b16 %v10527
    %v10663 = vunpack.c.l.b16 %v10528
    %v10664 = vunpack.c.l.b16 %v10529
    %v10665 = vunpack.c.l.b16 %v10530
    %v10666 = vunpack.c.l.b16 %v10531
    %v10667 = vunpack.c.l.b16 %v10532
    %v10668 = vpack.c.b16 %v10605, %v10604
    %v10669 = vpack.c.b16 %v10607, %v10606
    %v10670 = vpack.c.b16 %v10609, %v10608
    %v10671 = vpack.c.b16 %v10611, %v10610
    %v10672 = vpack.c.b16 %v10613, %v10612
    %v10673 = vpack.c.b16 %v10615, %v10614
    %v10674 = vpack.c.b16 %v10617, %v10616
    %v10675 = vpack.c.b16 %v10619, %v10618
    %v10676 = vpack.c.b16 %v10621, %v10620
    %v10677 = vpack.c.b16 %v10623, %v10622
    %v10678 = vpack.c.b16 %v10625, %v10624
    %v10679 = vpack.c.b16 %v10627, %v10626
    %v10680 = vpack.c.b16 %v10629, %v10628
    %v10681 = vpack.c.b16 %v10631, %v10630
    %v10682 = vpack.c.b16 %v10633, %v10632
    %v10683 = vpack.c.b16 %v10635, %v10634
    %v10684 = vpack.c.b16 %v10637, %v10636
    %v10685 = vpack.c.b16 %v10639, %v10638
    %v10686 = vpack.c.b16 %v10641, %v10640
    %v10687 = vpack.c.b16 %v10643, %v10642
    %v10688 = vpack.c.b16 %v10645, %v10644
    %v10689 = vpack.c.b16 %v10647, %v10646
    %v10690 = vpack.c.b16 %v10649, %v10648
    %v10691 = vpack.c.b16 %v10651, %v10650
    %v10692 = vpack.c.b16 %v10653, %v10652
    %v10693 = vpack.c.b16 %v10655, %v10654
    %v10694 = vpack.c.b16 %v10657, %v10656
    %v10695 = vpack.c.b16 %v10659, %v10658
    %v10696 = vpack.c.b16 %v10661, %v10660
    %v10697 = vpack.c.b16 %v10663, %v10662
    %v10698 = vpack.c.b16 %v10665, %v10664
    %v10699 = vpack.c.b16 %v10667, %v10666
    %10732 = vmatprep.subr.bf16.mxu0 0
    %10733 = vmatpush1.bf16.msra.mxu0 %v10675
    %10734 = vmatprep.subr.bf16.mxu0 0
    %10735 = vmatpush1.bf16.msra.mxu0 %v10674
    %10736 = vmatprep.subr.bf16.mxu0 0
    %10737 = vmatpush1.bf16.msra.mxu0 %v10673
    %10738 = vmatprep.subr.bf16.mxu0 0
    %10739 = vmatpush1.bf16.msra.mxu0 %v10672
    %10740 = vmatprep.subr.bf16.mxu0 0
    %10741 = vmatpush1.bf16.msra.mxu0 %v10671
    %10742 = vmatprep.subr.bf16.mxu0 0
    %10743 = vmatpush1.bf16.msra.mxu0 %v10670
    %10744 = vmatprep.subr.bf16.mxu0 0
    %10745 = vmatpush1.bf16.msra.mxu0 %v10669
    %10746 = vmatprep.subr.bf16.mxu0 0
    %10747 = vmatpush1.bf16.msra.mxu0 %v10668
    %10748 = vmatprep.subr.bf16.mxu0 0
    %10749 = vmatpush2.bf16.msra.mxu0 %v10683
    %10750 = vmatprep.subr.bf16.mxu0 0
    %10751 = vmatpush2.bf16.msra.mxu0 %v10682
    %10752 = vmatprep.subr.bf16.mxu0 0
    %10753 = vmatpush2.bf16.msra.mxu0 %v10681
    %10754 = vmatprep.subr.bf16.mxu0 0
    %10755 = vmatpush2.bf16.msra.mxu0 %v10680
    %10756 = vmatprep.subr.bf16.mxu0 0
    %10757 = vmatpush2.bf16.msra.mxu0 %v10679
    %10758 = vmatprep.subr.bf16.mxu0 0
    %10759 = vmatpush2.bf16.msra.mxu0 %v10678
    %10760 = vmatprep.subr.bf16.mxu0 0
    %10761 = vmatpush2.bf16.msra.mxu0 %v10677
    %10762 = vmatprep.subr.bf16.mxu0 0
    %10763 = vmatpush2.bf16.msra.mxu0 %v10676
    %10764 = vmatprep.mubr.bf16.mxu0 %v10466
    %10765 = vmatmul.mubr.bf16.gmra.mxu0 %v10465
    %v10766 = vpop.f32.mrf.mxu0
    %v10767 = vadd.f32 %v10538, %v10766
    %v10768 = vpop.f32.mrf.mxu0
    %v10769 = vpop.f32.mrf.mxu0
    %v10770 = vadd.f32 %v10538, %v10769
    %v10771 = vpop.f32.mrf.mxu0
    %10772 = vdwg.mxu0
    %10773 = vmatprep.subr.bf16.mxu0 0
    %10774 = vmatpush1.bf16.msra.mxu0 %v10691
    %10775 = vmatprep.subr.bf16.mxu0 0
    %10776 = vmatpush1.bf16.msra.mxu0 %v10690
    %10777 = vmatprep.subr.bf16.mxu0 0
    %10778 = vmatpush1.bf16.msra.mxu0 %v10689
    %10779 = vmatprep.subr.bf16.mxu0 0
    %10780 = vmatpush1.bf16.msra.mxu0 %v10688
    %10781 = vmatprep.subr.bf16.mxu0 0
    %10782 = vmatpush1.bf16.msra.mxu0 %v10687
    %10783 = vmatprep.subr.bf16.mxu0 0
    %10784 = vmatpush1.bf16.msra.mxu0 %v10686
    %10785 = vmatprep.subr.bf16.mxu0 0
    %10786 = vmatpush1.bf16.msra.mxu0 %v10685
    %10787 = vmatprep.subr.bf16.mxu0 0
    %10788 = vmatpush1.bf16.msra.mxu0 %v10684
    %10789 = vmatprep.subr.bf16.mxu0 0
    %10790 = vmatpush2.bf16.msra.mxu0 %v10699
    %10791 = vmatprep.subr.bf16.mxu0 0
    %10792 = vmatpush2.bf16.msra.mxu0 %v10698
    %10793 = vmatprep.subr.bf16.mxu0 0
    %10794 = vmatpush2.bf16.msra.mxu0 %v10697
    %10795 = vmatprep.subr.bf16.mxu0 0
    %10796 = vmatpush2.bf16.msra.mxu0 %v10696
    %10797 = vmatprep.subr.bf16.mxu0 0
    %10798 = vmatpush2.bf16.msra.mxu0 %v10695
    %10799 = vmatprep.subr.bf16.mxu0 0
    %10800 = vmatpush2.bf16.msra.mxu0 %v10694
    %10801 = vmatprep.subr.bf16.mxu0 0
    %10802 = vmatpush2.bf16.msra.mxu0 %v10693
    %10803 = vmatprep.subr.bf16.mxu0 0
    %10804 = vmatpush2.bf16.msra.mxu0 %v10692
    %10805 = vmatprep.mubr.bf16.mxu0 %v10468
    %10806 = vmatmul.mubr.bf16.gmra.mxu0 %v10467
    %v10807 = vpop.f32.mrf.mxu0
    %v10808 = vadd.f32 %v10767, %v10807
    %v10809 = vpop.f32.mrf.mxu0
    %v10810 = vpop.f32.mrf.mxu0
    %v10811 = vadd.f32 %v10770, %v10810
    %v10812 = vpop.f32.mrf.mxu0
    %10813 = vdwg.mxu0
    %v10814 = vxor.u32 %v10808, 2147483648
    %v10815 = vxor.u32 %v10811, 2147483648
    %v10816 = vmul.f32 %v10814, 1.442695
    %v10817 = vpow.pop %v10816
    %v10818 = vmul.f32 %v10815, 1.442695
    %v10819 = vpow.pop %v10818
    %v10820 = vadd.f32 %v10817, 1.0
    %v10821 = vadd.f32 %v10819, 1.0
    %v10822 = vrcp.pop %v10820
    %v10823 = vmul.f32 1.0, %v10822
    %v10824 = vrcp.pop %v10821
    %v10825 = vmul.f32 1.0, %v10824
    %10826 = vst [vmem:[#allocation27] sm:$0xff] %v10823
    %10827 = vst [vmem:[#allocation27 + $0x8] sm:$0xff] %v10825
    // Predicated region
    $region122: #{tpu_custom_call.1} parent=1 // pred_check
      _
    $region123: #{tpu_custom_call.1} parent=1 // pred_check_branch
      %10829 = sbr.rel (0) target = $region125
    $region124: #{tpu_custom_call.1} parent=1 // pred_region
      %s10831 = ssub.s32 256, 256
      %10832 = vsyncadd [#allocation5], %s10831
      %s10833 = sshll.u32 [#allocation27], 4
      %s10834 = int_to_ptr.vmem [resolvable:$true] %s10833
      %10839 = dma.vmem_to_hbm [thread:$0]  %s10834, 256, %s15, [#allocation5], 128, 128, 8
    $region125: #{tpu_custom_call.1} parent=1 // pred_fallthru
      _
    // Predicated region
    $region126: #{tpu_custom_call.1} parent=1 // pred_check
      _
    $region127: #{tpu_custom_call.1} parent=1 // pred_check_branch
      %10841 = sbr.rel (0) target = $region129
    $region128: #{tpu_custom_call.1} parent=1 // pred_region
      %10842 = dma.done [#allocation5], 256
    $region129: #{tpu_custom_call.1} parent=1 // pred_fallthru
      _
    %10843 = vsyncpa [#allocation4], 1
    %10844 = vsyncpa [#allocation7], 1
    %10845 = vsyncpa [#allocation10], 1
    %10846 = vsyncpa [#allocation13], 1
    %10847 = vsyncpa [#allocation16], 1
    %10848 = vsyncpa [#allocation19], 1
    %10849 = vsyncpa [#allocation22], 1
    %10850 = vsyncpa [#allocation25], 1
    %10851 = vsyncpa [#allocation5], 1

</llo_original>
